<compile_context>
chip_gen: v7x
topology: tpu7x:2x2x1
jax: 0.10.0
libtpu: 0.0.40
codegen_flags: <defaults>
</compile_context>

<pallas_src>
import math
import functools
import numpy as np
import jax
import jax.numpy as jnp
from jax import lax
from jax.experimental import pallas as pl
from jax.experimental.pallas import tpu as pltpu


# --------------------------------------------------------------------------
# In-kernel helpers (all f32 elementwise math)
# --------------------------------------------------------------------------
def _layernorm(x, w, b, eps=1e-5):
    # x: (M, C), w/b: (1, C)
    mu = jnp.mean(x, axis=-1, keepdims=True)
    var = jnp.mean((x - mu) ** 2, axis=-1, keepdims=True)
    return (x - mu) * lax.rsqrt(var + eps) * w + b


def _erf_approx(x):
    # Abramowitz & Stegun 7.1.26 rational approximation, |err| < 1.5e-7.
    a1, a2, a3, a4, a5 = 0.254829592, -0.284496736, 1.421413741, -1.453152027, 1.061405429
    p = 0.3275911
    ax = jnp.abs(x)
    t = 1.0 / (1.0 + p * ax)
    poly = ((((a5 * t + a4) * t + a3) * t + a2) * t + a1) * t
    y = 1.0 - poly * jnp.exp(-ax * ax)
    return jnp.where(x >= 0, y, -y)


def _gelu_exact(x):
    # torch.nn.GELU() default is the exact erf-based GELU.
    return 0.5 * x * (1.0 + _erf_approx(x * (1.0 / math.sqrt(2.0))))


# --------------------------------------------------------------------------
# Fused ViT forward kernel (single invocation; grid=(1,))
# --------------------------------------------------------------------------
def _vit_kernel(patches_ref, patch_w_ref, patch_b_ref, cls_ref, pos_ref,
                ln1w_ref, ln1b_ref, qkvw_ref, projw_ref, projb_ref,
                ln2w_ref, ln2b_ref, fc1w_ref, fc1b_ref, fc2w_ref, fc2b_ref,
                normw_ref, normb_ref,
                o_ref,
                tok_sc, head_sc,
                *, B, N, num_heads, depth, compute_dtype):
    cd = compute_dtype
    Np = N - 1

    def mm(a, w):
        # Cast MXU operands only; accumulate in f32.
        return jnp.dot(a.astype(cd), w.astype(cd), preferred_element_type=jnp.float32)

    # ---- patch embedding: im2col'd patches @ W + b (one MXU matmul) ----------
    emb = mm(patches_ref[...], patch_w_ref[...]) + patch_b_ref[...]          # (B*Np, C)

    # ---- token assembly: [cls; patches] + pos_embed (stays on-chip) ----------
    pos = pos_ref[...]                                                        # (N, C)
    cls_row = cls_ref[...] + pos[0:1, :]                                      # (1, C)
    pos_patches = pos[1:, :]                                                  # (Np, C)
    for b in range(B):
        tok_sc[b * N:b * N + 1, :] = cls_row
        tok_sc[b * N + 1:(b + 1) * N, :] = emb[b * Np:(b + 1) * Np, :] + pos_patches
    x = tok_sc[...]                                                           # (B*N, C) f32

    C = x.shape[-1]
    hd = C // num_heads

    # ---- transformer blocks (statically unrolled; weights VMEM-resident) -----
    # TODO(synk): for production ViT sizes (C=768, depth=12) the weights no longer
    # fit v7x's 64 MiB VMEM with double buffering; stream the stacked per-block
    # weights via a grid over depth + BlockSpec index_map instead.
    for d in range(depth):
        # ---- attention branch ----
        xn = _layernorm(x, ln1w_ref[d], ln1b_ref[d])
        qkv = mm(xn, qkvw_ref[d])                     # (B*N, 3C); q already scaled
        for b in range(B):
            qkv_b = qkv[b * N:(b + 1) * N, :]         # (N, 3C)
            for h in range(num_heads):
                qh = qkv_b[:, h * hd:(h + 1) * hd]
                kh = qkv_b[:, C + h * hd:C + (h + 1) * hd]
                vh = qkv_b[:, 2 * C + h * hd:2 * C + (h + 1) * hd]
                s = lax.dot_general(qh.astype(cd), kh.astype(cd),
                                    (((1,), (1,)), ((), ())),
                                    preferred_element_type=jnp.float32)       # (N, N)
                s = s - jnp.max(s, axis=-1, keepdims=True)
                p = jnp.exp(s)
                p = p * pl.reciprocal(jnp.sum(p, axis=-1, keepdims=True), approx=True)
                # write head output into the concat buffer (no per-head proj matmul)
                head_sc[b * N:(b + 1) * N, h * hd:(h + 1) * hd] = jnp.dot(
                    p.astype(cd), vh.astype(cd), preferred_element_type=jnp.float32)
        # single K=C output projection over all B*N rows
        y = mm(head_sc[...], projw_ref[d]) + projb_ref[d]
        x = x + y                                      # residual (DropPath = identity)

        # ---- MLP branch ----
        x1n = _layernorm(x, ln2w_ref[d], ln2b_ref[d])
        h1 = _gelu_exact(mm(x1n, fc1w_ref[d]) + fc1b_ref[d])
        x = x + mm(h1, fc2w_ref[d]) + fc2b_ref[d]

    # ---- final LayerNorm on the cls token only (only [:, 0] is returned) -----
    nw = normw_ref[...]
    nb = normb_ref[...]
    for b in range(B):
        o_ref[b:b + 1, :] = _layernorm(x[b * N:b * N + 1, :], nw, nb)


def _full_spec(shape):
    zeros = (0,) * len(shape)
    return pl.BlockSpec(shape, lambda i, _z=zeros: _z)


def vit_forward(x, params, *, patch_size, num_heads, compute_dtype=jnp.float32):
    B, Cin, H, W = x.shape
    P = patch_size
    nh, nw = H // P, W // P
    Np = nh * nw
    N = Np + 1
    D = params['pos_embed'].shape[-1]
    depth = len(params['blocks'])
    scale = (D // num_heads) ** (-0.5)

    # --- glue: im2col patch extraction (pure layout; Conv2d k=stride=patch) ---
    patches = (x.reshape(B, Cin, nh, P, nw, P)
                 .transpose(0, 2, 4, 1, 3, 5)
                 .reshape(B * Np, Cin * P * P)).astype(jnp.float32)
    patch_w2 = params['patch_w'].reshape(D, Cin * P * P).T                    # (K, D)

    # --- stack per-block weights along depth; fold attn scale into W_q --------
    stk = lambda name: jnp.stack([blk[name] for blk in params['blocks']], axis=0)
    qkv_w = stk('qkv_w').at[:, :, :D].multiply(scale)   # qkv_bias=False -> exact fold

    args = (patches, patch_w2, params['patch_b'].reshape(1, D),
            params['cls_token'].reshape(1, D), params['pos_embed'].reshape(N, D),
            stk('ln1_w'), stk('ln1_b'), qkv_w,
            stk('proj_w'), stk('proj_b'),
            stk('ln2_w'), stk('ln2_b'),
            stk('fc1_w'), stk('fc1_b'),
            stk('fc2_w'), stk('fc2_b'),
            params['norm_w'], params['norm_b'])

    kernel = functools.partial(_vit_kernel, B=B, N=N, num_heads=num_heads,
                               depth=depth, compute_dtype=compute_dtype)
    return pl.pallas_call(
        kernel,
        out_shape=jax.ShapeDtypeStruct((B, D), jnp.float32),
        grid=(1,),
        in_specs=[_full_spec(a.shape) for a in args],
        out_specs=_full_spec((B, D)),
        scratch_shapes=[pltpu.VMEM((B * N, D), jnp.float32),   # token assembly buffer
                        pltpu.VMEM((B * N, D), jnp.float32)],  # per-block head-concat buffer
    )(*args)


# --------------------------------------------------------------------------
# Deterministic parameter init (synthetic; approximates trunc_normal_(std=0.02))
# --------------------------------------------------------------------------
def init_params(key, *, in_chans, patch_size, embed_dim, depth, num_heads,
                mlp_ratio, num_patches):
    hidden = int(embed_dim * mlp_ratio)
    keys = iter(jax.random.split(key, 3 + 4 * depth))
    nrm = lambda k, shp: 0.02 * jax.random.normal(k, shp, jnp.float32)
    ones = lambda shp: jnp.ones(shp, jnp.float32)
    zeros = lambda shp: jnp.zeros(shp, jnp.float32)

    params = {
        'patch_w': nrm(next(keys), (embed_dim, in_chans, patch_size, patch_size)),
        'patch_b': zeros((embed_dim,)),
        'cls_token': nrm(next(keys), (1, 1, embed_dim)),
        'pos_embed': nrm(next(keys), (1, num_patches + 1, embed_dim)),
        'norm_w': ones((1, embed_dim)),
        'norm_b': zeros((1, embed_dim)),
        'blocks': [],
    }
    for _ in range(depth):
        params['blocks'].append({
            'ln1_w': ones((1, embed_dim)), 'ln1_b': zeros((1, embed_dim)),
            # Linear weights stored pre-transposed as (in, out) so kernels do x @ W
            'qkv_w': nrm(next(keys), (embed_dim, 3 * embed_dim)),   # qkv_bias=False
            'proj_w': nrm(next(keys), (embed_dim, embed_dim)),
            'proj_b': zeros((1, embed_dim)),
            'ln2_w': ones((1, embed_dim)), 'ln2_b': zeros((1, embed_dim)),
            'fc1_w': nrm(next(keys), (embed_dim, hidden)), 'fc1_b': zeros((1, hidden)),
            'fc2_w': nrm(next(keys), (hidden, embed_dim)), 'fc2_b': zeros((1, embed_dim)),
        })
    return params


# --------------------------------------------------------------------------
# Pure-JAX reference (mirrors the PyTorch forward) for a sanity check
# --------------------------------------------------------------------------
def _ln_ref(x, w, b, eps=1e-5):
    mu = x.mean(-1, keepdims=True)
    var = ((x - mu) ** 2).mean(-1, keepdims=True)
    return (x - mu) / jnp.sqrt(var + eps) * w + b


def _ref_block(x, p, num_heads):
    B, N, C = x.shape
    hd = C // num_heads
    scale = hd ** (-0.5)
    xn = _ln_ref(x, p['ln1_w'][0], p['ln1_b'][0])
    qkv = xn @ p['qkv_w']
    qkv = qkv.reshape(B, N, 3, num_heads, hd).transpose(2, 0, 3, 1, 4)
    q, k, v = qkv[0], qkv[1], qkv[2]
    attn = jnp.einsum('bhnd,bhmd->bhnm', q, k) * scale
    attn = jax.nn.softmax(attn, axis=-1)
    y = jnp.einsum('bhnm,bhmd->bhnd', attn, v).transpose(0, 2, 1, 3).reshape(B, N, C)
    y = y @ p['proj_w'] + p['proj_b'][0]
    x = x + y
    xn2 = _ln_ref(x, p['ln2_w'][0], p['ln2_b'][0])
    h = xn2 @ p['fc1_w'] + p['fc1_b'][0]
    h = 0.5 * h * (1.0 + lax.erf(h / math.sqrt(2.0)))     # exact GELU
    h = h @ p['fc2_w'] + p['fc2_b'][0]
    return x + h


def ref_forward(x, params, *, patch_size, num_heads):
    with jax.default_matmul_precision('float32'):
        B, Cin, H, W = x.shape
        P = patch_size
        nh, nw = H // P, W // P
        D = params['pos_embed'].shape[-1]
        patches = (x.reshape(B, Cin, nh, P, nw, P)
                     .transpose(0, 2, 4, 1, 3, 5)
                     .reshape(B, nh * nw, Cin * P * P))
        emb = patches @ params['patch_w'].reshape(D, -1).T + params['patch_b']
        cls = jnp.broadcast_to(params['cls_token'], (B, 1, D))
        t = jnp.concatenate([cls, emb], axis=1) + params['pos_embed']
        for p in params['blocks']:
            t = _ref_block(t, p, num_heads)
        t = _ln_ref(t, params['norm_w'][0], params['norm_b'][0])
        return t[:, 0]


# --------------------------------------------------------------------------
if __name__ == "__main__":
    B, C_in, H, W = 2, 3, 16, 16
    patch_size = 4
    embed_dim = 32
    depth = 2
    num_heads = 4
    mlp_ratio = 4.0
    num_patches = (H // patch_size) * (W // patch_size)

    key = jax.random.PRNGKey(0)
    k_x, k_p = jax.random.split(key)
    x = jax.random.normal(k_x, (B, C_in, H, W), jnp.float32)
    params = init_params(k_p, in_chans=C_in, patch_size=patch_size,
                         embed_dim=embed_dim, depth=depth, num_heads=num_heads,
                         mlp_ratio=mlp_ratio, num_patches=num_patches)

    ref = ref_forward(x, params, patch_size=patch_size, num_heads=num_heads)

    # f32 MXU inputs: matches the PyTorch/JAX reference tightly.
    fwd = jax.jit(functools.partial(vit_forward, patch_size=patch_size,
                                    num_heads=num_heads, compute_dtype=jnp.float32))
    out = jax.block_until_ready(fwd(x, params))
    assert out.shape == (B, embed_dim)
    np.testing.assert_allclose(np.asarray(out), np.asarray(ref), rtol=1e-2, atol=1e-2)

    # bf16 MXU inputs (LN / softmax / GELU / residuals stay f32): perf path for v6e/v7x.
    fwd_bf16 = jax.jit(functools.partial(vit_forward, patch_size=patch_size,
                                         num_heads=num_heads, compute_dtype=jnp.bfloat16))
    out_bf16 = jax.block_until_ready(fwd_bf16(x, params))
    np.testing.assert_allclose(np.asarray(out_bf16), np.asarray(ref), rtol=5e-2, atol=5e-2)

    print("KERNEL_OK")
</pallas_src>

<mosaic_0001>
module attributes {stable_mosaic.version = 11 : i64} {
  func.func @_vit_kernel(%arg0: i32, %arg1: memref<32x48xf32, #tpu.memory_space<vmem>>, %arg2: memref<48x32xf32, #tpu.memory_space<vmem>>, %arg3: memref<1x32xf32, #tpu.memory_space<vmem>>, %arg4: memref<1x32xf32, #tpu.memory_space<vmem>>, %arg5: memref<17x32xf32, #tpu.memory_space<vmem>>, %arg6: memref<2x1x32xf32, #tpu.memory_space<vmem>>, %arg7: memref<2x1x32xf32, #tpu.memory_space<vmem>>, %arg8: memref<2x32x96xf32, #tpu.memory_space<vmem>>, %arg9: memref<2x32x32xf32, #tpu.memory_space<vmem>>, %arg10: memref<2x1x32xf32, #tpu.memory_space<vmem>>, %arg11: memref<2x1x32xf32, #tpu.memory_space<vmem>>, %arg12: memref<2x1x32xf32, #tpu.memory_space<vmem>>, %arg13: memref<2x32x128xf32, #tpu.memory_space<vmem>>, %arg14: memref<2x1x128xf32, #tpu.memory_space<vmem>>, %arg15: memref<2x128x32xf32, #tpu.memory_space<vmem>>, %arg16: memref<2x1x32xf32, #tpu.memory_space<vmem>>, %arg17: memref<1x32xf32, #tpu.memory_space<vmem>>, %arg18: memref<1x32xf32, #tpu.memory_space<vmem>>, %arg19: memref<2x32xf32, #tpu.memory_space<vmem>>, %arg20: memref<34x32xf32, #tpu.memory_space<vmem>>, %arg21: memref<34x32xf32, #tpu.memory_space<vmem>>) attributes {dimension_semantics = [#tpu.dimension_semantics<arbitrary>], iteration_bounds = array<i64: 1>, scalar_prefetch = 0 : i64, scratch_operands = 2 : i64, tpu.core_type = #tpu.core_type<tc>, window_params = [{pipeline_mode = #tpu.pipeline_mode<synchronous>, transform_indices = @transform_0, window_bounds = array<i64: 32, 48>}, {pipeline_mode = #tpu.pipeline_mode<synchronous>, transform_indices = @transform_1, window_bounds = array<i64: 48, 32>}, {pipeline_mode = #tpu.pipeline_mode<synchronous>, transform_indices = @transform_2, window_bounds = array<i64: 1, 32>}, {pipeline_mode = #tpu.pipeline_mode<synchronous>, transform_indices = @transform_3, window_bounds = array<i64: 1, 32>}, {pipeline_mode = #tpu.pipeline_mode<synchronous>, transform_indices = @transform_4, window_bounds = array<i64: 17, 32>}, {pipeline_mode = #tpu.pipeline_mode<synchronous>, transform_indices = @transform_5, window_bounds = array<i64: 2, 1, 32>}, {pipeline_mode = #tpu.pipeline_mode<synchronous>, transform_indices = @transform_6, window_bounds = array<i64: 2, 1, 32>}, {pipeline_mode = #tpu.pipeline_mode<synchronous>, transform_indices = @transform_7, window_bounds = array<i64: 2, 32, 96>}, {pipeline_mode = #tpu.pipeline_mode<synchronous>, transform_indices = @transform_8, window_bounds = array<i64: 2, 32, 32>}, {pipeline_mode = #tpu.pipeline_mode<synchronous>, transform_indices = @transform_9, window_bounds = array<i64: 2, 1, 32>}, {pipeline_mode = #tpu.pipeline_mode<synchronous>, transform_indices = @transform_10, window_bounds = array<i64: 2, 1, 32>}, {pipeline_mode = #tpu.pipeline_mode<synchronous>, transform_indices = @transform_11, window_bounds = array<i64: 2, 1, 32>}, {pipeline_mode = #tpu.pipeline_mode<synchronous>, transform_indices = @transform_12, window_bounds = array<i64: 2, 32, 128>}, {pipeline_mode = #tpu.pipeline_mode<synchronous>, transform_indices = @transform_13, window_bounds = array<i64: 2, 1, 128>}, {pipeline_mode = #tpu.pipeline_mode<synchronous>, transform_indices = @transform_14, window_bounds = array<i64: 2, 128, 32>}, {pipeline_mode = #tpu.pipeline_mode<synchronous>, transform_indices = @transform_15, window_bounds = array<i64: 2, 1, 32>}, {pipeline_mode = #tpu.pipeline_mode<synchronous>, transform_indices = @transform_16, window_bounds = array<i64: 1, 32>}, {pipeline_mode = #tpu.pipeline_mode<synchronous>, transform_indices = @transform_17, window_bounds = array<i64: 1, 32>}, {pipeline_mode = #tpu.pipeline_mode<synchronous>, transform_indices = @transform_18, window_bounds = array<i64: 2, 32>}]} {
    %c0 = arith.constant 0 : index
    %c0_0 = arith.constant 0 : index
    %0 = vector.load %arg1[%c0, %c0_0] : memref<32x48xf32, #tpu.memory_space<vmem>>, vector<32x48xf32>
    %c0_1 = arith.constant 0 : index
    %c0_2 = arith.constant 0 : index
    %1 = vector.load %arg2[%c0_1, %c0_2] : memref<48x32xf32, #tpu.memory_space<vmem>>, vector<48x32xf32>
    %cst = arith.constant dense<0.000000e+00> : vector<32x32xf32>
    %2 = tpu.matmul %0, %1, %cst {dimension_numbers = #tpu.dot_dimension_numbers<[1], [0], [0], [1], [0, 0, 1, 1], [], []>} : vector<32x48xf32>, vector<48x32xf32>, vector<32x32xf32> -> vector<32x32xf32>
    %c0_3 = arith.constant 0 : index
    %c0_4 = arith.constant 0 : index
    %3 = vector.load %arg3[%c0_3, %c0_4] : memref<1x32xf32, #tpu.memory_space<vmem>>, vector<1x32xf32>
    %4 = vector.broadcast %3 : vector<1x32xf32> to vector<32x32xf32>
    %5 = arith.addf %2, %4 : vector<32x32xf32>
    %c0_5 = arith.constant 0 : index
    %c0_6 = arith.constant 0 : index
    %6 = vector.load %arg5[%c0_5, %c0_6] : memref<17x32xf32, #tpu.memory_space<vmem>>, vector<17x32xf32>
    %c0_7 = arith.constant 0 : index
    %c0_8 = arith.constant 0 : index
    %7 = vector.load %arg4[%c0_7, %c0_8] : memref<1x32xf32, #tpu.memory_space<vmem>>, vector<1x32xf32>
    %8 = vector.extract_strided_slice %6 {offsets = [0, 0], sizes = [1, 32], strides = [1, 1]} : vector<17x32xf32> to vector<1x32xf32>
    %9 = arith.addf %7, %8 : vector<1x32xf32>
    %10 = vector.extract_strided_slice %6 {offsets = [1, 0], sizes = [16, 32], strides = [1, 1]} : vector<17x32xf32> to vector<16x32xf32>
    %c0_9 = arith.constant 0 : index
    %c0_10 = arith.constant 0 : index
    %11 = vector.load %arg20[%c0_9, %c0_10] : memref<34x32xf32, #tpu.memory_space<vmem>>, vector<1x32xf32>
    tpu.vector_store %arg20[%c0_9, %c0_10], %9 {strides = array<i32>} : memref<34x32xf32, #tpu.memory_space<vmem>>, vector<1x32xf32>,
    %12 = vector.extract_strided_slice %5 {offsets = [0, 0], sizes = [16, 32], strides = [1, 1]} : vector<32x32xf32> to vector<16x32xf32>
    %13 = arith.addf %12, %10 : vector<16x32xf32>
    %c1 = arith.constant 1 : index
    %c0_11 = arith.constant 0 : index
    %14 = vector.load %arg20[%c1, %c0_11] : memref<34x32xf32, #tpu.memory_space<vmem>>, vector<16x32xf32>
    tpu.vector_store %arg20[%c1, %c0_11], %13 {strides = array<i32>} : memref<34x32xf32, #tpu.memory_space<vmem>>, vector<16x32xf32>,
    %c17 = arith.constant 17 : index
    %c0_12 = arith.constant 0 : index
    %15 = vector.load %arg20[%c17, %c0_12] : memref<34x32xf32, #tpu.memory_space<vmem>>, vector<1x32xf32>
    tpu.vector_store %arg20[%c17, %c0_12], %9 {strides = array<i32>} : memref<34x32xf32, #tpu.memory_space<vmem>>, vector<1x32xf32>,
    %16 = vector.extract_strided_slice %5 {offsets = [16, 0], sizes = [16, 32], strides = [1, 1]} : vector<32x32xf32> to vector<16x32xf32>
    %17 = arith.addf %16, %10 : vector<16x32xf32>
    %c18 = arith.constant 18 : index
    %c0_13 = arith.constant 0 : index
    %18 = vector.load %arg20[%c18, %c0_13] : memref<34x32xf32, #tpu.memory_space<vmem>>, vector<16x32xf32>
    tpu.vector_store %arg20[%c18, %c0_13], %17 {strides = array<i32>} : memref<34x32xf32, #tpu.memory_space<vmem>>, vector<16x32xf32>,
    %c0_14 = arith.constant 0 : index
    %c0_15 = arith.constant 0 : index
    %19 = vector.load %arg20[%c0_14, %c0_15] : memref<34x32xf32, #tpu.memory_space<vmem>>, vector<34x32xf32>
    %c0_16 = arith.constant 0 : index
    %c0_17 = arith.constant 0 : index
    %c0_18 = arith.constant 0 : index
    %20 = vector.load %arg6[%c0_16, %c0_17, %c0_18] : memref<2x1x32xf32, #tpu.memory_space<vmem>>, vector<1x1x32xf32>
    %21 = vector.shape_cast %20 : vector<1x1x32xf32> to vector<1x32xf32>
    %c0_19 = arith.constant 0 : index
    %c0_20 = arith.constant 0 : index
    %c0_21 = arith.constant 0 : index
    %22 = vector.load %arg7[%c0_19, %c0_20, %c0_21] : memref<2x1x32xf32, #tpu.memory_space<vmem>>, vector<1x1x32xf32>
    %23 = vector.shape_cast %22 : vector<1x1x32xf32> to vector<1x32xf32>
    %cst_22 = arith.constant dense<0.000000e+00> : vector<34xf32>
    %24 = vector.multi_reduction <add>, %19, %cst_22 [1] : vector<34x32xf32> to vector<34xf32>
    %25 = vector.shape_cast %24 : vector<34xf32> to vector<34x1xf32>
    %cst_23 = arith.constant 3.200000e+01 : f32
    %26 = vector.broadcast %cst_23 : f32 to vector<34x1xf32>
    %27 = arith.divf %25, %26 : vector<34x1xf32>
    %28 = vector.broadcast %27 : vector<34x1xf32> to vector<34x32xf32>
    %29 = arith.subf %19, %28 : vector<34x32xf32>
    %30 = arith.mulf %29, %29 : vector<34x32xf32>
    %cst_24 = arith.constant dense<0.000000e+00> : vector<34xf32>
    %31 = vector.multi_reduction <add>, %30, %cst_24 [1] : vector<34x32xf32> to vector<34xf32>
    %32 = vector.shape_cast %31 : vector<34xf32> to vector<34x1xf32>
    %cst_25 = arith.constant 3.200000e+01 : f32
    %33 = vector.broadcast %cst_25 : f32 to vector<34x1xf32>
    %34 = arith.divf %32, %33 : vector<34x1xf32>
    %35 = vector.broadcast %27 : vector<34x1xf32> to vector<34x32xf32>
    %36 = arith.subf %19, %35 : vector<34x32xf32>
    %cst_26 = arith.constant 9.99999974E-6 : f32
    %37 = vector.broadcast %cst_26 : f32 to vector<34x1xf32>
    %38 = arith.addf %34, %37 : vector<34x1xf32>
    %39 = math.rsqrt %38 : vector<34x1xf32>
    %40 = vector.broadcast %39 : vector<34x1xf32> to vector<34x32xf32>
    %41 = arith.mulf %36, %40 : vector<34x32xf32>
    %42 = vector.broadcast %21 : vector<1x32xf32> to vector<34x32xf32>
    %43 = arith.mulf %41, %42 : vector<34x32xf32>
    %44 = vector.broadcast %23 : vector<1x32xf32> to vector<34x32xf32>
    %45 = arith.addf %43, %44 : vector<34x32xf32>
    %c0_27 = arith.constant 0 : index
    %c0_28 = arith.constant 0 : index
    %c0_29 = arith.constant 0 : index
    %46 = vector.load %arg8[%c0_27, %c0_28, %c0_29] : memref<2x32x96xf32, #tpu.memory_space<vmem>>, vector<1x32x96xf32>
    %47 = vector.shape_cast %46 : vector<1x32x96xf32> to vector<32x96xf32>
    %cst_30 = arith.constant dense<0.000000e+00> : vector<34x96xf32>
    %48 = tpu.matmul %45, %47, %cst_30 {dimension_numbers = #tpu.dot_dimension_numbers<[1], [0], [0], [1], [0, 0, 1, 1], [], []>} : vector<34x32xf32>, vector<32x96xf32>, vector<34x96xf32> -> vector<34x96xf32>
    %49 = vector.extract_strided_slice %48 {offsets = [0, 0], sizes = [17, 96], strides = [1, 1]} : vector<34x96xf32> to vector<17x96xf32>
    %50 = vector.extract_strided_slice %49 {offsets = [0, 0], sizes = [17, 8], strides = [1, 1]} : vector<17x96xf32> to vector<17x8xf32>
    %51 = vector.extract_strided_slice %49 {offsets = [0, 32], sizes = [17, 8], strides = [1, 1]} : vector<17x96xf32> to vector<17x8xf32>
    %52 = vector.extract_strided_slice %49 {offsets = [0, 64], sizes = [17, 8], strides = [1, 1]} : vector<17x96xf32> to vector<17x8xf32>
    %cst_31 = arith.constant dense<0.000000e+00> : vector<17x17xf32>
    %53 = tpu.matmul %50, %51, %cst_31 {dimension_numbers = #tpu.dot_dimension_numbers<[1], [1], [0], [0], [0, 0, 1, 0], [], []>} : vector<17x8xf32>, vector<17x8xf32>, vector<17x17xf32> -> vector<17x17xf32>
    %cst_32 = arith.constant dense<0xFF800000> : vector<17xf32>
    %54 = vector.multi_reduction <maximumf>, %53, %cst_32 [1] : vector<17x17xf32> to vector<17xf32>
    %55 = vector.shape_cast %54 : vector<17xf32> to vector<17x1xf32>
    %56 = vector.broadcast %55 : vector<17x1xf32> to vector<17x17xf32>
    %57 = arith.subf %53, %56 : vector<17x17xf32>
    %58 = math.exp %57 : vector<17x17xf32>
    %cst_33 = arith.constant dense<0.000000e+00> : vector<17xf32>
    %59 = vector.multi_reduction <add>, %58, %cst_33 [1] : vector<17x17xf32> to vector<17xf32>
    %60 = vector.shape_cast %59 : vector<17xf32> to vector<17x1xf32>
    %61 = tpu.reciprocal %60 {approx = true} : vector<17x1xf32> -> vector<17x1xf32>
    %62 = vector.broadcast %61 : vector<17x1xf32> to vector<17x17xf32>
    %63 = arith.mulf %58, %62 : vector<17x17xf32>
    %cst_34 = arith.constant dense<0.000000e+00> : vector<17x8xf32>
    %64 = tpu.matmul %63, %52, %cst_34 {dimension_numbers = #tpu.dot_dimension_numbers<[1], [0], [0], [1], [0, 0, 1, 1], [], []>} : vector<17x17xf32>, vector<17x8xf32>, vector<17x8xf32> -> vector<17x8xf32>
    %c0_35 = arith.constant 0 : index
    %c0_36 = arith.constant 0 : index
    %65 = vector.load %arg21[%c0_35, %c0_36] : memref<34x32xf32, #tpu.memory_space<vmem>>, vector<17x8xf32>
    tpu.vector_store %arg21[%c0_35, %c0_36], %64 {strides = array<i32>} : memref<34x32xf32, #tpu.memory_space<vmem>>, vector<17x8xf32>,
    %66 = vector.extract_strided_slice %49 {offsets = [0, 8], sizes = [17, 8], strides = [1, 1]} : vector<17x96xf32> to vector<17x8xf32>
    %67 = vector.extract_strided_slice %49 {offsets = [0, 40], sizes = [17, 8], strides = [1, 1]} : vector<17x96xf32> to vector<17x8xf32>
    %68 = vector.extract_strided_slice %49 {offsets = [0, 72], sizes = [17, 8], strides = [1, 1]} : vector<17x96xf32> to vector<17x8xf32>
    %cst_37 = arith.constant dense<0.000000e+00> : vector<17x17xf32>
    %69 = tpu.matmul %66, %67, %cst_37 {dimension_numbers = #tpu.dot_dimension_numbers<[1], [1], [0], [0], [0, 0, 1, 0], [], []>} : vector<17x8xf32>, vector<17x8xf32>, vector<17x17xf32> -> vector<17x17xf32>
    %cst_38 = arith.constant dense<0xFF800000> : vector<17xf32>
    %70 = vector.multi_reduction <maximumf>, %69, %cst_38 [1] : vector<17x17xf32> to vector<17xf32>
    %71 = vector.shape_cast %70 : vector<17xf32> to vector<17x1xf32>
    %72 = vector.broadcast %71 : vector<17x1xf32> to vector<17x17xf32>
    %73 = arith.subf %69, %72 : vector<17x17xf32>
    %74 = math.exp %73 : vector<17x17xf32>
    %cst_39 = arith.constant dense<0.000000e+00> : vector<17xf32>
    %75 = vector.multi_reduction <add>, %74, %cst_39 [1] : vector<17x17xf32> to vector<17xf32>
    %76 = vector.shape_cast %75 : vector<17xf32> to vector<17x1xf32>
    %77 = tpu.reciprocal %76 {approx = true} : vector<17x1xf32> -> vector<17x1xf32>
    %78 = vector.broadcast %77 : vector<17x1xf32> to vector<17x17xf32>
    %79 = arith.mulf %74, %78 : vector<17x17xf32>
    %cst_40 = arith.constant dense<0.000000e+00> : vector<17x8xf32>
    %80 = tpu.matmul %79, %68, %cst_40 {dimension_numbers = #tpu.dot_dimension_numbers<[1], [0], [0], [1], [0, 0, 1, 1], [], []>} : vector<17x17xf32>, vector<17x8xf32>, vector<17x8xf32> -> vector<17x8xf32>
    %c0_41 = arith.constant 0 : index
    %c8 = arith.constant 8 : index
    %81 = vector.load %arg21[%c0_41, %c8] : memref<34x32xf32, #tpu.memory_space<vmem>>, vector<17x8xf32>
    tpu.vector_store %arg21[%c0_41, %c8], %80 {strides = array<i32>} : memref<34x32xf32, #tpu.memory_space<vmem>>, vector<17x8xf32>,
    %82 = vector.extract_strided_slice %49 {offsets = [0, 16], sizes = [17, 8], strides = [1, 1]} : vector<17x96xf32> to vector<17x8xf32>
    %83 = vector.extract_strided_slice %49 {offsets = [0, 48], sizes = [17, 8], strides = [1, 1]} : vector<17x96xf32> to vector<17x8xf32>
    %84 = vector.extract_strided_slice %49 {offsets = [0, 80], sizes = [17, 8], strides = [1, 1]} : vector<17x96xf32> to vector<17x8xf32>
    %cst_42 = arith.constant dense<0.000000e+00> : vector<17x17xf32>
    %85 = tpu.matmul %82, %83, %cst_42 {dimension_numbers = #tpu.dot_dimension_numbers<[1], [1], [0], [0], [0, 0, 1, 0], [], []>} : vector<17x8xf32>, vector<17x8xf32>, vector<17x17xf32> -> vector<17x17xf32>
    %cst_43 = arith.constant dense<0xFF800000> : vector<17xf32>
    %86 = vector.multi_reduction <maximumf>, %85, %cst_43 [1] : vector<17x17xf32> to vector<17xf32>
    %87 = vector.shape_cast %86 : vector<17xf32> to vector<17x1xf32>
    %88 = vector.broadcast %87 : vector<17x1xf32> to vector<17x17xf32>
    %89 = arith.subf %85, %88 : vector<17x17xf32>
    %90 = math.exp %89 : vector<17x17xf32>
    %cst_44 = arith.constant dense<0.000000e+00> : vector<17xf32>
    %91 = vector.multi_reduction <add>, %90, %cst_44 [1] : vector<17x17xf32> to vector<17xf32>
    %92 = vector.shape_cast %91 : vector<17xf32> to vector<17x1xf32>
    %93 = tpu.reciprocal %92 {approx = true} : vector<17x1xf32> -> vector<17x1xf32>
    %94 = vector.broadcast %93 : vector<17x1xf32> to vector<17x17xf32>
    %95 = arith.mulf %90, %94 : vector<17x17xf32>
    %cst_45 = arith.constant dense<0.000000e+00> : vector<17x8xf32>
    %96 = tpu.matmul %95, %84, %cst_45 {dimension_numbers = #tpu.dot_dimension_numbers<[1], [0], [0], [1], [0, 0, 1, 1], [], []>} : vector<17x17xf32>, vector<17x8xf32>, vector<17x8xf32> -> vector<17x8xf32>
    %c0_46 = arith.constant 0 : index
    %c16 = arith.constant 16 : index
    %97 = vector.load %arg21[%c0_46, %c16] : memref<34x32xf32, #tpu.memory_space<vmem>>, vector<17x8xf32>
    tpu.vector_store %arg21[%c0_46, %c16], %96 {strides = array<i32>} : memref<34x32xf32, #tpu.memory_space<vmem>>, vector<17x8xf32>,
    %98 = vector.extract_strided_slice %49 {offsets = [0, 24], sizes = [17, 8], strides = [1, 1]} : vector<17x96xf32> to vector<17x8xf32>
    %99 = vector.extract_strided_slice %49 {offsets = [0, 56], sizes = [17, 8], strides = [1, 1]} : vector<17x96xf32> to vector<17x8xf32>
    %100 = vector.extract_strided_slice %49 {offsets = [0, 88], sizes = [17, 8], strides = [1, 1]} : vector<17x96xf32> to vector<17x8xf32>
    %cst_47 = arith.constant dense<0.000000e+00> : vector<17x17xf32>
    %101 = tpu.matmul %98, %99, %cst_47 {dimension_numbers = #tpu.dot_dimension_numbers<[1], [1], [0], [0], [0, 0, 1, 0], [], []>} : vector<17x8xf32>, vector<17x8xf32>, vector<17x17xf32> -> vector<17x17xf32>
    %cst_48 = arith.constant dense<0xFF800000> : vector<17xf32>
    %102 = vector.multi_reduction <maximumf>, %101, %cst_48 [1] : vector<17x17xf32> to vector<17xf32>
    %103 = vector.shape_cast %102 : vector<17xf32> to vector<17x1xf32>
    %104 = vector.broadcast %103 : vector<17x1xf32> to vector<17x17xf32>
    %105 = arith.subf %101, %104 : vector<17x17xf32>
    %106 = math.exp %105 : vector<17x17xf32>
    %cst_49 = arith.constant dense<0.000000e+00> : vector<17xf32>
    %107 = vector.multi_reduction <add>, %106, %cst_49 [1] : vector<17x17xf32> to vector<17xf32>
    %108 = vector.shape_cast %107 : vector<17xf32> to vector<17x1xf32>
    %109 = tpu.reciprocal %108 {approx = true} : vector<17x1xf32> -> vector<17x1xf32>
    %110 = vector.broadcast %109 : vector<17x1xf32> to vector<17x17xf32>
    %111 = arith.mulf %106, %110 : vector<17x17xf32>
    %cst_50 = arith.constant dense<0.000000e+00> : vector<17x8xf32>
    %112 = tpu.matmul %111, %100, %cst_50 {dimension_numbers = #tpu.dot_dimension_numbers<[1], [0], [0], [1], [0, 0, 1, 1], [], []>} : vector<17x17xf32>, vector<17x8xf32>, vector<17x8xf32> -> vector<17x8xf32>
    %c0_51 = arith.constant 0 : index
    %c24 = arith.constant 24 : index
    %113 = vector.load %arg21[%c0_51, %c24] : memref<34x32xf32, #tpu.memory_space<vmem>>, vector<17x8xf32>
    tpu.vector_store %arg21[%c0_51, %c24], %112 {strides = array<i32>} : memref<34x32xf32, #tpu.memory_space<vmem>>, vector<17x8xf32>,
    %114 = vector.extract_strided_slice %48 {offsets = [17, 0], sizes = [17, 96], strides = [1, 1]} : vector<34x96xf32> to vector<17x96xf32>
    %115 = vector.extract_strided_slice %114 {offsets = [0, 0], sizes = [17, 8], strides = [1, 1]} : vector<17x96xf32> to vector<17x8xf32>
    %116 = vector.extract_strided_slice %114 {offsets = [0, 32], sizes = [17, 8], strides = [1, 1]} : vector<17x96xf32> to vector<17x8xf32>
    %117 = vector.extract_strided_slice %114 {offsets = [0, 64], sizes = [17, 8], strides = [1, 1]} : vector<17x96xf32> to vector<17x8xf32>
    %cst_52 = arith.constant dense<0.000000e+00> : vector<17x17xf32>
    %118 = tpu.matmul %115, %116, %cst_52 {dimension_numbers = #tpu.dot_dimension_numbers<[1], [1], [0], [0], [0, 0, 1, 0], [], []>} : vector<17x8xf32>, vector<17x8xf32>, vector<17x17xf32> -> vector<17x17xf32>
    %cst_53 = arith.constant dense<0xFF800000> : vector<17xf32>
    %119 = vector.multi_reduction <maximumf>, %118, %cst_53 [1] : vector<17x17xf32> to vector<17xf32>
    %120 = vector.shape_cast %119 : vector<17xf32> to vector<17x1xf32>
    %121 = vector.broadcast %120 : vector<17x1xf32> to vector<17x17xf32>
    %122 = arith.subf %118, %121 : vector<17x17xf32>
    %123 = math.exp %122 : vector<17x17xf32>
    %cst_54 = arith.constant dense<0.000000e+00> : vector<17xf32>
    %124 = vector.multi_reduction <add>, %123, %cst_54 [1] : vector<17x17xf32> to vector<17xf32>
    %125 = vector.shape_cast %124 : vector<17xf32> to vector<17x1xf32>
    %126 = tpu.reciprocal %125 {approx = true} : vector<17x1xf32> -> vector<17x1xf32>
    %127 = vector.broadcast %126 : vector<17x1xf32> to vector<17x17xf32>
    %128 = arith.mulf %123, %127 : vector<17x17xf32>
    %cst_55 = arith.constant dense<0.000000e+00> : vector<17x8xf32>
    %129 = tpu.matmul %128, %117, %cst_55 {dimension_numbers = #tpu.dot_dimension_numbers<[1], [0], [0], [1], [0, 0, 1, 1], [], []>} : vector<17x17xf32>, vector<17x8xf32>, vector<17x8xf32> -> vector<17x8xf32>
    %c17_56 = arith.constant 17 : index
    %c0_57 = arith.constant 0 : index
    %130 = vector.load %arg21[%c17_56, %c0_57] : memref<34x32xf32, #tpu.memory_space<vmem>>, vector<17x8xf32>
    tpu.vector_store %arg21[%c17_56, %c0_57], %129 {strides = array<i32>} : memref<34x32xf32, #tpu.memory_space<vmem>>, vector<17x8xf32>,
    %131 = vector.extract_strided_slice %114 {offsets = [0, 8], sizes = [17, 8], strides = [1, 1]} : vector<17x96xf32> to vector<17x8xf32>
    %132 = vector.extract_strided_slice %114 {offsets = [0, 40], sizes = [17, 8], strides = [1, 1]} : vector<17x96xf32> to vector<17x8xf32>
    %133 = vector.extract_strided_slice %114 {offsets = [0, 72], sizes = [17, 8], strides = [1, 1]} : vector<17x96xf32> to vector<17x8xf32>
    %cst_58 = arith.constant dense<0.000000e+00> : vector<17x17xf32>
    %134 = tpu.matmul %131, %132, %cst_58 {dimension_numbers = #tpu.dot_dimension_numbers<[1], [1], [0], [0], [0, 0, 1, 0], [], []>} : vector<17x8xf32>, vector<17x8xf32>, vector<17x17xf32> -> vector<17x17xf32>
    %cst_59 = arith.constant dense<0xFF800000> : vector<17xf32>
    %135 = vector.multi_reduction <maximumf>, %134, %cst_59 [1] : vector<17x17xf32> to vector<17xf32>
    %136 = vector.shape_cast %135 : vector<17xf32> to vector<17x1xf32>
    %137 = vector.broadcast %136 : vector<17x1xf32> to vector<17x17xf32>
    %138 = arith.subf %134, %137 : vector<17x17xf32>
    %139 = math.exp %138 : vector<17x17xf32>
    %cst_60 = arith.constant dense<0.000000e+00> : vector<17xf32>
    %140 = vector.multi_reduction <add>, %139, %cst_60 [1] : vector<17x17xf32> to vector<17xf32>
    %141 = vector.shape_cast %140 : vector<17xf32> to vector<17x1xf32>
    %142 = tpu.reciprocal %141 {approx = true} : vector<17x1xf32> -> vector<17x1xf32>
    %143 = vector.broadcast %142 : vector<17x1xf32> to vector<17x17xf32>
    %144 = arith.mulf %139, %143 : vector<17x17xf32>
    %cst_61 = arith.constant dense<0.000000e+00> : vector<17x8xf32>
    %145 = tpu.matmul %144, %133, %cst_61 {dimension_numbers = #tpu.dot_dimension_numbers<[1], [0], [0], [1], [0, 0, 1, 1], [], []>} : vector<17x17xf32>, vector<17x8xf32>, vector<17x8xf32> -> vector<17x8xf32>
    %c17_62 = arith.constant 17 : index
    %c8_63 = arith.constant 8 : index
    %146 = vector.load %arg21[%c17_62, %c8_63] : memref<34x32xf32, #tpu.memory_space<vmem>>, vector<17x8xf32>
    tpu.vector_store %arg21[%c17_62, %c8_63], %145 {strides = array<i32>} : memref<34x32xf32, #tpu.memory_space<vmem>>, vector<17x8xf32>,
    %147 = vector.extract_strided_slice %114 {offsets = [0, 16], sizes = [17, 8], strides = [1, 1]} : vector<17x96xf32> to vector<17x8xf32>
    %148 = vector.extract_strided_slice %114 {offsets = [0, 48], sizes = [17, 8], strides = [1, 1]} : vector<17x96xf32> to vector<17x8xf32>
    %149 = vector.extract_strided_slice %114 {offsets = [0, 80], sizes = [17, 8], strides = [1, 1]} : vector<17x96xf32> to vector<17x8xf32>
    %cst_64 = arith.constant dense<0.000000e+00> : vector<17x17xf32>
    %150 = tpu.matmul %147, %148, %cst_64 {dimension_numbers = #tpu.dot_dimension_numbers<[1], [1], [0], [0], [0, 0, 1, 0], [], []>} : vector<17x8xf32>, vector<17x8xf32>, vector<17x17xf32> -> vector<17x17xf32>
    %cst_65 = arith.constant dense<0xFF800000> : vector<17xf32>
    %151 = vector.multi_reduction <maximumf>, %150, %cst_65 [1] : vector<17x17xf32> to vector<17xf32>
    %152 = vector.shape_cast %151 : vector<17xf32> to vector<17x1xf32>
    %153 = vector.broadcast %152 : vector<17x1xf32> to vector<17x17xf32>
    %154 = arith.subf %150, %153 : vector<17x17xf32>
    %155 = math.exp %154 : vector<17x17xf32>
    %cst_66 = arith.constant dense<0.000000e+00> : vector<17xf32>
    %156 = vector.multi_reduction <add>, %155, %cst_66 [1] : vector<17x17xf32> to vector<17xf32>
    %157 = vector.shape_cast %156 : vector<17xf32> to vector<17x1xf32>
    %158 = tpu.reciprocal %157 {approx = true} : vector<17x1xf32> -> vector<17x1xf32>
    %159 = vector.broadcast %158 : vector<17x1xf32> to vector<17x17xf32>
    %160 = arith.mulf %155, %159 : vector<17x17xf32>
    %cst_67 = arith.constant dense<0.000000e+00> : vector<17x8xf32>
    %161 = tpu.matmul %160, %149, %cst_67 {dimension_numbers = #tpu.dot_dimension_numbers<[1], [0], [0], [1], [0, 0, 1, 1], [], []>} : vector<17x17xf32>, vector<17x8xf32>, vector<17x8xf32> -> vector<17x8xf32>
    %c17_68 = arith.constant 17 : index
    %c16_69 = arith.constant 16 : index
    %162 = vector.load %arg21[%c17_68, %c16_69] : memref<34x32xf32, #tpu.memory_space<vmem>>, vector<17x8xf32>
    tpu.vector_store %arg21[%c17_68, %c16_69], %161 {strides = array<i32>} : memref<34x32xf32, #tpu.memory_space<vmem>>, vector<17x8xf32>,
    %163 = vector.extract_strided_slice %114 {offsets = [0, 24], sizes = [17, 8], strides = [1, 1]} : vector<17x96xf32> to vector<17x8xf32>
    %164 = vector.extract_strided_slice %114 {offsets = [0, 56], sizes = [17, 8], strides = [1, 1]} : vector<17x96xf32> to vector<17x8xf32>
    %165 = vector.extract_strided_slice %114 {offsets = [0, 88], sizes = [17, 8], strides = [1, 1]} : vector<17x96xf32> to vector<17x8xf32>
    %cst_70 = arith.constant dense<0.000000e+00> : vector<17x17xf32>
    %166 = tpu.matmul %163, %164, %cst_70 {dimension_numbers = #tpu.dot_dimension_numbers<[1], [1], [0], [0], [0, 0, 1, 0], [], []>} : vector<17x8xf32>, vector<17x8xf32>, vector<17x17xf32> -> vector<17x17xf32>
    %cst_71 = arith.constant dense<0xFF800000> : vector<17xf32>
    %167 = vector.multi_reduction <maximumf>, %166, %cst_71 [1] : vector<17x17xf32> to vector<17xf32>
    %168 = vector.shape_cast %167 : vector<17xf32> to vector<17x1xf32>
    %169 = vector.broadcast %168 : vector<17x1xf32> to vector<17x17xf32>
    %170 = arith.subf %166, %169 : vector<17x17xf32>
    %171 = math.exp %170 : vector<17x17xf32>
    %cst_72 = arith.constant dense<0.000000e+00> : vector<17xf32>
    %172 = vector.multi_reduction <add>, %171, %cst_72 [1] : vector<17x17xf32> to vector<17xf32>
    %173 = vector.shape_cast %172 : vector<17xf32> to vector<17x1xf32>
    %174 = tpu.reciprocal %173 {approx = true} : vector<17x1xf32> -> vector<17x1xf32>
    %175 = vector.broadcast %174 : vector<17x1xf32> to vector<17x17xf32>
    %176 = arith.mulf %171, %175 : vector<17x17xf32>
    %cst_73 = arith.constant dense<0.000000e+00> : vector<17x8xf32>
    %177 = tpu.matmul %176, %165, %cst_73 {dimension_numbers = #tpu.dot_dimension_numbers<[1], [0], [0], [1], [0, 0, 1, 1], [], []>} : vector<17x17xf32>, vector<17x8xf32>, vector<17x8xf32> -> vector<17x8xf32>
    %c17_74 = arith.constant 17 : index
    %c24_75 = arith.constant 24 : index
    %178 = vector.load %arg21[%c17_74, %c24_75] : memref<34x32xf32, #tpu.memory_space<vmem>>, vector<17x8xf32>
    tpu.vector_store %arg21[%c17_74, %c24_75], %177 {strides = array<i32>} : memref<34x32xf32, #tpu.memory_space<vmem>>, vector<17x8xf32>,
    %c0_76 = arith.constant 0 : index
    %c0_77 = arith.constant 0 : index
    %179 = vector.load %arg21[%c0_76, %c0_77] : memref<34x32xf32, #tpu.memory_space<vmem>>, vector<34x32xf32>
    %c0_78 = arith.constant 0 : index
    %c0_79 = arith.constant 0 : index
    %c0_80 = arith.constant 0 : index
    %180 = vector.load %arg9[%c0_78, %c0_79, %c0_80] : memref<2x32x32xf32, #tpu.memory_space<vmem>>, vector<1x32x32xf32>
    %181 = vector.shape_cast %180 : vector<1x32x32xf32> to vector<32x32xf32>
    %cst_81 = arith.constant dense<0.000000e+00> : vector<34x32xf32>
    %182 = tpu.matmul %179, %181, %cst_81 {dimension_numbers = #tpu.dot_dimension_numbers<[1], [0], [0], [1], [0, 0, 1, 1], [], []>} : vector<34x32xf32>, vector<32x32xf32>, vector<34x32xf32> -> vector<34x32xf32>
    %c0_82 = arith.constant 0 : index
    %c0_83 = arith.constant 0 : index
    %c0_84 = arith.constant 0 : index
    %183 = vector.load %arg10[%c0_82, %c0_83, %c0_84] : memref<2x1x32xf32, #tpu.memory_space<vmem>>, vector<1x1x32xf32>
    %184 = vector.shape_cast %183 : vector<1x1x32xf32> to vector<1x32xf32>
    %185 = vector.broadcast %184 : vector<1x32xf32> to vector<34x32xf32>
    %186 = arith.addf %182, %185 : vector<34x32xf32>
    %187 = arith.addf %19, %186 : vector<34x32xf32>
    %c0_85 = arith.constant 0 : index
    %c0_86 = arith.constant 0 : index
    %c0_87 = arith.constant 0 : index
    %188 = vector.load %arg11[%c0_85, %c0_86, %c0_87] : memref<2x1x32xf32, #tpu.memory_space<vmem>>, vector<1x1x32xf32>
    %189 = vector.shape_cast %188 : vector<1x1x32xf32> to vector<1x32xf32>
    %c0_88 = arith.constant 0 : index
    %c0_89 = arith.constant 0 : index
    %c0_90 = arith.constant 0 : index
    %190 = vector.load %arg12[%c0_88, %c0_89, %c0_90] : memref<2x1x32xf32, #tpu.memory_space<vmem>>, vector<1x1x32xf32>
    %191 = vector.shape_cast %190 : vector<1x1x32xf32> to vector<1x32xf32>
    %cst_91 = arith.constant dense<0.000000e+00> : vector<34xf32>
    %192 = vector.multi_reduction <add>, %187, %cst_91 [1] : vector<34x32xf32> to vector<34xf32>
    %193 = vector.shape_cast %192 : vector<34xf32> to vector<34x1xf32>
    %cst_92 = arith.constant 3.200000e+01 : f32
    %194 = vector.broadcast %cst_92 : f32 to vector<34x1xf32>
    %195 = arith.divf %193, %194 : vector<34x1xf32>
    %196 = vector.broadcast %195 : vector<34x1xf32> to vector<34x32xf32>
    %197 = arith.subf %187, %196 : vector<34x32xf32>
    %198 = arith.mulf %197, %197 : vector<34x32xf32>
    %cst_93 = arith.constant dense<0.000000e+00> : vector<34xf32>
    %199 = vector.multi_reduction <add>, %198, %cst_93 [1] : vector<34x32xf32> to vector<34xf32>
    %200 = vector.shape_cast %199 : vector<34xf32> to vector<34x1xf32>
    %cst_94 = arith.constant 3.200000e+01 : f32
    %201 = vector.broadcast %cst_94 : f32 to vector<34x1xf32>
    %202 = arith.divf %200, %201 : vector<34x1xf32>
    %203 = vector.broadcast %195 : vector<34x1xf32> to vector<34x32xf32>
    %204 = arith.subf %187, %203 : vector<34x32xf32>
    %cst_95 = arith.constant 9.99999974E-6 : f32
    %205 = vector.broadcast %cst_95 : f32 to vector<34x1xf32>
    %206 = arith.addf %202, %205 : vector<34x1xf32>
    %207 = math.rsqrt %206 : vector<34x1xf32>
    %208 = vector.broadcast %207 : vector<34x1xf32> to vector<34x32xf32>
    %209 = arith.mulf %204, %208 : vector<34x32xf32>
    %210 = vector.broadcast %189 : vector<1x32xf32> to vector<34x32xf32>
    %211 = arith.mulf %209, %210 : vector<34x32xf32>
    %212 = vector.broadcast %191 : vector<1x32xf32> to vector<34x32xf32>
    %213 = arith.addf %211, %212 : vector<34x32xf32>
    %c0_96 = arith.constant 0 : index
    %c0_97 = arith.constant 0 : index
    %c0_98 = arith.constant 0 : index
    %214 = vector.load %arg13[%c0_96, %c0_97, %c0_98] : memref<2x32x128xf32, #tpu.memory_space<vmem>>, vector<1x32x128xf32>
    %215 = vector.shape_cast %214 : vector<1x32x128xf32> to vector<32x128xf32>
    %cst_99 = arith.constant dense<0.000000e+00> : vector<34x128xf32>
    %216 = tpu.matmul %213, %215, %cst_99 {dimension_numbers = #tpu.dot_dimension_numbers<[1], [0], [0], [1], [0, 0, 1, 1], [], []>} : vector<34x32xf32>, vector<32x128xf32>, vector<34x128xf32> -> vector<34x128xf32>
    %c0_100 = arith.constant 0 : index
    %c0_101 = arith.constant 0 : index
    %c0_102 = arith.constant 0 : index
    %217 = vector.load %arg14[%c0_100, %c0_101, %c0_102] : memref<2x1x128xf32, #tpu.memory_space<vmem>>, vector<1x1x128xf32>
    %218 = vector.shape_cast %217 : vector<1x1x128xf32> to vector<1x128xf32>
    %219 = vector.broadcast %218 : vector<1x128xf32> to vector<34x128xf32>
    %220 = arith.addf %216, %219 : vector<34x128xf32>
    %cst_103 = arith.constant 5.000000e-01 : f32
    %221 = vector.broadcast %cst_103 : f32 to vector<34x128xf32>
    %222 = arith.mulf %221, %220 : vector<34x128xf32>
    %cst_104 = arith.constant 0.707106769 : f32
    %223 = vector.broadcast %cst_104 : f32 to vector<34x128xf32>
    %224 = arith.mulf %220, %223 : vector<34x128xf32>
    %225 = math.absf %224 : vector<34x128xf32>
    %cst_105 = arith.constant 0.327591091 : f32
    %226 = vector.broadcast %cst_105 : f32 to vector<34x128xf32>
    %227 = arith.mulf %226, %225 : vector<34x128xf32>
    %cst_106 = arith.constant 1.000000e+00 : f32
    %228 = vector.broadcast %cst_106 : f32 to vector<34x128xf32>
    %229 = arith.addf %228, %227 : vector<34x128xf32>
    %cst_107 = arith.constant 1.000000e+00 : f32
    %230 = vector.broadcast %cst_107 : f32 to vector<34x128xf32>
    %231 = arith.divf %230, %229 : vector<34x128xf32>
    %cst_108 = arith.constant 1.06140542 : f32
    %232 = vector.broadcast %cst_108 : f32 to vector<34x128xf32>
    %233 = arith.mulf %232, %231 : vector<34x128xf32>
    %cst_109 = arith.constant -1.45315206 : f32
    %234 = vector.broadcast %cst_109 : f32 to vector<34x128xf32>
    %235 = arith.addf %233, %234 : vector<34x128xf32>
    %236 = arith.mulf %235, %231 : vector<34x128xf32>
    %cst_110 = arith.constant 1.42141378 : f32
    %237 = vector.broadcast %cst_110 : f32 to vector<34x128xf32>
    %238 = arith.addf %236, %237 : vector<34x128xf32>
    %239 = arith.mulf %238, %231 : vector<34x128xf32>
    %cst_111 = arith.constant -0.284496725 : f32
    %240 = vector.broadcast %cst_111 : f32 to vector<34x128xf32>
    %241 = arith.addf %239, %240 : vector<34x128xf32>
    %242 = arith.mulf %241, %231 : vector<34x128xf32>
    %cst_112 = arith.constant 0.254829586 : f32
    %243 = vector.broadcast %cst_112 : f32 to vector<34x128xf32>
    %244 = arith.addf %242, %243 : vector<34x128xf32>
    %245 = arith.mulf %244, %231 : vector<34x128xf32>
    %cst_113 = arith.constant 0.000000e+00 : f32
    %246 = vector.broadcast %cst_113 : f32 to vector<34x128xf32>
    %247 = arith.subf %246, %225 : vector<34x128xf32>
    %248 = arith.mulf %247, %225 : vector<34x128xf32>
    %249 = math.exp %248 : vector<34x128xf32>
    %250 = arith.mulf %245, %249 : vector<34x128xf32>
    %cst_114 = arith.constant 1.000000e+00 : f32
    %251 = vector.broadcast %cst_114 : f32 to vector<34x128xf32>
    %252 = arith.subf %251, %250 : vector<34x128xf32>
    %cst_115 = arith.constant 0.000000e+00 : f32
    %253 = vector.broadcast %cst_115 : f32 to vector<34x128xf32>
    %254 = arith.cmpf oge, %224, %253 : vector<34x128xf32>
    %cst_116 = arith.constant 0.000000e+00 : f32
    %255 = vector.broadcast %cst_116 : f32 to vector<34x128xf32>
    %256 = arith.subf %255, %252 : vector<34x128xf32>
    %257 = arith.select %254, %252, %256 : vector<34x128xi1>, vector<34x128xf32>
    %cst_117 = arith.constant 1.000000e+00 : f32
    %258 = vector.broadcast %cst_117 : f32 to vector<34x128xf32>
    %259 = arith.addf %258, %257 : vector<34x128xf32>
    %260 = arith.mulf %222, %259 : vector<34x128xf32>
    %c0_118 = arith.constant 0 : index
    %c0_119 = arith.constant 0 : index
    %c0_120 = arith.constant 0 : index
    %261 = vector.load %arg15[%c0_118, %c0_119, %c0_120] : memref<2x128x32xf32, #tpu.memory_space<vmem>>, vector<1x128x32xf32>
    %262 = vector.shape_cast %261 : vector<1x128x32xf32> to vector<128x32xf32>
    %cst_121 = arith.constant dense<0.000000e+00> : vector<34x32xf32>
    %263 = tpu.matmul %260, %262, %cst_121 {dimension_numbers = #tpu.dot_dimension_numbers<[1], [0], [0], [1], [0, 0, 1, 1], [], []>} : vector<34x128xf32>, vector<128x32xf32>, vector<34x32xf32> -> vector<34x32xf32>
    %264 = arith.addf %187, %263 : vector<34x32xf32>
    %c0_122 = arith.constant 0 : index
    %c0_123 = arith.constant 0 : index
    %c0_124 = arith.constant 0 : index
    %265 = vector.load %arg16[%c0_122, %c0_123, %c0_124] : memref<2x1x32xf32, #tpu.memory_space<vmem>>, vector<1x1x32xf32>
    %266 = vector.shape_cast %265 : vector<1x1x32xf32> to vector<1x32xf32>
    %267 = vector.broadcast %266 : vector<1x32xf32> to vector<34x32xf32>
    %268 = arith.addf %264, %267 : vector<34x32xf32>
    %c1_125 = arith.constant 1 : index
    %c0_126 = arith.constant 0 : index
    %c0_127 = arith.constant 0 : index
    %269 = vector.load %arg6[%c1_125, %c0_126, %c0_127] : memref<2x1x32xf32, #tpu.memory_space<vmem>>, vector<1x1x32xf32>
    %270 = vector.shape_cast %269 : vector<1x1x32xf32> to vector<1x32xf32>
    %c1_128 = arith.constant 1 : index
    %c0_129 = arith.constant 0 : index
    %c0_130 = arith.constant 0 : index
    %271 = vector.load %arg7[%c1_128, %c0_129, %c0_130] : memref<2x1x32xf32, #tpu.memory_space<vmem>>, vector<1x1x32xf32>
    %272 = vector.shape_cast %271 : vector<1x1x32xf32> to vector<1x32xf32>
    %cst_131 = arith.constant dense<0.000000e+00> : vector<34xf32>
    %273 = vector.multi_reduction <add>, %268, %cst_131 [1] : vector<34x32xf32> to vector<34xf32>
    %274 = vector.shape_cast %273 : vector<34xf32> to vector<34x1xf32>
    %cst_132 = arith.constant 3.200000e+01 : f32
    %275 = vector.broadcast %cst_132 : f32 to vector<34x1xf32>
    %276 = arith.divf %274, %275 : vector<34x1xf32>
    %277 = vector.broadcast %276 : vector<34x1xf32> to vector<34x32xf32>
    %278 = arith.subf %268, %277 : vector<34x32xf32>
    %279 = arith.mulf %278, %278 : vector<34x32xf32>
    %cst_133 = arith.constant dense<0.000000e+00> : vector<34xf32>
    %280 = vector.multi_reduction <add>, %279, %cst_133 [1] : vector<34x32xf32> to vector<34xf32>
    %281 = vector.shape_cast %280 : vector<34xf32> to vector<34x1xf32>
    %cst_134 = arith.constant 3.200000e+01 : f32
    %282 = vector.broadcast %cst_134 : f32 to vector<34x1xf32>
    %283 = arith.divf %281, %282 : vector<34x1xf32>
    %284 = vector.broadcast %276 : vector<34x1xf32> to vector<34x32xf32>
    %285 = arith.subf %268, %284 : vector<34x32xf32>
    %cst_135 = arith.constant 9.99999974E-6 : f32
    %286 = vector.broadcast %cst_135 : f32 to vector<34x1xf32>
    %287 = arith.addf %283, %286 : vector<34x1xf32>
    %288 = math.rsqrt %287 : vector<34x1xf32>
    %289 = vector.broadcast %288 : vector<34x1xf32> to vector<34x32xf32>
    %290 = arith.mulf %285, %289 : vector<34x32xf32>
    %291 = vector.broadcast %270 : vector<1x32xf32> to vector<34x32xf32>
    %292 = arith.mulf %290, %291 : vector<34x32xf32>
    %293 = vector.broadcast %272 : vector<1x32xf32> to vector<34x32xf32>
    %294 = arith.addf %292, %293 : vector<34x32xf32>
    %c1_136 = arith.constant 1 : index
    %c0_137 = arith.constant 0 : index
    %c0_138 = arith.constant 0 : index
    %295 = vector.load %arg8[%c1_136, %c0_137, %c0_138] : memref<2x32x96xf32, #tpu.memory_space<vmem>>, vector<1x32x96xf32>
    %296 = vector.shape_cast %295 : vector<1x32x96xf32> to vector<32x96xf32>
    %cst_139 = arith.constant dense<0.000000e+00> : vector<34x96xf32>
    %297 = tpu.matmul %294, %296, %cst_139 {dimension_numbers = #tpu.dot_dimension_numbers<[1], [0], [0], [1], [0, 0, 1, 1], [], []>} : vector<34x32xf32>, vector<32x96xf32>, vector<34x96xf32> -> vector<34x96xf32>
    %298 = vector.extract_strided_slice %297 {offsets = [0, 0], sizes = [17, 96], strides = [1, 1]} : vector<34x96xf32> to vector<17x96xf32>
    %299 = vector.extract_strided_slice %298 {offsets = [0, 0], sizes = [17, 8], strides = [1, 1]} : vector<17x96xf32> to vector<17x8xf32>
    %300 = vector.extract_strided_slice %298 {offsets = [0, 32], sizes = [17, 8], strides = [1, 1]} : vector<17x96xf32> to vector<17x8xf32>
    %301 = vector.extract_strided_slice %298 {offsets = [0, 64], sizes = [17, 8], strides = [1, 1]} : vector<17x96xf32> to vector<17x8xf32>
    %cst_140 = arith.constant dense<0.000000e+00> : vector<17x17xf32>
    %302 = tpu.matmul %299, %300, %cst_140 {dimension_numbers = #tpu.dot_dimension_numbers<[1], [1], [0], [0], [0, 0, 1, 0], [], []>} : vector<17x8xf32>, vector<17x8xf32>, vector<17x17xf32> -> vector<17x17xf32>
    %cst_141 = arith.constant dense<0xFF800000> : vector<17xf32>
    %303 = vector.multi_reduction <maximumf>, %302, %cst_141 [1] : vector<17x17xf32> to vector<17xf32>
    %304 = vector.shape_cast %303 : vector<17xf32> to vector<17x1xf32>
    %305 = vector.broadcast %304 : vector<17x1xf32> to vector<17x17xf32>
    %306 = arith.subf %302, %305 : vector<17x17xf32>
    %307 = math.exp %306 : vector<17x17xf32>
    %cst_142 = arith.constant dense<0.000000e+00> : vector<17xf32>
    %308 = vector.multi_reduction <add>, %307, %cst_142 [1] : vector<17x17xf32> to vector<17xf32>
    %309 = vector.shape_cast %308 : vector<17xf32> to vector<17x1xf32>
    %310 = tpu.reciprocal %309 {approx = true} : vector<17x1xf32> -> vector<17x1xf32>
    %311 = vector.broadcast %310 : vector<17x1xf32> to vector<17x17xf32>
    %312 = arith.mulf %307, %311 : vector<17x17xf32>
    %cst_143 = arith.constant dense<0.000000e+00> : vector<17x8xf32>
    %313 = tpu.matmul %312, %301, %cst_143 {dimension_numbers = #tpu.dot_dimension_numbers<[1], [0], [0], [1], [0, 0, 1, 1], [], []>} : vector<17x17xf32>, vector<17x8xf32>, vector<17x8xf32> -> vector<17x8xf32>
    %c0_144 = arith.constant 0 : index
    %c0_145 = arith.constant 0 : index
    %314 = vector.load %arg21[%c0_144, %c0_145] : memref<34x32xf32, #tpu.memory_space<vmem>>, vector<17x8xf32>
    tpu.vector_store %arg21[%c0_144, %c0_145], %313 {strides = array<i32>} : memref<34x32xf32, #tpu.memory_space<vmem>>, vector<17x8xf32>,
    %315 = vector.extract_strided_slice %298 {offsets = [0, 8], sizes = [17, 8], strides = [1, 1]} : vector<17x96xf32> to vector<17x8xf32>
    %316 = vector.extract_strided_slice %298 {offsets = [0, 40], sizes = [17, 8], strides = [1, 1]} : vector<17x96xf32> to vector<17x8xf32>
    %317 = vector.extract_strided_slice %298 {offsets = [0, 72], sizes = [17, 8], strides = [1, 1]} : vector<17x96xf32> to vector<17x8xf32>
    %cst_146 = arith.constant dense<0.000000e+00> : vector<17x17xf32>
    %318 = tpu.matmul %315, %316, %cst_146 {dimension_numbers = #tpu.dot_dimension_numbers<[1], [1], [0], [0], [0, 0, 1, 0], [], []>} : vector<17x8xf32>, vector<17x8xf32>, vector<17x17xf32> -> vector<17x17xf32>
    %cst_147 = arith.constant dense<0xFF800000> : vector<17xf32>
    %319 = vector.multi_reduction <maximumf>, %318, %cst_147 [1] : vector<17x17xf32> to vector<17xf32>
    %320 = vector.shape_cast %319 : vector<17xf32> to vector<17x1xf32>
    %321 = vector.broadcast %320 : vector<17x1xf32> to vector<17x17xf32>
    %322 = arith.subf %318, %321 : vector<17x17xf32>
    %323 = math.exp %322 : vector<17x17xf32>
    %cst_148 = arith.constant dense<0.000000e+00> : vector<17xf32>
    %324 = vector.multi_reduction <add>, %323, %cst_148 [1] : vector<17x17xf32> to vector<17xf32>
    %325 = vector.shape_cast %324 : vector<17xf32> to vector<17x1xf32>
    %326 = tpu.reciprocal %325 {approx = true} : vector<17x1xf32> -> vector<17x1xf32>
    %327 = vector.broadcast %326 : vector<17x1xf32> to vector<17x17xf32>
    %328 = arith.mulf %323, %327 : vector<17x17xf32>
    %cst_149 = arith.constant dense<0.000000e+00> : vector<17x8xf32>
    %329 = tpu.matmul %328, %317, %cst_149 {dimension_numbers = #tpu.dot_dimension_numbers<[1], [0], [0], [1], [0, 0, 1, 1], [], []>} : vector<17x17xf32>, vector<17x8xf32>, vector<17x8xf32> -> vector<17x8xf32>
    %c0_150 = arith.constant 0 : index
    %c8_151 = arith.constant 8 : index
    %330 = vector.load %arg21[%c0_150, %c8_151] : memref<34x32xf32, #tpu.memory_space<vmem>>, vector<17x8xf32>
    tpu.vector_store %arg21[%c0_150, %c8_151], %329 {strides = array<i32>} : memref<34x32xf32, #tpu.memory_space<vmem>>, vector<17x8xf32>,
    %331 = vector.extract_strided_slice %298 {offsets = [0, 16], sizes = [17, 8], strides = [1, 1]} : vector<17x96xf32> to vector<17x8xf32>
    %332 = vector.extract_strided_slice %298 {offsets = [0, 48], sizes = [17, 8], strides = [1, 1]} : vector<17x96xf32> to vector<17x8xf32>
    %333 = vector.extract_strided_slice %298 {offsets = [0, 80], sizes = [17, 8], strides = [1, 1]} : vector<17x96xf32> to vector<17x8xf32>
    %cst_152 = arith.constant dense<0.000000e+00> : vector<17x17xf32>
    %334 = tpu.matmul %331, %332, %cst_152 {dimension_numbers = #tpu.dot_dimension_numbers<[1], [1], [0], [0], [0, 0, 1, 0], [], []>} : vector<17x8xf32>, vector<17x8xf32>, vector<17x17xf32> -> vector<17x17xf32>
    %cst_153 = arith.constant dense<0xFF800000> : vector<17xf32>
    %335 = vector.multi_reduction <maximumf>, %334, %cst_153 [1] : vector<17x17xf32> to vector<17xf32>
    %336 = vector.shape_cast %335 : vector<17xf32> to vector<17x1xf32>
    %337 = vector.broadcast %336 : vector<17x1xf32> to vector<17x17xf32>
    %338 = arith.subf %334, %337 : vector<17x17xf32>
    %339 = math.exp %338 : vector<17x17xf32>
    %cst_154 = arith.constant dense<0.000000e+00> : vector<17xf32>
    %340 = vector.multi_reduction <add>, %339, %cst_154 [1] : vector<17x17xf32> to vector<17xf32>
    %341 = vector.shape_cast %340 : vector<17xf32> to vector<17x1xf32>
    %342 = tpu.reciprocal %341 {approx = true} : vector<17x1xf32> -> vector<17x1xf32>
    %343 = vector.broadcast %342 : vector<17x1xf32> to vector<17x17xf32>
    %344 = arith.mulf %339, %343 : vector<17x17xf32>
    %cst_155 = arith.constant dense<0.000000e+00> : vector<17x8xf32>
    %345 = tpu.matmul %344, %333, %cst_155 {dimension_numbers = #tpu.dot_dimension_numbers<[1], [0], [0], [1], [0, 0, 1, 1], [], []>} : vector<17x17xf32>, vector<17x8xf32>, vector<17x8xf32> -> vector<17x8xf32>
    %c0_156 = arith.constant 0 : index
    %c16_157 = arith.constant 16 : index
    %346 = vector.load %arg21[%c0_156, %c16_157] : memref<34x32xf32, #tpu.memory_space<vmem>>, vector<17x8xf32>
    tpu.vector_store %arg21[%c0_156, %c16_157], %345 {strides = array<i32>} : memref<34x32xf32, #tpu.memory_space<vmem>>, vector<17x8xf32>,
    %347 = vector.extract_strided_slice %298 {offsets = [0, 24], sizes = [17, 8], strides = [1, 1]} : vector<17x96xf32> to vector<17x8xf32>
    %348 = vector.extract_strided_slice %298 {offsets = [0, 56], sizes = [17, 8], strides = [1, 1]} : vector<17x96xf32> to vector<17x8xf32>
    %349 = vector.extract_strided_slice %298 {offsets = [0, 88], sizes = [17, 8], strides = [1, 1]} : vector<17x96xf32> to vector<17x8xf32>
    %cst_158 = arith.constant dense<0.000000e+00> : vector<17x17xf32>
    %350 = tpu.matmul %347, %348, %cst_158 {dimension_numbers = #tpu.dot_dimension_numbers<[1], [1], [0], [0], [0, 0, 1, 0], [], []>} : vector<17x8xf32>, vector<17x8xf32>, vector<17x17xf32> -> vector<17x17xf32>
    %cst_159 = arith.constant dense<0xFF800000> : vector<17xf32>
    %351 = vector.multi_reduction <maximumf>, %350, %cst_159 [1] : vector<17x17xf32> to vector<17xf32>
    %352 = vector.shape_cast %351 : vector<17xf32> to vector<17x1xf32>
    %353 = vector.broadcast %352 : vector<17x1xf32> to vector<17x17xf32>
    %354 = arith.subf %350, %353 : vector<17x17xf32>
    %355 = math.exp %354 : vector<17x17xf32>
    %cst_160 = arith.constant dense<0.000000e+00> : vector<17xf32>
    %356 = vector.multi_reduction <add>, %355, %cst_160 [1] : vector<17x17xf32> to vector<17xf32>
    %357 = vector.shape_cast %356 : vector<17xf32> to vector<17x1xf32>
    %358 = tpu.reciprocal %357 {approx = true} : vector<17x1xf32> -> vector<17x1xf32>
    %359 = vector.broadcast %358 : vector<17x1xf32> to vector<17x17xf32>
    %360 = arith.mulf %355, %359 : vector<17x17xf32>
    %cst_161 = arith.constant dense<0.000000e+00> : vector<17x8xf32>
    %361 = tpu.matmul %360, %349, %cst_161 {dimension_numbers = #tpu.dot_dimension_numbers<[1], [0], [0], [1], [0, 0, 1, 1], [], []>} : vector<17x17xf32>, vector<17x8xf32>, vector<17x8xf32> -> vector<17x8xf32>
    %c0_162 = arith.constant 0 : index
    %c24_163 = arith.constant 24 : index
    %362 = vector.load %arg21[%c0_162, %c24_163] : memref<34x32xf32, #tpu.memory_space<vmem>>, vector<17x8xf32>
    tpu.vector_store %arg21[%c0_162, %c24_163], %361 {strides = array<i32>} : memref<34x32xf32, #tpu.memory_space<vmem>>, vector<17x8xf32>,
    %363 = vector.extract_strided_slice %297 {offsets = [17, 0], sizes = [17, 96], strides = [1, 1]} : vector<34x96xf32> to vector<17x96xf32>
    %364 = vector.extract_strided_slice %363 {offsets = [0, 0], sizes = [17, 8], strides = [1, 1]} : vector<17x96xf32> to vector<17x8xf32>
    %365 = vector.extract_strided_slice %363 {offsets = [0, 32], sizes = [17, 8], strides = [1, 1]} : vector<17x96xf32> to vector<17x8xf32>
    %366 = vector.extract_strided_slice %363 {offsets = [0, 64], sizes = [17, 8], strides = [1, 1]} : vector<17x96xf32> to vector<17x8xf32>
    %cst_164 = arith.constant dense<0.000000e+00> : vector<17x17xf32>
    %367 = tpu.matmul %364, %365, %cst_164 {dimension_numbers = #tpu.dot_dimension_numbers<[1], [1], [0], [0], [0, 0, 1, 0], [], []>} : vector<17x8xf32>, vector<17x8xf32>, vector<17x17xf32> -> vector<17x17xf32>
    %cst_165 = arith.constant dense<0xFF800000> : vector<17xf32>
    %368 = vector.multi_reduction <maximumf>, %367, %cst_165 [1] : vector<17x17xf32> to vector<17xf32>
    %369 = vector.shape_cast %368 : vector<17xf32> to vector<17x1xf32>
    %370 = vector.broadcast %369 : vector<17x1xf32> to vector<17x17xf32>
    %371 = arith.subf %367, %370 : vector<17x17xf32>
    %372 = math.exp %371 : vector<17x17xf32>
    %cst_166 = arith.constant dense<0.000000e+00> : vector<17xf32>
    %373 = vector.multi_reduction <add>, %372, %cst_166 [1] : vector<17x17xf32> to vector<17xf32>
    %374 = vector.shape_cast %373 : vector<17xf32> to vector<17x1xf32>
    %375 = tpu.reciprocal %374 {approx = true} : vector<17x1xf32> -> vector<17x1xf32>
    %376 = vector.broadcast %375 : vector<17x1xf32> to vector<17x17xf32>
    %377 = arith.mulf %372, %376 : vector<17x17xf32>
    %cst_167 = arith.constant dense<0.000000e+00> : vector<17x8xf32>
    %378 = tpu.matmul %377, %366, %cst_167 {dimension_numbers = #tpu.dot_dimension_numbers<[1], [0], [0], [1], [0, 0, 1, 1], [], []>} : vector<17x17xf32>, vector<17x8xf32>, vector<17x8xf32> -> vector<17x8xf32>
    %c17_168 = arith.constant 17 : index
    %c0_169 = arith.constant 0 : index
    %379 = vector.load %arg21[%c17_168, %c0_169] : memref<34x32xf32, #tpu.memory_space<vmem>>, vector<17x8xf32>
    tpu.vector_store %arg21[%c17_168, %c0_169], %378 {strides = array<i32>} : memref<34x32xf32, #tpu.memory_space<vmem>>, vector<17x8xf32>,
    %380 = vector.extract_strided_slice %363 {offsets = [0, 8], sizes = [17, 8], strides = [1, 1]} : vector<17x96xf32> to vector<17x8xf32>
    %381 = vector.extract_strided_slice %363 {offsets = [0, 40], sizes = [17, 8], strides = [1, 1]} : vector<17x96xf32> to vector<17x8xf32>
    %382 = vector.extract_strided_slice %363 {offsets = [0, 72], sizes = [17, 8], strides = [1, 1]} : vector<17x96xf32> to vector<17x8xf32>
    %cst_170 = arith.constant dense<0.000000e+00> : vector<17x17xf32>
    %383 = tpu.matmul %380, %381, %cst_170 {dimension_numbers = #tpu.dot_dimension_numbers<[1], [1], [0], [0], [0, 0, 1, 0], [], []>} : vector<17x8xf32>, vector<17x8xf32>, vector<17x17xf32> -> vector<17x17xf32>
    %cst_171 = arith.constant dense<0xFF800000> : vector<17xf32>
    %384 = vector.multi_reduction <maximumf>, %383, %cst_171 [1] : vector<17x17xf32> to vector<17xf32>
    %385 = vector.shape_cast %384 : vector<17xf32> to vector<17x1xf32>
    %386 = vector.broadcast %385 : vector<17x1xf32> to vector<17x17xf32>
    %387 = arith.subf %383, %386 : vector<17x17xf32>
    %388 = math.exp %387 : vector<17x17xf32>
    %cst_172 = arith.constant dense<0.000000e+00> : vector<17xf32>
    %389 = vector.multi_reduction <add>, %388, %cst_172 [1] : vector<17x17xf32> to vector<17xf32>
    %390 = vector.shape_cast %389 : vector<17xf32> to vector<17x1xf32>
    %391 = tpu.reciprocal %390 {approx = true} : vector<17x1xf32> -> vector<17x1xf32>
    %392 = vector.broadcast %391 : vector<17x1xf32> to vector<17x17xf32>
    %393 = arith.mulf %388, %392 : vector<17x17xf32>
    %cst_173 = arith.constant dense<0.000000e+00> : vector<17x8xf32>
    %394 = tpu.matmul %393, %382, %cst_173 {dimension_numbers = #tpu.dot_dimension_numbers<[1], [0], [0], [1], [0, 0, 1, 1], [], []>} : vector<17x17xf32>, vector<17x8xf32>, vector<17x8xf32> -> vector<17x8xf32>
    %c17_174 = arith.constant 17 : index
    %c8_175 = arith.constant 8 : index
    %395 = vector.load %arg21[%c17_174, %c8_175] : memref<34x32xf32, #tpu.memory_space<vmem>>, vector<17x8xf32>
    tpu.vector_store %arg21[%c17_174, %c8_175], %394 {strides = array<i32>} : memref<34x32xf32, #tpu.memory_space<vmem>>, vector<17x8xf32>,
    %396 = vector.extract_strided_slice %363 {offsets = [0, 16], sizes = [17, 8], strides = [1, 1]} : vector<17x96xf32> to vector<17x8xf32>
    %397 = vector.extract_strided_slice %363 {offsets = [0, 48], sizes = [17, 8], strides = [1, 1]} : vector<17x96xf32> to vector<17x8xf32>
    %398 = vector.extract_strided_slice %363 {offsets = [0, 80], sizes = [17, 8], strides = [1, 1]} : vector<17x96xf32> to vector<17x8xf32>
    %cst_176 = arith.constant dense<0.000000e+00> : vector<17x17xf32>
    %399 = tpu.matmul %396, %397, %cst_176 {dimension_numbers = #tpu.dot_dimension_numbers<[1], [1], [0], [0], [0, 0, 1, 0], [], []>} : vector<17x8xf32>, vector<17x8xf32>, vector<17x17xf32> -> vector<17x17xf32>
    %cst_177 = arith.constant dense<0xFF800000> : vector<17xf32>
    %400 = vector.multi_reduction <maximumf>, %399, %cst_177 [1] : vector<17x17xf32> to vector<17xf32>
    %401 = vector.shape_cast %400 : vector<17xf32> to vector<17x1xf32>
    %402 = vector.broadcast %401 : vector<17x1xf32> to vector<17x17xf32>
    %403 = arith.subf %399, %402 : vector<17x17xf32>
    %404 = math.exp %403 : vector<17x17xf32>
    %cst_178 = arith.constant dense<0.000000e+00> : vector<17xf32>
    %405 = vector.multi_reduction <add>, %404, %cst_178 [1] : vector<17x17xf32> to vector<17xf32>
    %406 = vector.shape_cast %405 : vector<17xf32> to vector<17x1xf32>
    %407 = tpu.reciprocal %406 {approx = true} : vector<17x1xf32> -> vector<17x1xf32>
    %408 = vector.broadcast %407 : vector<17x1xf32> to vector<17x17xf32>
    %409 = arith.mulf %404, %408 : vector<17x17xf32>
    %cst_179 = arith.constant dense<0.000000e+00> : vector<17x8xf32>
    %410 = tpu.matmul %409, %398, %cst_179 {dimension_numbers = #tpu.dot_dimension_numbers<[1], [0], [0], [1], [0, 0, 1, 1], [], []>} : vector<17x17xf32>, vector<17x8xf32>, vector<17x8xf32> -> vector<17x8xf32>
    %c17_180 = arith.constant 17 : index
    %c16_181 = arith.constant 16 : index
    %411 = vector.load %arg21[%c17_180, %c16_181] : memref<34x32xf32, #tpu.memory_space<vmem>>, vector<17x8xf32>
    tpu.vector_store %arg21[%c17_180, %c16_181], %410 {strides = array<i32>} : memref<34x32xf32, #tpu.memory_space<vmem>>, vector<17x8xf32>,
    %412 = vector.extract_strided_slice %363 {offsets = [0, 24], sizes = [17, 8], strides = [1, 1]} : vector<17x96xf32> to vector<17x8xf32>
    %413 = vector.extract_strided_slice %363 {offsets = [0, 56], sizes = [17, 8], strides = [1, 1]} : vector<17x96xf32> to vector<17x8xf32>
    %414 = vector.extract_strided_slice %363 {offsets = [0, 88], sizes = [17, 8], strides = [1, 1]} : vector<17x96xf32> to vector<17x8xf32>
    %cst_182 = arith.constant dense<0.000000e+00> : vector<17x17xf32>
    %415 = tpu.matmul %412, %413, %cst_182 {dimension_numbers = #tpu.dot_dimension_numbers<[1], [1], [0], [0], [0, 0, 1, 0], [], []>} : vector<17x8xf32>, vector<17x8xf32>, vector<17x17xf32> -> vector<17x17xf32>
    %cst_183 = arith.constant dense<0xFF800000> : vector<17xf32>
    %416 = vector.multi_reduction <maximumf>, %415, %cst_183 [1] : vector<17x17xf32> to vector<17xf32>
    %417 = vector.shape_cast %416 : vector<17xf32> to vector<17x1xf32>
    %418 = vector.broadcast %417 : vector<17x1xf32> to vector<17x17xf32>
    %419 = arith.subf %415, %418 : vector<17x17xf32>
    %420 = math.exp %419 : vector<17x17xf32>
    %cst_184 = arith.constant dense<0.000000e+00> : vector<17xf32>
    %421 = vector.multi_reduction <add>, %420, %cst_184 [1] : vector<17x17xf32> to vector<17xf32>
    %422 = vector.shape_cast %421 : vector<17xf32> to vector<17x1xf32>
    %423 = tpu.reciprocal %422 {approx = true} : vector<17x1xf32> -> vector<17x1xf32>
    %424 = vector.broadcast %423 : vector<17x1xf32> to vector<17x17xf32>
    %425 = arith.mulf %420, %424 : vector<17x17xf32>
    %cst_185 = arith.constant dense<0.000000e+00> : vector<17x8xf32>
    %426 = tpu.matmul %425, %414, %cst_185 {dimension_numbers = #tpu.dot_dimension_numbers<[1], [0], [0], [1], [0, 0, 1, 1], [], []>} : vector<17x17xf32>, vector<17x8xf32>, vector<17x8xf32> -> vector<17x8xf32>
    %c17_186 = arith.constant 17 : index
    %c24_187 = arith.constant 24 : index
    %427 = vector.load %arg21[%c17_186, %c24_187] : memref<34x32xf32, #tpu.memory_space<vmem>>, vector<17x8xf32>
    tpu.vector_store %arg21[%c17_186, %c24_187], %426 {strides = array<i32>} : memref<34x32xf32, #tpu.memory_space<vmem>>, vector<17x8xf32>,
    %c0_188 = arith.constant 0 : index
    %c0_189 = arith.constant 0 : index
    %428 = vector.load %arg21[%c0_188, %c0_189] : memref<34x32xf32, #tpu.memory_space<vmem>>, vector<34x32xf32>
    %c1_190 = arith.constant 1 : index
    %c0_191 = arith.constant 0 : index
    %c0_192 = arith.constant 0 : index
    %429 = vector.load %arg9[%c1_190, %c0_191, %c0_192] : memref<2x32x32xf32, #tpu.memory_space<vmem>>, vector<1x32x32xf32>
    %430 = vector.shape_cast %429 : vector<1x32x32xf32> to vector<32x32xf32>
    %cst_193 = arith.constant dense<0.000000e+00> : vector<34x32xf32>
    %431 = tpu.matmul %428, %430, %cst_193 {dimension_numbers = #tpu.dot_dimension_numbers<[1], [0], [0], [1], [0, 0, 1, 1], [], []>} : vector<34x32xf32>, vector<32x32xf32>, vector<34x32xf32> -> vector<34x32xf32>
    %c1_194 = arith.constant 1 : index
    %c0_195 = arith.constant 0 : index
    %c0_196 = arith.constant 0 : index
    %432 = vector.load %arg10[%c1_194, %c0_195, %c0_196] : memref<2x1x32xf32, #tpu.memory_space<vmem>>, vector<1x1x32xf32>
    %433 = vector.shape_cast %432 : vector<1x1x32xf32> to vector<1x32xf32>
    %434 = vector.broadcast %433 : vector<1x32xf32> to vector<34x32xf32>
    %435 = arith.addf %431, %434 : vector<34x32xf32>
    %436 = arith.addf %268, %435 : vector<34x32xf32>
    %c1_197 = arith.constant 1 : index
    %c0_198 = arith.constant 0 : index
    %c0_199 = arith.constant 0 : index
    %437 = vector.load %arg11[%c1_197, %c0_198, %c0_199] : memref<2x1x32xf32, #tpu.memory_space<vmem>>, vector<1x1x32xf32>
    %438 = vector.shape_cast %437 : vector<1x1x32xf32> to vector<1x32xf32>
    %c1_200 = arith.constant 1 : index
    %c0_201 = arith.constant 0 : index
    %c0_202 = arith.constant 0 : index
    %439 = vector.load %arg12[%c1_200, %c0_201, %c0_202] : memref<2x1x32xf32, #tpu.memory_space<vmem>>, vector<1x1x32xf32>
    %440 = vector.shape_cast %439 : vector<1x1x32xf32> to vector<1x32xf32>
    %cst_203 = arith.constant dense<0.000000e+00> : vector<34xf32>
    %441 = vector.multi_reduction <add>, %436, %cst_203 [1] : vector<34x32xf32> to vector<34xf32>
    %442 = vector.shape_cast %441 : vector<34xf32> to vector<34x1xf32>
    %cst_204 = arith.constant 3.200000e+01 : f32
    %443 = vector.broadcast %cst_204 : f32 to vector<34x1xf32>
    %444 = arith.divf %442, %443 : vector<34x1xf32>
    %445 = vector.broadcast %444 : vector<34x1xf32> to vector<34x32xf32>
    %446 = arith.subf %436, %445 : vector<34x32xf32>
    %447 = arith.mulf %446, %446 : vector<34x32xf32>
    %cst_205 = arith.constant dense<0.000000e+00> : vector<34xf32>
    %448 = vector.multi_reduction <add>, %447, %cst_205 [1] : vector<34x32xf32> to vector<34xf32>
    %449 = vector.shape_cast %448 : vector<34xf32> to vector<34x1xf32>
    %cst_206 = arith.constant 3.200000e+01 : f32
    %450 = vector.broadcast %cst_206 : f32 to vector<34x1xf32>
    %451 = arith.divf %449, %450 : vector<34x1xf32>
    %452 = vector.broadcast %444 : vector<34x1xf32> to vector<34x32xf32>
    %453 = arith.subf %436, %452 : vector<34x32xf32>
    %cst_207 = arith.constant 9.99999974E-6 : f32
    %454 = vector.broadcast %cst_207 : f32 to vector<34x1xf32>
    %455 = arith.addf %451, %454 : vector<34x1xf32>
    %456 = math.rsqrt %455 : vector<34x1xf32>
    %457 = vector.broadcast %456 : vector<34x1xf32> to vector<34x32xf32>
    %458 = arith.mulf %453, %457 : vector<34x32xf32>
    %459 = vector.broadcast %438 : vector<1x32xf32> to vector<34x32xf32>
    %460 = arith.mulf %458, %459 : vector<34x32xf32>
    %461 = vector.broadcast %440 : vector<1x32xf32> to vector<34x32xf32>
    %462 = arith.addf %460, %461 : vector<34x32xf32>
    %c1_208 = arith.constant 1 : index
    %c0_209 = arith.constant 0 : index
    %c0_210 = arith.constant 0 : index
    %463 = vector.load %arg13[%c1_208, %c0_209, %c0_210] : memref<2x32x128xf32, #tpu.memory_space<vmem>>, vector<1x32x128xf32>
    %464 = vector.shape_cast %463 : vector<1x32x128xf32> to vector<32x128xf32>
    %cst_211 = arith.constant dense<0.000000e+00> : vector<34x128xf32>
    %465 = tpu.matmul %462, %464, %cst_211 {dimension_numbers = #tpu.dot_dimension_numbers<[1], [0], [0], [1], [0, 0, 1, 1], [], []>} : vector<34x32xf32>, vector<32x128xf32>, vector<34x128xf32> -> vector<34x128xf32>
    %c1_212 = arith.constant 1 : index
    %c0_213 = arith.constant 0 : index
    %c0_214 = arith.constant 0 : index
    %466 = vector.load %arg14[%c1_212, %c0_213, %c0_214] : memref<2x1x128xf32, #tpu.memory_space<vmem>>, vector<1x1x128xf32>
    %467 = vector.shape_cast %466 : vector<1x1x128xf32> to vector<1x128xf32>
    %468 = vector.broadcast %467 : vector<1x128xf32> to vector<34x128xf32>
    %469 = arith.addf %465, %468 : vector<34x128xf32>
    %cst_215 = arith.constant 5.000000e-01 : f32
    %470 = vector.broadcast %cst_215 : f32 to vector<34x128xf32>
    %471 = arith.mulf %470, %469 : vector<34x128xf32>
    %cst_216 = arith.constant 0.707106769 : f32
    %472 = vector.broadcast %cst_216 : f32 to vector<34x128xf32>
    %473 = arith.mulf %469, %472 : vector<34x128xf32>
    %474 = math.absf %473 : vector<34x128xf32>
    %cst_217 = arith.constant 0.327591091 : f32
    %475 = vector.broadcast %cst_217 : f32 to vector<34x128xf32>
    %476 = arith.mulf %475, %474 : vector<34x128xf32>
    %cst_218 = arith.constant 1.000000e+00 : f32
    %477 = vector.broadcast %cst_218 : f32 to vector<34x128xf32>
    %478 = arith.addf %477, %476 : vector<34x128xf32>
    %cst_219 = arith.constant 1.000000e+00 : f32
    %479 = vector.broadcast %cst_219 : f32 to vector<34x128xf32>
    %480 = arith.divf %479, %478 : vector<34x128xf32>
    %cst_220 = arith.constant 1.06140542 : f32
    %481 = vector.broadcast %cst_220 : f32 to vector<34x128xf32>
    %482 = arith.mulf %481, %480 : vector<34x128xf32>
    %cst_221 = arith.constant -1.45315206 : f32
    %483 = vector.broadcast %cst_221 : f32 to vector<34x128xf32>
    %484 = arith.addf %482, %483 : vector<34x128xf32>
    %485 = arith.mulf %484, %480 : vector<34x128xf32>
    %cst_222 = arith.constant 1.42141378 : f32
    %486 = vector.broadcast %cst_222 : f32 to vector<34x128xf32>
    %487 = arith.addf %485, %486 : vector<34x128xf32>
    %488 = arith.mulf %487, %480 : vector<34x128xf32>
    %cst_223 = arith.constant -0.284496725 : f32
    %489 = vector.broadcast %cst_223 : f32 to vector<34x128xf32>
    %490 = arith.addf %488, %489 : vector<34x128xf32>
    %491 = arith.mulf %490, %480 : vector<34x128xf32>
    %cst_224 = arith.constant 0.254829586 : f32
    %492 = vector.broadcast %cst_224 : f32 to vector<34x128xf32>
    %493 = arith.addf %491, %492 : vector<34x128xf32>
    %494 = arith.mulf %493, %480 : vector<34x128xf32>
    %cst_225 = arith.constant 0.000000e+00 : f32
    %495 = vector.broadcast %cst_225 : f32 to vector<34x128xf32>
    %496 = arith.subf %495, %474 : vector<34x128xf32>
    %497 = arith.mulf %496, %474 : vector<34x128xf32>
    %498 = math.exp %497 : vector<34x128xf32>
    %499 = arith.mulf %494, %498 : vector<34x128xf32>
    %cst_226 = arith.constant 1.000000e+00 : f32
    %500 = vector.broadcast %cst_226 : f32 to vector<34x128xf32>
    %501 = arith.subf %500, %499 : vector<34x128xf32>
    %cst_227 = arith.constant 0.000000e+00 : f32
    %502 = vector.broadcast %cst_227 : f32 to vector<34x128xf32>
    %503 = arith.cmpf oge, %473, %502 : vector<34x128xf32>
    %cst_228 = arith.constant 0.000000e+00 : f32
    %504 = vector.broadcast %cst_228 : f32 to vector<34x128xf32>
    %505 = arith.subf %504, %501 : vector<34x128xf32>
    %506 = arith.select %503, %501, %505 : vector<34x128xi1>, vector<34x128xf32>
    %cst_229 = arith.constant 1.000000e+00 : f32
    %507 = vector.broadcast %cst_229 : f32 to vector<34x128xf32>
    %508 = arith.addf %507, %506 : vector<34x128xf32>
    %509 = arith.mulf %471, %508 : vector<34x128xf32>
    %c1_230 = arith.constant 1 : index
    %c0_231 = arith.constant 0 : index
    %c0_232 = arith.constant 0 : index
    %510 = vector.load %arg15[%c1_230, %c0_231, %c0_232] : memref<2x128x32xf32, #tpu.memory_space<vmem>>, vector<1x128x32xf32>
    %511 = vector.shape_cast %510 : vector<1x128x32xf32> to vector<128x32xf32>
    %cst_233 = arith.constant dense<0.000000e+00> : vector<34x32xf32>
    %512 = tpu.matmul %509, %511, %cst_233 {dimension_numbers = #tpu.dot_dimension_numbers<[1], [0], [0], [1], [0, 0, 1, 1], [], []>} : vector<34x128xf32>, vector<128x32xf32>, vector<34x32xf32> -> vector<34x32xf32>
    %513 = arith.addf %436, %512 : vector<34x32xf32>
    %c1_234 = arith.constant 1 : index
    %c0_235 = arith.constant 0 : index
    %c0_236 = arith.constant 0 : index
    %514 = vector.load %arg16[%c1_234, %c0_235, %c0_236] : memref<2x1x32xf32, #tpu.memory_space<vmem>>, vector<1x1x32xf32>
    %515 = vector.shape_cast %514 : vector<1x1x32xf32> to vector<1x32xf32>
    %516 = vector.broadcast %515 : vector<1x32xf32> to vector<34x32xf32>
    %517 = arith.addf %513, %516 : vector<34x32xf32>
    %c0_237 = arith.constant 0 : index
    %c0_238 = arith.constant 0 : index
    %518 = vector.load %arg17[%c0_237, %c0_238] : memref<1x32xf32, #tpu.memory_space<vmem>>, vector<1x32xf32>
    %c0_239 = arith.constant 0 : index
    %c0_240 = arith.constant 0 : index
    %519 = vector.load %arg18[%c0_239, %c0_240] : memref<1x32xf32, #tpu.memory_space<vmem>>, vector<1x32xf32>
    %520 = vector.extract_strided_slice %517 {offsets = [0, 0], sizes = [1, 32], strides = [1, 1]} : vector<34x32xf32> to vector<1x32xf32>
    %cst_241 = arith.constant dense<0.000000e+00> : vector<1xf32>
    %521 = vector.multi_reduction <add>, %520, %cst_241 [1] : vector<1x32xf32> to vector<1xf32>
    %522 = vector.shape_cast %521 : vector<1xf32> to vector<1x1xf32>
    %cst_242 = arith.constant 3.200000e+01 : f32
    %523 = vector.broadcast %cst_242 : f32 to vector<1x1xf32>
    %524 = arith.divf %522, %523 : vector<1x1xf32>
    %525 = vector.broadcast %524 : vector<1x1xf32> to vector<1x32xf32>
    %526 = arith.subf %520, %525 : vector<1x32xf32>
    %527 = arith.mulf %526, %526 : vector<1x32xf32>
    %cst_243 = arith.constant dense<0.000000e+00> : vector<1xf32>
    %528 = vector.multi_reduction <add>, %527, %cst_243 [1] : vector<1x32xf32> to vector<1xf32>
    %529 = vector.shape_cast %528 : vector<1xf32> to vector<1x1xf32>
    %cst_244 = arith.constant 3.200000e+01 : f32
    %530 = vector.broadcast %cst_244 : f32 to vector<1x1xf32>
    %531 = arith.divf %529, %530 : vector<1x1xf32>
    %532 = vector.broadcast %524 : vector<1x1xf32> to vector<1x32xf32>
    %533 = arith.subf %520, %532 : vector<1x32xf32>
    %cst_245 = arith.constant 9.99999974E-6 : f32
    %534 = vector.broadcast %cst_245 : f32 to vector<1x1xf32>
    %535 = arith.addf %531, %534 : vector<1x1xf32>
    %536 = math.rsqrt %535 : vector<1x1xf32>
    %537 = vector.broadcast %536 : vector<1x1xf32> to vector<1x32xf32>
    %538 = arith.mulf %533, %537 : vector<1x32xf32>
    %539 = arith.mulf %538, %518 : vector<1x32xf32>
    %540 = arith.addf %539, %519 : vector<1x32xf32>
    %c0_246 = arith.constant 0 : index
    %c0_247 = arith.constant 0 : index
    %541 = vector.load %arg19[%c0_246, %c0_247] : memref<2x32xf32, #tpu.memory_space<vmem>>, vector<1x32xf32>
    tpu.vector_store %arg19[%c0_246, %c0_247], %540 {strides = array<i32>} : memref<2x32xf32, #tpu.memory_space<vmem>>, vector<1x32xf32>,
    %542 = vector.extract_strided_slice %517 {offsets = [17, 0], sizes = [1, 32], strides = [1, 1]} : vector<34x32xf32> to vector<1x32xf32>
    %cst_248 = arith.constant dense<0.000000e+00> : vector<1xf32>
    %543 = vector.multi_reduction <add>, %542, %cst_248 [1] : vector<1x32xf32> to vector<1xf32>
    %544 = vector.shape_cast %543 : vector<1xf32> to vector<1x1xf32>
    %cst_249 = arith.constant 3.200000e+01 : f32
    %545 = vector.broadcast %cst_249 : f32 to vector<1x1xf32>
    %546 = arith.divf %544, %545 : vector<1x1xf32>
    %547 = vector.broadcast %546 : vector<1x1xf32> to vector<1x32xf32>
    %548 = arith.subf %542, %547 : vector<1x32xf32>
    %549 = arith.mulf %548, %548 : vector<1x32xf32>
    %cst_250 = arith.constant dense<0.000000e+00> : vector<1xf32>
    %550 = vector.multi_reduction <add>, %549, %cst_250 [1] : vector<1x32xf32> to vector<1xf32>
    %551 = vector.shape_cast %550 : vector<1xf32> to vector<1x1xf32>
    %cst_251 = arith.constant 3.200000e+01 : f32
    %552 = vector.broadcast %cst_251 : f32 to vector<1x1xf32>
    %553 = arith.divf %551, %552 : vector<1x1xf32>
    %554 = vector.broadcast %546 : vector<1x1xf32> to vector<1x32xf32>
    %555 = arith.subf %542, %554 : vector<1x32xf32>
    %cst_252 = arith.constant 9.99999974E-6 : f32
    %556 = vector.broadcast %cst_252 : f32 to vector<1x1xf32>
    %557 = arith.addf %553, %556 : vector<1x1xf32>
    %558 = math.rsqrt %557 : vector<1x1xf32>
    %559 = vector.broadcast %558 : vector<1x1xf32> to vector<1x32xf32>
    %560 = arith.mulf %555, %559 : vector<1x32xf32>
    %561 = arith.mulf %560, %518 : vector<1x32xf32>
    %562 = arith.addf %561, %519 : vector<1x32xf32>
    %c1_253 = arith.constant 1 : index
    %c0_254 = arith.constant 0 : index
    %563 = vector.load %arg19[%c1_253, %c0_254] : memref<2x32xf32, #tpu.memory_space<vmem>>, vector<1x32xf32>
    tpu.vector_store %arg19[%c1_253, %c0_254], %562 {strides = array<i32>} : memref<2x32xf32, #tpu.memory_space<vmem>>, vector<1x32xf32>,
    return
  }
  func.func @transform_0(%arg0: i32) -> (i32, i32) {
    %c0_i32 = arith.constant 0 : i32
    %c0_i32_0 = arith.constant 0 : i32
    %c0_i32_1 = arith.constant 0 : i32
    return %c0_i32, %c0_i32_0 : i32, i32
  }
  func.func @transform_1(%arg0: i32) -> (i32, i32) {
    %c0_i32 = arith.constant 0 : i32
    %c0_i32_0 = arith.constant 0 : i32
    %c0_i32_1 = arith.constant 0 : i32
    return %c0_i32, %c0_i32_0 : i32, i32
  }
  func.func @transform_2(%arg0: i32) -> (i32, i32) {
    %c0_i32 = arith.constant 0 : i32
    %c0_i32_0 = arith.constant 0 : i32
    %c0_i32_1 = arith.constant 0 : i32
    return %c0_i32, %c0_i32_0 : i32, i32
  }
  func.func @transform_3(%arg0: i32) -> (i32, i32) {
    %c0_i32 = arith.constant 0 : i32
    %c0_i32_0 = arith.constant 0 : i32
    %c0_i32_1 = arith.constant 0 : i32
    return %c0_i32, %c0_i32_0 : i32, i32
  }
  func.func @transform_4(%arg0: i32) -> (i32, i32) {
    %c0_i32 = arith.constant 0 : i32
    %c0_i32_0 = arith.constant 0 : i32
    %c0_i32_1 = arith.constant 0 : i32
    return %c0_i32, %c0_i32_0 : i32, i32
  }
  func.func @transform_5(%arg0: i32) -> (i32, i32, i32) {
    %c0_i32 = arith.constant 0 : i32
    %c0_i32_0 = arith.constant 0 : i32
    %c0_i32_1 = arith.constant 0 : i32
    %c0_i32_2 = arith.constant 0 : i32
    return %c0_i32, %c0_i32_0, %c0_i32_1 : i32, i32, i32
  }
  func.func @transform_6(%arg0: i32) -> (i32, i32, i32) {
    %c0_i32 = arith.constant 0 : i32
    %c0_i32_0 = arith.constant 0 : i32
    %c0_i32_1 = arith.constant 0 : i32
    %c0_i32_2 = arith.constant 0 : i32
    return %c0_i32, %c0_i32_0, %c0_i32_1 : i32, i32, i32
  }
  func.func @transform_7(%arg0: i32) -> (i32, i32, i32) {
    %c0_i32 = arith.constant 0 : i32
    %c0_i32_0 = arith.constant 0 : i32
    %c0_i32_1 = arith.constant 0 : i32
    %c0_i32_2 = arith.constant 0 : i32
    return %c0_i32, %c0_i32_0, %c0_i32_1 : i32, i32, i32
  }
  func.func @transform_8(%arg0: i32) -> (i32, i32, i32) {
    %c0_i32 = arith.constant 0 : i32
    %c0_i32_0 = arith.constant 0 : i32
    %c0_i32_1 = arith.constant 0 : i32
    %c0_i32_2 = arith.constant 0 : i32
    return %c0_i32, %c0_i32_0, %c0_i32_1 : i32, i32, i32
  }
  func.func @transform_9(%arg0: i32) -> (i32, i32, i32) {
    %c0_i32 = arith.constant 0 : i32
    %c0_i32_0 = arith.constant 0 : i32
    %c0_i32_1 = arith.constant 0 : i32
    %c0_i32_2 = arith.constant 0 : i32
    return %c0_i32, %c0_i32_0, %c0_i32_1 : i32, i32, i32
  }
  func.func @transform_10(%arg0: i32) -> (i32, i32, i32) {
    %c0_i32 = arith.constant 0 : i32
    %c0_i32_0 = arith.constant 0 : i32
    %c0_i32_1 = arith.constant 0 : i32
    %c0_i32_2 = arith.constant 0 : i32
    return %c0_i32, %c0_i32_0, %c0_i32_1 : i32, i32, i32
  }
  func.func @transform_11(%arg0: i32) -> (i32, i32, i32) {
    %c0_i32 = arith.constant 0 : i32
    %c0_i32_0 = arith.constant 0 : i32
    %c0_i32_1 = arith.constant 0 : i32
    %c0_i32_2 = arith.constant 0 : i32
    return %c0_i32, %c0_i32_0, %c0_i32_1 : i32, i32, i32
  }
  func.func @transform_12(%arg0: i32) -> (i32, i32, i32) {
    %c0_i32 = arith.constant 0 : i32
    %c0_i32_0 = arith.constant 0 : i32
    %c0_i32_1 = arith.constant 0 : i32
    %c0_i32_2 = arith.constant 0 : i32
    return %c0_i32, %c0_i32_0, %c0_i32_1 : i32, i32, i32
  }
  func.func @transform_13(%arg0: i32) -> (i32, i32, i32) {
    %c0_i32 = arith.constant 0 : i32
    %c0_i32_0 = arith.constant 0 : i32
    %c0_i32_1 = arith.constant 0 : i32
    %c0_i32_2 = arith.constant 0 : i32
    return %c0_i32, %c0_i32_0, %c0_i32_1 : i32, i32, i32
  }
  func.func @transform_14(%arg0: i32) -> (i32, i32, i32) {
    %c0_i32 = arith.constant 0 : i32
    %c0_i32_0 = arith.constant 0 : i32
    %c0_i32_1 = arith.constant 0 : i32
    %c0_i32_2 = arith.constant 0 : i32
    return %c0_i32, %c0_i32_0, %c0_i32_1 : i32, i32, i32
  }
  func.func @transform_15(%arg0: i32) -> (i32, i32, i32) {
    %c0_i32 = arith.constant 0 : i32
    %c0_i32_0 = arith.constant 0 : i32
    %c0_i32_1 = arith.constant 0 : i32
    %c0_i32_2 = arith.constant 0 : i32
    return %c0_i32, %c0_i32_0, %c0_i32_1 : i32, i32, i32
  }
  func.func @transform_16(%arg0: i32) -> (i32, i32) {
    %c0_i32 = arith.constant 0 : i32
    %c0_i32_0 = arith.constant 0 : i32
    %c0_i32_1 = arith.constant 0 : i32
    return %c0_i32, %c0_i32_0 : i32, i32
  }
  func.func @transform_17(%arg0: i32) -> (i32, i32) {
    %c0_i32 = arith.constant 0 : i32
    %c0_i32_0 = arith.constant 0 : i32
    %c0_i32_1 = arith.constant 0 : i32
    return %c0_i32, %c0_i32_0 : i32, i32
  }
  func.func @transform_18(%arg0: i32) -> (i32, i32) {
    %c0_i32 = arith.constant 0 : i32
    %c0_i32_0 = arith.constant 0 : i32
    %c0_i32_1 = arith.constant 0 : i32
    return %c0_i32, %c0_i32_0 : i32, i32
  }
}

</mosaic_0001>

<llo_original>
// kernel: vit_forward.1
$region0: #{vit_forward.1}
  #allocation0 [shape = 'u32[]', space=smem, size = 0x4, offset = 0x4, fixed_abs, tag = 'smem constant byte address 0x4 - core index']
  #allocation1 [shape = 'u32[144,128]{1,0:T(1,128)}', space=vmem, size = 0x12000, scoped, tag = 'internal scratch']
  #allocation2 [shape = 'f32[34,32]{1,0:T(8,128)}', space=vmem, size = 0x5000, scoped, tag = 'scratch operand']
  #allocation3 [shape = 'f32[34,32]{1,0:T(8,128)}', space=vmem, size = 0x5000, scoped, tag = 'scratch operand']
  %s0 = inlined_call_operand.vmem [shape: f32[32,48], index: 0, kind: input, shape index: {}]
  %s1 = inlined_call_operand.vmem [shape: f32[48,32], index: 1, kind: input, shape index: {}]
  %s2 = inlined_call_operand.vmem [shape: f32[1,32], index: 2, kind: input, shape index: {}]
  %s3 = inlined_call_operand.vmem [shape: f32[1,32], index: 3, kind: input, shape index: {}]
  %s4 = inlined_call_operand.vmem [shape: f32[17,32], index: 4, kind: input, shape index: {}]
  %s5 = inlined_call_operand.vmem [shape: f32[2,1,32], index: 5, kind: input, shape index: {}]
  %s6 = inlined_call_operand.vmem [shape: f32[2,1,32], index: 6, kind: input, shape index: {}]
  %s7 = inlined_call_operand.vmem [shape: f32[2,32,96], index: 7, kind: input, shape index: {}]
  %s8 = inlined_call_operand.vmem [shape: f32[2,32,32], index: 8, kind: input, shape index: {}]
  %s9 = inlined_call_operand.vmem [shape: f32[2,1,32], index: 9, kind: input, shape index: {}]
  %s10 = inlined_call_operand.vmem [shape: f32[2,1,32], index: 10, kind: input, shape index: {}]
  %s11 = inlined_call_operand.vmem [shape: f32[2,1,32], index: 11, kind: input, shape index: {}]
  %s12 = inlined_call_operand.vmem [shape: f32[2,32,128], index: 12, kind: input, shape index: {}]
  %s13 = inlined_call_operand.vmem [shape: f32[2,1,128], index: 13, kind: input, shape index: {}]
  %s14 = inlined_call_operand.vmem [shape: f32[2,128,32], index: 14, kind: input, shape index: {}]
  %s15 = inlined_call_operand.vmem [shape: f32[2,1,32], index: 15, kind: input, shape index: {}]
  %s16 = inlined_call_operand.vmem [shape: f32[1,32], index: 16, kind: input, shape index: {}]
  %s17 = inlined_call_operand.vmem [shape: f32[1,32], index: 17, kind: input, shape index: {}]
  %s18 = inlined_call_operand.hbm [shape: f32[2,32], index: 18, kind: output, shape index: {}]
  %s19 = sld [smem:[#allocation0]]
  $region82: #{vit_forward.1} parent=0
    _
  %s21 = ssub.s32 1, %s19
  %s22 = scalar_select 0, %s21, %s19
  $region1: #{vit_forward.1} parent=0
    #allocation4 [shape = 'u8[1024]{0}', space=vmem, size = 0x400, scoped, tag = 'output window, operand 0, single buffered']
    #allocation5 [shape = 's32[1]{0}', space=sflag, size = 0x4, scoped, tag = 'scoped memory for vit_forward.1']
    %23 = vsyncpa [#allocation5], 0
    // Predicated region
    $region2: #{vit_forward.1} parent=1 // pred_check
      _
    $region3: #{vit_forward.1} parent=1 // pred_check_branch
      %25 = sbr.rel (0) target = $region5
    $region4: #{vit_forward.1} parent=1 // pred_region
      _
    $region5: #{vit_forward.1} parent=1 // pred_fallthru
      _
    // Predicated region
    $region6: #{vit_forward.1} parent=1 // pred_check
      _
    $region7: #{vit_forward.1} parent=1 // pred_check_branch
      %27 = sbr.rel (0) target = $region9
    $region8: #{vit_forward.1} parent=1 // pred_region
      _
    $region9: #{vit_forward.1} parent=1 // pred_fallthru
      _
    // Predicated region
    $region10: #{vit_forward.1} parent=1 // pred_check
      _
    $region11: #{vit_forward.1} parent=1 // pred_check_branch
      %29 = sbr.rel (0) target = $region13
    $region12: #{vit_forward.1} parent=1 // pred_region
      _
    $region13: #{vit_forward.1} parent=1 // pred_fallthru
      _
    // Predicated region
    $region14: #{vit_forward.1} parent=1 // pred_check
      _
    $region15: #{vit_forward.1} parent=1 // pred_check_branch
      %31 = sbr.rel (0) target = $region17
    $region16: #{vit_forward.1} parent=1 // pred_region
      _
    $region17: #{vit_forward.1} parent=1 // pred_fallthru
      _
    // Predicated region
    $region18: #{vit_forward.1} parent=1 // pred_check
      _
    $region19: #{vit_forward.1} parent=1 // pred_check_branch
      %33 = sbr.rel (0) target = $region21
    $region20: #{vit_forward.1} parent=1 // pred_region
      _
    $region21: #{vit_forward.1} parent=1 // pred_fallthru
      _
    // Predicated region
    $region22: #{vit_forward.1} parent=1 // pred_check
      _
    $region23: #{vit_forward.1} parent=1 // pred_check_branch
      %35 = sbr.rel (0) target = $region25
    $region24: #{vit_forward.1} parent=1 // pred_region
      _
    $region25: #{vit_forward.1} parent=1 // pred_fallthru
      _
    // Predicated region
    $region26: #{vit_forward.1} parent=1 // pred_check
      _
    $region27: #{vit_forward.1} parent=1 // pred_check_branch
      %37 = sbr.rel (0) target = $region29
    $region28: #{vit_forward.1} parent=1 // pred_region
      _
    $region29: #{vit_forward.1} parent=1 // pred_fallthru
      _
    // Predicated region
    $region30: #{vit_forward.1} parent=1 // pred_check
      _
    $region31: #{vit_forward.1} parent=1 // pred_check_branch
      %39 = sbr.rel (0) target = $region33
    $region32: #{vit_forward.1} parent=1 // pred_region
      _
    $region33: #{vit_forward.1} parent=1 // pred_fallthru
      _
    // Predicated region
    $region34: #{vit_forward.1} parent=1 // pred_check
      _
    $region35: #{vit_forward.1} parent=1 // pred_check_branch
      %41 = sbr.rel (0) target = $region37
    $region36: #{vit_forward.1} parent=1 // pred_region
      _
    $region37: #{vit_forward.1} parent=1 // pred_fallthru
      _
    // Predicated region
    $region38: #{vit_forward.1} parent=1 // pred_check
      _
    $region39: #{vit_forward.1} parent=1 // pred_check_branch
      %43 = sbr.rel (0) target = $region41
    $region40: #{vit_forward.1} parent=1 // pred_region
      _
    $region41: #{vit_forward.1} parent=1 // pred_fallthru
      _
    // Predicated region
    $region42: #{vit_forward.1} parent=1 // pred_check
      _
    $region43: #{vit_forward.1} parent=1 // pred_check_branch
      %45 = sbr.rel (0) target = $region45
    $region44: #{vit_forward.1} parent=1 // pred_region
      _
    $region45: #{vit_forward.1} parent=1 // pred_fallthru
      _
    // Predicated region
    $region46: #{vit_forward.1} parent=1 // pred_check
      _
    $region47: #{vit_forward.1} parent=1 // pred_check_branch
      %47 = sbr.rel (0) target = $region49
    $region48: #{vit_forward.1} parent=1 // pred_region
      _
    $region49: #{vit_forward.1} parent=1 // pred_fallthru
      _
    // Predicated region
    $region50: #{vit_forward.1} parent=1 // pred_check
      _
    $region51: #{vit_forward.1} parent=1 // pred_check_branch
      %49 = sbr.rel (0) target = $region53
    $region52: #{vit_forward.1} parent=1 // pred_region
      _
    $region53: #{vit_forward.1} parent=1 // pred_fallthru
      _
    // Predicated region
    $region54: #{vit_forward.1} parent=1 // pred_check
      _
    $region55: #{vit_forward.1} parent=1 // pred_check_branch
      %51 = sbr.rel (0) target = $region57
    $region56: #{vit_forward.1} parent=1 // pred_region
      _
    $region57: #{vit_forward.1} parent=1 // pred_fallthru
      _
    // Predicated region
    $region58: #{vit_forward.1} parent=1 // pred_check
      _
    $region59: #{vit_forward.1} parent=1 // pred_check_branch
      %53 = sbr.rel (0) target = $region61
    $region60: #{vit_forward.1} parent=1 // pred_region
      _
    $region61: #{vit_forward.1} parent=1 // pred_fallthru
      _
    // Predicated region
    $region62: #{vit_forward.1} parent=1 // pred_check
      _
    $region63: #{vit_forward.1} parent=1 // pred_check_branch
      %55 = sbr.rel (0) target = $region65
    $region64: #{vit_forward.1} parent=1 // pred_region
      _
    $region65: #{vit_forward.1} parent=1 // pred_fallthru
      _
    // Predicated region
    $region66: #{vit_forward.1} parent=1 // pred_check
      _
    $region67: #{vit_forward.1} parent=1 // pred_check_branch
      %57 = sbr.rel (0) target = $region69
    $region68: #{vit_forward.1} parent=1 // pred_region
      _
    $region69: #{vit_forward.1} parent=1 // pred_fallthru
      _
    // Predicated region
    $region70: #{vit_forward.1} parent=1 // pred_check
      _
    $region71: #{vit_forward.1} parent=1 // pred_check_branch
      %59 = sbr.rel (0) target = $region73
    $region72: #{vit_forward.1} parent=1 // pred_region
      _
    $region73: #{vit_forward.1} parent=1 // pred_fallthru
      _
    %v60 = vld [vmem:[%s0] sm:$0xff]
    %v61 = vld [vmem:[%s0 + $0x8] sm:$0xff]
    %v62 = vld [vmem:[%s0 + $0x10] sm:$0xff]
    %v63 = vld [vmem:[%s0 + $0x18] sm:$0xff]
    %v64 = vld [vmem:[%s1] sm:$0xff]
    %v65 = vld [vmem:[%s1 + $0x8] sm:$0xff]
    %v66 = vld [vmem:[%s1 + $0x10] sm:$0xff]
    %v67 = vld [vmem:[%s1 + $0x18] sm:$0xff]
    %v68 = vld [vmem:[%s1 + $0x20] sm:$0xff]
    %v69 = vld [vmem:[%s1 + $0x28] sm:$0xff]
    %v70 = vld [vmem:[%s2] sm:$0x1]
    %v72 = vlaneseq
    %v73 = vshrl.u32 %v72, 7
    %v74 = vsub.s32 0, %v73
    %v75 = vrot.slane %v70, %v74
    %vm77 = vcmask 392192
    %v79 = vsel %vm77, %v60, 0
    %v82 = vsel %vm77, %v61, 0
    %v85 = vsel %vm77, %v62, 0
    %v88 = vsel %vm77, %v63, 0
    %90 = vmatprep.subr.mxu0 0.0
    %91 = vmatpush1.msra.mxu0 %v64
    %92 = vmatprep.subr.mxu0 0.0
    %93 = vmatpush1.msra.mxu0 %v65
    %94 = vmatprep.subr.mxu0 0.0
    %95 = vmatpush1.msra.mxu0 %v66
    %96 = vmatprep.subr.mxu0 0.0
    %97 = vmatpush1.msra.mxu0 %v67
    %98 = vmatprep.subr.mxu0 0.0
    %99 = vmatpush1.msra.mxu0 %v68
    %100 = vmatprep.subr.mxu0 0.0
    %101 = vmatpush1.msra.mxu0 %v69
    %102 = vmatprep.subr.mxu0 0.0
    %103 = vmatpush1.msra.mxu0 0.0
    %104 = vmatprep.subr.mxu0 0.0
    %105 = vmatpush1.msra.mxu0 0.0
    %106 = vmatprep.subr.mxu0 0.0
    %107 = vmatpush1.msra.mxu0 0.0
    %108 = vmatprep.subr.mxu0 0.0
    %109 = vmatpush1.msra.mxu0 0.0
    %110 = vmatprep.subr.mxu0 0.0
    %111 = vmatpush1.msra.mxu0 0.0
    %112 = vmatprep.subr.mxu0 0.0
    %113 = vmatpush1.msra.mxu0 0.0
    %114 = vmatprep.subr.mxu0 0.0
    %115 = vmatpush1.msra.mxu0 0.0
    %116 = vmatprep.subr.mxu0 0.0
    %117 = vmatpush1.msra.mxu0 0.0
    %118 = vmatprep.subr.mxu0 0.0
    %119 = vmatpush1.msra.mxu0 0.0
    %120 = vmatprep.subr.mxu0 0.0
    %121 = vmatpush1.msra.mxu0 0.0
    %122 = vmatprep.subr.mxu0 0.0
    %123 = vmatpush1.msra.mxu0 0.0
    %124 = vmatprep.subr.mxu0 0.0
    %125 = vmatpush1.msra.mxu0 0.0
    %126 = vmatprep.subr.mxu0 0.0
    %127 = vmatpush1.msra.mxu0 0.0
    %128 = vmatprep.subr.mxu0 0.0
    %129 = vmatpush1.msra.mxu0 0.0
    %130 = vmatprep.subr.mxu0 0.0
    %131 = vmatpush1.msra.mxu0 0.0
    %132 = vmatprep.subr.mxu0 0.0
    %133 = vmatpush1.msra.mxu0 0.0
    %134 = vmatprep.subr.mxu0 0.0
    %135 = vmatpush1.msra.mxu0 0.0
    %136 = vmatprep.subr.mxu0 0.0
    %137 = vmatpush1.msra.mxu0 0.0
    %138 = vmatprep.subr.mxu0 0.0
    %139 = vmatpush1.msra.mxu0 0.0
    %140 = vmatprep.subr.mxu0 0.0
    %141 = vmatpush1.msra.mxu0 0.0
    %142 = vmatprep.subr.mxu0 0.0
    %143 = vmatpush1.msra.mxu0 0.0
    %144 = vmatprep.subr.mxu0 0.0
    %145 = vmatpush1.msra.mxu0 0.0
    %146 = vmatprep.subr.mxu0 0.0
    %147 = vmatpush1.msra.mxu0 0.0
    %148 = vmatprep.subr.mxu0 0.0
    %149 = vmatpush1.msra.mxu0 0.0
    %150 = vmatprep.subr.mxu0 0.0
    %151 = vmatpush1.msra.mxu0 0.0
    %152 = vmatprep.subr.mxu0 0.0
    %153 = vmatpush1.msra.mxu0 0.0
    %154 = vmatprep.mubr.f32.mxu0 0.0
    %155 = vmatmul.mubr.f32.gmra.mrb[0].mxu0 %v79
    %v156 = vpop.f32.mrb[0].mxu0
    %v157 = vadd.f32 %v75, %v156
    %v158 = vpop.f32.mrb[0].mxu0
    %159 = vmatprep.mubr.f32.mxu0 0.0
    %160 = vmatmul.mubr.f32.gmra.mrb[0].mxu0 %v82
    %v161 = vpop.f32.mrb[0].mxu0
    %v162 = vadd.f32 %v75, %v161
    %v163 = vpop.f32.mrb[0].mxu0
    %164 = vmatprep.mubr.f32.mxu0 0.0
    %165 = vmatmul.mubr.f32.gmra.mrb[0].mxu0 %v85
    %v166 = vpop.f32.mrb[0].mxu0
    %v167 = vadd.f32 %v75, %v166
    %v168 = vpop.f32.mrb[0].mxu0
    %169 = vmatprep.mubr.f32.mxu0 0.0
    %170 = vmatmul.mubr.f32.gmra.mrb[0].mxu0 %v88
    %v171 = vpop.f32.mrb[0].mxu0
    %v172 = vadd.f32 %v75, %v171
    %v173 = vpop.f32.mrb[0].mxu0
    %174 = vdwg.mxu0
    %v175 = vld [vmem:[%s4] sm:$0xff]
    %v176 = vld [vmem:[%s4 + $0x8] sm:$0xff]
    %v177 = vld [vmem:[%s4 + $0x10] sm:$0x1]
    %v178 = vld [vmem:[%s3] sm:$0x1]
    %v179 = vadd.f32 %v178, %v175
    %vm180 = vcmask 253952
    %181 = vst.msk [vmem:[#allocation2] sm:$0x1] %vm180, %v179
    %vm185 = vcmask 1046528
    %v186 = vrot.slane %v175, 1
    %v187 = vrot.slane %v176, 1
    %v188 = vsel %vm185, %v186, %v187
    %v189 = vrot.slane %v177, 1
    %v190 = vsel %vm185, %v187, %v189
    %v193 = vadd.f32 %v157, %v188
    %v194 = vadd.f32 %v162, %v190
    %vm195 = vcmask 261120
    %196 = vst.msk [vmem:[#allocation2 + $0x1] sm:$0xff] %vm195, %v193
    %197 = vst.msk [vmem:[#allocation2 + $0x9] sm:$0xff] %vm195, %v194
    %198 = vst.msk [vmem:[#allocation2 + $0x11] sm:$0x1] %vm180, %v179
    %v199 = vadd.f32 %v167, %v188
    %v200 = vadd.f32 %v172, %v190
    %201 = vst.msk [vmem:[#allocation2 + $0x12] sm:$0xff] %vm195, %v199
    %202 = vst.msk [vmem:[#allocation2 + $0x1a] sm:$0xff] %vm195, %v200
    %v203 = vld [vmem:[#allocation2] sm:$0xff]
    %v204 = vld [vmem:[#allocation2 + $0x8] sm:$0xff]
    %v205 = vld [vmem:[#allocation2 + $0x10] sm:$0xff]
    %v206 = vld [vmem:[#allocation2 + $0x18] sm:$0xff]
    %v207 = vld [vmem:[#allocation2 + $0x20] sm:$0x3]
    %v208 = vld [vmem:[%s5] sm:$0x1]
    %v209 = vld [vmem:[%s6] sm:$0x1]
    %v210 = vsel %vm195, %v203, 0.0
    %211 = vadd.xlane.f32.xlu0 %v210
    %v212 = vpop.xlane.xlu0 %211
    %v213 = vsel %vm195, %v204, 0.0
    %214 = vadd.xlane.f32.xlu0 %v213
    %v215 = vpop.xlane.xlu0 %214
    %v216 = vsel %vm195, %v205, 0.0
    %217 = vadd.xlane.f32.xlu0 %v216
    %v218 = vpop.xlane.xlu0 %217
    %v219 = vsel %vm195, %v206, 0.0
    %220 = vadd.xlane.f32.xlu0 %v219
    %v221 = vpop.xlane.xlu0 %220
    %vm222 = vcmask 254976
    %v223 = vsel %vm222, %v207, 0.0
    %224 = vadd.xlane.f32.xlu0 %v223
    %v225 = vpop.xlane.xlu0 %224
    %v226 = vrcp.pop 32.0
    %v227 = vmul.f32 %v212, %v226
    %v228 = vmul.f32 %v215, %v226
    %v229 = vmul.f32 %v218, %v226
    %v230 = vmul.f32 %v221, %v226
    %v231 = vmul.f32 %v225, %v226
    %v232 = vsub.f32 %v203, %v227
    %v233 = vsub.f32 %v204, %v228
    %v234 = vsub.f32 %v205, %v229
    %v235 = vsub.f32 %v206, %v230
    %v236 = vsub.f32 %v207, %v231
    %v237 = vmul.f32 %v232, %v232
    %v238 = vmul.f32 %v233, %v233
    %v239 = vmul.f32 %v234, %v234
    %v240 = vmul.f32 %v235, %v235
    %v241 = vmul.f32 %v236, %v236
    %v242 = vsel %vm195, %v237, 0.0
    %243 = vadd.xlane.f32.xlu0 %v242
    %v244 = vpop.xlane.xlu0 %243
    %v245 = vsel %vm195, %v238, 0.0
    %246 = vadd.xlane.f32.xlu0 %v245
    %v247 = vpop.xlane.xlu0 %246
    %v248 = vsel %vm195, %v239, 0.0
    %249 = vadd.xlane.f32.xlu0 %v248
    %v250 = vpop.xlane.xlu0 %249
    %v251 = vsel %vm195, %v240, 0.0
    %252 = vadd.xlane.f32.xlu0 %v251
    %v253 = vpop.xlane.xlu0 %252
    %v254 = vsel %vm222, %v241, 0.0
    %255 = vadd.xlane.f32.xlu0 %v254
    %v256 = vpop.xlane.xlu0 %255
    %v257 = vmul.f32 %v244, %v226
    %v258 = vmul.f32 %v247, %v226
    %v259 = vmul.f32 %v250, %v226
    %v260 = vmul.f32 %v253, %v226
    %v261 = vmul.f32 %v256, %v226
    %v262 = vadd.f32 %v257, 1e-05
    %v263 = vadd.f32 %v258, 1e-05
    %v264 = vadd.f32 %v259, 1e-05
    %v265 = vadd.f32 %v260, 1e-05
    %v266 = vadd.f32 %v261, 1e-05
    %v267 = vrsqrt.pop %v262
    %v268 = vrsqrt.pop %v263
    %v269 = vrsqrt.pop %v264
    %v270 = vrsqrt.pop %v265
    %v271 = vrsqrt.pop %v266
    %v272 = vmul.f32 %v232, %v267
    %v273 = vmul.f32 %v233, %v268
    %v274 = vmul.f32 %v234, %v269
    %v275 = vmul.f32 %v235, %v270
    %v276 = vmul.f32 %v236, %v271
    %v278 = vlaneseq
    %v279 = vshrl.u32 %v278, 7
    %v280 = vsub.s32 0, %v279
    %v281 = vrot.slane %v208, %v280
    %v283 = vmul.f32 %v272, %v281
    %v284 = vmul.f32 %v273, %v281
    %v285 = vmul.f32 %v274, %v281
    %v286 = vmul.f32 %v275, %v281
    %v287 = vmul.f32 %v276, %v281
    %v289 = vlaneseq
    %v290 = vshrl.u32 %v289, 7
    %v291 = vsub.s32 0, %v290
    %v292 = vrot.slane %v209, %v291
    %v294 = vadd.f32 %v283, %v292
    %v295 = vadd.f32 %v284, %v292
    %v296 = vadd.f32 %v285, %v292
    %v297 = vadd.f32 %v286, %v292
    %v298 = vadd.f32 %v287, %v292
    %v299 = vld [vmem:[%s7] sm:$0xff]
    %v300 = vld [vmem:[%s7 + $0x8] sm:$0xff]
    %v301 = vld [vmem:[%s7 + $0x10] sm:$0xff]
    %v302 = vld [vmem:[%s7 + $0x18] sm:$0xff]
    %v304 = vsel %vm195, %v294, 0
    %v307 = vsel %vm195, %v295, 0
    %v310 = vsel %vm195, %v296, 0
    %v313 = vsel %vm195, %v297, 0
    %v316 = vsel %vm195, %v298, 0
    %318 = vmatprep.subr.mxu0 0.0
    %319 = vmatpush1.msra.mxu0 %v299
    %320 = vmatprep.subr.mxu0 0.0
    %321 = vmatpush1.msra.mxu0 %v300
    %322 = vmatprep.subr.mxu0 0.0
    %323 = vmatpush1.msra.mxu0 %v301
    %324 = vmatprep.subr.mxu0 0.0
    %325 = vmatpush1.msra.mxu0 %v302
    %326 = vmatprep.subr.mxu0 0.0
    %327 = vmatpush1.msra.mxu0 0.0
    %328 = vmatprep.subr.mxu0 0.0
    %329 = vmatpush1.msra.mxu0 0.0
    %330 = vmatprep.subr.mxu0 0.0
    %331 = vmatpush1.msra.mxu0 0.0
    %332 = vmatprep.subr.mxu0 0.0
    %333 = vmatpush1.msra.mxu0 0.0
    %334 = vmatprep.subr.mxu0 0.0
    %335 = vmatpush1.msra.mxu0 0.0
    %336 = vmatprep.subr.mxu0 0.0
    %337 = vmatpush1.msra.mxu0 0.0
    %338 = vmatprep.subr.mxu0 0.0
    %339 = vmatpush1.msra.mxu0 0.0
    %340 = vmatprep.subr.mxu0 0.0
    %341 = vmatpush1.msra.mxu0 0.0
    %342 = vmatprep.subr.mxu0 0.0
    %343 = vmatpush1.msra.mxu0 0.0
    %344 = vmatprep.subr.mxu0 0.0
    %345 = vmatpush1.msra.mxu0 0.0
    %346 = vmatprep.subr.mxu0 0.0
    %347 = vmatpush1.msra.mxu0 0.0
    %348 = vmatprep.subr.mxu0 0.0
    %349 = vmatpush1.msra.mxu0 0.0
    %350 = vmatprep.subr.mxu0 0.0
    %351 = vmatpush1.msra.mxu0 0.0
    %352 = vmatprep.subr.mxu0 0.0
    %353 = vmatpush1.msra.mxu0 0.0
    %354 = vmatprep.subr.mxu0 0.0
    %355 = vmatpush1.msra.mxu0 0.0
    %356 = vmatprep.subr.mxu0 0.0
    %357 = vmatpush1.msra.mxu0 0.0
    %358 = vmatprep.subr.mxu0 0.0
    %359 = vmatpush1.msra.mxu0 0.0
    %360 = vmatprep.subr.mxu0 0.0
    %361 = vmatpush1.msra.mxu0 0.0
    %362 = vmatprep.subr.mxu0 0.0
    %363 = vmatpush1.msra.mxu0 0.0
    %364 = vmatprep.subr.mxu0 0.0
    %365 = vmatpush1.msra.mxu0 0.0
    %366 = vmatprep.subr.mxu0 0.0
    %367 = vmatpush1.msra.mxu0 0.0
    %368 = vmatprep.subr.mxu0 0.0
    %369 = vmatpush1.msra.mxu0 0.0
    %370 = vmatprep.subr.mxu0 0.0
    %371 = vmatpush1.msra.mxu0 0.0
    %372 = vmatprep.subr.mxu0 0.0
    %373 = vmatpush1.msra.mxu0 0.0
    %374 = vmatprep.subr.mxu0 0.0
    %375 = vmatpush1.msra.mxu0 0.0
    %376 = vmatprep.subr.mxu0 0.0
    %377 = vmatpush1.msra.mxu0 0.0
    %378 = vmatprep.subr.mxu0 0.0
    %379 = vmatpush1.msra.mxu0 0.0
    %380 = vmatprep.subr.mxu0 0.0
    %381 = vmatpush1.msra.mxu0 0.0
    %382 = vmatprep.mubr.f32.mxu0 0.0
    %383 = vmatmul.mubr.f32.gmra.mrb[0].mxu0 %v304
    %v384 = vpop.f32.mrb[0].mxu0
    %v385 = vadd.f32 0.0, %v384
    %v386 = vpop.f32.mrb[0].mxu0
    %387 = vmatprep.mubr.f32.mxu0 0.0
    %388 = vmatmul.mubr.f32.gmra.mrb[0].mxu0 %v307
    %v389 = vpop.f32.mrb[0].mxu0
    %v390 = vadd.f32 0.0, %v389
    %v391 = vpop.f32.mrb[0].mxu0
    %392 = vmatprep.mubr.f32.mxu0 0.0
    %393 = vmatmul.mubr.f32.gmra.mrb[0].mxu0 %v310
    %v394 = vpop.f32.mrb[0].mxu0
    %v395 = vadd.f32 0.0, %v394
    %v396 = vpop.f32.mrb[0].mxu0
    %397 = vmatprep.mubr.f32.mxu0 0.0
    %398 = vmatmul.mubr.f32.gmra.mrb[0].mxu0 %v313
    %v399 = vpop.f32.mrb[0].mxu0
    %v400 = vadd.f32 0.0, %v399
    %v401 = vpop.f32.mrb[0].mxu0
    %402 = vmatprep.mubr.f32.mxu0 0.0
    %403 = vmatmul.mubr.f32.gmra.mrb[0].mxu0 %v316
    %v404 = vpop.f32.mrb[0].mxu0
    %v405 = vadd.f32 0.0, %v404
    %v406 = vpop.f32.mrb[0].mxu0
    %407 = vdwg.mxu0
    %411 = vrot.lane.b32.xlu0 %v385, 96
    %v412 = vpop.permute.xlu0 %411
    %413 = vrot.lane.b32.xlu0 %v390, 96
    %v414 = vpop.permute.xlu0 %413
    %415 = vrot.lane.b32.xlu0 %v395, 96
    %v416 = vpop.permute.xlu0 %415
    %vm417 = vcmask 64512
    %v418 = vsel %vm417, %v385, 0
    %v420 = vsel %vm417, %v390, 0
    %v422 = vsel %vm417, %v395, 0
    %v424 = vsel %vm417, %v412, 0
    %v426 = vsel %vm417, %v414, 0
    %v428 = vsel %vm417, %v416, 0
    %430 = vmatprep.subr.mxu0 0.0
    %431 = vmatpush1.xpose.msra.mxu0 %v424
    %432 = vmatprep.subr.mxu0 0.0
    %433 = vmatpush1.xpose.msra.mxu0 %v426
    %434 = vmatprep.subr.mxu0 0.0
    %435 = vmatpush1.xpose.msra.mxu0 %v428
    %436 = vmatprep.subr.mxu0 0.0
    %437 = vmatpush1.xpose.msra.mxu0 0.0
    %438 = vmatprep.subr.mxu0 0.0
    %439 = vmatpush1.xpose.msra.mxu0 0.0
    %440 = vmatprep.subr.mxu0 0.0
    %441 = vmatpush1.xpose.msra.mxu0 0.0
    %442 = vmatprep.subr.mxu0 0.0
    %443 = vmatpush1.xpose.msra.mxu0 0.0
    %444 = vmatprep.subr.mxu0 0.0
    %445 = vmatpush1.xpose.msra.mxu0 0.0
    %446 = vmatprep.subr.mxu0 0.0
    %447 = vmatpush1.xpose.msra.mxu0 0.0
    %448 = vmatprep.subr.mxu0 0.0
    %449 = vmatpush1.xpose.msra.mxu0 0.0
    %450 = vmatprep.subr.mxu0 0.0
    %451 = vmatpush1.xpose.msra.mxu0 0.0
    %452 = vmatprep.subr.mxu0 0.0
    %453 = vmatpush1.xpose.msra.mxu0 0.0
    %454 = vmatprep.subr.mxu0 0.0
    %455 = vmatpush1.xpose.msra.mxu0 0.0
    %456 = vmatprep.subr.mxu0 0.0
    %457 = vmatpush1.xpose.msra.mxu0 0.0
    %458 = vmatprep.subr.mxu0 0.0
    %459 = vmatpush1.xpose.msra.mxu0 0.0
    %460 = vmatprep.subr.mxu0 0.0
    %461 = vmatpush1.xpose.msra.mxu0 0.0
    %462 = vmatprep.subr.mxu0 0.0
    %463 = vmatpush1.xpose.msra.mxu0 0.0
    %464 = vmatprep.subr.mxu0 0.0
    %465 = vmatpush1.xpose.msra.mxu0 0.0
    %466 = vmatprep.subr.mxu0 0.0
    %467 = vmatpush1.xpose.msra.mxu0 0.0
    %468 = vmatprep.subr.mxu0 0.0
    %469 = vmatpush1.xpose.msra.mxu0 0.0
    %470 = vmatprep.subr.mxu0 0.0
    %471 = vmatpush1.xpose.msra.mxu0 0.0
    %472 = vmatprep.subr.mxu0 0.0
    %473 = vmatpush1.xpose.msra.mxu0 0.0
    %474 = vmatprep.subr.mxu0 0.0
    %475 = vmatpush1.xpose.msra.mxu0 0.0
    %476 = vmatprep.subr.mxu0 0.0
    %477 = vmatpush1.xpose.msra.mxu0 0.0
    %478 = vmatprep.subr.mxu0 0.0
    %479 = vmatpush1.xpose.msra.mxu0 0.0
    %480 = vmatprep.subr.mxu0 0.0
    %481 = vmatpush1.xpose.msra.mxu0 0.0
    %482 = vmatprep.subr.mxu0 0.0
    %483 = vmatpush1.xpose.msra.mxu0 0.0
    %484 = vmatprep.subr.mxu0 0.0
    %485 = vmatpush1.xpose.msra.mxu0 0.0
    %486 = vmatprep.subr.mxu0 0.0
    %487 = vmatpush1.xpose.msra.mxu0 0.0
    %488 = vmatprep.subr.mxu0 0.0
    %489 = vmatpush1.xpose.msra.mxu0 0.0
    %490 = vmatprep.subr.mxu0 0.0
    %491 = vmatpush1.xpose.msra.mxu0 0.0
    %492 = vmatprep.subr.mxu0 0.0
    %493 = vmatpush1.xpose.msra.mxu0 0.0
    %494 = vmatprep.mubr.f32.mxu0 0.0
    %495 = vmatmul.mubr.f32.gmra.mrb[0].mxu0 %v418
    %v496 = vpop.f32.mrb[0].mxu0
    %v497 = vadd.f32 0.0, %v496
    %v498 = vpop.f32.mrb[0].mxu0
    %499 = vmatprep.mubr.f32.mxu0 0.0
    %500 = vmatmul.mubr.f32.gmra.mrb[0].mxu0 %v420
    %v501 = vpop.f32.mrb[0].mxu0
    %v502 = vadd.f32 0.0, %v501
    %v503 = vpop.f32.mrb[0].mxu0
    %504 = vmatprep.mubr.f32.mxu0 0.0
    %505 = vmatmul.mubr.f32.gmra.mrb[0].mxu0 %v422
    %v506 = vpop.f32.mrb[0].mxu0
    %v507 = vadd.f32 0.0, %v506
    %v508 = vpop.f32.mrb[0].mxu0
    %509 = vdwg.mxu0
    %vm510 = vcmask 138240
    %v511 = vsel %vm510, %v497, -inf
    %512 = vmax.xlane.f32.xlu0 %v511
    %v513 = vpop.xlane.xlu0 %512
    %v514 = vsel %vm510, %v502, -inf
    %515 = vmax.xlane.f32.xlu0 %v514
    %v516 = vpop.xlane.xlu0 %515
    %vm517 = vcmask 131072
    %v518 = vsel %vm517, %v507, -inf
    %519 = vmax.xlane.f32.xlu0 %v518
    %v520 = vpop.xlane.xlu0 %519
    %v521 = vsub.f32 %v497, %v513
    %v522 = vsub.f32 %v502, %v516
    %v523 = vsub.f32 %v507, %v520
    %v524 = vmul.f32 %v521, 1.442695
    %v525 = vpow.pop %v524
    %v526 = vmul.f32 %v522, 1.442695
    %v527 = vpow.pop %v526
    %v528 = vmul.f32 %v523, 1.442695
    %v529 = vpow.pop %v528
    %v530 = vsel %vm510, %v525, 0.0
    %531 = vadd.xlane.f32.xlu0 %v530
    %v532 = vpop.xlane.xlu0 %531
    %v533 = vsel %vm510, %v527, 0.0
    %534 = vadd.xlane.f32.xlu0 %v533
    %v535 = vpop.xlane.xlu0 %534
    %v536 = vsel %vm517, %v529, 0.0
    %537 = vadd.xlane.f32.xlu0 %v536
    %v538 = vpop.xlane.xlu0 %537
    %v539 = vrcp.pop %v532
    %v540 = vrcp.pop %v535
    %v541 = vrcp.pop %v538
    %v542 = vmul.f32 %v525, %v539
    %v543 = vmul.f32 %v527, %v540
    %v544 = vmul.f32 %v529, %v541
    %545 = vrot.lane.b32.xlu0 %v385, 64
    %v546 = vpop.permute.xlu0 %545
    %547 = vrot.lane.b32.xlu0 %v390, 64
    %v548 = vpop.permute.xlu0 %547
    %549 = vrot.lane.b32.xlu0 %v395, 64
    %v550 = vpop.permute.xlu0 %549
    %v554 = vsel %vm510, %v542, 0
    %v557 = vsel %vm510, %v543, 0
    %v560 = vsel %vm510, %v544, 0
    %vm562 = vcmask 1040384
    %v563 = vsel %vm562, %v550, 0
    %565 = vmatprep.subr.mxu0 0.0
    %566 = vmatpush1.msra.mxu0 %v546
    %567 = vmatprep.subr.mxu0 0.0
    %568 = vmatpush1.msra.mxu0 %v548
    %569 = vmatprep.subr.mxu0 0.0
    %570 = vmatpush1.msra.mxu0 %v563
    %571 = vmatprep.subr.mxu0 0.0
    %572 = vmatpush1.msra.mxu0 0.0
    %573 = vmatprep.subr.mxu0 0.0
    %574 = vmatpush1.msra.mxu0 0.0
    %575 = vmatprep.subr.mxu0 0.0
    %576 = vmatpush1.msra.mxu0 0.0
    %577 = vmatprep.subr.mxu0 0.0
    %578 = vmatpush1.msra.mxu0 0.0
    %579 = vmatprep.subr.mxu0 0.0
    %580 = vmatpush1.msra.mxu0 0.0
    %581 = vmatprep.subr.mxu0 0.0
    %582 = vmatpush1.msra.mxu0 0.0
    %583 = vmatprep.subr.mxu0 0.0
    %584 = vmatpush1.msra.mxu0 0.0
    %585 = vmatprep.subr.mxu0 0.0
    %586 = vmatpush1.msra.mxu0 0.0
    %587 = vmatprep.subr.mxu0 0.0
    %588 = vmatpush1.msra.mxu0 0.0
    %589 = vmatprep.subr.mxu0 0.0
    %590 = vmatpush1.msra.mxu0 0.0
    %591 = vmatprep.subr.mxu0 0.0
    %592 = vmatpush1.msra.mxu0 0.0
    %593 = vmatprep.subr.mxu0 0.0
    %594 = vmatpush1.msra.mxu0 0.0
    %595 = vmatprep.subr.mxu0 0.0
    %596 = vmatpush1.msra.mxu0 0.0
    %597 = vmatprep.subr.mxu0 0.0
    %598 = vmatpush1.msra.mxu0 0.0
    %599 = vmatprep.subr.mxu0 0.0
    %600 = vmatpush1.msra.mxu0 0.0
    %601 = vmatprep.subr.mxu0 0.0
    %602 = vmatpush1.msra.mxu0 0.0
    %603 = vmatprep.subr.mxu0 0.0
    %604 = vmatpush1.msra.mxu0 0.0
    %605 = vmatprep.subr.mxu0 0.0
    %606 = vmatpush1.msra.mxu0 0.0
    %607 = vmatprep.subr.mxu0 0.0
    %608 = vmatpush1.msra.mxu0 0.0
    %609 = vmatprep.subr.mxu0 0.0
    %610 = vmatpush1.msra.mxu0 0.0
    %611 = vmatprep.subr.mxu0 0.0
    %612 = vmatpush1.msra.mxu0 0.0
    %613 = vmatprep.subr.mxu0 0.0
    %614 = vmatpush1.msra.mxu0 0.0
    %615 = vmatprep.subr.mxu0 0.0
    %616 = vmatpush1.msra.mxu0 0.0
    %617 = vmatprep.subr.mxu0 0.0
    %618 = vmatpush1.msra.mxu0 0.0
    %619 = vmatprep.subr.mxu0 0.0
    %620 = vmatpush1.msra.mxu0 0.0
    %621 = vmatprep.subr.mxu0 0.0
    %622 = vmatpush1.msra.mxu0 0.0
    %623 = vmatprep.subr.mxu0 0.0
    %624 = vmatpush1.msra.mxu0 0.0
    %625 = vmatprep.subr.mxu0 0.0
    %626 = vmatpush1.msra.mxu0 0.0
    %627 = vmatprep.subr.mxu0 0.0
    %628 = vmatpush1.msra.mxu0 0.0
    %629 = vmatprep.mubr.f32.mxu0 0.0
    %630 = vmatmul.mubr.f32.gmra.mrb[0].mxu0 %v554
    %v631 = vpop.f32.mrb[0].mxu0
    %v632 = vadd.f32 0.0, %v631
    %v633 = vpop.f32.mrb[0].mxu0
    %634 = vmatprep.mubr.f32.mxu0 0.0
    %635 = vmatmul.mubr.f32.gmra.mrb[0].mxu0 %v557
    %v636 = vpop.f32.mrb[0].mxu0
    %v637 = vadd.f32 0.0, %v636
    %v638 = vpop.f32.mrb[0].mxu0
    %639 = vmatprep.mubr.f32.mxu0 0.0
    %640 = vmatmul.mubr.f32.gmra.mrb[0].mxu0 %v560
    %v641 = vpop.f32.mrb[0].mxu0
    %v642 = vadd.f32 0.0, %v641
    %v643 = vpop.f32.mrb[0].mxu0
    %644 = vdwg.mxu0
    %645 = vst.msk [vmem:[#allocation3] sm:$0xff] %vm417, %v632
    %646 = vst.msk [vmem:[#allocation3 + $0x8] sm:$0xff] %vm417, %v637
    %vm647 = vcmask 57344
    %648 = vst.msk [vmem:[#allocation3 + $0x10] sm:$0x1] %vm647, %v642
    %649 = vrot.lane.b32.xlu0 %v385, 120
    %v650 = vpop.permute.xlu0 %649
    %651 = vrot.lane.b32.xlu0 %v390, 120
    %v652 = vpop.permute.xlu0 %651
    %653 = vrot.lane.b32.xlu0 %v395, 120
    %v654 = vpop.permute.xlu0 %653
    %655 = vrot.lane.b32.xlu0 %v385, 88
    %v656 = vpop.permute.xlu0 %655
    %657 = vrot.lane.b32.xlu0 %v390, 88
    %v658 = vpop.permute.xlu0 %657
    %659 = vrot.lane.b32.xlu0 %v395, 88
    %v660 = vpop.permute.xlu0 %659
    %v661 = vsel %vm417, %v650, 0
    %v663 = vsel %vm417, %v652, 0
    %v665 = vsel %vm417, %v654, 0
    %v667 = vsel %vm417, %v656, 0
    %v669 = vsel %vm417, %v658, 0
    %v671 = vsel %vm417, %v660, 0
    %673 = vmatprep.subr.mxu0 0.0
    %674 = vmatpush1.xpose.msra.mxu0 %v667
    %675 = vmatprep.subr.mxu0 0.0
    %676 = vmatpush1.xpose.msra.mxu0 %v669
    %677 = vmatprep.subr.mxu0 0.0
    %678 = vmatpush1.xpose.msra.mxu0 %v671
    %679 = vmatprep.subr.mxu0 0.0
    %680 = vmatpush1.xpose.msra.mxu0 0.0
    %681 = vmatprep.subr.mxu0 0.0
    %682 = vmatpush1.xpose.msra.mxu0 0.0
    %683 = vmatprep.subr.mxu0 0.0
    %684 = vmatpush1.xpose.msra.mxu0 0.0
    %685 = vmatprep.subr.mxu0 0.0
    %686 = vmatpush1.xpose.msra.mxu0 0.0
    %687 = vmatprep.subr.mxu0 0.0
    %688 = vmatpush1.xpose.msra.mxu0 0.0
    %689 = vmatprep.subr.mxu0 0.0
    %690 = vmatpush1.xpose.msra.mxu0 0.0
    %691 = vmatprep.subr.mxu0 0.0
    %692 = vmatpush1.xpose.msra.mxu0 0.0
    %693 = vmatprep.subr.mxu0 0.0
    %694 = vmatpush1.xpose.msra.mxu0 0.0
    %695 = vmatprep.subr.mxu0 0.0
    %696 = vmatpush1.xpose.msra.mxu0 0.0
    %697 = vmatprep.subr.mxu0 0.0
    %698 = vmatpush1.xpose.msra.mxu0 0.0
    %699 = vmatprep.subr.mxu0 0.0
    %700 = vmatpush1.xpose.msra.mxu0 0.0
    %701 = vmatprep.subr.mxu0 0.0
    %702 = vmatpush1.xpose.msra.mxu0 0.0
    %703 = vmatprep.subr.mxu0 0.0
    %704 = vmatpush1.xpose.msra.mxu0 0.0
    %705 = vmatprep.subr.mxu0 0.0
    %706 = vmatpush1.xpose.msra.mxu0 0.0
    %707 = vmatprep.subr.mxu0 0.0
    %708 = vmatpush1.xpose.msra.mxu0 0.0
    %709 = vmatprep.subr.mxu0 0.0
    %710 = vmatpush1.xpose.msra.mxu0 0.0
    %711 = vmatprep.subr.mxu0 0.0
    %712 = vmatpush1.xpose.msra.mxu0 0.0
    %713 = vmatprep.subr.mxu0 0.0
    %714 = vmatpush1.xpose.msra.mxu0 0.0
    %715 = vmatprep.subr.mxu0 0.0
    %716 = vmatpush1.xpose.msra.mxu0 0.0
    %717 = vmatprep.subr.mxu0 0.0
    %718 = vmatpush1.xpose.msra.mxu0 0.0
    %719 = vmatprep.subr.mxu0 0.0
    %720 = vmatpush1.xpose.msra.mxu0 0.0
    %721 = vmatprep.subr.mxu0 0.0
    %722 = vmatpush1.xpose.msra.mxu0 0.0
    %723 = vmatprep.subr.mxu0 0.0
    %724 = vmatpush1.xpose.msra.mxu0 0.0
    %725 = vmatprep.subr.mxu0 0.0
    %726 = vmatpush1.xpose.msra.mxu0 0.0
    %727 = vmatprep.subr.mxu0 0.0
    %728 = vmatpush1.xpose.msra.mxu0 0.0
    %729 = vmatprep.subr.mxu0 0.0
    %730 = vmatpush1.xpose.msra.mxu0 0.0
    %731 = vmatprep.subr.mxu0 0.0
    %732 = vmatpush1.xpose.msra.mxu0 0.0
    %733 = vmatprep.subr.mxu0 0.0
    %734 = vmatpush1.xpose.msra.mxu0 0.0
    %735 = vmatprep.subr.mxu0 0.0
    %736 = vmatpush1.xpose.msra.mxu0 0.0
    %737 = vmatprep.mubr.f32.mxu0 0.0
    %738 = vmatmul.mubr.f32.gmra.mrb[0].mxu0 %v661
    %v739 = vpop.f32.mrb[0].mxu0
    %v740 = vadd.f32 0.0, %v739
    %v741 = vpop.f32.mrb[0].mxu0
    %742 = vmatprep.mubr.f32.mxu0 0.0
    %743 = vmatmul.mubr.f32.gmra.mrb[0].mxu0 %v663
    %v744 = vpop.f32.mrb[0].mxu0
    %v745 = vadd.f32 0.0, %v744
    %v746 = vpop.f32.mrb[0].mxu0
    %747 = vmatprep.mubr.f32.mxu0 0.0
    %748 = vmatmul.mubr.f32.gmra.mrb[0].mxu0 %v665
    %v749 = vpop.f32.mrb[0].mxu0
    %v750 = vadd.f32 0.0, %v749
    %v751 = vpop.f32.mrb[0].mxu0
    %752 = vdwg.mxu0
    %v753 = vsel %vm510, %v740, -inf
    %754 = vmax.xlane.f32.xlu0 %v753
    %v755 = vpop.xlane.xlu0 %754
    %v756 = vsel %vm510, %v745, -inf
    %757 = vmax.xlane.f32.xlu0 %v756
    %v758 = vpop.xlane.xlu0 %757
    %v759 = vsel %vm517, %v750, -inf
    %760 = vmax.xlane.f32.xlu0 %v759
    %v761 = vpop.xlane.xlu0 %760
    %v762 = vsub.f32 %v740, %v755
    %v763 = vsub.f32 %v745, %v758
    %v764 = vsub.f32 %v750, %v761
    %v765 = vmul.f32 %v762, 1.442695
    %v766 = vpow.pop %v765
    %v767 = vmul.f32 %v763, 1.442695
    %v768 = vpow.pop %v767
    %v769 = vmul.f32 %v764, 1.442695
    %v770 = vpow.pop %v769
    %v771 = vsel %vm510, %v766, 0.0
    %772 = vadd.xlane.f32.xlu0 %v771
    %v773 = vpop.xlane.xlu0 %772
    %v774 = vsel %vm510, %v768, 0.0
    %775 = vadd.xlane.f32.xlu0 %v774
    %v776 = vpop.xlane.xlu0 %775
    %v777 = vsel %vm517, %v770, 0.0
    %778 = vadd.xlane.f32.xlu0 %v777
    %v779 = vpop.xlane.xlu0 %778
    %v780 = vrcp.pop %v773
    %v781 = vrcp.pop %v776
    %v782 = vrcp.pop %v779
    %v783 = vmul.f32 %v766, %v780
    %v784 = vmul.f32 %v768, %v781
    %v785 = vmul.f32 %v770, %v782
    %786 = vrot.lane.b32.xlu0 %v385, 56
    %v787 = vpop.permute.xlu0 %786
    %788 = vrot.lane.b32.xlu0 %v390, 56
    %v789 = vpop.permute.xlu0 %788
    %790 = vrot.lane.b32.xlu0 %v395, 56
    %v791 = vpop.permute.xlu0 %790
    %v795 = vsel %vm510, %v783, 0
    %v798 = vsel %vm510, %v784, 0
    %v801 = vsel %vm510, %v785, 0
    %v803 = vsel %vm562, %v791, 0
    %805 = vmatprep.subr.mxu0 0.0
    %806 = vmatpush1.msra.mxu0 %v787
    %807 = vmatprep.subr.mxu0 0.0
    %808 = vmatpush1.msra.mxu0 %v789
    %809 = vmatprep.subr.mxu0 0.0
    %810 = vmatpush1.msra.mxu0 %v803
    %811 = vmatprep.subr.mxu0 0.0
    %812 = vmatpush1.msra.mxu0 0.0
    %813 = vmatprep.subr.mxu0 0.0
    %814 = vmatpush1.msra.mxu0 0.0
    %815 = vmatprep.subr.mxu0 0.0
    %816 = vmatpush1.msra.mxu0 0.0
    %817 = vmatprep.subr.mxu0 0.0
    %818 = vmatpush1.msra.mxu0 0.0
    %819 = vmatprep.subr.mxu0 0.0
    %820 = vmatpush1.msra.mxu0 0.0
    %821 = vmatprep.subr.mxu0 0.0
    %822 = vmatpush1.msra.mxu0 0.0
    %823 = vmatprep.subr.mxu0 0.0
    %824 = vmatpush1.msra.mxu0 0.0
    %825 = vmatprep.subr.mxu0 0.0
    %826 = vmatpush1.msra.mxu0 0.0
    %827 = vmatprep.subr.mxu0 0.0
    %828 = vmatpush1.msra.mxu0 0.0
    %829 = vmatprep.subr.mxu0 0.0
    %830 = vmatpush1.msra.mxu0 0.0
    %831 = vmatprep.subr.mxu0 0.0
    %832 = vmatpush1.msra.mxu0 0.0
    %833 = vmatprep.subr.mxu0 0.0
    %834 = vmatpush1.msra.mxu0 0.0
    %835 = vmatprep.subr.mxu0 0.0
    %836 = vmatpush1.msra.mxu0 0.0
    %837 = vmatprep.subr.mxu0 0.0
    %838 = vmatpush1.msra.mxu0 0.0
    %839 = vmatprep.subr.mxu0 0.0
    %840 = vmatpush1.msra.mxu0 0.0
    %841 = vmatprep.subr.mxu0 0.0
    %842 = vmatpush1.msra.mxu0 0.0
    %843 = vmatprep.subr.mxu0 0.0
    %844 = vmatpush1.msra.mxu0 0.0
    %845 = vmatprep.subr.mxu0 0.0
    %846 = vmatpush1.msra.mxu0 0.0
    %847 = vmatprep.subr.mxu0 0.0
    %848 = vmatpush1.msra.mxu0 0.0
    %849 = vmatprep.subr.mxu0 0.0
    %850 = vmatpush1.msra.mxu0 0.0
    %851 = vmatprep.subr.mxu0 0.0
    %852 = vmatpush1.msra.mxu0 0.0
    %853 = vmatprep.subr.mxu0 0.0
    %854 = vmatpush1.msra.mxu0 0.0
    %855 = vmatprep.subr.mxu0 0.0
    %856 = vmatpush1.msra.mxu0 0.0
    %857 = vmatprep.subr.mxu0 0.0
    %858 = vmatpush1.msra.mxu0 0.0
    %859 = vmatprep.subr.mxu0 0.0
    %860 = vmatpush1.msra.mxu0 0.0
    %861 = vmatprep.subr.mxu0 0.0
    %862 = vmatpush1.msra.mxu0 0.0
    %863 = vmatprep.subr.mxu0 0.0
    %864 = vmatpush1.msra.mxu0 0.0
    %865 = vmatprep.subr.mxu0 0.0
    %866 = vmatpush1.msra.mxu0 0.0
    %867 = vmatprep.subr.mxu0 0.0
    %868 = vmatpush1.msra.mxu0 0.0
    %869 = vmatprep.mubr.f32.mxu0 0.0
    %870 = vmatmul.mubr.f32.gmra.mrb[0].mxu0 %v795
    %v871 = vpop.f32.mrb[0].mxu0
    %v872 = vadd.f32 0.0, %v871
    %v873 = vpop.f32.mrb[0].mxu0
    %874 = vmatprep.mubr.f32.mxu0 0.0
    %875 = vmatmul.mubr.f32.gmra.mrb[0].mxu0 %v798
    %v876 = vpop.f32.mrb[0].mxu0
    %v877 = vadd.f32 0.0, %v876
    %v878 = vpop.f32.mrb[0].mxu0
    %879 = vmatprep.mubr.f32.mxu0 0.0
    %880 = vmatmul.mubr.f32.gmra.mrb[0].mxu0 %v801
    %v881 = vpop.f32.mrb[0].mxu0
    %v882 = vadd.f32 0.0, %v881
    %v883 = vpop.f32.mrb[0].mxu0
    %884 = vdwg.mxu0
    %888 = vrot.lane.b32.xlu0 %v872, 8
    %v889 = vpop.permute.xlu0 %888
    %890 = vrot.lane.b32.xlu0 %v877, 8
    %v891 = vpop.permute.xlu0 %890
    %892 = vrot.lane.b32.xlu0 %v882, 8
    %v893 = vpop.permute.xlu0 %892
    %vm897 = vcmask 130112
    %898 = vst.msk [vmem:[#allocation3] sm:$0xff] %vm897, %v889
    %899 = vst.msk [vmem:[#allocation3 + $0x8] sm:$0xff] %vm897, %v891
    %vm900 = vcmask 122944
    %901 = vst.msk [vmem:[#allocation3 + $0x10] sm:$0x1] %vm900, %v893
    %902 = vrot.lane.b32.xlu0 %v385, 112
    %v903 = vpop.permute.xlu0 %902
    %904 = vrot.lane.b32.xlu0 %v390, 112
    %v905 = vpop.permute.xlu0 %904
    %906 = vrot.lane.b32.xlu0 %v395, 112
    %v907 = vpop.permute.xlu0 %906
    %908 = vrot.lane.b32.xlu0 %v385, 80
    %v909 = vpop.permute.xlu0 %908
    %910 = vrot.lane.b32.xlu0 %v390, 80
    %v911 = vpop.permute.xlu0 %910
    %912 = vrot.lane.b32.xlu0 %v395, 80
    %v913 = vpop.permute.xlu0 %912
    %v914 = vsel %vm417, %v903, 0
    %v916 = vsel %vm417, %v905, 0
    %v918 = vsel %vm417, %v907, 0
    %v920 = vsel %vm417, %v909, 0
    %v922 = vsel %vm417, %v911, 0
    %v924 = vsel %vm417, %v913, 0
    %926 = vmatprep.subr.mxu0 0.0
    %927 = vmatpush1.xpose.msra.mxu0 %v920
    %928 = vmatprep.subr.mxu0 0.0
    %929 = vmatpush1.xpose.msra.mxu0 %v922
    %930 = vmatprep.subr.mxu0 0.0
    %931 = vmatpush1.xpose.msra.mxu0 %v924
    %932 = vmatprep.subr.mxu0 0.0
    %933 = vmatpush1.xpose.msra.mxu0 0.0
    %934 = vmatprep.subr.mxu0 0.0
    %935 = vmatpush1.xpose.msra.mxu0 0.0
    %936 = vmatprep.subr.mxu0 0.0
    %937 = vmatpush1.xpose.msra.mxu0 0.0
    %938 = vmatprep.subr.mxu0 0.0
    %939 = vmatpush1.xpose.msra.mxu0 0.0
    %940 = vmatprep.subr.mxu0 0.0
    %941 = vmatpush1.xpose.msra.mxu0 0.0
    %942 = vmatprep.subr.mxu0 0.0
    %943 = vmatpush1.xpose.msra.mxu0 0.0
    %944 = vmatprep.subr.mxu0 0.0
    %945 = vmatpush1.xpose.msra.mxu0 0.0
    %946 = vmatprep.subr.mxu0 0.0
    %947 = vmatpush1.xpose.msra.mxu0 0.0
    %948 = vmatprep.subr.mxu0 0.0
    %949 = vmatpush1.xpose.msra.mxu0 0.0
    %950 = vmatprep.subr.mxu0 0.0
    %951 = vmatpush1.xpose.msra.mxu0 0.0
    %952 = vmatprep.subr.mxu0 0.0
    %953 = vmatpush1.xpose.msra.mxu0 0.0
    %954 = vmatprep.subr.mxu0 0.0
    %955 = vmatpush1.xpose.msra.mxu0 0.0
    %956 = vmatprep.subr.mxu0 0.0
    %957 = vmatpush1.xpose.msra.mxu0 0.0
    %958 = vmatprep.subr.mxu0 0.0
    %959 = vmatpush1.xpose.msra.mxu0 0.0
    %960 = vmatprep.subr.mxu0 0.0
    %961 = vmatpush1.xpose.msra.mxu0 0.0
    %962 = vmatprep.subr.mxu0 0.0
    %963 = vmatpush1.xpose.msra.mxu0 0.0
    %964 = vmatprep.subr.mxu0 0.0
    %965 = vmatpush1.xpose.msra.mxu0 0.0
    %966 = vmatprep.subr.mxu0 0.0
    %967 = vmatpush1.xpose.msra.mxu0 0.0
    %968 = vmatprep.subr.mxu0 0.0
    %969 = vmatpush1.xpose.msra.mxu0 0.0
    %970 = vmatprep.subr.mxu0 0.0
    %971 = vmatpush1.xpose.msra.mxu0 0.0
    %972 = vmatprep.subr.mxu0 0.0
    %973 = vmatpush1.xpose.msra.mxu0 0.0
    %974 = vmatprep.subr.mxu0 0.0
    %975 = vmatpush1.xpose.msra.mxu0 0.0
    %976 = vmatprep.subr.mxu0 0.0
    %977 = vmatpush1.xpose.msra.mxu0 0.0
    %978 = vmatprep.subr.mxu0 0.0
    %979 = vmatpush1.xpose.msra.mxu0 0.0
    %980 = vmatprep.subr.mxu0 0.0
    %981 = vmatpush1.xpose.msra.mxu0 0.0
    %982 = vmatprep.subr.mxu0 0.0
    %983 = vmatpush1.xpose.msra.mxu0 0.0
    %984 = vmatprep.subr.mxu0 0.0
    %985 = vmatpush1.xpose.msra.mxu0 0.0
    %986 = vmatprep.subr.mxu0 0.0
    %987 = vmatpush1.xpose.msra.mxu0 0.0
    %988 = vmatprep.subr.mxu0 0.0
    %989 = vmatpush1.xpose.msra.mxu0 0.0
    %990 = vmatprep.mubr.f32.mxu0 0.0
    %991 = vmatmul.mubr.f32.gmra.mrb[0].mxu0 %v914
    %v992 = vpop.f32.mrb[0].mxu0
    %v993 = vadd.f32 0.0, %v992
    %v994 = vpop.f32.mrb[0].mxu0
    %995 = vmatprep.mubr.f32.mxu0 0.0
    %996 = vmatmul.mubr.f32.gmra.mrb[0].mxu0 %v916
    %v997 = vpop.f32.mrb[0].mxu0
    %v998 = vadd.f32 0.0, %v997
    %v999 = vpop.f32.mrb[0].mxu0
    %1000 = vmatprep.mubr.f32.mxu0 0.0
    %1001 = vmatmul.mubr.f32.gmra.mrb[0].mxu0 %v918
    %v1002 = vpop.f32.mrb[0].mxu0
    %v1003 = vadd.f32 0.0, %v1002
    %v1004 = vpop.f32.mrb[0].mxu0
    %1005 = vdwg.mxu0
    %v1006 = vsel %vm510, %v993, -inf
    %1007 = vmax.xlane.f32.xlu0 %v1006
    %v1008 = vpop.xlane.xlu0 %1007
    %v1009 = vsel %vm510, %v998, -inf
    %1010 = vmax.xlane.f32.xlu0 %v1009
    %v1011 = vpop.xlane.xlu0 %1010
    %v1012 = vsel %vm517, %v1003, -inf
    %1013 = vmax.xlane.f32.xlu0 %v1012
    %v1014 = vpop.xlane.xlu0 %1013
    %v1015 = vsub.f32 %v993, %v1008
    %v1016 = vsub.f32 %v998, %v1011
    %v1017 = vsub.f32 %v1003, %v1014
    %v1018 = vmul.f32 %v1015, 1.442695
    %v1019 = vpow.pop %v1018
    %v1020 = vmul.f32 %v1016, 1.442695
    %v1021 = vpow.pop %v1020
    %v1022 = vmul.f32 %v1017, 1.442695
    %v1023 = vpow.pop %v1022
    %v1024 = vsel %vm510, %v1019, 0.0
    %1025 = vadd.xlane.f32.xlu0 %v1024
    %v1026 = vpop.xlane.xlu0 %1025
    %v1027 = vsel %vm510, %v1021, 0.0
    %1028 = vadd.xlane.f32.xlu0 %v1027
    %v1029 = vpop.xlane.xlu0 %1028
    %v1030 = vsel %vm517, %v1023, 0.0
    %1031 = vadd.xlane.f32.xlu0 %v1030
    %v1032 = vpop.xlane.xlu0 %1031
    %v1033 = vrcp.pop %v1026
    %v1034 = vrcp.pop %v1029
    %v1035 = vrcp.pop %v1032
    %v1036 = vmul.f32 %v1019, %v1033
    %v1037 = vmul.f32 %v1021, %v1034
    %v1038 = vmul.f32 %v1023, %v1035
    %1039 = vrot.lane.b32.xlu0 %v385, 48
    %v1040 = vpop.permute.xlu0 %1039
    %1041 = vrot.lane.b32.xlu0 %v390, 48
    %v1042 = vpop.permute.xlu0 %1041
    %1043 = vrot.lane.b32.xlu0 %v395, 48
    %v1044 = vpop.permute.xlu0 %1043
    %v1048 = vsel %vm510, %v1036, 0
    %v1051 = vsel %vm510, %v1037, 0
    %v1054 = vsel %vm510, %v1038, 0
    %v1056 = vsel %vm562, %v1044, 0
    %1058 = vmatprep.subr.mxu0 0.0
    %1059 = vmatpush1.msra.mxu0 %v1040
    %1060 = vmatprep.subr.mxu0 0.0
    %1061 = vmatpush1.msra.mxu0 %v1042
    %1062 = vmatprep.subr.mxu0 0.0
    %1063 = vmatpush1.msra.mxu0 %v1056
    %1064 = vmatprep.subr.mxu0 0.0
    %1065 = vmatpush1.msra.mxu0 0.0
    %1066 = vmatprep.subr.mxu0 0.0
    %1067 = vmatpush1.msra.mxu0 0.0
    %1068 = vmatprep.subr.mxu0 0.0
    %1069 = vmatpush1.msra.mxu0 0.0
    %1070 = vmatprep.subr.mxu0 0.0
    %1071 = vmatpush1.msra.mxu0 0.0
    %1072 = vmatprep.subr.mxu0 0.0
    %1073 = vmatpush1.msra.mxu0 0.0
    %1074 = vmatprep.subr.mxu0 0.0
    %1075 = vmatpush1.msra.mxu0 0.0
    %1076 = vmatprep.subr.mxu0 0.0
    %1077 = vmatpush1.msra.mxu0 0.0
    %1078 = vmatprep.subr.mxu0 0.0
    %1079 = vmatpush1.msra.mxu0 0.0
    %1080 = vmatprep.subr.mxu0 0.0
    %1081 = vmatpush1.msra.mxu0 0.0
    %1082 = vmatprep.subr.mxu0 0.0
    %1083 = vmatpush1.msra.mxu0 0.0
    %1084 = vmatprep.subr.mxu0 0.0
    %1085 = vmatpush1.msra.mxu0 0.0
    %1086 = vmatprep.subr.mxu0 0.0
    %1087 = vmatpush1.msra.mxu0 0.0
    %1088 = vmatprep.subr.mxu0 0.0
    %1089 = vmatpush1.msra.mxu0 0.0
    %1090 = vmatprep.subr.mxu0 0.0
    %1091 = vmatpush1.msra.mxu0 0.0
    %1092 = vmatprep.subr.mxu0 0.0
    %1093 = vmatpush1.msra.mxu0 0.0
    %1094 = vmatprep.subr.mxu0 0.0
    %1095 = vmatpush1.msra.mxu0 0.0
    %1096 = vmatprep.subr.mxu0 0.0
    %1097 = vmatpush1.msra.mxu0 0.0
    %1098 = vmatprep.subr.mxu0 0.0
    %1099 = vmatpush1.msra.mxu0 0.0
    %1100 = vmatprep.subr.mxu0 0.0
    %1101 = vmatpush1.msra.mxu0 0.0
    %1102 = vmatprep.subr.mxu0 0.0
    %1103 = vmatpush1.msra.mxu0 0.0
    %1104 = vmatprep.subr.mxu0 0.0
    %1105 = vmatpush1.msra.mxu0 0.0
    %1106 = vmatprep.subr.mxu0 0.0
    %1107 = vmatpush1.msra.mxu0 0.0
    %1108 = vmatprep.subr.mxu0 0.0
    %1109 = vmatpush1.msra.mxu0 0.0
    %1110 = vmatprep.subr.mxu0 0.0
    %1111 = vmatpush1.msra.mxu0 0.0
    %1112 = vmatprep.subr.mxu0 0.0
    %1113 = vmatpush1.msra.mxu0 0.0
    %1114 = vmatprep.subr.mxu0 0.0
    %1115 = vmatpush1.msra.mxu0 0.0
    %1116 = vmatprep.subr.mxu0 0.0
    %1117 = vmatpush1.msra.mxu0 0.0
    %1118 = vmatprep.subr.mxu0 0.0
    %1119 = vmatpush1.msra.mxu0 0.0
    %1120 = vmatprep.subr.mxu0 0.0
    %1121 = vmatpush1.msra.mxu0 0.0
    %1122 = vmatprep.mubr.f32.mxu0 0.0
    %1123 = vmatmul.mubr.f32.gmra.mrb[0].mxu0 %v1048
    %v1124 = vpop.f32.mrb[0].mxu0
    %v1125 = vadd.f32 0.0, %v1124
    %v1126 = vpop.f32.mrb[0].mxu0
    %1127 = vmatprep.mubr.f32.mxu0 0.0
    %1128 = vmatmul.mubr.f32.gmra.mrb[0].mxu0 %v1051
    %v1129 = vpop.f32.mrb[0].mxu0
    %v1130 = vadd.f32 0.0, %v1129
    %v1131 = vpop.f32.mrb[0].mxu0
    %1132 = vmatprep.mubr.f32.mxu0 0.0
    %1133 = vmatmul.mubr.f32.gmra.mrb[0].mxu0 %v1054
    %v1134 = vpop.f32.mrb[0].mxu0
    %v1135 = vadd.f32 0.0, %v1134
    %v1136 = vpop.f32.mrb[0].mxu0
    %1137 = vdwg.mxu0
    %1141 = vrot.lane.b32.xlu0 %v1125, 16
    %v1142 = vpop.permute.xlu0 %1141
    %1143 = vrot.lane.b32.xlu0 %v1130, 16
    %v1144 = vpop.permute.xlu0 %1143
    %1145 = vrot.lane.b32.xlu0 %v1135, 16
    %v1146 = vpop.permute.xlu0 %1145
    %vm1150 = vcmask 195712
    %1151 = vst.msk [vmem:[#allocation3] sm:$0xff] %vm1150, %v1142
    %1152 = vst.msk [vmem:[#allocation3 + $0x8] sm:$0xff] %vm1150, %v1144
    %vm1153 = vcmask 188544
    %1154 = vst.msk [vmem:[#allocation3 + $0x10] sm:$0x1] %vm1153, %v1146
    %1155 = vrot.lane.b32.xlu0 %v385, 104
    %v1156 = vpop.permute.xlu0 %1155
    %1157 = vrot.lane.b32.xlu0 %v390, 104
    %v1158 = vpop.permute.xlu0 %1157
    %1159 = vrot.lane.b32.xlu0 %v395, 104
    %v1160 = vpop.permute.xlu0 %1159
    %1161 = vrot.lane.b32.xlu0 %v385, 72
    %v1162 = vpop.permute.xlu0 %1161
    %1163 = vrot.lane.b32.xlu0 %v390, 72
    %v1164 = vpop.permute.xlu0 %1163
    %1165 = vrot.lane.b32.xlu0 %v395, 72
    %v1166 = vpop.permute.xlu0 %1165
    %v1167 = vsel %vm417, %v1156, 0
    %v1169 = vsel %vm417, %v1158, 0
    %v1171 = vsel %vm417, %v1160, 0
    %v1173 = vsel %vm417, %v1162, 0
    %v1175 = vsel %vm417, %v1164, 0
    %v1177 = vsel %vm417, %v1166, 0
    %1179 = vmatprep.subr.mxu0 0.0
    %1180 = vmatpush1.xpose.msra.mxu0 %v1173
    %1181 = vmatprep.subr.mxu0 0.0
    %1182 = vmatpush1.xpose.msra.mxu0 %v1175
    %1183 = vmatprep.subr.mxu0 0.0
    %1184 = vmatpush1.xpose.msra.mxu0 %v1177
    %1185 = vmatprep.subr.mxu0 0.0
    %1186 = vmatpush1.xpose.msra.mxu0 0.0
    %1187 = vmatprep.subr.mxu0 0.0
    %1188 = vmatpush1.xpose.msra.mxu0 0.0
    %1189 = vmatprep.subr.mxu0 0.0
    %1190 = vmatpush1.xpose.msra.mxu0 0.0
    %1191 = vmatprep.subr.mxu0 0.0
    %1192 = vmatpush1.xpose.msra.mxu0 0.0
    %1193 = vmatprep.subr.mxu0 0.0
    %1194 = vmatpush1.xpose.msra.mxu0 0.0
    %1195 = vmatprep.subr.mxu0 0.0
    %1196 = vmatpush1.xpose.msra.mxu0 0.0
    %1197 = vmatprep.subr.mxu0 0.0
    %1198 = vmatpush1.xpose.msra.mxu0 0.0
    %1199 = vmatprep.subr.mxu0 0.0
    %1200 = vmatpush1.xpose.msra.mxu0 0.0
    %1201 = vmatprep.subr.mxu0 0.0
    %1202 = vmatpush1.xpose.msra.mxu0 0.0
    %1203 = vmatprep.subr.mxu0 0.0
    %1204 = vmatpush1.xpose.msra.mxu0 0.0
    %1205 = vmatprep.subr.mxu0 0.0
    %1206 = vmatpush1.xpose.msra.mxu0 0.0
    %1207 = vmatprep.subr.mxu0 0.0
    %1208 = vmatpush1.xpose.msra.mxu0 0.0
    %1209 = vmatprep.subr.mxu0 0.0
    %1210 = vmatpush1.xpose.msra.mxu0 0.0
    %1211 = vmatprep.subr.mxu0 0.0
    %1212 = vmatpush1.xpose.msra.mxu0 0.0
    %1213 = vmatprep.subr.mxu0 0.0
    %1214 = vmatpush1.xpose.msra.mxu0 0.0
    %1215 = vmatprep.subr.mxu0 0.0
    %1216 = vmatpush1.xpose.msra.mxu0 0.0
    %1217 = vmatprep.subr.mxu0 0.0
    %1218 = vmatpush1.xpose.msra.mxu0 0.0
    %1219 = vmatprep.subr.mxu0 0.0
    %1220 = vmatpush1.xpose.msra.mxu0 0.0
    %1221 = vmatprep.subr.mxu0 0.0
    %1222 = vmatpush1.xpose.msra.mxu0 0.0
    %1223 = vmatprep.subr.mxu0 0.0
    %1224 = vmatpush1.xpose.msra.mxu0 0.0
    %1225 = vmatprep.subr.mxu0 0.0
    %1226 = vmatpush1.xpose.msra.mxu0 0.0
    %1227 = vmatprep.subr.mxu0 0.0
    %1228 = vmatpush1.xpose.msra.mxu0 0.0
    %1229 = vmatprep.subr.mxu0 0.0
    %1230 = vmatpush1.xpose.msra.mxu0 0.0
    %1231 = vmatprep.subr.mxu0 0.0
    %1232 = vmatpush1.xpose.msra.mxu0 0.0
    %1233 = vmatprep.subr.mxu0 0.0
    %1234 = vmatpush1.xpose.msra.mxu0 0.0
    %1235 = vmatprep.subr.mxu0 0.0
    %1236 = vmatpush1.xpose.msra.mxu0 0.0
    %1237 = vmatprep.subr.mxu0 0.0
    %1238 = vmatpush1.xpose.msra.mxu0 0.0
    %1239 = vmatprep.subr.mxu0 0.0
    %1240 = vmatpush1.xpose.msra.mxu0 0.0
    %1241 = vmatprep.subr.mxu0 0.0
    %1242 = vmatpush1.xpose.msra.mxu0 0.0
    %1243 = vmatprep.mubr.f32.mxu0 0.0
    %1244 = vmatmul.mubr.f32.gmra.mrb[0].mxu0 %v1167
    %v1245 = vpop.f32.mrb[0].mxu0
    %v1246 = vadd.f32 0.0, %v1245
    %v1247 = vpop.f32.mrb[0].mxu0
    %1248 = vmatprep.mubr.f32.mxu0 0.0
    %1249 = vmatmul.mubr.f32.gmra.mrb[0].mxu0 %v1169
    %v1250 = vpop.f32.mrb[0].mxu0
    %v1251 = vadd.f32 0.0, %v1250
    %v1252 = vpop.f32.mrb[0].mxu0
    %1253 = vmatprep.mubr.f32.mxu0 0.0
    %1254 = vmatmul.mubr.f32.gmra.mrb[0].mxu0 %v1171
    %v1255 = vpop.f32.mrb[0].mxu0
    %v1256 = vadd.f32 0.0, %v1255
    %v1257 = vpop.f32.mrb[0].mxu0
    %1258 = vdwg.mxu0
    %v1259 = vsel %vm510, %v1246, -inf
    %1260 = vmax.xlane.f32.xlu0 %v1259
    %v1261 = vpop.xlane.xlu0 %1260
    %v1262 = vsel %vm510, %v1251, -inf
    %1263 = vmax.xlane.f32.xlu0 %v1262
    %v1264 = vpop.xlane.xlu0 %1263
    %v1265 = vsel %vm517, %v1256, -inf
    %1266 = vmax.xlane.f32.xlu0 %v1265
    %v1267 = vpop.xlane.xlu0 %1266
    %v1268 = vsub.f32 %v1246, %v1261
    %v1269 = vsub.f32 %v1251, %v1264
    %v1270 = vsub.f32 %v1256, %v1267
    %v1271 = vmul.f32 %v1268, 1.442695
    %v1272 = vpow.pop %v1271
    %v1273 = vmul.f32 %v1269, 1.442695
    %v1274 = vpow.pop %v1273
    %v1275 = vmul.f32 %v1270, 1.442695
    %v1276 = vpow.pop %v1275
    %v1277 = vsel %vm510, %v1272, 0.0
    %1278 = vadd.xlane.f32.xlu0 %v1277
    %v1279 = vpop.xlane.xlu0 %1278
    %v1280 = vsel %vm510, %v1274, 0.0
    %1281 = vadd.xlane.f32.xlu0 %v1280
    %v1282 = vpop.xlane.xlu0 %1281
    %v1283 = vsel %vm517, %v1276, 0.0
    %1284 = vadd.xlane.f32.xlu0 %v1283
    %v1285 = vpop.xlane.xlu0 %1284
    %v1286 = vrcp.pop %v1279
    %v1287 = vrcp.pop %v1282
    %v1288 = vrcp.pop %v1285
    %v1289 = vmul.f32 %v1272, %v1286
    %v1290 = vmul.f32 %v1274, %v1287
    %v1291 = vmul.f32 %v1276, %v1288
    %1292 = vrot.lane.b32.xlu0 %v385, 40
    %v1293 = vpop.permute.xlu0 %1292
    %1294 = vrot.lane.b32.xlu0 %v390, 40
    %v1295 = vpop.permute.xlu0 %1294
    %1296 = vrot.lane.b32.xlu0 %v395, 40
    %v1297 = vpop.permute.xlu0 %1296
    %v1301 = vsel %vm510, %v1289, 0
    %v1304 = vsel %vm510, %v1290, 0
    %v1307 = vsel %vm510, %v1291, 0
    %v1309 = vsel %vm562, %v1297, 0
    %1311 = vmatprep.subr.mxu0 0.0
    %1312 = vmatpush1.msra.mxu0 %v1293
    %1313 = vmatprep.subr.mxu0 0.0
    %1314 = vmatpush1.msra.mxu0 %v1295
    %1315 = vmatprep.subr.mxu0 0.0
    %1316 = vmatpush1.msra.mxu0 %v1309
    %1317 = vmatprep.subr.mxu0 0.0
    %1318 = vmatpush1.msra.mxu0 0.0
    %1319 = vmatprep.subr.mxu0 0.0
    %1320 = vmatpush1.msra.mxu0 0.0
    %1321 = vmatprep.subr.mxu0 0.0
    %1322 = vmatpush1.msra.mxu0 0.0
    %1323 = vmatprep.subr.mxu0 0.0
    %1324 = vmatpush1.msra.mxu0 0.0
    %1325 = vmatprep.subr.mxu0 0.0
    %1326 = vmatpush1.msra.mxu0 0.0
    %1327 = vmatprep.subr.mxu0 0.0
    %1328 = vmatpush1.msra.mxu0 0.0
    %1329 = vmatprep.subr.mxu0 0.0
    %1330 = vmatpush1.msra.mxu0 0.0
    %1331 = vmatprep.subr.mxu0 0.0
    %1332 = vmatpush1.msra.mxu0 0.0
    %1333 = vmatprep.subr.mxu0 0.0
    %1334 = vmatpush1.msra.mxu0 0.0
    %1335 = vmatprep.subr.mxu0 0.0
    %1336 = vmatpush1.msra.mxu0 0.0
    %1337 = vmatprep.subr.mxu0 0.0
    %1338 = vmatpush1.msra.mxu0 0.0
    %1339 = vmatprep.subr.mxu0 0.0
    %1340 = vmatpush1.msra.mxu0 0.0
    %1341 = vmatprep.subr.mxu0 0.0
    %1342 = vmatpush1.msra.mxu0 0.0
    %1343 = vmatprep.subr.mxu0 0.0
    %1344 = vmatpush1.msra.mxu0 0.0
    %1345 = vmatprep.subr.mxu0 0.0
    %1346 = vmatpush1.msra.mxu0 0.0
    %1347 = vmatprep.subr.mxu0 0.0
    %1348 = vmatpush1.msra.mxu0 0.0
    %1349 = vmatprep.subr.mxu0 0.0
    %1350 = vmatpush1.msra.mxu0 0.0
    %1351 = vmatprep.subr.mxu0 0.0
    %1352 = vmatpush1.msra.mxu0 0.0
    %1353 = vmatprep.subr.mxu0 0.0
    %1354 = vmatpush1.msra.mxu0 0.0
    %1355 = vmatprep.subr.mxu0 0.0
    %1356 = vmatpush1.msra.mxu0 0.0
    %1357 = vmatprep.subr.mxu0 0.0
    %1358 = vmatpush1.msra.mxu0 0.0
    %1359 = vmatprep.subr.mxu0 0.0
    %1360 = vmatpush1.msra.mxu0 0.0
    %1361 = vmatprep.subr.mxu0 0.0
    %1362 = vmatpush1.msra.mxu0 0.0
    %1363 = vmatprep.subr.mxu0 0.0
    %1364 = vmatpush1.msra.mxu0 0.0
    %1365 = vmatprep.subr.mxu0 0.0
    %1366 = vmatpush1.msra.mxu0 0.0
    %1367 = vmatprep.subr.mxu0 0.0
    %1368 = vmatpush1.msra.mxu0 0.0
    %1369 = vmatprep.subr.mxu0 0.0
    %1370 = vmatpush1.msra.mxu0 0.0
    %1371 = vmatprep.subr.mxu0 0.0
    %1372 = vmatpush1.msra.mxu0 0.0
    %1373 = vmatprep.subr.mxu0 0.0
    %1374 = vmatpush1.msra.mxu0 0.0
    %1375 = vmatprep.mubr.f32.mxu0 0.0
    %1376 = vmatmul.mubr.f32.gmra.mrb[0].mxu0 %v1301
    %v1377 = vpop.f32.mrb[0].mxu0
    %v1378 = vadd.f32 0.0, %v1377
    %v1379 = vpop.f32.mrb[0].mxu0
    %1380 = vmatprep.mubr.f32.mxu0 0.0
    %1381 = vmatmul.mubr.f32.gmra.mrb[0].mxu0 %v1304
    %v1382 = vpop.f32.mrb[0].mxu0
    %v1383 = vadd.f32 0.0, %v1382
    %v1384 = vpop.f32.mrb[0].mxu0
    %1385 = vmatprep.mubr.f32.mxu0 0.0
    %1386 = vmatmul.mubr.f32.gmra.mrb[0].mxu0 %v1307
    %v1387 = vpop.f32.mrb[0].mxu0
    %v1388 = vadd.f32 0.0, %v1387
    %v1389 = vpop.f32.mrb[0].mxu0
    %1390 = vdwg.mxu0
    %1394 = vrot.lane.b32.xlu0 %v1378, 24
    %v1395 = vpop.permute.xlu0 %1394
    %1396 = vrot.lane.b32.xlu0 %v1383, 24
    %v1397 = vpop.permute.xlu0 %1396
    %1398 = vrot.lane.b32.xlu0 %v1388, 24
    %v1399 = vpop.permute.xlu0 %1398
    %vm1403 = vcmask 261312
    %1404 = vst.msk [vmem:[#allocation3] sm:$0xff] %vm1403, %v1395
    %1405 = vst.msk [vmem:[#allocation3 + $0x8] sm:$0xff] %vm1403, %v1397
    %vm1406 = vcmask 254144
    %1407 = vst.msk [vmem:[#allocation3 + $0x10] sm:$0x1] %vm1406, %v1399
    %v1410 = vrot.slane %v395, 1
    %v1411 = vrot.slane %v400, 1
    %v1412 = vsel %vm185, %v1410, %v1411
    %v1413 = vrot.slane %v405, 1
    %v1414 = vsel %vm185, %v1411, %v1413
    %1415 = vrot.lane.b32.xlu0 %v1412, 96
    %v1416 = vpop.permute.xlu0 %1415
    %1417 = vrot.lane.b32.xlu0 %v1414, 96
    %v1418 = vpop.permute.xlu0 %1417
    %1419 = vrot.lane.b32.xlu0 %v1413, 96
    %v1420 = vpop.permute.xlu0 %1419
    %v1421 = vsel %vm417, %v1412, 0
    %v1423 = vsel %vm417, %v1414, 0
    %v1425 = vsel %vm417, %v1413, 0
    %v1427 = vsel %vm417, %v1416, 0
    %v1429 = vsel %vm417, %v1418, 0
    %v1431 = vsel %vm417, %v1420, 0
    %1433 = vmatprep.subr.mxu0 0.0
    %1434 = vmatpush1.xpose.msra.mxu0 %v1427
    %1435 = vmatprep.subr.mxu0 0.0
    %1436 = vmatpush1.xpose.msra.mxu0 %v1429
    %1437 = vmatprep.subr.mxu0 0.0
    %1438 = vmatpush1.xpose.msra.mxu0 %v1431
    %1439 = vmatprep.subr.mxu0 0.0
    %1440 = vmatpush1.xpose.msra.mxu0 0.0
    %1441 = vmatprep.subr.mxu0 0.0
    %1442 = vmatpush1.xpose.msra.mxu0 0.0
    %1443 = vmatprep.subr.mxu0 0.0
    %1444 = vmatpush1.xpose.msra.mxu0 0.0
    %1445 = vmatprep.subr.mxu0 0.0
    %1446 = vmatpush1.xpose.msra.mxu0 0.0
    %1447 = vmatprep.subr.mxu0 0.0
    %1448 = vmatpush1.xpose.msra.mxu0 0.0
    %1449 = vmatprep.subr.mxu0 0.0
    %1450 = vmatpush1.xpose.msra.mxu0 0.0
    %1451 = vmatprep.subr.mxu0 0.0
    %1452 = vmatpush1.xpose.msra.mxu0 0.0
    %1453 = vmatprep.subr.mxu0 0.0
    %1454 = vmatpush1.xpose.msra.mxu0 0.0
    %1455 = vmatprep.subr.mxu0 0.0
    %1456 = vmatpush1.xpose.msra.mxu0 0.0
    %1457 = vmatprep.subr.mxu0 0.0
    %1458 = vmatpush1.xpose.msra.mxu0 0.0
    %1459 = vmatprep.subr.mxu0 0.0
    %1460 = vmatpush1.xpose.msra.mxu0 0.0
    %1461 = vmatprep.subr.mxu0 0.0
    %1462 = vmatpush1.xpose.msra.mxu0 0.0
    %1463 = vmatprep.subr.mxu0 0.0
    %1464 = vmatpush1.xpose.msra.mxu0 0.0
    %1465 = vmatprep.subr.mxu0 0.0
    %1466 = vmatpush1.xpose.msra.mxu0 0.0
    %1467 = vmatprep.subr.mxu0 0.0
    %1468 = vmatpush1.xpose.msra.mxu0 0.0
    %1469 = vmatprep.subr.mxu0 0.0
    %1470 = vmatpush1.xpose.msra.mxu0 0.0
    %1471 = vmatprep.subr.mxu0 0.0
    %1472 = vmatpush1.xpose.msra.mxu0 0.0
    %1473 = vmatprep.subr.mxu0 0.0
    %1474 = vmatpush1.xpose.msra.mxu0 0.0
    %1475 = vmatprep.subr.mxu0 0.0
    %1476 = vmatpush1.xpose.msra.mxu0 0.0
    %1477 = vmatprep.subr.mxu0 0.0
    %1478 = vmatpush1.xpose.msra.mxu0 0.0
    %1479 = vmatprep.subr.mxu0 0.0
    %1480 = vmatpush1.xpose.msra.mxu0 0.0
    %1481 = vmatprep.subr.mxu0 0.0
    %1482 = vmatpush1.xpose.msra.mxu0 0.0
    %1483 = vmatprep.subr.mxu0 0.0
    %1484 = vmatpush1.xpose.msra.mxu0 0.0
    %1485 = vmatprep.subr.mxu0 0.0
    %1486 = vmatpush1.xpose.msra.mxu0 0.0
    %1487 = vmatprep.subr.mxu0 0.0
    %1488 = vmatpush1.xpose.msra.mxu0 0.0
    %1489 = vmatprep.subr.mxu0 0.0
    %1490 = vmatpush1.xpose.msra.mxu0 0.0
    %1491 = vmatprep.subr.mxu0 0.0
    %1492 = vmatpush1.xpose.msra.mxu0 0.0
    %1493 = vmatprep.subr.mxu0 0.0
    %1494 = vmatpush1.xpose.msra.mxu0 0.0
    %1495 = vmatprep.subr.mxu0 0.0
    %1496 = vmatpush1.xpose.msra.mxu0 0.0
    %1497 = vmatprep.mubr.f32.mxu0 0.0
    %1498 = vmatmul.mubr.f32.gmra.mrb[0].mxu0 %v1421
    %v1499 = vpop.f32.mrb[0].mxu0
    %v1500 = vadd.f32 0.0, %v1499
    %v1501 = vpop.f32.mrb[0].mxu0
    %1502 = vmatprep.mubr.f32.mxu0 0.0
    %1503 = vmatmul.mubr.f32.gmra.mrb[0].mxu0 %v1423
    %v1504 = vpop.f32.mrb[0].mxu0
    %v1505 = vadd.f32 0.0, %v1504
    %v1506 = vpop.f32.mrb[0].mxu0
    %1507 = vmatprep.mubr.f32.mxu0 0.0
    %1508 = vmatmul.mubr.f32.gmra.mrb[0].mxu0 %v1425
    %v1509 = vpop.f32.mrb[0].mxu0
    %v1510 = vadd.f32 0.0, %v1509
    %v1511 = vpop.f32.mrb[0].mxu0
    %1512 = vdwg.mxu0
    %v1513 = vsel %vm510, %v1500, -inf
    %1514 = vmax.xlane.f32.xlu0 %v1513
    %v1515 = vpop.xlane.xlu0 %1514
    %v1516 = vsel %vm510, %v1505, -inf
    %1517 = vmax.xlane.f32.xlu0 %v1516
    %v1518 = vpop.xlane.xlu0 %1517
    %v1519 = vsel %vm517, %v1510, -inf
    %1520 = vmax.xlane.f32.xlu0 %v1519
    %v1521 = vpop.xlane.xlu0 %1520
    %v1522 = vsub.f32 %v1500, %v1515
    %v1523 = vsub.f32 %v1505, %v1518
    %v1524 = vsub.f32 %v1510, %v1521
    %v1525 = vmul.f32 %v1522, 1.442695
    %v1526 = vpow.pop %v1525
    %v1527 = vmul.f32 %v1523, 1.442695
    %v1528 = vpow.pop %v1527
    %v1529 = vmul.f32 %v1524, 1.442695
    %v1530 = vpow.pop %v1529
    %v1531 = vsel %vm510, %v1526, 0.0
    %1532 = vadd.xlane.f32.xlu0 %v1531
    %v1533 = vpop.xlane.xlu0 %1532
    %v1534 = vsel %vm510, %v1528, 0.0
    %1535 = vadd.xlane.f32.xlu0 %v1534
    %v1536 = vpop.xlane.xlu0 %1535
    %v1537 = vsel %vm517, %v1530, 0.0
    %1538 = vadd.xlane.f32.xlu0 %v1537
    %v1539 = vpop.xlane.xlu0 %1538
    %v1540 = vrcp.pop %v1533
    %v1541 = vrcp.pop %v1536
    %v1542 = vrcp.pop %v1539
    %v1543 = vmul.f32 %v1526, %v1540
    %v1544 = vmul.f32 %v1528, %v1541
    %v1545 = vmul.f32 %v1530, %v1542
    %1546 = vrot.lane.b32.xlu0 %v1412, 64
    %v1547 = vpop.permute.xlu0 %1546
    %1548 = vrot.lane.b32.xlu0 %v1414, 64
    %v1549 = vpop.permute.xlu0 %1548
    %1550 = vrot.lane.b32.xlu0 %v1413, 64
    %v1551 = vpop.permute.xlu0 %1550
    %v1555 = vsel %vm510, %v1543, 0
    %v1558 = vsel %vm510, %v1544, 0
    %v1561 = vsel %vm510, %v1545, 0
    %v1563 = vsel %vm562, %v1551, 0
    %1565 = vmatprep.subr.mxu0 0.0
    %1566 = vmatpush1.msra.mxu0 %v1547
    %1567 = vmatprep.subr.mxu0 0.0
    %1568 = vmatpush1.msra.mxu0 %v1549
    %1569 = vmatprep.subr.mxu0 0.0
    %1570 = vmatpush1.msra.mxu0 %v1563
    %1571 = vmatprep.subr.mxu0 0.0
    %1572 = vmatpush1.msra.mxu0 0.0
    %1573 = vmatprep.subr.mxu0 0.0
    %1574 = vmatpush1.msra.mxu0 0.0
    %1575 = vmatprep.subr.mxu0 0.0
    %1576 = vmatpush1.msra.mxu0 0.0
    %1577 = vmatprep.subr.mxu0 0.0
    %1578 = vmatpush1.msra.mxu0 0.0
    %1579 = vmatprep.subr.mxu0 0.0
    %1580 = vmatpush1.msra.mxu0 0.0
    %1581 = vmatprep.subr.mxu0 0.0
    %1582 = vmatpush1.msra.mxu0 0.0
    %1583 = vmatprep.subr.mxu0 0.0
    %1584 = vmatpush1.msra.mxu0 0.0
    %1585 = vmatprep.subr.mxu0 0.0
    %1586 = vmatpush1.msra.mxu0 0.0
    %1587 = vmatprep.subr.mxu0 0.0
    %1588 = vmatpush1.msra.mxu0 0.0
    %1589 = vmatprep.subr.mxu0 0.0
    %1590 = vmatpush1.msra.mxu0 0.0
    %1591 = vmatprep.subr.mxu0 0.0
    %1592 = vmatpush1.msra.mxu0 0.0
    %1593 = vmatprep.subr.mxu0 0.0
    %1594 = vmatpush1.msra.mxu0 0.0
    %1595 = vmatprep.subr.mxu0 0.0
    %1596 = vmatpush1.msra.mxu0 0.0
    %1597 = vmatprep.subr.mxu0 0.0
    %1598 = vmatpush1.msra.mxu0 0.0
    %1599 = vmatprep.subr.mxu0 0.0
    %1600 = vmatpush1.msra.mxu0 0.0
    %1601 = vmatprep.subr.mxu0 0.0
    %1602 = vmatpush1.msra.mxu0 0.0
    %1603 = vmatprep.subr.mxu0 0.0
    %1604 = vmatpush1.msra.mxu0 0.0
    %1605 = vmatprep.subr.mxu0 0.0
    %1606 = vmatpush1.msra.mxu0 0.0
    %1607 = vmatprep.subr.mxu0 0.0
    %1608 = vmatpush1.msra.mxu0 0.0
    %1609 = vmatprep.subr.mxu0 0.0
    %1610 = vmatpush1.msra.mxu0 0.0
    %1611 = vmatprep.subr.mxu0 0.0
    %1612 = vmatpush1.msra.mxu0 0.0
    %1613 = vmatprep.subr.mxu0 0.0
    %1614 = vmatpush1.msra.mxu0 0.0
    %1615 = vmatprep.subr.mxu0 0.0
    %1616 = vmatpush1.msra.mxu0 0.0
    %1617 = vmatprep.subr.mxu0 0.0
    %1618 = vmatpush1.msra.mxu0 0.0
    %1619 = vmatprep.subr.mxu0 0.0
    %1620 = vmatpush1.msra.mxu0 0.0
    %1621 = vmatprep.subr.mxu0 0.0
    %1622 = vmatpush1.msra.mxu0 0.0
    %1623 = vmatprep.subr.mxu0 0.0
    %1624 = vmatpush1.msra.mxu0 0.0
    %1625 = vmatprep.subr.mxu0 0.0
    %1626 = vmatpush1.msra.mxu0 0.0
    %1627 = vmatprep.subr.mxu0 0.0
    %1628 = vmatpush1.msra.mxu0 0.0
    %1629 = vmatprep.mubr.f32.mxu0 0.0
    %1630 = vmatmul.mubr.f32.gmra.mrb[0].mxu0 %v1555
    %v1631 = vpop.f32.mrb[0].mxu0
    %v1632 = vadd.f32 0.0, %v1631
    %v1633 = vpop.f32.mrb[0].mxu0
    %1634 = vmatprep.mubr.f32.mxu0 0.0
    %1635 = vmatmul.mubr.f32.gmra.mrb[0].mxu0 %v1558
    %v1636 = vpop.f32.mrb[0].mxu0
    %v1637 = vadd.f32 0.0, %v1636
    %v1638 = vpop.f32.mrb[0].mxu0
    %1639 = vmatprep.mubr.f32.mxu0 0.0
    %1640 = vmatmul.mubr.f32.gmra.mrb[0].mxu0 %v1561
    %v1641 = vpop.f32.mrb[0].mxu0
    %v1642 = vadd.f32 0.0, %v1641
    %v1643 = vpop.f32.mrb[0].mxu0
    %1644 = vdwg.mxu0
    %1645 = vst.msk [vmem:[#allocation3 + $0x11] sm:$0xff] %vm417, %v1632
    %1646 = vst.msk [vmem:[#allocation3 + $0x19] sm:$0xff] %vm417, %v1637
    %1647 = vst.msk [vmem:[#allocation3 + $0x21] sm:$0x1] %vm647, %v1642
    %1648 = vrot.lane.b32.xlu0 %v1412, 120
    %v1649 = vpop.permute.xlu0 %1648
    %1650 = vrot.lane.b32.xlu0 %v1414, 120
    %v1651 = vpop.permute.xlu0 %1650
    %1652 = vrot.lane.b32.xlu0 %v1413, 120
    %v1653 = vpop.permute.xlu0 %1652
    %1654 = vrot.lane.b32.xlu0 %v1412, 88
    %v1655 = vpop.permute.xlu0 %1654
    %1656 = vrot.lane.b32.xlu0 %v1414, 88
    %v1657 = vpop.permute.xlu0 %1656
    %1658 = vrot.lane.b32.xlu0 %v1413, 88
    %v1659 = vpop.permute.xlu0 %1658
    %v1660 = vsel %vm417, %v1649, 0
    %v1662 = vsel %vm417, %v1651, 0
    %v1664 = vsel %vm417, %v1653, 0
    %v1666 = vsel %vm417, %v1655, 0
    %v1668 = vsel %vm417, %v1657, 0
    %v1670 = vsel %vm417, %v1659, 0
    %1672 = vmatprep.subr.mxu0 0.0
    %1673 = vmatpush1.xpose.msra.mxu0 %v1666
    %1674 = vmatprep.subr.mxu0 0.0
    %1675 = vmatpush1.xpose.msra.mxu0 %v1668
    %1676 = vmatprep.subr.mxu0 0.0
    %1677 = vmatpush1.xpose.msra.mxu0 %v1670
    %1678 = vmatprep.subr.mxu0 0.0
    %1679 = vmatpush1.xpose.msra.mxu0 0.0
    %1680 = vmatprep.subr.mxu0 0.0
    %1681 = vmatpush1.xpose.msra.mxu0 0.0
    %1682 = vmatprep.subr.mxu0 0.0
    %1683 = vmatpush1.xpose.msra.mxu0 0.0
    %1684 = vmatprep.subr.mxu0 0.0
    %1685 = vmatpush1.xpose.msra.mxu0 0.0
    %1686 = vmatprep.subr.mxu0 0.0
    %1687 = vmatpush1.xpose.msra.mxu0 0.0
    %1688 = vmatprep.subr.mxu0 0.0
    %1689 = vmatpush1.xpose.msra.mxu0 0.0
    %1690 = vmatprep.subr.mxu0 0.0
    %1691 = vmatpush1.xpose.msra.mxu0 0.0
    %1692 = vmatprep.subr.mxu0 0.0
    %1693 = vmatpush1.xpose.msra.mxu0 0.0
    %1694 = vmatprep.subr.mxu0 0.0
    %1695 = vmatpush1.xpose.msra.mxu0 0.0
    %1696 = vmatprep.subr.mxu0 0.0
    %1697 = vmatpush1.xpose.msra.mxu0 0.0
    %1698 = vmatprep.subr.mxu0 0.0
    %1699 = vmatpush1.xpose.msra.mxu0 0.0
    %1700 = vmatprep.subr.mxu0 0.0
    %1701 = vmatpush1.xpose.msra.mxu0 0.0
    %1702 = vmatprep.subr.mxu0 0.0
    %1703 = vmatpush1.xpose.msra.mxu0 0.0
    %1704 = vmatprep.subr.mxu0 0.0
    %1705 = vmatpush1.xpose.msra.mxu0 0.0
    %1706 = vmatprep.subr.mxu0 0.0
    %1707 = vmatpush1.xpose.msra.mxu0 0.0
    %1708 = vmatprep.subr.mxu0 0.0
    %1709 = vmatpush1.xpose.msra.mxu0 0.0
    %1710 = vmatprep.subr.mxu0 0.0
    %1711 = vmatpush1.xpose.msra.mxu0 0.0
    %1712 = vmatprep.subr.mxu0 0.0
    %1713 = vmatpush1.xpose.msra.mxu0 0.0
    %1714 = vmatprep.subr.mxu0 0.0
    %1715 = vmatpush1.xpose.msra.mxu0 0.0
    %1716 = vmatprep.subr.mxu0 0.0
    %1717 = vmatpush1.xpose.msra.mxu0 0.0
    %1718 = vmatprep.subr.mxu0 0.0
    %1719 = vmatpush1.xpose.msra.mxu0 0.0
    %1720 = vmatprep.subr.mxu0 0.0
    %1721 = vmatpush1.xpose.msra.mxu0 0.0
    %1722 = vmatprep.subr.mxu0 0.0
    %1723 = vmatpush1.xpose.msra.mxu0 0.0
    %1724 = vmatprep.subr.mxu0 0.0
    %1725 = vmatpush1.xpose.msra.mxu0 0.0
    %1726 = vmatprep.subr.mxu0 0.0
    %1727 = vmatpush1.xpose.msra.mxu0 0.0
    %1728 = vmatprep.subr.mxu0 0.0
    %1729 = vmatpush1.xpose.msra.mxu0 0.0
    %1730 = vmatprep.subr.mxu0 0.0
    %1731 = vmatpush1.xpose.msra.mxu0 0.0
    %1732 = vmatprep.subr.mxu0 0.0
    %1733 = vmatpush1.xpose.msra.mxu0 0.0
    %1734 = vmatprep.subr.mxu0 0.0
    %1735 = vmatpush1.xpose.msra.mxu0 0.0
    %1736 = vmatprep.mubr.f32.mxu0 0.0
    %1737 = vmatmul.mubr.f32.gmra.mrb[0].mxu0 %v1660
    %v1738 = vpop.f32.mrb[0].mxu0
    %v1739 = vadd.f32 0.0, %v1738
    %v1740 = vpop.f32.mrb[0].mxu0
    %1741 = vmatprep.mubr.f32.mxu0 0.0
    %1742 = vmatmul.mubr.f32.gmra.mrb[0].mxu0 %v1662
    %v1743 = vpop.f32.mrb[0].mxu0
    %v1744 = vadd.f32 0.0, %v1743
    %v1745 = vpop.f32.mrb[0].mxu0
    %1746 = vmatprep.mubr.f32.mxu0 0.0
    %1747 = vmatmul.mubr.f32.gmra.mrb[0].mxu0 %v1664
    %v1748 = vpop.f32.mrb[0].mxu0
    %v1749 = vadd.f32 0.0, %v1748
    %v1750 = vpop.f32.mrb[0].mxu0
    %1751 = vdwg.mxu0
    %v1752 = vsel %vm510, %v1739, -inf
    %1753 = vmax.xlane.f32.xlu0 %v1752
    %v1754 = vpop.xlane.xlu0 %1753
    %v1755 = vsel %vm510, %v1744, -inf
    %1756 = vmax.xlane.f32.xlu0 %v1755
    %v1757 = vpop.xlane.xlu0 %1756
    %v1758 = vsel %vm517, %v1749, -inf
    %1759 = vmax.xlane.f32.xlu0 %v1758
    %v1760 = vpop.xlane.xlu0 %1759
    %v1761 = vsub.f32 %v1739, %v1754
    %v1762 = vsub.f32 %v1744, %v1757
    %v1763 = vsub.f32 %v1749, %v1760
    %v1764 = vmul.f32 %v1761, 1.442695
    %v1765 = vpow.pop %v1764
    %v1766 = vmul.f32 %v1762, 1.442695
    %v1767 = vpow.pop %v1766
    %v1768 = vmul.f32 %v1763, 1.442695
    %v1769 = vpow.pop %v1768
    %v1770 = vsel %vm510, %v1765, 0.0
    %1771 = vadd.xlane.f32.xlu0 %v1770
    %v1772 = vpop.xlane.xlu0 %1771
    %v1773 = vsel %vm510, %v1767, 0.0
    %1774 = vadd.xlane.f32.xlu0 %v1773
    %v1775 = vpop.xlane.xlu0 %1774
    %v1776 = vsel %vm517, %v1769, 0.0
    %1777 = vadd.xlane.f32.xlu0 %v1776
    %v1778 = vpop.xlane.xlu0 %1777
    %v1779 = vrcp.pop %v1772
    %v1780 = vrcp.pop %v1775
    %v1781 = vrcp.pop %v1778
    %v1782 = vmul.f32 %v1765, %v1779
    %v1783 = vmul.f32 %v1767, %v1780
    %v1784 = vmul.f32 %v1769, %v1781
    %1785 = vrot.lane.b32.xlu0 %v1412, 56
    %v1786 = vpop.permute.xlu0 %1785
    %1787 = vrot.lane.b32.xlu0 %v1414, 56
    %v1788 = vpop.permute.xlu0 %1787
    %1789 = vrot.lane.b32.xlu0 %v1413, 56
    %v1790 = vpop.permute.xlu0 %1789
    %v1794 = vsel %vm510, %v1782, 0
    %v1797 = vsel %vm510, %v1783, 0
    %v1800 = vsel %vm510, %v1784, 0
    %v1802 = vsel %vm562, %v1790, 0
    %1804 = vmatprep.subr.mxu0 0.0
    %1805 = vmatpush1.msra.mxu0 %v1786
    %1806 = vmatprep.subr.mxu0 0.0
    %1807 = vmatpush1.msra.mxu0 %v1788
    %1808 = vmatprep.subr.mxu0 0.0
    %1809 = vmatpush1.msra.mxu0 %v1802
    %1810 = vmatprep.subr.mxu0 0.0
    %1811 = vmatpush1.msra.mxu0 0.0
    %1812 = vmatprep.subr.mxu0 0.0
    %1813 = vmatpush1.msra.mxu0 0.0
    %1814 = vmatprep.subr.mxu0 0.0
    %1815 = vmatpush1.msra.mxu0 0.0
    %1816 = vmatprep.subr.mxu0 0.0
    %1817 = vmatpush1.msra.mxu0 0.0
    %1818 = vmatprep.subr.mxu0 0.0
    %1819 = vmatpush1.msra.mxu0 0.0
    %1820 = vmatprep.subr.mxu0 0.0
    %1821 = vmatpush1.msra.mxu0 0.0
    %1822 = vmatprep.subr.mxu0 0.0
    %1823 = vmatpush1.msra.mxu0 0.0
    %1824 = vmatprep.subr.mxu0 0.0
    %1825 = vmatpush1.msra.mxu0 0.0
    %1826 = vmatprep.subr.mxu0 0.0
    %1827 = vmatpush1.msra.mxu0 0.0
    %1828 = vmatprep.subr.mxu0 0.0
    %1829 = vmatpush1.msra.mxu0 0.0
    %1830 = vmatprep.subr.mxu0 0.0
    %1831 = vmatpush1.msra.mxu0 0.0
    %1832 = vmatprep.subr.mxu0 0.0
    %1833 = vmatpush1.msra.mxu0 0.0
    %1834 = vmatprep.subr.mxu0 0.0
    %1835 = vmatpush1.msra.mxu0 0.0
    %1836 = vmatprep.subr.mxu0 0.0
    %1837 = vmatpush1.msra.mxu0 0.0
    %1838 = vmatprep.subr.mxu0 0.0
    %1839 = vmatpush1.msra.mxu0 0.0
    %1840 = vmatprep.subr.mxu0 0.0
    %1841 = vmatpush1.msra.mxu0 0.0
    %1842 = vmatprep.subr.mxu0 0.0
    %1843 = vmatpush1.msra.mxu0 0.0
    %1844 = vmatprep.subr.mxu0 0.0
    %1845 = vmatpush1.msra.mxu0 0.0
    %1846 = vmatprep.subr.mxu0 0.0
    %1847 = vmatpush1.msra.mxu0 0.0
    %1848 = vmatprep.subr.mxu0 0.0
    %1849 = vmatpush1.msra.mxu0 0.0
    %1850 = vmatprep.subr.mxu0 0.0
    %1851 = vmatpush1.msra.mxu0 0.0
    %1852 = vmatprep.subr.mxu0 0.0
    %1853 = vmatpush1.msra.mxu0 0.0
    %1854 = vmatprep.subr.mxu0 0.0
    %1855 = vmatpush1.msra.mxu0 0.0
    %1856 = vmatprep.subr.mxu0 0.0
    %1857 = vmatpush1.msra.mxu0 0.0
    %1858 = vmatprep.subr.mxu0 0.0
    %1859 = vmatpush1.msra.mxu0 0.0
    %1860 = vmatprep.subr.mxu0 0.0
    %1861 = vmatpush1.msra.mxu0 0.0
    %1862 = vmatprep.subr.mxu0 0.0
    %1863 = vmatpush1.msra.mxu0 0.0
    %1864 = vmatprep.subr.mxu0 0.0
    %1865 = vmatpush1.msra.mxu0 0.0
    %1866 = vmatprep.subr.mxu0 0.0
    %1867 = vmatpush1.msra.mxu0 0.0
    %1868 = vmatprep.mubr.f32.mxu0 0.0
    %1869 = vmatmul.mubr.f32.gmra.mrb[0].mxu0 %v1794
    %v1870 = vpop.f32.mrb[0].mxu0
    %v1871 = vadd.f32 0.0, %v1870
    %v1872 = vpop.f32.mrb[0].mxu0
    %1873 = vmatprep.mubr.f32.mxu0 0.0
    %1874 = vmatmul.mubr.f32.gmra.mrb[0].mxu0 %v1797
    %v1875 = vpop.f32.mrb[0].mxu0
    %v1876 = vadd.f32 0.0, %v1875
    %v1877 = vpop.f32.mrb[0].mxu0
    %1878 = vmatprep.mubr.f32.mxu0 0.0
    %1879 = vmatmul.mubr.f32.gmra.mrb[0].mxu0 %v1800
    %v1880 = vpop.f32.mrb[0].mxu0
    %v1881 = vadd.f32 0.0, %v1880
    %v1882 = vpop.f32.mrb[0].mxu0
    %1883 = vdwg.mxu0
    %1887 = vrot.lane.b32.xlu0 %v1871, 8
    %v1888 = vpop.permute.xlu0 %1887
    %1889 = vrot.lane.b32.xlu0 %v1876, 8
    %v1890 = vpop.permute.xlu0 %1889
    %1891 = vrot.lane.b32.xlu0 %v1881, 8
    %v1892 = vpop.permute.xlu0 %1891
    %1896 = vst.msk [vmem:[#allocation3 + $0x11] sm:$0xff] %vm897, %v1888
    %1897 = vst.msk [vmem:[#allocation3 + $0x19] sm:$0xff] %vm897, %v1890
    %1898 = vst.msk [vmem:[#allocation3 + $0x21] sm:$0x1] %vm900, %v1892
    %1899 = vrot.lane.b32.xlu0 %v1412, 112
    %v1900 = vpop.permute.xlu0 %1899
    %1901 = vrot.lane.b32.xlu0 %v1414, 112
    %v1902 = vpop.permute.xlu0 %1901
    %1903 = vrot.lane.b32.xlu0 %v1413, 112
    %v1904 = vpop.permute.xlu0 %1903
    %1905 = vrot.lane.b32.xlu0 %v1412, 80
    %v1906 = vpop.permute.xlu0 %1905
    %1907 = vrot.lane.b32.xlu0 %v1414, 80
    %v1908 = vpop.permute.xlu0 %1907
    %1909 = vrot.lane.b32.xlu0 %v1413, 80
    %v1910 = vpop.permute.xlu0 %1909
    %v1911 = vsel %vm417, %v1900, 0
    %v1913 = vsel %vm417, %v1902, 0
    %v1915 = vsel %vm417, %v1904, 0
    %v1917 = vsel %vm417, %v1906, 0
    %v1919 = vsel %vm417, %v1908, 0
    %v1921 = vsel %vm417, %v1910, 0
    %1923 = vmatprep.subr.mxu0 0.0
    %1924 = vmatpush1.xpose.msra.mxu0 %v1917
    %1925 = vmatprep.subr.mxu0 0.0
    %1926 = vmatpush1.xpose.msra.mxu0 %v1919
    %1927 = vmatprep.subr.mxu0 0.0
    %1928 = vmatpush1.xpose.msra.mxu0 %v1921
    %1929 = vmatprep.subr.mxu0 0.0
    %1930 = vmatpush1.xpose.msra.mxu0 0.0
    %1931 = vmatprep.subr.mxu0 0.0
    %1932 = vmatpush1.xpose.msra.mxu0 0.0
    %1933 = vmatprep.subr.mxu0 0.0
    %1934 = vmatpush1.xpose.msra.mxu0 0.0
    %1935 = vmatprep.subr.mxu0 0.0
    %1936 = vmatpush1.xpose.msra.mxu0 0.0
    %1937 = vmatprep.subr.mxu0 0.0
    %1938 = vmatpush1.xpose.msra.mxu0 0.0
    %1939 = vmatprep.subr.mxu0 0.0
    %1940 = vmatpush1.xpose.msra.mxu0 0.0
    %1941 = vmatprep.subr.mxu0 0.0
    %1942 = vmatpush1.xpose.msra.mxu0 0.0
    %1943 = vmatprep.subr.mxu0 0.0
    %1944 = vmatpush1.xpose.msra.mxu0 0.0
    %1945 = vmatprep.subr.mxu0 0.0
    %1946 = vmatpush1.xpose.msra.mxu0 0.0
    %1947 = vmatprep.subr.mxu0 0.0
    %1948 = vmatpush1.xpose.msra.mxu0 0.0
    %1949 = vmatprep.subr.mxu0 0.0
    %1950 = vmatpush1.xpose.msra.mxu0 0.0
    %1951 = vmatprep.subr.mxu0 0.0
    %1952 = vmatpush1.xpose.msra.mxu0 0.0
    %1953 = vmatprep.subr.mxu0 0.0
    %1954 = vmatpush1.xpose.msra.mxu0 0.0
    %1955 = vmatprep.subr.mxu0 0.0
    %1956 = vmatpush1.xpose.msra.mxu0 0.0
    %1957 = vmatprep.subr.mxu0 0.0
    %1958 = vmatpush1.xpose.msra.mxu0 0.0
    %1959 = vmatprep.subr.mxu0 0.0
    %1960 = vmatpush1.xpose.msra.mxu0 0.0
    %1961 = vmatprep.subr.mxu0 0.0
    %1962 = vmatpush1.xpose.msra.mxu0 0.0
    %1963 = vmatprep.subr.mxu0 0.0
    %1964 = vmatpush1.xpose.msra.mxu0 0.0
    %1965 = vmatprep.subr.mxu0 0.0
    %1966 = vmatpush1.xpose.msra.mxu0 0.0
    %1967 = vmatprep.subr.mxu0 0.0
    %1968 = vmatpush1.xpose.msra.mxu0 0.0
    %1969 = vmatprep.subr.mxu0 0.0
    %1970 = vmatpush1.xpose.msra.mxu0 0.0
    %1971 = vmatprep.subr.mxu0 0.0
    %1972 = vmatpush1.xpose.msra.mxu0 0.0
    %1973 = vmatprep.subr.mxu0 0.0
    %1974 = vmatpush1.xpose.msra.mxu0 0.0
    %1975 = vmatprep.subr.mxu0 0.0
    %1976 = vmatpush1.xpose.msra.mxu0 0.0
    %1977 = vmatprep.subr.mxu0 0.0
    %1978 = vmatpush1.xpose.msra.mxu0 0.0
    %1979 = vmatprep.subr.mxu0 0.0
    %1980 = vmatpush1.xpose.msra.mxu0 0.0
    %1981 = vmatprep.subr.mxu0 0.0
    %1982 = vmatpush1.xpose.msra.mxu0 0.0
    %1983 = vmatprep.subr.mxu0 0.0
    %1984 = vmatpush1.xpose.msra.mxu0 0.0
    %1985 = vmatprep.subr.mxu0 0.0
    %1986 = vmatpush1.xpose.msra.mxu0 0.0
    %1987 = vmatprep.mubr.f32.mxu0 0.0
    %1988 = vmatmul.mubr.f32.gmra.mrb[0].mxu0 %v1911
    %v1989 = vpop.f32.mrb[0].mxu0
    %v1990 = vadd.f32 0.0, %v1989
    %v1991 = vpop.f32.mrb[0].mxu0
    %1992 = vmatprep.mubr.f32.mxu0 0.0
    %1993 = vmatmul.mubr.f32.gmra.mrb[0].mxu0 %v1913
    %v1994 = vpop.f32.mrb[0].mxu0
    %v1995 = vadd.f32 0.0, %v1994
    %v1996 = vpop.f32.mrb[0].mxu0
    %1997 = vmatprep.mubr.f32.mxu0 0.0
    %1998 = vmatmul.mubr.f32.gmra.mrb[0].mxu0 %v1915
    %v1999 = vpop.f32.mrb[0].mxu0
    %v2000 = vadd.f32 0.0, %v1999
    %v2001 = vpop.f32.mrb[0].mxu0
    %2002 = vdwg.mxu0
    %v2003 = vsel %vm510, %v1990, -inf
    %2004 = vmax.xlane.f32.xlu0 %v2003
    %v2005 = vpop.xlane.xlu0 %2004
    %v2006 = vsel %vm510, %v1995, -inf
    %2007 = vmax.xlane.f32.xlu0 %v2006
    %v2008 = vpop.xlane.xlu0 %2007
    %v2009 = vsel %vm517, %v2000, -inf
    %2010 = vmax.xlane.f32.xlu0 %v2009
    %v2011 = vpop.xlane.xlu0 %2010
    %v2012 = vsub.f32 %v1990, %v2005
    %v2013 = vsub.f32 %v1995, %v2008
    %v2014 = vsub.f32 %v2000, %v2011
    %v2015 = vmul.f32 %v2012, 1.442695
    %v2016 = vpow.pop %v2015
    %v2017 = vmul.f32 %v2013, 1.442695
    %v2018 = vpow.pop %v2017
    %v2019 = vmul.f32 %v2014, 1.442695
    %v2020 = vpow.pop %v2019
    %v2021 = vsel %vm510, %v2016, 0.0
    %2022 = vadd.xlane.f32.xlu0 %v2021
    %v2023 = vpop.xlane.xlu0 %2022
    %v2024 = vsel %vm510, %v2018, 0.0
    %2025 = vadd.xlane.f32.xlu0 %v2024
    %v2026 = vpop.xlane.xlu0 %2025
    %v2027 = vsel %vm517, %v2020, 0.0
    %2028 = vadd.xlane.f32.xlu0 %v2027
    %v2029 = vpop.xlane.xlu0 %2028
    %v2030 = vrcp.pop %v2023
    %v2031 = vrcp.pop %v2026
    %v2032 = vrcp.pop %v2029
    %v2033 = vmul.f32 %v2016, %v2030
    %v2034 = vmul.f32 %v2018, %v2031
    %v2035 = vmul.f32 %v2020, %v2032
    %2036 = vrot.lane.b32.xlu0 %v1412, 48
    %v2037 = vpop.permute.xlu0 %2036
    %2038 = vrot.lane.b32.xlu0 %v1414, 48
    %v2039 = vpop.permute.xlu0 %2038
    %2040 = vrot.lane.b32.xlu0 %v1413, 48
    %v2041 = vpop.permute.xlu0 %2040
    %v2045 = vsel %vm510, %v2033, 0
    %v2048 = vsel %vm510, %v2034, 0
    %v2051 = vsel %vm510, %v2035, 0
    %v2053 = vsel %vm562, %v2041, 0
    %2055 = vmatprep.subr.mxu0 0.0
    %2056 = vmatpush1.msra.mxu0 %v2037
    %2057 = vmatprep.subr.mxu0 0.0
    %2058 = vmatpush1.msra.mxu0 %v2039
    %2059 = vmatprep.subr.mxu0 0.0
    %2060 = vmatpush1.msra.mxu0 %v2053
    %2061 = vmatprep.subr.mxu0 0.0
    %2062 = vmatpush1.msra.mxu0 0.0
    %2063 = vmatprep.subr.mxu0 0.0
    %2064 = vmatpush1.msra.mxu0 0.0
    %2065 = vmatprep.subr.mxu0 0.0
    %2066 = vmatpush1.msra.mxu0 0.0
    %2067 = vmatprep.subr.mxu0 0.0
    %2068 = vmatpush1.msra.mxu0 0.0
    %2069 = vmatprep.subr.mxu0 0.0
    %2070 = vmatpush1.msra.mxu0 0.0
    %2071 = vmatprep.subr.mxu0 0.0
    %2072 = vmatpush1.msra.mxu0 0.0
    %2073 = vmatprep.subr.mxu0 0.0
    %2074 = vmatpush1.msra.mxu0 0.0
    %2075 = vmatprep.subr.mxu0 0.0
    %2076 = vmatpush1.msra.mxu0 0.0
    %2077 = vmatprep.subr.mxu0 0.0
    %2078 = vmatpush1.msra.mxu0 0.0
    %2079 = vmatprep.subr.mxu0 0.0
    %2080 = vmatpush1.msra.mxu0 0.0
    %2081 = vmatprep.subr.mxu0 0.0
    %2082 = vmatpush1.msra.mxu0 0.0
    %2083 = vmatprep.subr.mxu0 0.0
    %2084 = vmatpush1.msra.mxu0 0.0
    %2085 = vmatprep.subr.mxu0 0.0
    %2086 = vmatpush1.msra.mxu0 0.0
    %2087 = vmatprep.subr.mxu0 0.0
    %2088 = vmatpush1.msra.mxu0 0.0
    %2089 = vmatprep.subr.mxu0 0.0
    %2090 = vmatpush1.msra.mxu0 0.0
    %2091 = vmatprep.subr.mxu0 0.0
    %2092 = vmatpush1.msra.mxu0 0.0
    %2093 = vmatprep.subr.mxu0 0.0
    %2094 = vmatpush1.msra.mxu0 0.0
    %2095 = vmatprep.subr.mxu0 0.0
    %2096 = vmatpush1.msra.mxu0 0.0
    %2097 = vmatprep.subr.mxu0 0.0
    %2098 = vmatpush1.msra.mxu0 0.0
    %2099 = vmatprep.subr.mxu0 0.0
    %2100 = vmatpush1.msra.mxu0 0.0
    %2101 = vmatprep.subr.mxu0 0.0
    %2102 = vmatpush1.msra.mxu0 0.0
    %2103 = vmatprep.subr.mxu0 0.0
    %2104 = vmatpush1.msra.mxu0 0.0
    %2105 = vmatprep.subr.mxu0 0.0
    %2106 = vmatpush1.msra.mxu0 0.0
    %2107 = vmatprep.subr.mxu0 0.0
    %2108 = vmatpush1.msra.mxu0 0.0
    %2109 = vmatprep.subr.mxu0 0.0
    %2110 = vmatpush1.msra.mxu0 0.0
    %2111 = vmatprep.subr.mxu0 0.0
    %2112 = vmatpush1.msra.mxu0 0.0
    %2113 = vmatprep.subr.mxu0 0.0
    %2114 = vmatpush1.msra.mxu0 0.0
    %2115 = vmatprep.subr.mxu0 0.0
    %2116 = vmatpush1.msra.mxu0 0.0
    %2117 = vmatprep.subr.mxu0 0.0
    %2118 = vmatpush1.msra.mxu0 0.0
    %2119 = vmatprep.mubr.f32.mxu0 0.0
    %2120 = vmatmul.mubr.f32.gmra.mrb[0].mxu0 %v2045
    %v2121 = vpop.f32.mrb[0].mxu0
    %v2122 = vadd.f32 0.0, %v2121
    %v2123 = vpop.f32.mrb[0].mxu0
    %2124 = vmatprep.mubr.f32.mxu0 0.0
    %2125 = vmatmul.mubr.f32.gmra.mrb[0].mxu0 %v2048
    %v2126 = vpop.f32.mrb[0].mxu0
    %v2127 = vadd.f32 0.0, %v2126
    %v2128 = vpop.f32.mrb[0].mxu0
    %2129 = vmatprep.mubr.f32.mxu0 0.0
    %2130 = vmatmul.mubr.f32.gmra.mrb[0].mxu0 %v2051
    %v2131 = vpop.f32.mrb[0].mxu0
    %v2132 = vadd.f32 0.0, %v2131
    %v2133 = vpop.f32.mrb[0].mxu0
    %2134 = vdwg.mxu0
    %2138 = vrot.lane.b32.xlu0 %v2122, 16
    %v2139 = vpop.permute.xlu0 %2138
    %2140 = vrot.lane.b32.xlu0 %v2127, 16
    %v2141 = vpop.permute.xlu0 %2140
    %2142 = vrot.lane.b32.xlu0 %v2132, 16
    %v2143 = vpop.permute.xlu0 %2142
    %2147 = vst.msk [vmem:[#allocation3 + $0x11] sm:$0xff] %vm1150, %v2139
    %2148 = vst.msk [vmem:[#allocation3 + $0x19] sm:$0xff] %vm1150, %v2141
    %2149 = vst.msk [vmem:[#allocation3 + $0x21] sm:$0x1] %vm1153, %v2143
    %2150 = vrot.lane.b32.xlu0 %v1412, 104
    %v2151 = vpop.permute.xlu0 %2150
    %2152 = vrot.lane.b32.xlu0 %v1414, 104
    %v2153 = vpop.permute.xlu0 %2152
    %2154 = vrot.lane.b32.xlu0 %v1413, 104
    %v2155 = vpop.permute.xlu0 %2154
    %2156 = vrot.lane.b32.xlu0 %v1412, 72
    %v2157 = vpop.permute.xlu0 %2156
    %2158 = vrot.lane.b32.xlu0 %v1414, 72
    %v2159 = vpop.permute.xlu0 %2158
    %2160 = vrot.lane.b32.xlu0 %v1413, 72
    %v2161 = vpop.permute.xlu0 %2160
    %v2162 = vsel %vm417, %v2151, 0
    %v2164 = vsel %vm417, %v2153, 0
    %v2166 = vsel %vm417, %v2155, 0
    %v2168 = vsel %vm417, %v2157, 0
    %v2170 = vsel %vm417, %v2159, 0
    %v2172 = vsel %vm417, %v2161, 0
    %2174 = vmatprep.subr.mxu0 0.0
    %2175 = vmatpush1.xpose.msra.mxu0 %v2168
    %2176 = vmatprep.subr.mxu0 0.0
    %2177 = vmatpush1.xpose.msra.mxu0 %v2170
    %2178 = vmatprep.subr.mxu0 0.0
    %2179 = vmatpush1.xpose.msra.mxu0 %v2172
    %2180 = vmatprep.subr.mxu0 0.0
    %2181 = vmatpush1.xpose.msra.mxu0 0.0
    %2182 = vmatprep.subr.mxu0 0.0
    %2183 = vmatpush1.xpose.msra.mxu0 0.0
    %2184 = vmatprep.subr.mxu0 0.0
    %2185 = vmatpush1.xpose.msra.mxu0 0.0
    %2186 = vmatprep.subr.mxu0 0.0
    %2187 = vmatpush1.xpose.msra.mxu0 0.0
    %2188 = vmatprep.subr.mxu0 0.0
    %2189 = vmatpush1.xpose.msra.mxu0 0.0
    %2190 = vmatprep.subr.mxu0 0.0
    %2191 = vmatpush1.xpose.msra.mxu0 0.0
    %2192 = vmatprep.subr.mxu0 0.0
    %2193 = vmatpush1.xpose.msra.mxu0 0.0
    %2194 = vmatprep.subr.mxu0 0.0
    %2195 = vmatpush1.xpose.msra.mxu0 0.0
    %2196 = vmatprep.subr.mxu0 0.0
    %2197 = vmatpush1.xpose.msra.mxu0 0.0
    %2198 = vmatprep.subr.mxu0 0.0
    %2199 = vmatpush1.xpose.msra.mxu0 0.0
    %2200 = vmatprep.subr.mxu0 0.0
    %2201 = vmatpush1.xpose.msra.mxu0 0.0
    %2202 = vmatprep.subr.mxu0 0.0
    %2203 = vmatpush1.xpose.msra.mxu0 0.0
    %2204 = vmatprep.subr.mxu0 0.0
    %2205 = vmatpush1.xpose.msra.mxu0 0.0
    %2206 = vmatprep.subr.mxu0 0.0
    %2207 = vmatpush1.xpose.msra.mxu0 0.0
    %2208 = vmatprep.subr.mxu0 0.0
    %2209 = vmatpush1.xpose.msra.mxu0 0.0
    %2210 = vmatprep.subr.mxu0 0.0
    %2211 = vmatpush1.xpose.msra.mxu0 0.0
    %2212 = vmatprep.subr.mxu0 0.0
    %2213 = vmatpush1.xpose.msra.mxu0 0.0
    %2214 = vmatprep.subr.mxu0 0.0
    %2215 = vmatpush1.xpose.msra.mxu0 0.0
    %2216 = vmatprep.subr.mxu0 0.0
    %2217 = vmatpush1.xpose.msra.mxu0 0.0
    %2218 = vmatprep.subr.mxu0 0.0
    %2219 = vmatpush1.xpose.msra.mxu0 0.0
    %2220 = vmatprep.subr.mxu0 0.0
    %2221 = vmatpush1.xpose.msra.mxu0 0.0
    %2222 = vmatprep.subr.mxu0 0.0
    %2223 = vmatpush1.xpose.msra.mxu0 0.0
    %2224 = vmatprep.subr.mxu0 0.0
    %2225 = vmatpush1.xpose.msra.mxu0 0.0
    %2226 = vmatprep.subr.mxu0 0.0
    %2227 = vmatpush1.xpose.msra.mxu0 0.0
    %2228 = vmatprep.subr.mxu0 0.0
    %2229 = vmatpush1.xpose.msra.mxu0 0.0
    %2230 = vmatprep.subr.mxu0 0.0
    %2231 = vmatpush1.xpose.msra.mxu0 0.0
    %2232 = vmatprep.subr.mxu0 0.0
    %2233 = vmatpush1.xpose.msra.mxu0 0.0
    %2234 = vmatprep.subr.mxu0 0.0
    %2235 = vmatpush1.xpose.msra.mxu0 0.0
    %2236 = vmatprep.subr.mxu0 0.0
    %2237 = vmatpush1.xpose.msra.mxu0 0.0
    %2238 = vmatprep.mubr.f32.mxu0 0.0
    %2239 = vmatmul.mubr.f32.gmra.mrb[0].mxu0 %v2162
    %v2240 = vpop.f32.mrb[0].mxu0
    %v2241 = vadd.f32 0.0, %v2240
    %v2242 = vpop.f32.mrb[0].mxu0
    %2243 = vmatprep.mubr.f32.mxu0 0.0
    %2244 = vmatmul.mubr.f32.gmra.mrb[0].mxu0 %v2164
    %v2245 = vpop.f32.mrb[0].mxu0
    %v2246 = vadd.f32 0.0, %v2245
    %v2247 = vpop.f32.mrb[0].mxu0
    %2248 = vmatprep.mubr.f32.mxu0 0.0
    %2249 = vmatmul.mubr.f32.gmra.mrb[0].mxu0 %v2166
    %v2250 = vpop.f32.mrb[0].mxu0
    %v2251 = vadd.f32 0.0, %v2250
    %v2252 = vpop.f32.mrb[0].mxu0
    %2253 = vdwg.mxu0
    %v2254 = vsel %vm510, %v2241, -inf
    %2255 = vmax.xlane.f32.xlu0 %v2254
    %v2256 = vpop.xlane.xlu0 %2255
    %v2257 = vsel %vm510, %v2246, -inf
    %2258 = vmax.xlane.f32.xlu0 %v2257
    %v2259 = vpop.xlane.xlu0 %2258
    %v2260 = vsel %vm517, %v2251, -inf
    %2261 = vmax.xlane.f32.xlu0 %v2260
    %v2262 = vpop.xlane.xlu0 %2261
    %v2263 = vsub.f32 %v2241, %v2256
    %v2264 = vsub.f32 %v2246, %v2259
    %v2265 = vsub.f32 %v2251, %v2262
    %v2266 = vmul.f32 %v2263, 1.442695
    %v2267 = vpow.pop %v2266
    %v2268 = vmul.f32 %v2264, 1.442695
    %v2269 = vpow.pop %v2268
    %v2270 = vmul.f32 %v2265, 1.442695
    %v2271 = vpow.pop %v2270
    %v2272 = vsel %vm510, %v2267, 0.0
    %2273 = vadd.xlane.f32.xlu0 %v2272
    %v2274 = vpop.xlane.xlu0 %2273
    %v2275 = vsel %vm510, %v2269, 0.0
    %2276 = vadd.xlane.f32.xlu0 %v2275
    %v2277 = vpop.xlane.xlu0 %2276
    %v2278 = vsel %vm517, %v2271, 0.0
    %2279 = vadd.xlane.f32.xlu0 %v2278
    %v2280 = vpop.xlane.xlu0 %2279
    %v2281 = vrcp.pop %v2274
    %v2282 = vrcp.pop %v2277
    %v2283 = vrcp.pop %v2280
    %v2284 = vmul.f32 %v2267, %v2281
    %v2285 = vmul.f32 %v2269, %v2282
    %v2286 = vmul.f32 %v2271, %v2283
    %2287 = vrot.lane.b32.xlu0 %v1412, 40
    %v2288 = vpop.permute.xlu0 %2287
    %2289 = vrot.lane.b32.xlu0 %v1414, 40
    %v2290 = vpop.permute.xlu0 %2289
    %2291 = vrot.lane.b32.xlu0 %v1413, 40
    %v2292 = vpop.permute.xlu0 %2291
    %v2296 = vsel %vm510, %v2284, 0
    %v2299 = vsel %vm510, %v2285, 0
    %v2302 = vsel %vm510, %v2286, 0
    %v2304 = vsel %vm562, %v2292, 0
    %2306 = vmatprep.subr.mxu0 0.0
    %2307 = vmatpush1.msra.mxu0 %v2288
    %2308 = vmatprep.subr.mxu0 0.0
    %2309 = vmatpush1.msra.mxu0 %v2290
    %2310 = vmatprep.subr.mxu0 0.0
    %2311 = vmatpush1.msra.mxu0 %v2304
    %2312 = vmatprep.subr.mxu0 0.0
    %2313 = vmatpush1.msra.mxu0 0.0
    %2314 = vmatprep.subr.mxu0 0.0
    %2315 = vmatpush1.msra.mxu0 0.0
    %2316 = vmatprep.subr.mxu0 0.0
    %2317 = vmatpush1.msra.mxu0 0.0
    %2318 = vmatprep.subr.mxu0 0.0
    %2319 = vmatpush1.msra.mxu0 0.0
    %2320 = vmatprep.subr.mxu0 0.0
    %2321 = vmatpush1.msra.mxu0 0.0
    %2322 = vmatprep.subr.mxu0 0.0
    %2323 = vmatpush1.msra.mxu0 0.0
    %2324 = vmatprep.subr.mxu0 0.0
    %2325 = vmatpush1.msra.mxu0 0.0
    %2326 = vmatprep.subr.mxu0 0.0
    %2327 = vmatpush1.msra.mxu0 0.0
    %2328 = vmatprep.subr.mxu0 0.0
    %2329 = vmatpush1.msra.mxu0 0.0
    %2330 = vmatprep.subr.mxu0 0.0
    %2331 = vmatpush1.msra.mxu0 0.0
    %2332 = vmatprep.subr.mxu0 0.0
    %2333 = vmatpush1.msra.mxu0 0.0
    %2334 = vmatprep.subr.mxu0 0.0
    %2335 = vmatpush1.msra.mxu0 0.0
    %2336 = vmatprep.subr.mxu0 0.0
    %2337 = vmatpush1.msra.mxu0 0.0
    %2338 = vmatprep.subr.mxu0 0.0
    %2339 = vmatpush1.msra.mxu0 0.0
    %2340 = vmatprep.subr.mxu0 0.0
    %2341 = vmatpush1.msra.mxu0 0.0
    %2342 = vmatprep.subr.mxu0 0.0
    %2343 = vmatpush1.msra.mxu0 0.0
    %2344 = vmatprep.subr.mxu0 0.0
    %2345 = vmatpush1.msra.mxu0 0.0
    %2346 = vmatprep.subr.mxu0 0.0
    %2347 = vmatpush1.msra.mxu0 0.0
    %2348 = vmatprep.subr.mxu0 0.0
    %2349 = vmatpush1.msra.mxu0 0.0
    %2350 = vmatprep.subr.mxu0 0.0
    %2351 = vmatpush1.msra.mxu0 0.0
    %2352 = vmatprep.subr.mxu0 0.0
    %2353 = vmatpush1.msra.mxu0 0.0
    %2354 = vmatprep.subr.mxu0 0.0
    %2355 = vmatpush1.msra.mxu0 0.0
    %2356 = vmatprep.subr.mxu0 0.0
    %2357 = vmatpush1.msra.mxu0 0.0
    %2358 = vmatprep.subr.mxu0 0.0
    %2359 = vmatpush1.msra.mxu0 0.0
    %2360 = vmatprep.subr.mxu0 0.0
    %2361 = vmatpush1.msra.mxu0 0.0
    %2362 = vmatprep.subr.mxu0 0.0
    %2363 = vmatpush1.msra.mxu0 0.0
    %2364 = vmatprep.subr.mxu0 0.0
    %2365 = vmatpush1.msra.mxu0 0.0
    %2366 = vmatprep.subr.mxu0 0.0
    %2367 = vmatpush1.msra.mxu0 0.0
    %2368 = vmatprep.subr.mxu0 0.0
    %2369 = vmatpush1.msra.mxu0 0.0
    %2370 = vmatprep.mubr.f32.mxu0 0.0
    %2371 = vmatmul.mubr.f32.gmra.mrb[0].mxu0 %v2296
    %v2372 = vpop.f32.mrb[0].mxu0
    %v2373 = vadd.f32 0.0, %v2372
    %v2374 = vpop.f32.mrb[0].mxu0
    %2375 = vmatprep.mubr.f32.mxu0 0.0
    %2376 = vmatmul.mubr.f32.gmra.mrb[0].mxu0 %v2299
    %v2377 = vpop.f32.mrb[0].mxu0
    %v2378 = vadd.f32 0.0, %v2377
    %v2379 = vpop.f32.mrb[0].mxu0
    %2380 = vmatprep.mubr.f32.mxu0 0.0
    %2381 = vmatmul.mubr.f32.gmra.mrb[0].mxu0 %v2302
    %v2382 = vpop.f32.mrb[0].mxu0
    %v2383 = vadd.f32 0.0, %v2382
    %v2384 = vpop.f32.mrb[0].mxu0
    %2385 = vdwg.mxu0
    %2389 = vrot.lane.b32.xlu0 %v2373, 24
    %v2390 = vpop.permute.xlu0 %2389
    %2391 = vrot.lane.b32.xlu0 %v2378, 24
    %v2392 = vpop.permute.xlu0 %2391
    %2393 = vrot.lane.b32.xlu0 %v2383, 24
    %v2394 = vpop.permute.xlu0 %2393
    %2398 = vst.msk [vmem:[#allocation3 + $0x11] sm:$0xff] %vm1403, %v2390
    %2399 = vst.msk [vmem:[#allocation3 + $0x19] sm:$0xff] %vm1403, %v2392
    %2400 = vst.msk [vmem:[#allocation3 + $0x21] sm:$0x1] %vm1406, %v2394
    %v2401 = vld [vmem:[#allocation3] sm:$0xff]
    %v2402 = vld [vmem:[#allocation3 + $0x8] sm:$0xff]
    %v2403 = vld [vmem:[#allocation3 + $0x10] sm:$0xff]
    %v2404 = vld [vmem:[#allocation3 + $0x18] sm:$0xff]
    %v2405 = vld [vmem:[#allocation3 + $0x20] sm:$0x3]
    %v2406 = vld [vmem:[%s8] sm:$0xff]
    %v2407 = vld [vmem:[%s8 + $0x8] sm:$0xff]
    %v2408 = vld [vmem:[%s8 + $0x10] sm:$0xff]
    %v2409 = vld [vmem:[%s8 + $0x18] sm:$0xff]
    %v2410 = vld [vmem:[%s9] sm:$0x1]
    %v2412 = vlaneseq
    %v2413 = vshrl.u32 %v2412, 7
    %v2414 = vsub.s32 0, %v2413
    %v2415 = vrot.slane %v2410, %v2414
    %v2418 = vsel %vm195, %v2401, 0
    %v2421 = vsel %vm195, %v2402, 0
    %v2424 = vsel %vm195, %v2403, 0
    %v2427 = vsel %vm195, %v2404, 0
    %v2430 = vsel %vm195, %v2405, 0
    %2432 = vmatprep.subr.mxu0 0.0
    %2433 = vmatpush1.msra.mxu0 %v2406
    %2434 = vmatprep.subr.mxu0 0.0
    %2435 = vmatpush1.msra.mxu0 %v2407
    %2436 = vmatprep.subr.mxu0 0.0
    %2437 = vmatpush1.msra.mxu0 %v2408
    %2438 = vmatprep.subr.mxu0 0.0
    %2439 = vmatpush1.msra.mxu0 %v2409
    %2440 = vmatprep.subr.mxu0 0.0
    %2441 = vmatpush1.msra.mxu0 0.0
    %2442 = vmatprep.subr.mxu0 0.0
    %2443 = vmatpush1.msra.mxu0 0.0
    %2444 = vmatprep.subr.mxu0 0.0
    %2445 = vmatpush1.msra.mxu0 0.0
    %2446 = vmatprep.subr.mxu0 0.0
    %2447 = vmatpush1.msra.mxu0 0.0
    %2448 = vmatprep.subr.mxu0 0.0
    %2449 = vmatpush1.msra.mxu0 0.0
    %2450 = vmatprep.subr.mxu0 0.0
    %2451 = vmatpush1.msra.mxu0 0.0
    %2452 = vmatprep.subr.mxu0 0.0
    %2453 = vmatpush1.msra.mxu0 0.0
    %2454 = vmatprep.subr.mxu0 0.0
    %2455 = vmatpush1.msra.mxu0 0.0
    %2456 = vmatprep.subr.mxu0 0.0
    %2457 = vmatpush1.msra.mxu0 0.0
    %2458 = vmatprep.subr.mxu0 0.0
    %2459 = vmatpush1.msra.mxu0 0.0
    %2460 = vmatprep.subr.mxu0 0.0
    %2461 = vmatpush1.msra.mxu0 0.0
    %2462 = vmatprep.subr.mxu0 0.0
    %2463 = vmatpush1.msra.mxu0 0.0
    %2464 = vmatprep.subr.mxu0 0.0
    %2465 = vmatpush1.msra.mxu0 0.0
    %2466 = vmatprep.subr.mxu0 0.0
    %2467 = vmatpush1.msra.mxu0 0.0
    %2468 = vmatprep.subr.mxu0 0.0
    %2469 = vmatpush1.msra.mxu0 0.0
    %2470 = vmatprep.subr.mxu0 0.0
    %2471 = vmatpush1.msra.mxu0 0.0
    %2472 = vmatprep.subr.mxu0 0.0
    %2473 = vmatpush1.msra.mxu0 0.0
    %2474 = vmatprep.subr.mxu0 0.0
    %2475 = vmatpush1.msra.mxu0 0.0
    %2476 = vmatprep.subr.mxu0 0.0
    %2477 = vmatpush1.msra.mxu0 0.0
    %2478 = vmatprep.subr.mxu0 0.0
    %2479 = vmatpush1.msra.mxu0 0.0
    %2480 = vmatprep.subr.mxu0 0.0
    %2481 = vmatpush1.msra.mxu0 0.0
    %2482 = vmatprep.subr.mxu0 0.0
    %2483 = vmatpush1.msra.mxu0 0.0
    %2484 = vmatprep.subr.mxu0 0.0
    %2485 = vmatpush1.msra.mxu0 0.0
    %2486 = vmatprep.subr.mxu0 0.0
    %2487 = vmatpush1.msra.mxu0 0.0
    %2488 = vmatprep.subr.mxu0 0.0
    %2489 = vmatpush1.msra.mxu0 0.0
    %2490 = vmatprep.subr.mxu0 0.0
    %2491 = vmatpush1.msra.mxu0 0.0
    %2492 = vmatprep.subr.mxu0 0.0
    %2493 = vmatpush1.msra.mxu0 0.0
    %2494 = vmatprep.subr.mxu0 0.0
    %2495 = vmatpush1.msra.mxu0 0.0
    %2496 = vmatprep.mubr.f32.mxu0 0.0
    %2497 = vmatmul.mubr.f32.gmra.mrb[0].mxu0 %v2418
    %v2498 = vpop.f32.mrb[0].mxu0
    %v2499 = vadd.f32 %v2415, %v2498
    %v2500 = vpop.f32.mrb[0].mxu0
    %2501 = vmatprep.mubr.f32.mxu0 0.0
    %2502 = vmatmul.mubr.f32.gmra.mrb[0].mxu0 %v2421
    %v2503 = vpop.f32.mrb[0].mxu0
    %v2504 = vadd.f32 %v2415, %v2503
    %v2505 = vpop.f32.mrb[0].mxu0
    %2506 = vmatprep.mubr.f32.mxu0 0.0
    %2507 = vmatmul.mubr.f32.gmra.mrb[0].mxu0 %v2424
    %v2508 = vpop.f32.mrb[0].mxu0
    %v2509 = vadd.f32 %v2415, %v2508
    %v2510 = vpop.f32.mrb[0].mxu0
    %2511 = vmatprep.mubr.f32.mxu0 0.0
    %2512 = vmatmul.mubr.f32.gmra.mrb[0].mxu0 %v2427
    %v2513 = vpop.f32.mrb[0].mxu0
    %v2514 = vadd.f32 %v2415, %v2513
    %v2515 = vpop.f32.mrb[0].mxu0
    %2516 = vmatprep.mubr.f32.mxu0 0.0
    %2517 = vmatmul.mubr.f32.gmra.mrb[0].mxu0 %v2430
    %v2518 = vpop.f32.mrb[0].mxu0
    %v2519 = vadd.f32 %v2415, %v2518
    %v2520 = vpop.f32.mrb[0].mxu0
    %2521 = vdwg.mxu0
    %v2522 = vadd.f32 %v203, %v2499
    %v2523 = vadd.f32 %v204, %v2504
    %v2524 = vadd.f32 %v205, %v2509
    %v2525 = vadd.f32 %v206, %v2514
    %v2526 = vadd.f32 %v207, %v2519
    %v2527 = vld [vmem:[%s10] sm:$0x1]
    %v2528 = vld [vmem:[%s11] sm:$0x1]
    %v2529 = vsel %vm195, %v2522, 0.0
    %2530 = vadd.xlane.f32.xlu0 %v2529
    %v2531 = vpop.xlane.xlu0 %2530
    %v2532 = vsel %vm195, %v2523, 0.0
    %2533 = vadd.xlane.f32.xlu0 %v2532
    %v2534 = vpop.xlane.xlu0 %2533
    %v2535 = vsel %vm195, %v2524, 0.0
    %2536 = vadd.xlane.f32.xlu0 %v2535
    %v2537 = vpop.xlane.xlu0 %2536
    %v2538 = vsel %vm195, %v2525, 0.0
    %2539 = vadd.xlane.f32.xlu0 %v2538
    %v2540 = vpop.xlane.xlu0 %2539
    %v2541 = vsel %vm222, %v2526, 0.0
    %2542 = vadd.xlane.f32.xlu0 %v2541
    %v2543 = vpop.xlane.xlu0 %2542
    %v2544 = vmul.f32 %v2531, %v226
    %v2545 = vmul.f32 %v2534, %v226
    %v2546 = vmul.f32 %v2537, %v226
    %v2547 = vmul.f32 %v2540, %v226
    %v2548 = vmul.f32 %v2543, %v226
    %v2549 = vsub.f32 %v2522, %v2544
    %v2550 = vsub.f32 %v2523, %v2545
    %v2551 = vsub.f32 %v2524, %v2546
    %v2552 = vsub.f32 %v2525, %v2547
    %v2553 = vsub.f32 %v2526, %v2548
    %v2554 = vmul.f32 %v2549, %v2549
    %v2555 = vmul.f32 %v2550, %v2550
    %v2556 = vmul.f32 %v2551, %v2551
    %v2557 = vmul.f32 %v2552, %v2552
    %v2558 = vmul.f32 %v2553, %v2553
    %v2559 = vsel %vm195, %v2554, 0.0
    %2560 = vadd.xlane.f32.xlu0 %v2559
    %v2561 = vpop.xlane.xlu0 %2560
    %v2562 = vsel %vm195, %v2555, 0.0
    %2563 = vadd.xlane.f32.xlu0 %v2562
    %v2564 = vpop.xlane.xlu0 %2563
    %v2565 = vsel %vm195, %v2556, 0.0
    %2566 = vadd.xlane.f32.xlu0 %v2565
    %v2567 = vpop.xlane.xlu0 %2566
    %v2568 = vsel %vm195, %v2557, 0.0
    %2569 = vadd.xlane.f32.xlu0 %v2568
    %v2570 = vpop.xlane.xlu0 %2569
    %v2571 = vsel %vm222, %v2558, 0.0
    %2572 = vadd.xlane.f32.xlu0 %v2571
    %v2573 = vpop.xlane.xlu0 %2572
    %v2574 = vmul.f32 %v2561, %v226
    %v2575 = vmul.f32 %v2564, %v226
    %v2576 = vmul.f32 %v2567, %v226
    %v2577 = vmul.f32 %v2570, %v226
    %v2578 = vmul.f32 %v2573, %v226
    %v2579 = vadd.f32 %v2574, 1e-05
    %v2580 = vadd.f32 %v2575, 1e-05
    %v2581 = vadd.f32 %v2576, 1e-05
    %v2582 = vadd.f32 %v2577, 1e-05
    %v2583 = vadd.f32 %v2578, 1e-05
    %v2584 = vrsqrt.pop %v2579
    %v2585 = vrsqrt.pop %v2580
    %v2586 = vrsqrt.pop %v2581
    %v2587 = vrsqrt.pop %v2582
    %v2588 = vrsqrt.pop %v2583
    %v2589 = vmul.f32 %v2549, %v2584
    %v2590 = vmul.f32 %v2550, %v2585
    %v2591 = vmul.f32 %v2551, %v2586
    %v2592 = vmul.f32 %v2552, %v2587
    %v2593 = vmul.f32 %v2553, %v2588
    %v2595 = vlaneseq
    %v2596 = vshrl.u32 %v2595, 7
    %v2597 = vsub.s32 0, %v2596
    %v2598 = vrot.slane %v2527, %v2597
    %v2600 = vmul.f32 %v2589, %v2598
    %v2601 = vmul.f32 %v2590, %v2598
    %v2602 = vmul.f32 %v2591, %v2598
    %v2603 = vmul.f32 %v2592, %v2598
    %v2604 = vmul.f32 %v2593, %v2598
    %v2606 = vlaneseq
    %v2607 = vshrl.u32 %v2606, 7
    %v2608 = vsub.s32 0, %v2607
    %v2609 = vrot.slane %v2528, %v2608
    %v2611 = vadd.f32 %v2600, %v2609
    %v2612 = vadd.f32 %v2601, %v2609
    %v2613 = vadd.f32 %v2602, %v2609
    %v2614 = vadd.f32 %v2603, %v2609
    %v2615 = vadd.f32 %v2604, %v2609
    %v2616 = vld [vmem:[%s12] sm:$0xff]
    %v2617 = vld [vmem:[%s12 + $0x8] sm:$0xff]
    %v2618 = vld [vmem:[%s12 + $0x10] sm:$0xff]
    %v2619 = vld [vmem:[%s12 + $0x18] sm:$0xff]
    %v2620 = vld [vmem:[%s13] sm:$0x1]
    %v2622 = vlaneseq
    %v2623 = vshrl.u32 %v2622, 7
    %v2624 = vsub.s32 0, %v2623
    %v2625 = vrot.slane %v2620, %v2624
    %v2628 = vsel %vm195, %v2611, 0
    %v2631 = vsel %vm195, %v2612, 0
    %v2634 = vsel %vm195, %v2613, 0
    %v2637 = vsel %vm195, %v2614, 0
    %v2640 = vsel %vm195, %v2615, 0
    %2642 = vmatprep.subr.mxu0 0.0
    %2643 = vmatpush1.msra.mxu0 %v2616
    %2644 = vmatprep.subr.mxu0 0.0
    %2645 = vmatpush1.msra.mxu0 %v2617
    %2646 = vmatprep.subr.mxu0 0.0
    %2647 = vmatpush1.msra.mxu0 %v2618
    %2648 = vmatprep.subr.mxu0 0.0
    %2649 = vmatpush1.msra.mxu0 %v2619
    %2650 = vmatprep.subr.mxu0 0.0
    %2651 = vmatpush1.msra.mxu0 0.0
    %2652 = vmatprep.subr.mxu0 0.0
    %2653 = vmatpush1.msra.mxu0 0.0
    %2654 = vmatprep.subr.mxu0 0.0
    %2655 = vmatpush1.msra.mxu0 0.0
    %2656 = vmatprep.subr.mxu0 0.0
    %2657 = vmatpush1.msra.mxu0 0.0
    %2658 = vmatprep.subr.mxu0 0.0
    %2659 = vmatpush1.msra.mxu0 0.0
    %2660 = vmatprep.subr.mxu0 0.0
    %2661 = vmatpush1.msra.mxu0 0.0
    %2662 = vmatprep.subr.mxu0 0.0
    %2663 = vmatpush1.msra.mxu0 0.0
    %2664 = vmatprep.subr.mxu0 0.0
    %2665 = vmatpush1.msra.mxu0 0.0
    %2666 = vmatprep.subr.mxu0 0.0
    %2667 = vmatpush1.msra.mxu0 0.0
    %2668 = vmatprep.subr.mxu0 0.0
    %2669 = vmatpush1.msra.mxu0 0.0
    %2670 = vmatprep.subr.mxu0 0.0
    %2671 = vmatpush1.msra.mxu0 0.0
    %2672 = vmatprep.subr.mxu0 0.0
    %2673 = vmatpush1.msra.mxu0 0.0
    %2674 = vmatprep.subr.mxu0 0.0
    %2675 = vmatpush1.msra.mxu0 0.0
    %2676 = vmatprep.subr.mxu0 0.0
    %2677 = vmatpush1.msra.mxu0 0.0
    %2678 = vmatprep.subr.mxu0 0.0
    %2679 = vmatpush1.msra.mxu0 0.0
    %2680 = vmatprep.subr.mxu0 0.0
    %2681 = vmatpush1.msra.mxu0 0.0
    %2682 = vmatprep.subr.mxu0 0.0
    %2683 = vmatpush1.msra.mxu0 0.0
    %2684 = vmatprep.subr.mxu0 0.0
    %2685 = vmatpush1.msra.mxu0 0.0
    %2686 = vmatprep.subr.mxu0 0.0
    %2687 = vmatpush1.msra.mxu0 0.0
    %2688 = vmatprep.subr.mxu0 0.0
    %2689 = vmatpush1.msra.mxu0 0.0
    %2690 = vmatprep.subr.mxu0 0.0
    %2691 = vmatpush1.msra.mxu0 0.0
    %2692 = vmatprep.subr.mxu0 0.0
    %2693 = vmatpush1.msra.mxu0 0.0
    %2694 = vmatprep.subr.mxu0 0.0
    %2695 = vmatpush1.msra.mxu0 0.0
    %2696 = vmatprep.subr.mxu0 0.0
    %2697 = vmatpush1.msra.mxu0 0.0
    %2698 = vmatprep.subr.mxu0 0.0
    %2699 = vmatpush1.msra.mxu0 0.0
    %2700 = vmatprep.subr.mxu0 0.0
    %2701 = vmatpush1.msra.mxu0 0.0
    %2702 = vmatprep.subr.mxu0 0.0
    %2703 = vmatpush1.msra.mxu0 0.0
    %2704 = vmatprep.subr.mxu0 0.0
    %2705 = vmatpush1.msra.mxu0 0.0
    %2706 = vmatprep.mubr.f32.mxu0 0.0
    %2707 = vmatmul.mubr.f32.gmra.mrb[0].mxu0 %v2628
    %v2708 = vpop.f32.mrb[0].mxu0
    %v2709 = vadd.f32 %v2625, %v2708
    %v2710 = vpop.f32.mrb[0].mxu0
    %2711 = vmatprep.mubr.f32.mxu0 0.0
    %2712 = vmatmul.mubr.f32.gmra.mrb[0].mxu0 %v2631
    %v2713 = vpop.f32.mrb[0].mxu0
    %v2714 = vadd.f32 %v2625, %v2713
    %v2715 = vpop.f32.mrb[0].mxu0
    %2716 = vmatprep.mubr.f32.mxu0 0.0
    %2717 = vmatmul.mubr.f32.gmra.mrb[0].mxu0 %v2634
    %v2718 = vpop.f32.mrb[0].mxu0
    %v2719 = vadd.f32 %v2625, %v2718
    %v2720 = vpop.f32.mrb[0].mxu0
    %2721 = vmatprep.mubr.f32.mxu0 0.0
    %2722 = vmatmul.mubr.f32.gmra.mrb[0].mxu0 %v2637
    %v2723 = vpop.f32.mrb[0].mxu0
    %v2724 = vadd.f32 %v2625, %v2723
    %v2725 = vpop.f32.mrb[0].mxu0
    %2726 = vmatprep.mubr.f32.mxu0 0.0
    %2727 = vmatmul.mubr.f32.gmra.mrb[0].mxu0 %v2640
    %v2728 = vpop.f32.mrb[0].mxu0
    %v2729 = vadd.f32 %v2625, %v2728
    %v2730 = vpop.f32.mrb[0].mxu0
    %2731 = vdwg.mxu0
    %v2732 = vmul.f32 %v2709, 0.5
    %v2733 = vmul.f32 %v2714, 0.5
    %v2734 = vmul.f32 %v2719, 0.5
    %v2735 = vmul.f32 %v2724, 0.5
    %v2736 = vmul.f32 %v2729, 0.5
    %v2737 = vmul.f32 %v2709, 0.70710677
    %v2738 = vmul.f32 %v2714, 0.70710677
    %v2739 = vmul.f32 %v2719, 0.70710677
    %v2740 = vmul.f32 %v2724, 0.70710677
    %v2741 = vmul.f32 %v2729, 0.70710677
    %v2742 = vand.u32 2147483647, %v2737
    %v2743 = vand.u32 2147483647, %v2738
    %v2744 = vand.u32 2147483647, %v2739
    %v2745 = vand.u32 2147483647, %v2740
    %v2746 = vand.u32 2147483647, %v2741
    %v2747 = vmul.f32 %v2742, 0.3275911
    %v2748 = vmul.f32 %v2743, 0.3275911
    %v2749 = vmul.f32 %v2744, 0.3275911
    %v2750 = vmul.f32 %v2745, 0.3275911
    %v2751 = vmul.f32 %v2746, 0.3275911
    %v2752 = vadd.f32 %v2747, 1.0
    %v2753 = vadd.f32 %v2748, 1.0
    %v2754 = vadd.f32 %v2749, 1.0
    %v2755 = vadd.f32 %v2750, 1.0
    %v2756 = vadd.f32 %v2751, 1.0
    %v2757 = vrcp.pop %v2752
    %v2758 = vmul.f32 1.0, %v2757
    %v2759 = vrcp.pop %v2753
    %v2760 = vmul.f32 1.0, %v2759
    %v2761 = vrcp.pop %v2754
    %v2762 = vmul.f32 1.0, %v2761
    %v2763 = vrcp.pop %v2755
    %v2764 = vmul.f32 1.0, %v2763
    %v2765 = vrcp.pop %v2756
    %v2766 = vmul.f32 1.0, %v2765
    %v2767 = vmul.f32 %v2758, 1.0614054
    %v2768 = vmul.f32 %v2760, 1.0614054
    %v2769 = vmul.f32 %v2762, 1.0614054
    %v2770 = vmul.f32 %v2764, 1.0614054
    %v2771 = vmul.f32 %v2766, 1.0614054
    %v2772 = vadd.f32 %v2767, -1.4531521
    %v2773 = vadd.f32 %v2768, -1.4531521
    %v2774 = vadd.f32 %v2769, -1.4531521
    %v2775 = vadd.f32 %v2770, -1.4531521
    %v2776 = vadd.f32 %v2771, -1.4531521
    %v2777 = vmul.f32 %v2772, %v2758
    %v2778 = vmul.f32 %v2773, %v2760
    %v2779 = vmul.f32 %v2774, %v2762
    %v2780 = vmul.f32 %v2775, %v2764
    %v2781 = vmul.f32 %v2776, %v2766
    %v2782 = vadd.f32 %v2777, 1.4214138
    %v2783 = vadd.f32 %v2778, 1.4214138
    %v2784 = vadd.f32 %v2779, 1.4214138
    %v2785 = vadd.f32 %v2780, 1.4214138
    %v2786 = vadd.f32 %v2781, 1.4214138
    %v2787 = vmul.f32 %v2782, %v2758
    %v2788 = vmul.f32 %v2783, %v2760
    %v2789 = vmul.f32 %v2784, %v2762
    %v2790 = vmul.f32 %v2785, %v2764
    %v2791 = vmul.f32 %v2786, %v2766
    %v2792 = vadd.f32 %v2787, -0.28449672
    %v2793 = vadd.f32 %v2788, -0.28449672
    %v2794 = vadd.f32 %v2789, -0.28449672
    %v2795 = vadd.f32 %v2790, -0.28449672
    %v2796 = vadd.f32 %v2791, -0.28449672
    %v2797 = vmul.f32 %v2792, %v2758
    %v2798 = vmul.f32 %v2793, %v2760
    %v2799 = vmul.f32 %v2794, %v2762
    %v2800 = vmul.f32 %v2795, %v2764
    %v2801 = vmul.f32 %v2796, %v2766
    %v2802 = vadd.f32 %v2797, 0.2548296
    %v2803 = vadd.f32 %v2798, 0.2548296
    %v2804 = vadd.f32 %v2799, 0.2548296
    %v2805 = vadd.f32 %v2800, 0.2548296
    %v2806 = vadd.f32 %v2801, 0.2548296
    %v2807 = vmul.f32 %v2802, %v2758
    %v2808 = vmul.f32 %v2803, %v2760
    %v2809 = vmul.f32 %v2804, %v2762
    %v2810 = vmul.f32 %v2805, %v2764
    %v2811 = vmul.f32 %v2806, %v2766
    %v2812 = vsub.f32 0.0, %v2742
    %v2813 = vsub.f32 0.0, %v2743
    %v2814 = vsub.f32 0.0, %v2744
    %v2815 = vsub.f32 0.0, %v2745
    %v2816 = vsub.f32 0.0, %v2746
    %v2817 = vmul.f32 %v2812, %v2742
    %v2818 = vmul.f32 %v2813, %v2743
    %v2819 = vmul.f32 %v2814, %v2744
    %v2820 = vmul.f32 %v2815, %v2745
    %v2821 = vmul.f32 %v2816, %v2746
    %v2822 = vmul.f32 %v2817, 1.442695
    %v2823 = vpow.pop %v2822
    %v2824 = vmul.f32 %v2818, 1.442695
    %v2825 = vpow.pop %v2824
    %v2826 = vmul.f32 %v2819, 1.442695
    %v2827 = vpow.pop %v2826
    %v2828 = vmul.f32 %v2820, 1.442695
    %v2829 = vpow.pop %v2828
    %v2830 = vmul.f32 %v2821, 1.442695
    %v2831 = vpow.pop %v2830
    %v2832 = vmul.f32 %v2807, %v2823
    %v2833 = vmul.f32 %v2808, %v2825
    %v2834 = vmul.f32 %v2809, %v2827
    %v2835 = vmul.f32 %v2810, %v2829
    %v2836 = vmul.f32 %v2811, %v2831
    %v2837 = vsub.f32 1.0, %v2832
    %v2838 = vsub.f32 1.0, %v2833
    %v2839 = vsub.f32 1.0, %v2834
    %v2840 = vsub.f32 1.0, %v2835
    %v2841 = vsub.f32 1.0, %v2836
    %vm2842 = vcmp.ge.f32.partialorder %v2737, 0.0
    %vm2843 = vcmp.ge.f32.partialorder %v2738, 0.0
    %vm2844 = vcmp.ge.f32.partialorder %v2739, 0.0
    %vm2845 = vcmp.ge.f32.partialorder %v2740, 0.0
    %vm2846 = vcmp.ge.f32.partialorder %v2741, 0.0
    %v2847 = vsub.f32 0.0, %v2837
    %v2848 = vsub.f32 0.0, %v2838
    %v2849 = vsub.f32 0.0, %v2839
    %v2850 = vsub.f32 0.0, %v2840
    %v2851 = vsub.f32 0.0, %v2841
    %v2852 = vsel %vm2842, %v2837, %v2847
    %v2853 = vsel %vm2843, %v2838, %v2848
    %v2854 = vsel %vm2844, %v2839, %v2849
    %v2855 = vsel %vm2845, %v2840, %v2850
    %v2856 = vsel %vm2846, %v2841, %v2851
    %v2857 = vadd.f32 %v2852, 1.0
    %v2858 = vadd.f32 %v2853, 1.0
    %v2859 = vadd.f32 %v2854, 1.0
    %v2860 = vadd.f32 %v2855, 1.0
    %v2861 = vadd.f32 %v2856, 1.0
    %v2862 = vmul.f32 %v2732, %v2857
    %v2863 = vmul.f32 %v2733, %v2858
    %v2864 = vmul.f32 %v2734, %v2859
    %v2865 = vmul.f32 %v2735, %v2860
    %v2866 = vmul.f32 %v2736, %v2861
    %v2867 = vld [vmem:[%s14] sm:$0xff]
    %v2868 = vld [vmem:[%s14 + $0x8] sm:$0xff]
    %v2869 = vld [vmem:[%s14 + $0x10] sm:$0xff]
    %v2870 = vld [vmem:[%s14 + $0x18] sm:$0xff]
    %v2871 = vld [vmem:[%s14 + $0x20] sm:$0xff]
    %v2872 = vld [vmem:[%s14 + $0x28] sm:$0xff]
    %v2873 = vld [vmem:[%s14 + $0x30] sm:$0xff]
    %v2874 = vld [vmem:[%s14 + $0x38] sm:$0xff]
    %v2875 = vld [vmem:[%s14 + $0x40] sm:$0xff]
    %v2876 = vld [vmem:[%s14 + $0x48] sm:$0xff]
    %v2877 = vld [vmem:[%s14 + $0x50] sm:$0xff]
    %v2878 = vld [vmem:[%s14 + $0x58] sm:$0xff]
    %v2879 = vld [vmem:[%s14 + $0x60] sm:$0xff]
    %v2880 = vld [vmem:[%s14 + $0x68] sm:$0xff]
    %v2881 = vld [vmem:[%s14 + $0x70] sm:$0xff]
    %v2882 = vld [vmem:[%s14 + $0x78] sm:$0xff]
    %2883 = vmatprep.subr.mxu0 0.0
    %2884 = vmatpush1.msra.mxu0 %v2867
    %2885 = vmatprep.subr.mxu0 0.0
    %2886 = vmatpush1.msra.mxu0 %v2868
    %2887 = vmatprep.subr.mxu0 0.0
    %2888 = vmatpush1.msra.mxu0 %v2869
    %2889 = vmatprep.subr.mxu0 0.0
    %2890 = vmatpush1.msra.mxu0 %v2870
    %2891 = vmatprep.subr.mxu0 0.0
    %2892 = vmatpush1.msra.mxu0 %v2871
    %2893 = vmatprep.subr.mxu0 0.0
    %2894 = vmatpush1.msra.mxu0 %v2872
    %2895 = vmatprep.subr.mxu0 0.0
    %2896 = vmatpush1.msra.mxu0 %v2873
    %2897 = vmatprep.subr.mxu0 0.0
    %2898 = vmatpush1.msra.mxu0 %v2874
    %2899 = vmatprep.subr.mxu0 0.0
    %2900 = vmatpush1.msra.mxu0 %v2875
    %2901 = vmatprep.subr.mxu0 0.0
    %2902 = vmatpush1.msra.mxu0 %v2876
    %2903 = vmatprep.subr.mxu0 0.0
    %2904 = vmatpush1.msra.mxu0 %v2877
    %2905 = vmatprep.subr.mxu0 0.0
    %2906 = vmatpush1.msra.mxu0 %v2878
    %2907 = vmatprep.subr.mxu0 0.0
    %2908 = vmatpush1.msra.mxu0 %v2879
    %2909 = vmatprep.subr.mxu0 0.0
    %2910 = vmatpush1.msra.mxu0 %v2880
    %2911 = vmatprep.subr.mxu0 0.0
    %2912 = vmatpush1.msra.mxu0 %v2881
    %2913 = vmatprep.subr.mxu0 0.0
    %2914 = vmatpush1.msra.mxu0 %v2882
    %2915 = vmatprep.subr.mxu0 0.0
    %2916 = vmatpush1.msra.mxu0 0.0
    %2917 = vmatprep.subr.mxu0 0.0
    %2918 = vmatpush1.msra.mxu0 0.0
    %2919 = vmatprep.subr.mxu0 0.0
    %2920 = vmatpush1.msra.mxu0 0.0
    %2921 = vmatprep.subr.mxu0 0.0
    %2922 = vmatpush1.msra.mxu0 0.0
    %2923 = vmatprep.subr.mxu0 0.0
    %2924 = vmatpush1.msra.mxu0 0.0
    %2925 = vmatprep.subr.mxu0 0.0
    %2926 = vmatpush1.msra.mxu0 0.0
    %2927 = vmatprep.subr.mxu0 0.0
    %2928 = vmatpush1.msra.mxu0 0.0
    %2929 = vmatprep.subr.mxu0 0.0
    %2930 = vmatpush1.msra.mxu0 0.0
    %2931 = vmatprep.subr.mxu0 0.0
    %2932 = vmatpush1.msra.mxu0 0.0
    %2933 = vmatprep.subr.mxu0 0.0
    %2934 = vmatpush1.msra.mxu0 0.0
    %2935 = vmatprep.subr.mxu0 0.0
    %2936 = vmatpush1.msra.mxu0 0.0
    %2937 = vmatprep.subr.mxu0 0.0
    %2938 = vmatpush1.msra.mxu0 0.0
    %2939 = vmatprep.subr.mxu0 0.0
    %2940 = vmatpush1.msra.mxu0 0.0
    %2941 = vmatprep.subr.mxu0 0.0
    %2942 = vmatpush1.msra.mxu0 0.0
    %2943 = vmatprep.subr.mxu0 0.0
    %2944 = vmatpush1.msra.mxu0 0.0
    %2945 = vmatprep.subr.mxu0 0.0
    %2946 = vmatpush1.msra.mxu0 0.0
    %2947 = vmatprep.mubr.f32.mxu0 0.0
    %2948 = vmatmul.mubr.f32.gmra.mrb[0].mxu0 %v2862
    %v2949 = vpop.f32.mrb[0].mxu0
    %v2950 = vadd.f32 0.0, %v2949
    %v2951 = vpop.f32.mrb[0].mxu0
    %2952 = vmatprep.mubr.f32.mxu0 0.0
    %2953 = vmatmul.mubr.f32.gmra.mrb[0].mxu0 %v2863
    %v2954 = vpop.f32.mrb[0].mxu0
    %v2955 = vadd.f32 0.0, %v2954
    %v2956 = vpop.f32.mrb[0].mxu0
    %2957 = vmatprep.mubr.f32.mxu0 0.0
    %2958 = vmatmul.mubr.f32.gmra.mrb[0].mxu0 %v2864
    %v2959 = vpop.f32.mrb[0].mxu0
    %v2960 = vadd.f32 0.0, %v2959
    %v2961 = vpop.f32.mrb[0].mxu0
    %2962 = vmatprep.mubr.f32.mxu0 0.0
    %2963 = vmatmul.mubr.f32.gmra.mrb[0].mxu0 %v2865
    %v2964 = vpop.f32.mrb[0].mxu0
    %v2965 = vadd.f32 0.0, %v2964
    %v2966 = vpop.f32.mrb[0].mxu0
    %2967 = vmatprep.mubr.f32.mxu0 0.0
    %2968 = vmatmul.mubr.f32.gmra.mrb[0].mxu0 %v2866
    %v2969 = vpop.f32.mrb[0].mxu0
    %v2970 = vadd.f32 0.0, %v2969
    %v2971 = vpop.f32.mrb[0].mxu0
    %2972 = vdwg.mxu0
    %v2973 = vadd.f32 %v2522, %v2950
    %v2974 = vadd.f32 %v2523, %v2955
    %v2975 = vadd.f32 %v2524, %v2960
    %v2976 = vadd.f32 %v2525, %v2965
    %v2977 = vadd.f32 %v2526, %v2970
    %v2978 = vld [vmem:[%s15] sm:$0x1]
    %v2980 = vlaneseq
    %v2981 = vshrl.u32 %v2980, 7
    %v2982 = vsub.s32 0, %v2981
    %v2983 = vrot.slane %v2978, %v2982
    %v2985 = vadd.f32 %v2973, %v2983
    %v2986 = vadd.f32 %v2974, %v2983
    %v2987 = vadd.f32 %v2975, %v2983
    %v2988 = vadd.f32 %v2976, %v2983
    %v2989 = vadd.f32 %v2977, %v2983
    %s2990 = scalar_lea.vmem %s5, 1
    %v2991 = vld [vmem:[%s2990] sm:$0x1]
    %s2992 = scalar_lea.vmem %s6, 1
    %v2993 = vld [vmem:[%s2992] sm:$0x1]
    %v2994 = vsel %vm195, %v2985, 0.0
    %2995 = vadd.xlane.f32.xlu0 %v2994
    %v2996 = vpop.xlane.xlu0 %2995
    %v2997 = vsel %vm195, %v2986, 0.0
    %2998 = vadd.xlane.f32.xlu0 %v2997
    %v2999 = vpop.xlane.xlu0 %2998
    %v3000 = vsel %vm195, %v2987, 0.0
    %3001 = vadd.xlane.f32.xlu0 %v3000
    %v3002 = vpop.xlane.xlu0 %3001
    %v3003 = vsel %vm195, %v2988, 0.0
    %3004 = vadd.xlane.f32.xlu0 %v3003
    %v3005 = vpop.xlane.xlu0 %3004
    %v3006 = vsel %vm222, %v2989, 0.0
    %3007 = vadd.xlane.f32.xlu0 %v3006
    %v3008 = vpop.xlane.xlu0 %3007
    %v3009 = vmul.f32 %v2996, %v226
    %v3010 = vmul.f32 %v2999, %v226
    %v3011 = vmul.f32 %v3002, %v226
    %v3012 = vmul.f32 %v3005, %v226
    %v3013 = vmul.f32 %v3008, %v226
    %v3014 = vsub.f32 %v2985, %v3009
    %v3015 = vsub.f32 %v2986, %v3010
    %v3016 = vsub.f32 %v2987, %v3011
    %v3017 = vsub.f32 %v2988, %v3012
    %v3018 = vsub.f32 %v2989, %v3013
    %v3019 = vmul.f32 %v3014, %v3014
    %v3020 = vmul.f32 %v3015, %v3015
    %v3021 = vmul.f32 %v3016, %v3016
    %v3022 = vmul.f32 %v3017, %v3017
    %v3023 = vmul.f32 %v3018, %v3018
    %v3024 = vsel %vm195, %v3019, 0.0
    %3025 = vadd.xlane.f32.xlu0 %v3024
    %v3026 = vpop.xlane.xlu0 %3025
    %v3027 = vsel %vm195, %v3020, 0.0
    %3028 = vadd.xlane.f32.xlu0 %v3027
    %v3029 = vpop.xlane.xlu0 %3028
    %v3030 = vsel %vm195, %v3021, 0.0
    %3031 = vadd.xlane.f32.xlu0 %v3030
    %v3032 = vpop.xlane.xlu0 %3031
    %v3033 = vsel %vm195, %v3022, 0.0
    %3034 = vadd.xlane.f32.xlu0 %v3033
    %v3035 = vpop.xlane.xlu0 %3034
    %v3036 = vsel %vm222, %v3023, 0.0
    %3037 = vadd.xlane.f32.xlu0 %v3036
    %v3038 = vpop.xlane.xlu0 %3037
    %v3039 = vmul.f32 %v3026, %v226
    %v3040 = vmul.f32 %v3029, %v226
    %v3041 = vmul.f32 %v3032, %v226
    %v3042 = vmul.f32 %v3035, %v226
    %v3043 = vmul.f32 %v3038, %v226
    %v3044 = vadd.f32 %v3039, 1e-05
    %v3045 = vadd.f32 %v3040, 1e-05
    %v3046 = vadd.f32 %v3041, 1e-05
    %v3047 = vadd.f32 %v3042, 1e-05
    %v3048 = vadd.f32 %v3043, 1e-05
    %v3049 = vrsqrt.pop %v3044
    %v3050 = vrsqrt.pop %v3045
    %v3051 = vrsqrt.pop %v3046
    %v3052 = vrsqrt.pop %v3047
    %v3053 = vrsqrt.pop %v3048
    %v3054 = vmul.f32 %v3014, %v3049
    %v3055 = vmul.f32 %v3015, %v3050
    %v3056 = vmul.f32 %v3016, %v3051
    %v3057 = vmul.f32 %v3017, %v3052
    %v3058 = vmul.f32 %v3018, %v3053
    %v3060 = vlaneseq
    %v3061 = vshrl.u32 %v3060, 7
    %v3062 = vsub.s32 0, %v3061
    %v3063 = vrot.slane %v2991, %v3062
    %v3065 = vmul.f32 %v3054, %v3063
    %v3066 = vmul.f32 %v3055, %v3063
    %v3067 = vmul.f32 %v3056, %v3063
    %v3068 = vmul.f32 %v3057, %v3063
    %v3069 = vmul.f32 %v3058, %v3063
    %v3071 = vlaneseq
    %v3072 = vshrl.u32 %v3071, 7
    %v3073 = vsub.s32 0, %v3072
    %v3074 = vrot.slane %v2993, %v3073
    %v3076 = vadd.f32 %v3065, %v3074
    %v3077 = vadd.f32 %v3066, %v3074
    %v3078 = vadd.f32 %v3067, %v3074
    %v3079 = vadd.f32 %v3068, %v3074
    %v3080 = vadd.f32 %v3069, %v3074
    %s3081 = scalar_lea.vmem %s7, 32
    %v3082 = vld [vmem:[%s3081] sm:$0xff]
    %v3083 = vld [vmem:[%s3081 + $0x8] sm:$0xff]
    %v3084 = vld [vmem:[%s3081 + $0x10] sm:$0xff]
    %v3085 = vld [vmem:[%s3081 + $0x18] sm:$0xff]
    %v3087 = vsel %vm195, %v3076, 0
    %v3090 = vsel %vm195, %v3077, 0
    %v3093 = vsel %vm195, %v3078, 0
    %v3096 = vsel %vm195, %v3079, 0
    %v3099 = vsel %vm195, %v3080, 0
    %3101 = vmatprep.subr.mxu0 0.0
    %3102 = vmatpush1.msra.mxu0 %v3082
    %3103 = vmatprep.subr.mxu0 0.0
    %3104 = vmatpush1.msra.mxu0 %v3083
    %3105 = vmatprep.subr.mxu0 0.0
    %3106 = vmatpush1.msra.mxu0 %v3084
    %3107 = vmatprep.subr.mxu0 0.0
    %3108 = vmatpush1.msra.mxu0 %v3085
    %3109 = vmatprep.subr.mxu0 0.0
    %3110 = vmatpush1.msra.mxu0 0.0
    %3111 = vmatprep.subr.mxu0 0.0
    %3112 = vmatpush1.msra.mxu0 0.0
    %3113 = vmatprep.subr.mxu0 0.0
    %3114 = vmatpush1.msra.mxu0 0.0
    %3115 = vmatprep.subr.mxu0 0.0
    %3116 = vmatpush1.msra.mxu0 0.0
    %3117 = vmatprep.subr.mxu0 0.0
    %3118 = vmatpush1.msra.mxu0 0.0
    %3119 = vmatprep.subr.mxu0 0.0
    %3120 = vmatpush1.msra.mxu0 0.0
    %3121 = vmatprep.subr.mxu0 0.0
    %3122 = vmatpush1.msra.mxu0 0.0
    %3123 = vmatprep.subr.mxu0 0.0
    %3124 = vmatpush1.msra.mxu0 0.0
    %3125 = vmatprep.subr.mxu0 0.0
    %3126 = vmatpush1.msra.mxu0 0.0
    %3127 = vmatprep.subr.mxu0 0.0
    %3128 = vmatpush1.msra.mxu0 0.0
    %3129 = vmatprep.subr.mxu0 0.0
    %3130 = vmatpush1.msra.mxu0 0.0
    %3131 = vmatprep.subr.mxu0 0.0
    %3132 = vmatpush1.msra.mxu0 0.0
    %3133 = vmatprep.subr.mxu0 0.0
    %3134 = vmatpush1.msra.mxu0 0.0
    %3135 = vmatprep.subr.mxu0 0.0
    %3136 = vmatpush1.msra.mxu0 0.0
    %3137 = vmatprep.subr.mxu0 0.0
    %3138 = vmatpush1.msra.mxu0 0.0
    %3139 = vmatprep.subr.mxu0 0.0
    %3140 = vmatpush1.msra.mxu0 0.0
    %3141 = vmatprep.subr.mxu0 0.0
    %3142 = vmatpush1.msra.mxu0 0.0
    %3143 = vmatprep.subr.mxu0 0.0
    %3144 = vmatpush1.msra.mxu0 0.0
    %3145 = vmatprep.subr.mxu0 0.0
    %3146 = vmatpush1.msra.mxu0 0.0
    %3147 = vmatprep.subr.mxu0 0.0
    %3148 = vmatpush1.msra.mxu0 0.0
    %3149 = vmatprep.subr.mxu0 0.0
    %3150 = vmatpush1.msra.mxu0 0.0
    %3151 = vmatprep.subr.mxu0 0.0
    %3152 = vmatpush1.msra.mxu0 0.0
    %3153 = vmatprep.subr.mxu0 0.0
    %3154 = vmatpush1.msra.mxu0 0.0
    %3155 = vmatprep.subr.mxu0 0.0
    %3156 = vmatpush1.msra.mxu0 0.0
    %3157 = vmatprep.subr.mxu0 0.0
    %3158 = vmatpush1.msra.mxu0 0.0
    %3159 = vmatprep.subr.mxu0 0.0
    %3160 = vmatpush1.msra.mxu0 0.0
    %3161 = vmatprep.subr.mxu0 0.0
    %3162 = vmatpush1.msra.mxu0 0.0
    %3163 = vmatprep.subr.mxu0 0.0
    %3164 = vmatpush1.msra.mxu0 0.0
    %3165 = vmatprep.mubr.f32.mxu0 0.0
    %3166 = vmatmul.mubr.f32.gmra.mrb[0].mxu0 %v3087
    %v3167 = vpop.f32.mrb[0].mxu0
    %v3168 = vadd.f32 0.0, %v3167
    %v3169 = vpop.f32.mrb[0].mxu0
    %3170 = vmatprep.mubr.f32.mxu0 0.0
    %3171 = vmatmul.mubr.f32.gmra.mrb[0].mxu0 %v3090
    %v3172 = vpop.f32.mrb[0].mxu0
    %v3173 = vadd.f32 0.0, %v3172
    %v3174 = vpop.f32.mrb[0].mxu0
    %3175 = vmatprep.mubr.f32.mxu0 0.0
    %3176 = vmatmul.mubr.f32.gmra.mrb[0].mxu0 %v3093
    %v3177 = vpop.f32.mrb[0].mxu0
    %v3178 = vadd.f32 0.0, %v3177
    %v3179 = vpop.f32.mrb[0].mxu0
    %3180 = vmatprep.mubr.f32.mxu0 0.0
    %3181 = vmatmul.mubr.f32.gmra.mrb[0].mxu0 %v3096
    %v3182 = vpop.f32.mrb[0].mxu0
    %v3183 = vadd.f32 0.0, %v3182
    %v3184 = vpop.f32.mrb[0].mxu0
    %3185 = vmatprep.mubr.f32.mxu0 0.0
    %3186 = vmatmul.mubr.f32.gmra.mrb[0].mxu0 %v3099
    %v3187 = vpop.f32.mrb[0].mxu0
    %v3188 = vadd.f32 0.0, %v3187
    %v3189 = vpop.f32.mrb[0].mxu0
    %3190 = vdwg.mxu0
    %3194 = vrot.lane.b32.xlu0 %v3168, 96
    %v3195 = vpop.permute.xlu0 %3194
    %3196 = vrot.lane.b32.xlu0 %v3173, 96
    %v3197 = vpop.permute.xlu0 %3196
    %3198 = vrot.lane.b32.xlu0 %v3178, 96
    %v3199 = vpop.permute.xlu0 %3198
    %v3200 = vsel %vm417, %v3168, 0
    %v3202 = vsel %vm417, %v3173, 0
    %v3204 = vsel %vm417, %v3178, 0
    %v3206 = vsel %vm417, %v3195, 0
    %v3208 = vsel %vm417, %v3197, 0
    %v3210 = vsel %vm417, %v3199, 0
    %3212 = vmatprep.subr.mxu0 0.0
    %3213 = vmatpush1.xpose.msra.mxu0 %v3206
    %3214 = vmatprep.subr.mxu0 0.0
    %3215 = vmatpush1.xpose.msra.mxu0 %v3208
    %3216 = vmatprep.subr.mxu0 0.0
    %3217 = vmatpush1.xpose.msra.mxu0 %v3210
    %3218 = vmatprep.subr.mxu0 0.0
    %3219 = vmatpush1.xpose.msra.mxu0 0.0
    %3220 = vmatprep.subr.mxu0 0.0
    %3221 = vmatpush1.xpose.msra.mxu0 0.0
    %3222 = vmatprep.subr.mxu0 0.0
    %3223 = vmatpush1.xpose.msra.mxu0 0.0
    %3224 = vmatprep.subr.mxu0 0.0
    %3225 = vmatpush1.xpose.msra.mxu0 0.0
    %3226 = vmatprep.subr.mxu0 0.0
    %3227 = vmatpush1.xpose.msra.mxu0 0.0
    %3228 = vmatprep.subr.mxu0 0.0
    %3229 = vmatpush1.xpose.msra.mxu0 0.0
    %3230 = vmatprep.subr.mxu0 0.0
    %3231 = vmatpush1.xpose.msra.mxu0 0.0
    %3232 = vmatprep.subr.mxu0 0.0
    %3233 = vmatpush1.xpose.msra.mxu0 0.0
    %3234 = vmatprep.subr.mxu0 0.0
    %3235 = vmatpush1.xpose.msra.mxu0 0.0
    %3236 = vmatprep.subr.mxu0 0.0
    %3237 = vmatpush1.xpose.msra.mxu0 0.0
    %3238 = vmatprep.subr.mxu0 0.0
    %3239 = vmatpush1.xpose.msra.mxu0 0.0
    %3240 = vmatprep.subr.mxu0 0.0
    %3241 = vmatpush1.xpose.msra.mxu0 0.0
    %3242 = vmatprep.subr.mxu0 0.0
    %3243 = vmatpush1.xpose.msra.mxu0 0.0
    %3244 = vmatprep.subr.mxu0 0.0
    %3245 = vmatpush1.xpose.msra.mxu0 0.0
    %3246 = vmatprep.subr.mxu0 0.0
    %3247 = vmatpush1.xpose.msra.mxu0 0.0
    %3248 = vmatprep.subr.mxu0 0.0
    %3249 = vmatpush1.xpose.msra.mxu0 0.0
    %3250 = vmatprep.subr.mxu0 0.0
    %3251 = vmatpush1.xpose.msra.mxu0 0.0
    %3252 = vmatprep.subr.mxu0 0.0
    %3253 = vmatpush1.xpose.msra.mxu0 0.0
    %3254 = vmatprep.subr.mxu0 0.0
    %3255 = vmatpush1.xpose.msra.mxu0 0.0
    %3256 = vmatprep.subr.mxu0 0.0
    %3257 = vmatpush1.xpose.msra.mxu0 0.0
    %3258 = vmatprep.subr.mxu0 0.0
    %3259 = vmatpush1.xpose.msra.mxu0 0.0
    %3260 = vmatprep.subr.mxu0 0.0
    %3261 = vmatpush1.xpose.msra.mxu0 0.0
    %3262 = vmatprep.subr.mxu0 0.0
    %3263 = vmatpush1.xpose.msra.mxu0 0.0
    %3264 = vmatprep.subr.mxu0 0.0
    %3265 = vmatpush1.xpose.msra.mxu0 0.0
    %3266 = vmatprep.subr.mxu0 0.0
    %3267 = vmatpush1.xpose.msra.mxu0 0.0
    %3268 = vmatprep.subr.mxu0 0.0
    %3269 = vmatpush1.xpose.msra.mxu0 0.0
    %3270 = vmatprep.subr.mxu0 0.0
    %3271 = vmatpush1.xpose.msra.mxu0 0.0
    %3272 = vmatprep.subr.mxu0 0.0
    %3273 = vmatpush1.xpose.msra.mxu0 0.0
    %3274 = vmatprep.subr.mxu0 0.0
    %3275 = vmatpush1.xpose.msra.mxu0 0.0
    %3276 = vmatprep.mubr.f32.mxu0 0.0
    %3277 = vmatmul.mubr.f32.gmra.mrb[0].mxu0 %v3200
    %v3278 = vpop.f32.mrb[0].mxu0
    %v3279 = vadd.f32 0.0, %v3278
    %v3280 = vpop.f32.mrb[0].mxu0
    %3281 = vmatprep.mubr.f32.mxu0 0.0
    %3282 = vmatmul.mubr.f32.gmra.mrb[0].mxu0 %v3202
    %v3283 = vpop.f32.mrb[0].mxu0
    %v3284 = vadd.f32 0.0, %v3283
    %v3285 = vpop.f32.mrb[0].mxu0
    %3286 = vmatprep.mubr.f32.mxu0 0.0
    %3287 = vmatmul.mubr.f32.gmra.mrb[0].mxu0 %v3204
    %v3288 = vpop.f32.mrb[0].mxu0
    %v3289 = vadd.f32 0.0, %v3288
    %v3290 = vpop.f32.mrb[0].mxu0
    %3291 = vdwg.mxu0
    %v3292 = vsel %vm510, %v3279, -inf
    %3293 = vmax.xlane.f32.xlu0 %v3292
    %v3294 = vpop.xlane.xlu0 %3293
    %v3295 = vsel %vm510, %v3284, -inf
    %3296 = vmax.xlane.f32.xlu0 %v3295
    %v3297 = vpop.xlane.xlu0 %3296
    %v3298 = vsel %vm517, %v3289, -inf
    %3299 = vmax.xlane.f32.xlu0 %v3298
    %v3300 = vpop.xlane.xlu0 %3299
    %v3301 = vsub.f32 %v3279, %v3294
    %v3302 = vsub.f32 %v3284, %v3297
    %v3303 = vsub.f32 %v3289, %v3300
    %v3304 = vmul.f32 %v3301, 1.442695
    %v3305 = vpow.pop %v3304
    %v3306 = vmul.f32 %v3302, 1.442695
    %v3307 = vpow.pop %v3306
    %v3308 = vmul.f32 %v3303, 1.442695
    %v3309 = vpow.pop %v3308
    %v3310 = vsel %vm510, %v3305, 0.0
    %3311 = vadd.xlane.f32.xlu0 %v3310
    %v3312 = vpop.xlane.xlu0 %3311
    %v3313 = vsel %vm510, %v3307, 0.0
    %3314 = vadd.xlane.f32.xlu0 %v3313
    %v3315 = vpop.xlane.xlu0 %3314
    %v3316 = vsel %vm517, %v3309, 0.0
    %3317 = vadd.xlane.f32.xlu0 %v3316
    %v3318 = vpop.xlane.xlu0 %3317
    %v3319 = vrcp.pop %v3312
    %v3320 = vrcp.pop %v3315
    %v3321 = vrcp.pop %v3318
    %v3322 = vmul.f32 %v3305, %v3319
    %v3323 = vmul.f32 %v3307, %v3320
    %v3324 = vmul.f32 %v3309, %v3321
    %3325 = vrot.lane.b32.xlu0 %v3168, 64
    %v3326 = vpop.permute.xlu0 %3325
    %3327 = vrot.lane.b32.xlu0 %v3173, 64
    %v3328 = vpop.permute.xlu0 %3327
    %3329 = vrot.lane.b32.xlu0 %v3178, 64
    %v3330 = vpop.permute.xlu0 %3329
    %v3334 = vsel %vm510, %v3322, 0
    %v3337 = vsel %vm510, %v3323, 0
    %v3340 = vsel %vm510, %v3324, 0
    %v3342 = vsel %vm562, %v3330, 0
    %3344 = vmatprep.subr.mxu0 0.0
    %3345 = vmatpush1.msra.mxu0 %v3326
    %3346 = vmatprep.subr.mxu0 0.0
    %3347 = vmatpush1.msra.mxu0 %v3328
    %3348 = vmatprep.subr.mxu0 0.0
    %3349 = vmatpush1.msra.mxu0 %v3342
    %3350 = vmatprep.subr.mxu0 0.0
    %3351 = vmatpush1.msra.mxu0 0.0
    %3352 = vmatprep.subr.mxu0 0.0
    %3353 = vmatpush1.msra.mxu0 0.0
    %3354 = vmatprep.subr.mxu0 0.0
    %3355 = vmatpush1.msra.mxu0 0.0
    %3356 = vmatprep.subr.mxu0 0.0
    %3357 = vmatpush1.msra.mxu0 0.0
    %3358 = vmatprep.subr.mxu0 0.0
    %3359 = vmatpush1.msra.mxu0 0.0
    %3360 = vmatprep.subr.mxu0 0.0
    %3361 = vmatpush1.msra.mxu0 0.0
    %3362 = vmatprep.subr.mxu0 0.0
    %3363 = vmatpush1.msra.mxu0 0.0
    %3364 = vmatprep.subr.mxu0 0.0
    %3365 = vmatpush1.msra.mxu0 0.0
    %3366 = vmatprep.subr.mxu0 0.0
    %3367 = vmatpush1.msra.mxu0 0.0
    %3368 = vmatprep.subr.mxu0 0.0
    %3369 = vmatpush1.msra.mxu0 0.0
    %3370 = vmatprep.subr.mxu0 0.0
    %3371 = vmatpush1.msra.mxu0 0.0
    %3372 = vmatprep.subr.mxu0 0.0
    %3373 = vmatpush1.msra.mxu0 0.0
    %3374 = vmatprep.subr.mxu0 0.0
    %3375 = vmatpush1.msra.mxu0 0.0
    %3376 = vmatprep.subr.mxu0 0.0
    %3377 = vmatpush1.msra.mxu0 0.0
    %3378 = vmatprep.subr.mxu0 0.0
    %3379 = vmatpush1.msra.mxu0 0.0
    %3380 = vmatprep.subr.mxu0 0.0
    %3381 = vmatpush1.msra.mxu0 0.0
    %3382 = vmatprep.subr.mxu0 0.0
    %3383 = vmatpush1.msra.mxu0 0.0
    %3384 = vmatprep.subr.mxu0 0.0
    %3385 = vmatpush1.msra.mxu0 0.0
    %3386 = vmatprep.subr.mxu0 0.0
    %3387 = vmatpush1.msra.mxu0 0.0
    %3388 = vmatprep.subr.mxu0 0.0
    %3389 = vmatpush1.msra.mxu0 0.0
    %3390 = vmatprep.subr.mxu0 0.0
    %3391 = vmatpush1.msra.mxu0 0.0
    %3392 = vmatprep.subr.mxu0 0.0
    %3393 = vmatpush1.msra.mxu0 0.0
    %3394 = vmatprep.subr.mxu0 0.0
    %3395 = vmatpush1.msra.mxu0 0.0
    %3396 = vmatprep.subr.mxu0 0.0
    %3397 = vmatpush1.msra.mxu0 0.0
    %3398 = vmatprep.subr.mxu0 0.0
    %3399 = vmatpush1.msra.mxu0 0.0
    %3400 = vmatprep.subr.mxu0 0.0
    %3401 = vmatpush1.msra.mxu0 0.0
    %3402 = vmatprep.subr.mxu0 0.0
    %3403 = vmatpush1.msra.mxu0 0.0
    %3404 = vmatprep.subr.mxu0 0.0
    %3405 = vmatpush1.msra.mxu0 0.0
    %3406 = vmatprep.subr.mxu0 0.0
    %3407 = vmatpush1.msra.mxu0 0.0
    %3408 = vmatprep.mubr.f32.mxu0 0.0
    %3409 = vmatmul.mubr.f32.gmra.mrb[0].mxu0 %v3334
    %v3410 = vpop.f32.mrb[0].mxu0
    %v3411 = vadd.f32 0.0, %v3410
    %v3412 = vpop.f32.mrb[0].mxu0
    %3413 = vmatprep.mubr.f32.mxu0 0.0
    %3414 = vmatmul.mubr.f32.gmra.mrb[0].mxu0 %v3337
    %v3415 = vpop.f32.mrb[0].mxu0
    %v3416 = vadd.f32 0.0, %v3415
    %v3417 = vpop.f32.mrb[0].mxu0
    %3418 = vmatprep.mubr.f32.mxu0 0.0
    %3419 = vmatmul.mubr.f32.gmra.mrb[0].mxu0 %v3340
    %v3420 = vpop.f32.mrb[0].mxu0
    %v3421 = vadd.f32 0.0, %v3420
    %v3422 = vpop.f32.mrb[0].mxu0
    %3423 = vdwg.mxu0
    %3424 = vst.msk [vmem:[#allocation3] sm:$0xff] %vm417, %v3411
    %3425 = vst.msk [vmem:[#allocation3 + $0x8] sm:$0xff] %vm417, %v3416
    %3426 = vst.msk [vmem:[#allocation3 + $0x10] sm:$0x1] %vm647, %v3421
    %3427 = vrot.lane.b32.xlu0 %v3168, 120
    %v3428 = vpop.permute.xlu0 %3427
    %3429 = vrot.lane.b32.xlu0 %v3173, 120
    %v3430 = vpop.permute.xlu0 %3429
    %3431 = vrot.lane.b32.xlu0 %v3178, 120
    %v3432 = vpop.permute.xlu0 %3431
    %3433 = vrot.lane.b32.xlu0 %v3168, 88
    %v3434 = vpop.permute.xlu0 %3433
    %3435 = vrot.lane.b32.xlu0 %v3173, 88
    %v3436 = vpop.permute.xlu0 %3435
    %3437 = vrot.lane.b32.xlu0 %v3178, 88
    %v3438 = vpop.permute.xlu0 %3437
    %v3439 = vsel %vm417, %v3428, 0
    %v3441 = vsel %vm417, %v3430, 0
    %v3443 = vsel %vm417, %v3432, 0
    %v3445 = vsel %vm417, %v3434, 0
    %v3447 = vsel %vm417, %v3436, 0
    %v3449 = vsel %vm417, %v3438, 0
    %3451 = vmatprep.subr.mxu0 0.0
    %3452 = vmatpush1.xpose.msra.mxu0 %v3445
    %3453 = vmatprep.subr.mxu0 0.0
    %3454 = vmatpush1.xpose.msra.mxu0 %v3447
    %3455 = vmatprep.subr.mxu0 0.0
    %3456 = vmatpush1.xpose.msra.mxu0 %v3449
    %3457 = vmatprep.subr.mxu0 0.0
    %3458 = vmatpush1.xpose.msra.mxu0 0.0
    %3459 = vmatprep.subr.mxu0 0.0
    %3460 = vmatpush1.xpose.msra.mxu0 0.0
    %3461 = vmatprep.subr.mxu0 0.0
    %3462 = vmatpush1.xpose.msra.mxu0 0.0
    %3463 = vmatprep.subr.mxu0 0.0
    %3464 = vmatpush1.xpose.msra.mxu0 0.0
    %3465 = vmatprep.subr.mxu0 0.0
    %3466 = vmatpush1.xpose.msra.mxu0 0.0
    %3467 = vmatprep.subr.mxu0 0.0
    %3468 = vmatpush1.xpose.msra.mxu0 0.0
    %3469 = vmatprep.subr.mxu0 0.0
    %3470 = vmatpush1.xpose.msra.mxu0 0.0
    %3471 = vmatprep.subr.mxu0 0.0
    %3472 = vmatpush1.xpose.msra.mxu0 0.0
    %3473 = vmatprep.subr.mxu0 0.0
    %3474 = vmatpush1.xpose.msra.mxu0 0.0
    %3475 = vmatprep.subr.mxu0 0.0
    %3476 = vmatpush1.xpose.msra.mxu0 0.0
    %3477 = vmatprep.subr.mxu0 0.0
    %3478 = vmatpush1.xpose.msra.mxu0 0.0
    %3479 = vmatprep.subr.mxu0 0.0
    %3480 = vmatpush1.xpose.msra.mxu0 0.0
    %3481 = vmatprep.subr.mxu0 0.0
    %3482 = vmatpush1.xpose.msra.mxu0 0.0
    %3483 = vmatprep.subr.mxu0 0.0
    %3484 = vmatpush1.xpose.msra.mxu0 0.0
    %3485 = vmatprep.subr.mxu0 0.0
    %3486 = vmatpush1.xpose.msra.mxu0 0.0
    %3487 = vmatprep.subr.mxu0 0.0
    %3488 = vmatpush1.xpose.msra.mxu0 0.0
    %3489 = vmatprep.subr.mxu0 0.0
    %3490 = vmatpush1.xpose.msra.mxu0 0.0
    %3491 = vmatprep.subr.mxu0 0.0
    %3492 = vmatpush1.xpose.msra.mxu0 0.0
    %3493 = vmatprep.subr.mxu0 0.0
    %3494 = vmatpush1.xpose.msra.mxu0 0.0
    %3495 = vmatprep.subr.mxu0 0.0
    %3496 = vmatpush1.xpose.msra.mxu0 0.0
    %3497 = vmatprep.subr.mxu0 0.0
    %3498 = vmatpush1.xpose.msra.mxu0 0.0
    %3499 = vmatprep.subr.mxu0 0.0
    %3500 = vmatpush1.xpose.msra.mxu0 0.0
    %3501 = vmatprep.subr.mxu0 0.0
    %3502 = vmatpush1.xpose.msra.mxu0 0.0
    %3503 = vmatprep.subr.mxu0 0.0
    %3504 = vmatpush1.xpose.msra.mxu0 0.0
    %3505 = vmatprep.subr.mxu0 0.0
    %3506 = vmatpush1.xpose.msra.mxu0 0.0
    %3507 = vmatprep.subr.mxu0 0.0
    %3508 = vmatpush1.xpose.msra.mxu0 0.0
    %3509 = vmatprep.subr.mxu0 0.0
    %3510 = vmatpush1.xpose.msra.mxu0 0.0
    %3511 = vmatprep.subr.mxu0 0.0
    %3512 = vmatpush1.xpose.msra.mxu0 0.0
    %3513 = vmatprep.subr.mxu0 0.0
    %3514 = vmatpush1.xpose.msra.mxu0 0.0
    %3515 = vmatprep.mubr.f32.mxu0 0.0
    %3516 = vmatmul.mubr.f32.gmra.mrb[0].mxu0 %v3439
    %v3517 = vpop.f32.mrb[0].mxu0
    %v3518 = vadd.f32 0.0, %v3517
    %v3519 = vpop.f32.mrb[0].mxu0
    %3520 = vmatprep.mubr.f32.mxu0 0.0
    %3521 = vmatmul.mubr.f32.gmra.mrb[0].mxu0 %v3441
    %v3522 = vpop.f32.mrb[0].mxu0
    %v3523 = vadd.f32 0.0, %v3522
    %v3524 = vpop.f32.mrb[0].mxu0
    %3525 = vmatprep.mubr.f32.mxu0 0.0
    %3526 = vmatmul.mubr.f32.gmra.mrb[0].mxu0 %v3443
    %v3527 = vpop.f32.mrb[0].mxu0
    %v3528 = vadd.f32 0.0, %v3527
    %v3529 = vpop.f32.mrb[0].mxu0
    %3530 = vdwg.mxu0
    %v3531 = vsel %vm510, %v3518, -inf
    %3532 = vmax.xlane.f32.xlu0 %v3531
    %v3533 = vpop.xlane.xlu0 %3532
    %v3534 = vsel %vm510, %v3523, -inf
    %3535 = vmax.xlane.f32.xlu0 %v3534
    %v3536 = vpop.xlane.xlu0 %3535
    %v3537 = vsel %vm517, %v3528, -inf
    %3538 = vmax.xlane.f32.xlu0 %v3537
    %v3539 = vpop.xlane.xlu0 %3538
    %v3540 = vsub.f32 %v3518, %v3533
    %v3541 = vsub.f32 %v3523, %v3536
    %v3542 = vsub.f32 %v3528, %v3539
    %v3543 = vmul.f32 %v3540, 1.442695
    %v3544 = vpow.pop %v3543
    %v3545 = vmul.f32 %v3541, 1.442695
    %v3546 = vpow.pop %v3545
    %v3547 = vmul.f32 %v3542, 1.442695
    %v3548 = vpow.pop %v3547
    %v3549 = vsel %vm510, %v3544, 0.0
    %3550 = vadd.xlane.f32.xlu0 %v3549
    %v3551 = vpop.xlane.xlu0 %3550
    %v3552 = vsel %vm510, %v3546, 0.0
    %3553 = vadd.xlane.f32.xlu0 %v3552
    %v3554 = vpop.xlane.xlu0 %3553
    %v3555 = vsel %vm517, %v3548, 0.0
    %3556 = vadd.xlane.f32.xlu0 %v3555
    %v3557 = vpop.xlane.xlu0 %3556
    %v3558 = vrcp.pop %v3551
    %v3559 = vrcp.pop %v3554
    %v3560 = vrcp.pop %v3557
    %v3561 = vmul.f32 %v3544, %v3558
    %v3562 = vmul.f32 %v3546, %v3559
    %v3563 = vmul.f32 %v3548, %v3560
    %3564 = vrot.lane.b32.xlu0 %v3168, 56
    %v3565 = vpop.permute.xlu0 %3564
    %3566 = vrot.lane.b32.xlu0 %v3173, 56
    %v3567 = vpop.permute.xlu0 %3566
    %3568 = vrot.lane.b32.xlu0 %v3178, 56
    %v3569 = vpop.permute.xlu0 %3568
    %v3573 = vsel %vm510, %v3561, 0
    %v3576 = vsel %vm510, %v3562, 0
    %v3579 = vsel %vm510, %v3563, 0
    %v3581 = vsel %vm562, %v3569, 0
    %3583 = vmatprep.subr.mxu0 0.0
    %3584 = vmatpush1.msra.mxu0 %v3565
    %3585 = vmatprep.subr.mxu0 0.0
    %3586 = vmatpush1.msra.mxu0 %v3567
    %3587 = vmatprep.subr.mxu0 0.0
    %3588 = vmatpush1.msra.mxu0 %v3581
    %3589 = vmatprep.subr.mxu0 0.0
    %3590 = vmatpush1.msra.mxu0 0.0
    %3591 = vmatprep.subr.mxu0 0.0
    %3592 = vmatpush1.msra.mxu0 0.0
    %3593 = vmatprep.subr.mxu0 0.0
    %3594 = vmatpush1.msra.mxu0 0.0
    %3595 = vmatprep.subr.mxu0 0.0
    %3596 = vmatpush1.msra.mxu0 0.0
    %3597 = vmatprep.subr.mxu0 0.0
    %3598 = vmatpush1.msra.mxu0 0.0
    %3599 = vmatprep.subr.mxu0 0.0
    %3600 = vmatpush1.msra.mxu0 0.0
    %3601 = vmatprep.subr.mxu0 0.0
    %3602 = vmatpush1.msra.mxu0 0.0
    %3603 = vmatprep.subr.mxu0 0.0
    %3604 = vmatpush1.msra.mxu0 0.0
    %3605 = vmatprep.subr.mxu0 0.0
    %3606 = vmatpush1.msra.mxu0 0.0
    %3607 = vmatprep.subr.mxu0 0.0
    %3608 = vmatpush1.msra.mxu0 0.0
    %3609 = vmatprep.subr.mxu0 0.0
    %3610 = vmatpush1.msra.mxu0 0.0
    %3611 = vmatprep.subr.mxu0 0.0
    %3612 = vmatpush1.msra.mxu0 0.0
    %3613 = vmatprep.subr.mxu0 0.0
    %3614 = vmatpush1.msra.mxu0 0.0
    %3615 = vmatprep.subr.mxu0 0.0
    %3616 = vmatpush1.msra.mxu0 0.0
    %3617 = vmatprep.subr.mxu0 0.0
    %3618 = vmatpush1.msra.mxu0 0.0
    %3619 = vmatprep.subr.mxu0 0.0
    %3620 = vmatpush1.msra.mxu0 0.0
    %3621 = vmatprep.subr.mxu0 0.0
    %3622 = vmatpush1.msra.mxu0 0.0
    %3623 = vmatprep.subr.mxu0 0.0
    %3624 = vmatpush1.msra.mxu0 0.0
    %3625 = vmatprep.subr.mxu0 0.0
    %3626 = vmatpush1.msra.mxu0 0.0
    %3627 = vmatprep.subr.mxu0 0.0
    %3628 = vmatpush1.msra.mxu0 0.0
    %3629 = vmatprep.subr.mxu0 0.0
    %3630 = vmatpush1.msra.mxu0 0.0
    %3631 = vmatprep.subr.mxu0 0.0
    %3632 = vmatpush1.msra.mxu0 0.0
    %3633 = vmatprep.subr.mxu0 0.0
    %3634 = vmatpush1.msra.mxu0 0.0
    %3635 = vmatprep.subr.mxu0 0.0
    %3636 = vmatpush1.msra.mxu0 0.0
    %3637 = vmatprep.subr.mxu0 0.0
    %3638 = vmatpush1.msra.mxu0 0.0
    %3639 = vmatprep.subr.mxu0 0.0
    %3640 = vmatpush1.msra.mxu0 0.0
    %3641 = vmatprep.subr.mxu0 0.0
    %3642 = vmatpush1.msra.mxu0 0.0
    %3643 = vmatprep.subr.mxu0 0.0
    %3644 = vmatpush1.msra.mxu0 0.0
    %3645 = vmatprep.subr.mxu0 0.0
    %3646 = vmatpush1.msra.mxu0 0.0
    %3647 = vmatprep.mubr.f32.mxu0 0.0
    %3648 = vmatmul.mubr.f32.gmra.mrb[0].mxu0 %v3573
    %v3649 = vpop.f32.mrb[0].mxu0
    %v3650 = vadd.f32 0.0, %v3649
    %v3651 = vpop.f32.mrb[0].mxu0
    %3652 = vmatprep.mubr.f32.mxu0 0.0
    %3653 = vmatmul.mubr.f32.gmra.mrb[0].mxu0 %v3576
    %v3654 = vpop.f32.mrb[0].mxu0
    %v3655 = vadd.f32 0.0, %v3654
    %v3656 = vpop.f32.mrb[0].mxu0
    %3657 = vmatprep.mubr.f32.mxu0 0.0
    %3658 = vmatmul.mubr.f32.gmra.mrb[0].mxu0 %v3579
    %v3659 = vpop.f32.mrb[0].mxu0
    %v3660 = vadd.f32 0.0, %v3659
    %v3661 = vpop.f32.mrb[0].mxu0
    %3662 = vdwg.mxu0
    %3666 = vrot.lane.b32.xlu0 %v3650, 8
    %v3667 = vpop.permute.xlu0 %3666
    %3668 = vrot.lane.b32.xlu0 %v3655, 8
    %v3669 = vpop.permute.xlu0 %3668
    %3670 = vrot.lane.b32.xlu0 %v3660, 8
    %v3671 = vpop.permute.xlu0 %3670
    %3675 = vst.msk [vmem:[#allocation3] sm:$0xff] %vm897, %v3667
    %3676 = vst.msk [vmem:[#allocation3 + $0x8] sm:$0xff] %vm897, %v3669
    %3677 = vst.msk [vmem:[#allocation3 + $0x10] sm:$0x1] %vm900, %v3671
    %3678 = vrot.lane.b32.xlu0 %v3168, 112
    %v3679 = vpop.permute.xlu0 %3678
    %3680 = vrot.lane.b32.xlu0 %v3173, 112
    %v3681 = vpop.permute.xlu0 %3680
    %3682 = vrot.lane.b32.xlu0 %v3178, 112
    %v3683 = vpop.permute.xlu0 %3682
    %3684 = vrot.lane.b32.xlu0 %v3168, 80
    %v3685 = vpop.permute.xlu0 %3684
    %3686 = vrot.lane.b32.xlu0 %v3173, 80
    %v3687 = vpop.permute.xlu0 %3686
    %3688 = vrot.lane.b32.xlu0 %v3178, 80
    %v3689 = vpop.permute.xlu0 %3688
    %v3690 = vsel %vm417, %v3679, 0
    %v3692 = vsel %vm417, %v3681, 0
    %v3694 = vsel %vm417, %v3683, 0
    %v3696 = vsel %vm417, %v3685, 0
    %v3698 = vsel %vm417, %v3687, 0
    %v3700 = vsel %vm417, %v3689, 0
    %3702 = vmatprep.subr.mxu0 0.0
    %3703 = vmatpush1.xpose.msra.mxu0 %v3696
    %3704 = vmatprep.subr.mxu0 0.0
    %3705 = vmatpush1.xpose.msra.mxu0 %v3698
    %3706 = vmatprep.subr.mxu0 0.0
    %3707 = vmatpush1.xpose.msra.mxu0 %v3700
    %3708 = vmatprep.subr.mxu0 0.0
    %3709 = vmatpush1.xpose.msra.mxu0 0.0
    %3710 = vmatprep.subr.mxu0 0.0
    %3711 = vmatpush1.xpose.msra.mxu0 0.0
    %3712 = vmatprep.subr.mxu0 0.0
    %3713 = vmatpush1.xpose.msra.mxu0 0.0
    %3714 = vmatprep.subr.mxu0 0.0
    %3715 = vmatpush1.xpose.msra.mxu0 0.0
    %3716 = vmatprep.subr.mxu0 0.0
    %3717 = vmatpush1.xpose.msra.mxu0 0.0
    %3718 = vmatprep.subr.mxu0 0.0
    %3719 = vmatpush1.xpose.msra.mxu0 0.0
    %3720 = vmatprep.subr.mxu0 0.0
    %3721 = vmatpush1.xpose.msra.mxu0 0.0
    %3722 = vmatprep.subr.mxu0 0.0
    %3723 = vmatpush1.xpose.msra.mxu0 0.0
    %3724 = vmatprep.subr.mxu0 0.0
    %3725 = vmatpush1.xpose.msra.mxu0 0.0
    %3726 = vmatprep.subr.mxu0 0.0
    %3727 = vmatpush1.xpose.msra.mxu0 0.0
    %3728 = vmatprep.subr.mxu0 0.0
    %3729 = vmatpush1.xpose.msra.mxu0 0.0
    %3730 = vmatprep.subr.mxu0 0.0
    %3731 = vmatpush1.xpose.msra.mxu0 0.0
    %3732 = vmatprep.subr.mxu0 0.0
    %3733 = vmatpush1.xpose.msra.mxu0 0.0
    %3734 = vmatprep.subr.mxu0 0.0
    %3735 = vmatpush1.xpose.msra.mxu0 0.0
    %3736 = vmatprep.subr.mxu0 0.0
    %3737 = vmatpush1.xpose.msra.mxu0 0.0
    %3738 = vmatprep.subr.mxu0 0.0
    %3739 = vmatpush1.xpose.msra.mxu0 0.0
    %3740 = vmatprep.subr.mxu0 0.0
    %3741 = vmatpush1.xpose.msra.mxu0 0.0
    %3742 = vmatprep.subr.mxu0 0.0
    %3743 = vmatpush1.xpose.msra.mxu0 0.0
    %3744 = vmatprep.subr.mxu0 0.0
    %3745 = vmatpush1.xpose.msra.mxu0 0.0
    %3746 = vmatprep.subr.mxu0 0.0
    %3747 = vmatpush1.xpose.msra.mxu0 0.0
    %3748 = vmatprep.subr.mxu0 0.0
    %3749 = vmatpush1.xpose.msra.mxu0 0.0
    %3750 = vmatprep.subr.mxu0 0.0
    %3751 = vmatpush1.xpose.msra.mxu0 0.0
    %3752 = vmatprep.subr.mxu0 0.0
    %3753 = vmatpush1.xpose.msra.mxu0 0.0
    %3754 = vmatprep.subr.mxu0 0.0
    %3755 = vmatpush1.xpose.msra.mxu0 0.0
    %3756 = vmatprep.subr.mxu0 0.0
    %3757 = vmatpush1.xpose.msra.mxu0 0.0
    %3758 = vmatprep.subr.mxu0 0.0
    %3759 = vmatpush1.xpose.msra.mxu0 0.0
    %3760 = vmatprep.subr.mxu0 0.0
    %3761 = vmatpush1.xpose.msra.mxu0 0.0
    %3762 = vmatprep.subr.mxu0 0.0
    %3763 = vmatpush1.xpose.msra.mxu0 0.0
    %3764 = vmatprep.subr.mxu0 0.0
    %3765 = vmatpush1.xpose.msra.mxu0 0.0
    %3766 = vmatprep.mubr.f32.mxu0 0.0
    %3767 = vmatmul.mubr.f32.gmra.mrb[0].mxu0 %v3690
    %v3768 = vpop.f32.mrb[0].mxu0
    %v3769 = vadd.f32 0.0, %v3768
    %v3770 = vpop.f32.mrb[0].mxu0
    %3771 = vmatprep.mubr.f32.mxu0 0.0
    %3772 = vmatmul.mubr.f32.gmra.mrb[0].mxu0 %v3692
    %v3773 = vpop.f32.mrb[0].mxu0
    %v3774 = vadd.f32 0.0, %v3773
    %v3775 = vpop.f32.mrb[0].mxu0
    %3776 = vmatprep.mubr.f32.mxu0 0.0
    %3777 = vmatmul.mubr.f32.gmra.mrb[0].mxu0 %v3694
    %v3778 = vpop.f32.mrb[0].mxu0
    %v3779 = vadd.f32 0.0, %v3778
    %v3780 = vpop.f32.mrb[0].mxu0
    %3781 = vdwg.mxu0
    %v3782 = vsel %vm510, %v3769, -inf
    %3783 = vmax.xlane.f32.xlu0 %v3782
    %v3784 = vpop.xlane.xlu0 %3783
    %v3785 = vsel %vm510, %v3774, -inf
    %3786 = vmax.xlane.f32.xlu0 %v3785
    %v3787 = vpop.xlane.xlu0 %3786
    %v3788 = vsel %vm517, %v3779, -inf
    %3789 = vmax.xlane.f32.xlu0 %v3788
    %v3790 = vpop.xlane.xlu0 %3789
    %v3791 = vsub.f32 %v3769, %v3784
    %v3792 = vsub.f32 %v3774, %v3787
    %v3793 = vsub.f32 %v3779, %v3790
    %v3794 = vmul.f32 %v3791, 1.442695
    %v3795 = vpow.pop %v3794
    %v3796 = vmul.f32 %v3792, 1.442695
    %v3797 = vpow.pop %v3796
    %v3798 = vmul.f32 %v3793, 1.442695
    %v3799 = vpow.pop %v3798
    %v3800 = vsel %vm510, %v3795, 0.0
    %3801 = vadd.xlane.f32.xlu0 %v3800
    %v3802 = vpop.xlane.xlu0 %3801
    %v3803 = vsel %vm510, %v3797, 0.0
    %3804 = vadd.xlane.f32.xlu0 %v3803
    %v3805 = vpop.xlane.xlu0 %3804
    %v3806 = vsel %vm517, %v3799, 0.0
    %3807 = vadd.xlane.f32.xlu0 %v3806
    %v3808 = vpop.xlane.xlu0 %3807
    %v3809 = vrcp.pop %v3802
    %v3810 = vrcp.pop %v3805
    %v3811 = vrcp.pop %v3808
    %v3812 = vmul.f32 %v3795, %v3809
    %v3813 = vmul.f32 %v3797, %v3810
    %v3814 = vmul.f32 %v3799, %v3811
    %3815 = vrot.lane.b32.xlu0 %v3168, 48
    %v3816 = vpop.permute.xlu0 %3815
    %3817 = vrot.lane.b32.xlu0 %v3173, 48
    %v3818 = vpop.permute.xlu0 %3817
    %3819 = vrot.lane.b32.xlu0 %v3178, 48
    %v3820 = vpop.permute.xlu0 %3819
    %v3824 = vsel %vm510, %v3812, 0
    %v3827 = vsel %vm510, %v3813, 0
    %v3830 = vsel %vm510, %v3814, 0
    %v3832 = vsel %vm562, %v3820, 0
    %3834 = vmatprep.subr.mxu0 0.0
    %3835 = vmatpush1.msra.mxu0 %v3816
    %3836 = vmatprep.subr.mxu0 0.0
    %3837 = vmatpush1.msra.mxu0 %v3818
    %3838 = vmatprep.subr.mxu0 0.0
    %3839 = vmatpush1.msra.mxu0 %v3832
    %3840 = vmatprep.subr.mxu0 0.0
    %3841 = vmatpush1.msra.mxu0 0.0
    %3842 = vmatprep.subr.mxu0 0.0
    %3843 = vmatpush1.msra.mxu0 0.0
    %3844 = vmatprep.subr.mxu0 0.0
    %3845 = vmatpush1.msra.mxu0 0.0
    %3846 = vmatprep.subr.mxu0 0.0
    %3847 = vmatpush1.msra.mxu0 0.0
    %3848 = vmatprep.subr.mxu0 0.0
    %3849 = vmatpush1.msra.mxu0 0.0
    %3850 = vmatprep.subr.mxu0 0.0
    %3851 = vmatpush1.msra.mxu0 0.0
    %3852 = vmatprep.subr.mxu0 0.0
    %3853 = vmatpush1.msra.mxu0 0.0
    %3854 = vmatprep.subr.mxu0 0.0
    %3855 = vmatpush1.msra.mxu0 0.0
    %3856 = vmatprep.subr.mxu0 0.0
    %3857 = vmatpush1.msra.mxu0 0.0
    %3858 = vmatprep.subr.mxu0 0.0
    %3859 = vmatpush1.msra.mxu0 0.0
    %3860 = vmatprep.subr.mxu0 0.0
    %3861 = vmatpush1.msra.mxu0 0.0
    %3862 = vmatprep.subr.mxu0 0.0
    %3863 = vmatpush1.msra.mxu0 0.0
    %3864 = vmatprep.subr.mxu0 0.0
    %3865 = vmatpush1.msra.mxu0 0.0
    %3866 = vmatprep.subr.mxu0 0.0
    %3867 = vmatpush1.msra.mxu0 0.0
    %3868 = vmatprep.subr.mxu0 0.0
    %3869 = vmatpush1.msra.mxu0 0.0
    %3870 = vmatprep.subr.mxu0 0.0
    %3871 = vmatpush1.msra.mxu0 0.0
    %3872 = vmatprep.subr.mxu0 0.0
    %3873 = vmatpush1.msra.mxu0 0.0
    %3874 = vmatprep.subr.mxu0 0.0
    %3875 = vmatpush1.msra.mxu0 0.0
    %3876 = vmatprep.subr.mxu0 0.0
    %3877 = vmatpush1.msra.mxu0 0.0
    %3878 = vmatprep.subr.mxu0 0.0
    %3879 = vmatpush1.msra.mxu0 0.0
    %3880 = vmatprep.subr.mxu0 0.0
    %3881 = vmatpush1.msra.mxu0 0.0
    %3882 = vmatprep.subr.mxu0 0.0
    %3883 = vmatpush1.msra.mxu0 0.0
    %3884 = vmatprep.subr.mxu0 0.0
    %3885 = vmatpush1.msra.mxu0 0.0
    %3886 = vmatprep.subr.mxu0 0.0
    %3887 = vmatpush1.msra.mxu0 0.0
    %3888 = vmatprep.subr.mxu0 0.0
    %3889 = vmatpush1.msra.mxu0 0.0
    %3890 = vmatprep.subr.mxu0 0.0
    %3891 = vmatpush1.msra.mxu0 0.0
    %3892 = vmatprep.subr.mxu0 0.0
    %3893 = vmatpush1.msra.mxu0 0.0
    %3894 = vmatprep.subr.mxu0 0.0
    %3895 = vmatpush1.msra.mxu0 0.0
    %3896 = vmatprep.subr.mxu0 0.0
    %3897 = vmatpush1.msra.mxu0 0.0
    %3898 = vmatprep.mubr.f32.mxu0 0.0
    %3899 = vmatmul.mubr.f32.gmra.mrb[0].mxu0 %v3824
    %v3900 = vpop.f32.mrb[0].mxu0
    %v3901 = vadd.f32 0.0, %v3900
    %v3902 = vpop.f32.mrb[0].mxu0
    %3903 = vmatprep.mubr.f32.mxu0 0.0
    %3904 = vmatmul.mubr.f32.gmra.mrb[0].mxu0 %v3827
    %v3905 = vpop.f32.mrb[0].mxu0
    %v3906 = vadd.f32 0.0, %v3905
    %v3907 = vpop.f32.mrb[0].mxu0
    %3908 = vmatprep.mubr.f32.mxu0 0.0
    %3909 = vmatmul.mubr.f32.gmra.mrb[0].mxu0 %v3830
    %v3910 = vpop.f32.mrb[0].mxu0
    %v3911 = vadd.f32 0.0, %v3910
    %v3912 = vpop.f32.mrb[0].mxu0
    %3913 = vdwg.mxu0
    %3917 = vrot.lane.b32.xlu0 %v3901, 16
    %v3918 = vpop.permute.xlu0 %3917
    %3919 = vrot.lane.b32.xlu0 %v3906, 16
    %v3920 = vpop.permute.xlu0 %3919
    %3921 = vrot.lane.b32.xlu0 %v3911, 16
    %v3922 = vpop.permute.xlu0 %3921
    %3926 = vst.msk [vmem:[#allocation3] sm:$0xff] %vm1150, %v3918
    %3927 = vst.msk [vmem:[#allocation3 + $0x8] sm:$0xff] %vm1150, %v3920
    %3928 = vst.msk [vmem:[#allocation3 + $0x10] sm:$0x1] %vm1153, %v3922
    %3929 = vrot.lane.b32.xlu0 %v3168, 104
    %v3930 = vpop.permute.xlu0 %3929
    %3931 = vrot.lane.b32.xlu0 %v3173, 104
    %v3932 = vpop.permute.xlu0 %3931
    %3933 = vrot.lane.b32.xlu0 %v3178, 104
    %v3934 = vpop.permute.xlu0 %3933
    %3935 = vrot.lane.b32.xlu0 %v3168, 72
    %v3936 = vpop.permute.xlu0 %3935
    %3937 = vrot.lane.b32.xlu0 %v3173, 72
    %v3938 = vpop.permute.xlu0 %3937
    %3939 = vrot.lane.b32.xlu0 %v3178, 72
    %v3940 = vpop.permute.xlu0 %3939
    %v3941 = vsel %vm417, %v3930, 0
    %v3943 = vsel %vm417, %v3932, 0
    %v3945 = vsel %vm417, %v3934, 0
    %v3947 = vsel %vm417, %v3936, 0
    %v3949 = vsel %vm417, %v3938, 0
    %v3951 = vsel %vm417, %v3940, 0
    %3953 = vmatprep.subr.mxu0 0.0
    %3954 = vmatpush1.xpose.msra.mxu0 %v3947
    %3955 = vmatprep.subr.mxu0 0.0
    %3956 = vmatpush1.xpose.msra.mxu0 %v3949
    %3957 = vmatprep.subr.mxu0 0.0
    %3958 = vmatpush1.xpose.msra.mxu0 %v3951
    %3959 = vmatprep.subr.mxu0 0.0
    %3960 = vmatpush1.xpose.msra.mxu0 0.0
    %3961 = vmatprep.subr.mxu0 0.0
    %3962 = vmatpush1.xpose.msra.mxu0 0.0
    %3963 = vmatprep.subr.mxu0 0.0
    %3964 = vmatpush1.xpose.msra.mxu0 0.0
    %3965 = vmatprep.subr.mxu0 0.0
    %3966 = vmatpush1.xpose.msra.mxu0 0.0
    %3967 = vmatprep.subr.mxu0 0.0
    %3968 = vmatpush1.xpose.msra.mxu0 0.0
    %3969 = vmatprep.subr.mxu0 0.0
    %3970 = vmatpush1.xpose.msra.mxu0 0.0
    %3971 = vmatprep.subr.mxu0 0.0
    %3972 = vmatpush1.xpose.msra.mxu0 0.0
    %3973 = vmatprep.subr.mxu0 0.0
    %3974 = vmatpush1.xpose.msra.mxu0 0.0
    %3975 = vmatprep.subr.mxu0 0.0
    %3976 = vmatpush1.xpose.msra.mxu0 0.0
    %3977 = vmatprep.subr.mxu0 0.0
    %3978 = vmatpush1.xpose.msra.mxu0 0.0
    %3979 = vmatprep.subr.mxu0 0.0
    %3980 = vmatpush1.xpose.msra.mxu0 0.0
    %3981 = vmatprep.subr.mxu0 0.0
    %3982 = vmatpush1.xpose.msra.mxu0 0.0
    %3983 = vmatprep.subr.mxu0 0.0
    %3984 = vmatpush1.xpose.msra.mxu0 0.0
    %3985 = vmatprep.subr.mxu0 0.0
    %3986 = vmatpush1.xpose.msra.mxu0 0.0
    %3987 = vmatprep.subr.mxu0 0.0
    %3988 = vmatpush1.xpose.msra.mxu0 0.0
    %3989 = vmatprep.subr.mxu0 0.0
    %3990 = vmatpush1.xpose.msra.mxu0 0.0
    %3991 = vmatprep.subr.mxu0 0.0
    %3992 = vmatpush1.xpose.msra.mxu0 0.0
    %3993 = vmatprep.subr.mxu0 0.0
    %3994 = vmatpush1.xpose.msra.mxu0 0.0
    %3995 = vmatprep.subr.mxu0 0.0
    %3996 = vmatpush1.xpose.msra.mxu0 0.0
    %3997 = vmatprep.subr.mxu0 0.0
    %3998 = vmatpush1.xpose.msra.mxu0 0.0
    %3999 = vmatprep.subr.mxu0 0.0
    %4000 = vmatpush1.xpose.msra.mxu0 0.0
    %4001 = vmatprep.subr.mxu0 0.0
    %4002 = vmatpush1.xpose.msra.mxu0 0.0
    %4003 = vmatprep.subr.mxu0 0.0
    %4004 = vmatpush1.xpose.msra.mxu0 0.0
    %4005 = vmatprep.subr.mxu0 0.0
    %4006 = vmatpush1.xpose.msra.mxu0 0.0
    %4007 = vmatprep.subr.mxu0 0.0
    %4008 = vmatpush1.xpose.msra.mxu0 0.0
    %4009 = vmatprep.subr.mxu0 0.0
    %4010 = vmatpush1.xpose.msra.mxu0 0.0
    %4011 = vmatprep.subr.mxu0 0.0
    %4012 = vmatpush1.xpose.msra.mxu0 0.0
    %4013 = vmatprep.subr.mxu0 0.0
    %4014 = vmatpush1.xpose.msra.mxu0 0.0
    %4015 = vmatprep.subr.mxu0 0.0
    %4016 = vmatpush1.xpose.msra.mxu0 0.0
    %4017 = vmatprep.mubr.f32.mxu0 0.0
    %4018 = vmatmul.mubr.f32.gmra.mrb[0].mxu0 %v3941
    %v4019 = vpop.f32.mrb[0].mxu0
    %v4020 = vadd.f32 0.0, %v4019
    %v4021 = vpop.f32.mrb[0].mxu0
    %4022 = vmatprep.mubr.f32.mxu0 0.0
    %4023 = vmatmul.mubr.f32.gmra.mrb[0].mxu0 %v3943
    %v4024 = vpop.f32.mrb[0].mxu0
    %v4025 = vadd.f32 0.0, %v4024
    %v4026 = vpop.f32.mrb[0].mxu0
    %4027 = vmatprep.mubr.f32.mxu0 0.0
    %4028 = vmatmul.mubr.f32.gmra.mrb[0].mxu0 %v3945
    %v4029 = vpop.f32.mrb[0].mxu0
    %v4030 = vadd.f32 0.0, %v4029
    %v4031 = vpop.f32.mrb[0].mxu0
    %4032 = vdwg.mxu0
    %v4033 = vsel %vm510, %v4020, -inf
    %4034 = vmax.xlane.f32.xlu0 %v4033
    %v4035 = vpop.xlane.xlu0 %4034
    %v4036 = vsel %vm510, %v4025, -inf
    %4037 = vmax.xlane.f32.xlu0 %v4036
    %v4038 = vpop.xlane.xlu0 %4037
    %v4039 = vsel %vm517, %v4030, -inf
    %4040 = vmax.xlane.f32.xlu0 %v4039
    %v4041 = vpop.xlane.xlu0 %4040
    %v4042 = vsub.f32 %v4020, %v4035
    %v4043 = vsub.f32 %v4025, %v4038
    %v4044 = vsub.f32 %v4030, %v4041
    %v4045 = vmul.f32 %v4042, 1.442695
    %v4046 = vpow.pop %v4045
    %v4047 = vmul.f32 %v4043, 1.442695
    %v4048 = vpow.pop %v4047
    %v4049 = vmul.f32 %v4044, 1.442695
    %v4050 = vpow.pop %v4049
    %v4051 = vsel %vm510, %v4046, 0.0
    %4052 = vadd.xlane.f32.xlu0 %v4051
    %v4053 = vpop.xlane.xlu0 %4052
    %v4054 = vsel %vm510, %v4048, 0.0
    %4055 = vadd.xlane.f32.xlu0 %v4054
    %v4056 = vpop.xlane.xlu0 %4055
    %v4057 = vsel %vm517, %v4050, 0.0
    %4058 = vadd.xlane.f32.xlu0 %v4057
    %v4059 = vpop.xlane.xlu0 %4058
    %v4060 = vrcp.pop %v4053
    %v4061 = vrcp.pop %v4056
    %v4062 = vrcp.pop %v4059
    %v4063 = vmul.f32 %v4046, %v4060
    %v4064 = vmul.f32 %v4048, %v4061
    %v4065 = vmul.f32 %v4050, %v4062
    %4066 = vrot.lane.b32.xlu0 %v3168, 40
    %v4067 = vpop.permute.xlu0 %4066
    %4068 = vrot.lane.b32.xlu0 %v3173, 40
    %v4069 = vpop.permute.xlu0 %4068
    %4070 = vrot.lane.b32.xlu0 %v3178, 40
    %v4071 = vpop.permute.xlu0 %4070
    %v4075 = vsel %vm510, %v4063, 0
    %v4078 = vsel %vm510, %v4064, 0
    %v4081 = vsel %vm510, %v4065, 0
    %v4083 = vsel %vm562, %v4071, 0
    %4085 = vmatprep.subr.mxu0 0.0
    %4086 = vmatpush1.msra.mxu0 %v4067
    %4087 = vmatprep.subr.mxu0 0.0
    %4088 = vmatpush1.msra.mxu0 %v4069
    %4089 = vmatprep.subr.mxu0 0.0
    %4090 = vmatpush1.msra.mxu0 %v4083
    %4091 = vmatprep.subr.mxu0 0.0
    %4092 = vmatpush1.msra.mxu0 0.0
    %4093 = vmatprep.subr.mxu0 0.0
    %4094 = vmatpush1.msra.mxu0 0.0
    %4095 = vmatprep.subr.mxu0 0.0
    %4096 = vmatpush1.msra.mxu0 0.0
    %4097 = vmatprep.subr.mxu0 0.0
    %4098 = vmatpush1.msra.mxu0 0.0
    %4099 = vmatprep.subr.mxu0 0.0
    %4100 = vmatpush1.msra.mxu0 0.0
    %4101 = vmatprep.subr.mxu0 0.0
    %4102 = vmatpush1.msra.mxu0 0.0
    %4103 = vmatprep.subr.mxu0 0.0
    %4104 = vmatpush1.msra.mxu0 0.0
    %4105 = vmatprep.subr.mxu0 0.0
    %4106 = vmatpush1.msra.mxu0 0.0
    %4107 = vmatprep.subr.mxu0 0.0
    %4108 = vmatpush1.msra.mxu0 0.0
    %4109 = vmatprep.subr.mxu0 0.0
    %4110 = vmatpush1.msra.mxu0 0.0
    %4111 = vmatprep.subr.mxu0 0.0
    %4112 = vmatpush1.msra.mxu0 0.0
    %4113 = vmatprep.subr.mxu0 0.0
    %4114 = vmatpush1.msra.mxu0 0.0
    %4115 = vmatprep.subr.mxu0 0.0
    %4116 = vmatpush1.msra.mxu0 0.0
    %4117 = vmatprep.subr.mxu0 0.0
    %4118 = vmatpush1.msra.mxu0 0.0
    %4119 = vmatprep.subr.mxu0 0.0
    %4120 = vmatpush1.msra.mxu0 0.0
    %4121 = vmatprep.subr.mxu0 0.0
    %4122 = vmatpush1.msra.mxu0 0.0
    %4123 = vmatprep.subr.mxu0 0.0
    %4124 = vmatpush1.msra.mxu0 0.0
    %4125 = vmatprep.subr.mxu0 0.0
    %4126 = vmatpush1.msra.mxu0 0.0
    %4127 = vmatprep.subr.mxu0 0.0
    %4128 = vmatpush1.msra.mxu0 0.0
    %4129 = vmatprep.subr.mxu0 0.0
    %4130 = vmatpush1.msra.mxu0 0.0
    %4131 = vmatprep.subr.mxu0 0.0
    %4132 = vmatpush1.msra.mxu0 0.0
    %4133 = vmatprep.subr.mxu0 0.0
    %4134 = vmatpush1.msra.mxu0 0.0
    %4135 = vmatprep.subr.mxu0 0.0
    %4136 = vmatpush1.msra.mxu0 0.0
    %4137 = vmatprep.subr.mxu0 0.0
    %4138 = vmatpush1.msra.mxu0 0.0
    %4139 = vmatprep.subr.mxu0 0.0
    %4140 = vmatpush1.msra.mxu0 0.0
    %4141 = vmatprep.subr.mxu0 0.0
    %4142 = vmatpush1.msra.mxu0 0.0
    %4143 = vmatprep.subr.mxu0 0.0
    %4144 = vmatpush1.msra.mxu0 0.0
    %4145 = vmatprep.subr.mxu0 0.0
    %4146 = vmatpush1.msra.mxu0 0.0
    %4147 = vmatprep.subr.mxu0 0.0
    %4148 = vmatpush1.msra.mxu0 0.0
    %4149 = vmatprep.mubr.f32.mxu0 0.0
    %4150 = vmatmul.mubr.f32.gmra.mrb[0].mxu0 %v4075
    %v4151 = vpop.f32.mrb[0].mxu0
    %v4152 = vadd.f32 0.0, %v4151
    %v4153 = vpop.f32.mrb[0].mxu0
    %4154 = vmatprep.mubr.f32.mxu0 0.0
    %4155 = vmatmul.mubr.f32.gmra.mrb[0].mxu0 %v4078
    %v4156 = vpop.f32.mrb[0].mxu0
    %v4157 = vadd.f32 0.0, %v4156
    %v4158 = vpop.f32.mrb[0].mxu0
    %4159 = vmatprep.mubr.f32.mxu0 0.0
    %4160 = vmatmul.mubr.f32.gmra.mrb[0].mxu0 %v4081
    %v4161 = vpop.f32.mrb[0].mxu0
    %v4162 = vadd.f32 0.0, %v4161
    %v4163 = vpop.f32.mrb[0].mxu0
    %4164 = vdwg.mxu0
    %4168 = vrot.lane.b32.xlu0 %v4152, 24
    %v4169 = vpop.permute.xlu0 %4168
    %4170 = vrot.lane.b32.xlu0 %v4157, 24
    %v4171 = vpop.permute.xlu0 %4170
    %4172 = vrot.lane.b32.xlu0 %v4162, 24
    %v4173 = vpop.permute.xlu0 %4172
    %4177 = vst.msk [vmem:[#allocation3] sm:$0xff] %vm1403, %v4169
    %4178 = vst.msk [vmem:[#allocation3 + $0x8] sm:$0xff] %vm1403, %v4171
    %4179 = vst.msk [vmem:[#allocation3 + $0x10] sm:$0x1] %vm1406, %v4173
    %v4182 = vrot.slane %v3178, 1
    %v4183 = vrot.slane %v3183, 1
    %v4184 = vsel %vm185, %v4182, %v4183
    %v4185 = vrot.slane %v3188, 1
    %v4186 = vsel %vm185, %v4183, %v4185
    %4187 = vrot.lane.b32.xlu0 %v4184, 96
    %v4188 = vpop.permute.xlu0 %4187
    %4189 = vrot.lane.b32.xlu0 %v4186, 96
    %v4190 = vpop.permute.xlu0 %4189
    %4191 = vrot.lane.b32.xlu0 %v4185, 96
    %v4192 = vpop.permute.xlu0 %4191
    %v4193 = vsel %vm417, %v4184, 0
    %v4195 = vsel %vm417, %v4186, 0
    %v4197 = vsel %vm417, %v4185, 0
    %v4199 = vsel %vm417, %v4188, 0
    %v4201 = vsel %vm417, %v4190, 0
    %v4203 = vsel %vm417, %v4192, 0
    %4205 = vmatprep.subr.mxu0 0.0
    %4206 = vmatpush1.xpose.msra.mxu0 %v4199
    %4207 = vmatprep.subr.mxu0 0.0
    %4208 = vmatpush1.xpose.msra.mxu0 %v4201
    %4209 = vmatprep.subr.mxu0 0.0
    %4210 = vmatpush1.xpose.msra.mxu0 %v4203
    %4211 = vmatprep.subr.mxu0 0.0
    %4212 = vmatpush1.xpose.msra.mxu0 0.0
    %4213 = vmatprep.subr.mxu0 0.0
    %4214 = vmatpush1.xpose.msra.mxu0 0.0
    %4215 = vmatprep.subr.mxu0 0.0
    %4216 = vmatpush1.xpose.msra.mxu0 0.0
    %4217 = vmatprep.subr.mxu0 0.0
    %4218 = vmatpush1.xpose.msra.mxu0 0.0
    %4219 = vmatprep.subr.mxu0 0.0
    %4220 = vmatpush1.xpose.msra.mxu0 0.0
    %4221 = vmatprep.subr.mxu0 0.0
    %4222 = vmatpush1.xpose.msra.mxu0 0.0
    %4223 = vmatprep.subr.mxu0 0.0
    %4224 = vmatpush1.xpose.msra.mxu0 0.0
    %4225 = vmatprep.subr.mxu0 0.0
    %4226 = vmatpush1.xpose.msra.mxu0 0.0
    %4227 = vmatprep.subr.mxu0 0.0
    %4228 = vmatpush1.xpose.msra.mxu0 0.0
    %4229 = vmatprep.subr.mxu0 0.0
    %4230 = vmatpush1.xpose.msra.mxu0 0.0
    %4231 = vmatprep.subr.mxu0 0.0
    %4232 = vmatpush1.xpose.msra.mxu0 0.0
    %4233 = vmatprep.subr.mxu0 0.0
    %4234 = vmatpush1.xpose.msra.mxu0 0.0
    %4235 = vmatprep.subr.mxu0 0.0
    %4236 = vmatpush1.xpose.msra.mxu0 0.0
    %4237 = vmatprep.subr.mxu0 0.0
    %4238 = vmatpush1.xpose.msra.mxu0 0.0
    %4239 = vmatprep.subr.mxu0 0.0
    %4240 = vmatpush1.xpose.msra.mxu0 0.0
    %4241 = vmatprep.subr.mxu0 0.0
    %4242 = vmatpush1.xpose.msra.mxu0 0.0
    %4243 = vmatprep.subr.mxu0 0.0
    %4244 = vmatpush1.xpose.msra.mxu0 0.0
    %4245 = vmatprep.subr.mxu0 0.0
    %4246 = vmatpush1.xpose.msra.mxu0 0.0
    %4247 = vmatprep.subr.mxu0 0.0
    %4248 = vmatpush1.xpose.msra.mxu0 0.0
    %4249 = vmatprep.subr.mxu0 0.0
    %4250 = vmatpush1.xpose.msra.mxu0 0.0
    %4251 = vmatprep.subr.mxu0 0.0
    %4252 = vmatpush1.xpose.msra.mxu0 0.0
    %4253 = vmatprep.subr.mxu0 0.0
    %4254 = vmatpush1.xpose.msra.mxu0 0.0
    %4255 = vmatprep.subr.mxu0 0.0
    %4256 = vmatpush1.xpose.msra.mxu0 0.0
    %4257 = vmatprep.subr.mxu0 0.0
    %4258 = vmatpush1.xpose.msra.mxu0 0.0
    %4259 = vmatprep.subr.mxu0 0.0
    %4260 = vmatpush1.xpose.msra.mxu0 0.0
    %4261 = vmatprep.subr.mxu0 0.0
    %4262 = vmatpush1.xpose.msra.mxu0 0.0
    %4263 = vmatprep.subr.mxu0 0.0
    %4264 = vmatpush1.xpose.msra.mxu0 0.0
    %4265 = vmatprep.subr.mxu0 0.0
    %4266 = vmatpush1.xpose.msra.mxu0 0.0
    %4267 = vmatprep.subr.mxu0 0.0
    %4268 = vmatpush1.xpose.msra.mxu0 0.0
    %4269 = vmatprep.mubr.f32.mxu0 0.0
    %4270 = vmatmul.mubr.f32.gmra.mrb[0].mxu0 %v4193
    %v4271 = vpop.f32.mrb[0].mxu0
    %v4272 = vadd.f32 0.0, %v4271
    %v4273 = vpop.f32.mrb[0].mxu0
    %4274 = vmatprep.mubr.f32.mxu0 0.0
    %4275 = vmatmul.mubr.f32.gmra.mrb[0].mxu0 %v4195
    %v4276 = vpop.f32.mrb[0].mxu0
    %v4277 = vadd.f32 0.0, %v4276
    %v4278 = vpop.f32.mrb[0].mxu0
    %4279 = vmatprep.mubr.f32.mxu0 0.0
    %4280 = vmatmul.mubr.f32.gmra.mrb[0].mxu0 %v4197
    %v4281 = vpop.f32.mrb[0].mxu0
    %v4282 = vadd.f32 0.0, %v4281
    %v4283 = vpop.f32.mrb[0].mxu0
    %4284 = vdwg.mxu0
    %v4285 = vsel %vm510, %v4272, -inf
    %4286 = vmax.xlane.f32.xlu0 %v4285
    %v4287 = vpop.xlane.xlu0 %4286
    %v4288 = vsel %vm510, %v4277, -inf
    %4289 = vmax.xlane.f32.xlu0 %v4288
    %v4290 = vpop.xlane.xlu0 %4289
    %v4291 = vsel %vm517, %v4282, -inf
    %4292 = vmax.xlane.f32.xlu0 %v4291
    %v4293 = vpop.xlane.xlu0 %4292
    %v4294 = vsub.f32 %v4272, %v4287
    %v4295 = vsub.f32 %v4277, %v4290
    %v4296 = vsub.f32 %v4282, %v4293
    %v4297 = vmul.f32 %v4294, 1.442695
    %v4298 = vpow.pop %v4297
    %v4299 = vmul.f32 %v4295, 1.442695
    %v4300 = vpow.pop %v4299
    %v4301 = vmul.f32 %v4296, 1.442695
    %v4302 = vpow.pop %v4301
    %v4303 = vsel %vm510, %v4298, 0.0
    %4304 = vadd.xlane.f32.xlu0 %v4303
    %v4305 = vpop.xlane.xlu0 %4304
    %v4306 = vsel %vm510, %v4300, 0.0
    %4307 = vadd.xlane.f32.xlu0 %v4306
    %v4308 = vpop.xlane.xlu0 %4307
    %v4309 = vsel %vm517, %v4302, 0.0
    %4310 = vadd.xlane.f32.xlu0 %v4309
    %v4311 = vpop.xlane.xlu0 %4310
    %v4312 = vrcp.pop %v4305
    %v4313 = vrcp.pop %v4308
    %v4314 = vrcp.pop %v4311
    %v4315 = vmul.f32 %v4298, %v4312
    %v4316 = vmul.f32 %v4300, %v4313
    %v4317 = vmul.f32 %v4302, %v4314
    %4318 = vrot.lane.b32.xlu0 %v4184, 64
    %v4319 = vpop.permute.xlu0 %4318
    %4320 = vrot.lane.b32.xlu0 %v4186, 64
    %v4321 = vpop.permute.xlu0 %4320
    %4322 = vrot.lane.b32.xlu0 %v4185, 64
    %v4323 = vpop.permute.xlu0 %4322
    %v4327 = vsel %vm510, %v4315, 0
    %v4330 = vsel %vm510, %v4316, 0
    %v4333 = vsel %vm510, %v4317, 0
    %v4335 = vsel %vm562, %v4323, 0
    %4337 = vmatprep.subr.mxu0 0.0
    %4338 = vmatpush1.msra.mxu0 %v4319
    %4339 = vmatprep.subr.mxu0 0.0
    %4340 = vmatpush1.msra.mxu0 %v4321
    %4341 = vmatprep.subr.mxu0 0.0
    %4342 = vmatpush1.msra.mxu0 %v4335
    %4343 = vmatprep.subr.mxu0 0.0
    %4344 = vmatpush1.msra.mxu0 0.0
    %4345 = vmatprep.subr.mxu0 0.0
    %4346 = vmatpush1.msra.mxu0 0.0
    %4347 = vmatprep.subr.mxu0 0.0
    %4348 = vmatpush1.msra.mxu0 0.0
    %4349 = vmatprep.subr.mxu0 0.0
    %4350 = vmatpush1.msra.mxu0 0.0
    %4351 = vmatprep.subr.mxu0 0.0
    %4352 = vmatpush1.msra.mxu0 0.0
    %4353 = vmatprep.subr.mxu0 0.0
    %4354 = vmatpush1.msra.mxu0 0.0
    %4355 = vmatprep.subr.mxu0 0.0
    %4356 = vmatpush1.msra.mxu0 0.0
    %4357 = vmatprep.subr.mxu0 0.0
    %4358 = vmatpush1.msra.mxu0 0.0
    %4359 = vmatprep.subr.mxu0 0.0
    %4360 = vmatpush1.msra.mxu0 0.0
    %4361 = vmatprep.subr.mxu0 0.0
    %4362 = vmatpush1.msra.mxu0 0.0
    %4363 = vmatprep.subr.mxu0 0.0
    %4364 = vmatpush1.msra.mxu0 0.0
    %4365 = vmatprep.subr.mxu0 0.0
    %4366 = vmatpush1.msra.mxu0 0.0
    %4367 = vmatprep.subr.mxu0 0.0
    %4368 = vmatpush1.msra.mxu0 0.0
    %4369 = vmatprep.subr.mxu0 0.0
    %4370 = vmatpush1.msra.mxu0 0.0
    %4371 = vmatprep.subr.mxu0 0.0
    %4372 = vmatpush1.msra.mxu0 0.0
    %4373 = vmatprep.subr.mxu0 0.0
    %4374 = vmatpush1.msra.mxu0 0.0
    %4375 = vmatprep.subr.mxu0 0.0
    %4376 = vmatpush1.msra.mxu0 0.0
    %4377 = vmatprep.subr.mxu0 0.0
    %4378 = vmatpush1.msra.mxu0 0.0
    %4379 = vmatprep.subr.mxu0 0.0
    %4380 = vmatpush1.msra.mxu0 0.0
    %4381 = vmatprep.subr.mxu0 0.0
    %4382 = vmatpush1.msra.mxu0 0.0
    %4383 = vmatprep.subr.mxu0 0.0
    %4384 = vmatpush1.msra.mxu0 0.0
    %4385 = vmatprep.subr.mxu0 0.0
    %4386 = vmatpush1.msra.mxu0 0.0
    %4387 = vmatprep.subr.mxu0 0.0
    %4388 = vmatpush1.msra.mxu0 0.0
    %4389 = vmatprep.subr.mxu0 0.0
    %4390 = vmatpush1.msra.mxu0 0.0
    %4391 = vmatprep.subr.mxu0 0.0
    %4392 = vmatpush1.msra.mxu0 0.0
    %4393 = vmatprep.subr.mxu0 0.0
    %4394 = vmatpush1.msra.mxu0 0.0
    %4395 = vmatprep.subr.mxu0 0.0
    %4396 = vmatpush1.msra.mxu0 0.0
    %4397 = vmatprep.subr.mxu0 0.0
    %4398 = vmatpush1.msra.mxu0 0.0
    %4399 = vmatprep.subr.mxu0 0.0
    %4400 = vmatpush1.msra.mxu0 0.0
    %4401 = vmatprep.mubr.f32.mxu0 0.0
    %4402 = vmatmul.mubr.f32.gmra.mrb[0].mxu0 %v4327
    %v4403 = vpop.f32.mrb[0].mxu0
    %v4404 = vadd.f32 0.0, %v4403
    %v4405 = vpop.f32.mrb[0].mxu0
    %4406 = vmatprep.mubr.f32.mxu0 0.0
    %4407 = vmatmul.mubr.f32.gmra.mrb[0].mxu0 %v4330
    %v4408 = vpop.f32.mrb[0].mxu0
    %v4409 = vadd.f32 0.0, %v4408
    %v4410 = vpop.f32.mrb[0].mxu0
    %4411 = vmatprep.mubr.f32.mxu0 0.0
    %4412 = vmatmul.mubr.f32.gmra.mrb[0].mxu0 %v4333
    %v4413 = vpop.f32.mrb[0].mxu0
    %v4414 = vadd.f32 0.0, %v4413
    %v4415 = vpop.f32.mrb[0].mxu0
    %4416 = vdwg.mxu0
    %4417 = vst.msk [vmem:[#allocation3 + $0x11] sm:$0xff] %vm417, %v4404
    %4418 = vst.msk [vmem:[#allocation3 + $0x19] sm:$0xff] %vm417, %v4409
    %4419 = vst.msk [vmem:[#allocation3 + $0x21] sm:$0x1] %vm647, %v4414
    %4420 = vrot.lane.b32.xlu0 %v4184, 120
    %v4421 = vpop.permute.xlu0 %4420
    %4422 = vrot.lane.b32.xlu0 %v4186, 120
    %v4423 = vpop.permute.xlu0 %4422
    %4424 = vrot.lane.b32.xlu0 %v4185, 120
    %v4425 = vpop.permute.xlu0 %4424
    %4426 = vrot.lane.b32.xlu0 %v4184, 88
    %v4427 = vpop.permute.xlu0 %4426
    %4428 = vrot.lane.b32.xlu0 %v4186, 88
    %v4429 = vpop.permute.xlu0 %4428
    %4430 = vrot.lane.b32.xlu0 %v4185, 88
    %v4431 = vpop.permute.xlu0 %4430
    %v4432 = vsel %vm417, %v4421, 0
    %v4434 = vsel %vm417, %v4423, 0
    %v4436 = vsel %vm417, %v4425, 0
    %v4438 = vsel %vm417, %v4427, 0
    %v4440 = vsel %vm417, %v4429, 0
    %v4442 = vsel %vm417, %v4431, 0
    %4444 = vmatprep.subr.mxu0 0.0
    %4445 = vmatpush1.xpose.msra.mxu0 %v4438
    %4446 = vmatprep.subr.mxu0 0.0
    %4447 = vmatpush1.xpose.msra.mxu0 %v4440
    %4448 = vmatprep.subr.mxu0 0.0
    %4449 = vmatpush1.xpose.msra.mxu0 %v4442
    %4450 = vmatprep.subr.mxu0 0.0
    %4451 = vmatpush1.xpose.msra.mxu0 0.0
    %4452 = vmatprep.subr.mxu0 0.0
    %4453 = vmatpush1.xpose.msra.mxu0 0.0
    %4454 = vmatprep.subr.mxu0 0.0
    %4455 = vmatpush1.xpose.msra.mxu0 0.0
    %4456 = vmatprep.subr.mxu0 0.0
    %4457 = vmatpush1.xpose.msra.mxu0 0.0
    %4458 = vmatprep.subr.mxu0 0.0
    %4459 = vmatpush1.xpose.msra.mxu0 0.0
    %4460 = vmatprep.subr.mxu0 0.0
    %4461 = vmatpush1.xpose.msra.mxu0 0.0
    %4462 = vmatprep.subr.mxu0 0.0
    %4463 = vmatpush1.xpose.msra.mxu0 0.0
    %4464 = vmatprep.subr.mxu0 0.0
    %4465 = vmatpush1.xpose.msra.mxu0 0.0
    %4466 = vmatprep.subr.mxu0 0.0
    %4467 = vmatpush1.xpose.msra.mxu0 0.0
    %4468 = vmatprep.subr.mxu0 0.0
    %4469 = vmatpush1.xpose.msra.mxu0 0.0
    %4470 = vmatprep.subr.mxu0 0.0
    %4471 = vmatpush1.xpose.msra.mxu0 0.0
    %4472 = vmatprep.subr.mxu0 0.0
    %4473 = vmatpush1.xpose.msra.mxu0 0.0
    %4474 = vmatprep.subr.mxu0 0.0
    %4475 = vmatpush1.xpose.msra.mxu0 0.0
    %4476 = vmatprep.subr.mxu0 0.0
    %4477 = vmatpush1.xpose.msra.mxu0 0.0
    %4478 = vmatprep.subr.mxu0 0.0
    %4479 = vmatpush1.xpose.msra.mxu0 0.0
    %4480 = vmatprep.subr.mxu0 0.0
    %4481 = vmatpush1.xpose.msra.mxu0 0.0
    %4482 = vmatprep.subr.mxu0 0.0
    %4483 = vmatpush1.xpose.msra.mxu0 0.0
    %4484 = vmatprep.subr.mxu0 0.0
    %4485 = vmatpush1.xpose.msra.mxu0 0.0
    %4486 = vmatprep.subr.mxu0 0.0
    %4487 = vmatpush1.xpose.msra.mxu0 0.0
    %4488 = vmatprep.subr.mxu0 0.0
    %4489 = vmatpush1.xpose.msra.mxu0 0.0
    %4490 = vmatprep.subr.mxu0 0.0
    %4491 = vmatpush1.xpose.msra.mxu0 0.0
    %4492 = vmatprep.subr.mxu0 0.0
    %4493 = vmatpush1.xpose.msra.mxu0 0.0
    %4494 = vmatprep.subr.mxu0 0.0
    %4495 = vmatpush1.xpose.msra.mxu0 0.0
    %4496 = vmatprep.subr.mxu0 0.0
    %4497 = vmatpush1.xpose.msra.mxu0 0.0
    %4498 = vmatprep.subr.mxu0 0.0
    %4499 = vmatpush1.xpose.msra.mxu0 0.0
    %4500 = vmatprep.subr.mxu0 0.0
    %4501 = vmatpush1.xpose.msra.mxu0 0.0
    %4502 = vmatprep.subr.mxu0 0.0
    %4503 = vmatpush1.xpose.msra.mxu0 0.0
    %4504 = vmatprep.subr.mxu0 0.0
    %4505 = vmatpush1.xpose.msra.mxu0 0.0
    %4506 = vmatprep.subr.mxu0 0.0
    %4507 = vmatpush1.xpose.msra.mxu0 0.0
    %4508 = vmatprep.mubr.f32.mxu0 0.0
    %4509 = vmatmul.mubr.f32.gmra.mrb[0].mxu0 %v4432
    %v4510 = vpop.f32.mrb[0].mxu0
    %v4511 = vadd.f32 0.0, %v4510
    %v4512 = vpop.f32.mrb[0].mxu0
    %4513 = vmatprep.mubr.f32.mxu0 0.0
    %4514 = vmatmul.mubr.f32.gmra.mrb[0].mxu0 %v4434
    %v4515 = vpop.f32.mrb[0].mxu0
    %v4516 = vadd.f32 0.0, %v4515
    %v4517 = vpop.f32.mrb[0].mxu0
    %4518 = vmatprep.mubr.f32.mxu0 0.0
    %4519 = vmatmul.mubr.f32.gmra.mrb[0].mxu0 %v4436
    %v4520 = vpop.f32.mrb[0].mxu0
    %v4521 = vadd.f32 0.0, %v4520
    %v4522 = vpop.f32.mrb[0].mxu0
    %4523 = vdwg.mxu0
    %v4524 = vsel %vm510, %v4511, -inf
    %4525 = vmax.xlane.f32.xlu0 %v4524
    %v4526 = vpop.xlane.xlu0 %4525
    %v4527 = vsel %vm510, %v4516, -inf
    %4528 = vmax.xlane.f32.xlu0 %v4527
    %v4529 = vpop.xlane.xlu0 %4528
    %v4530 = vsel %vm517, %v4521, -inf
    %4531 = vmax.xlane.f32.xlu0 %v4530
    %v4532 = vpop.xlane.xlu0 %4531
    %v4533 = vsub.f32 %v4511, %v4526
    %v4534 = vsub.f32 %v4516, %v4529
    %v4535 = vsub.f32 %v4521, %v4532
    %v4536 = vmul.f32 %v4533, 1.442695
    %v4537 = vpow.pop %v4536
    %v4538 = vmul.f32 %v4534, 1.442695
    %v4539 = vpow.pop %v4538
    %v4540 = vmul.f32 %v4535, 1.442695
    %v4541 = vpow.pop %v4540
    %v4542 = vsel %vm510, %v4537, 0.0
    %4543 = vadd.xlane.f32.xlu0 %v4542
    %v4544 = vpop.xlane.xlu0 %4543
    %v4545 = vsel %vm510, %v4539, 0.0
    %4546 = vadd.xlane.f32.xlu0 %v4545
    %v4547 = vpop.xlane.xlu0 %4546
    %v4548 = vsel %vm517, %v4541, 0.0
    %4549 = vadd.xlane.f32.xlu0 %v4548
    %v4550 = vpop.xlane.xlu0 %4549
    %v4551 = vrcp.pop %v4544
    %v4552 = vrcp.pop %v4547
    %v4553 = vrcp.pop %v4550
    %v4554 = vmul.f32 %v4537, %v4551
    %v4555 = vmul.f32 %v4539, %v4552
    %v4556 = vmul.f32 %v4541, %v4553
    %4557 = vrot.lane.b32.xlu0 %v4184, 56
    %v4558 = vpop.permute.xlu0 %4557
    %4559 = vrot.lane.b32.xlu0 %v4186, 56
    %v4560 = vpop.permute.xlu0 %4559
    %4561 = vrot.lane.b32.xlu0 %v4185, 56
    %v4562 = vpop.permute.xlu0 %4561
    %v4566 = vsel %vm510, %v4554, 0
    %v4569 = vsel %vm510, %v4555, 0
    %v4572 = vsel %vm510, %v4556, 0
    %v4574 = vsel %vm562, %v4562, 0
    %4576 = vmatprep.subr.mxu0 0.0
    %4577 = vmatpush1.msra.mxu0 %v4558
    %4578 = vmatprep.subr.mxu0 0.0
    %4579 = vmatpush1.msra.mxu0 %v4560
    %4580 = vmatprep.subr.mxu0 0.0
    %4581 = vmatpush1.msra.mxu0 %v4574
    %4582 = vmatprep.subr.mxu0 0.0
    %4583 = vmatpush1.msra.mxu0 0.0
    %4584 = vmatprep.subr.mxu0 0.0
    %4585 = vmatpush1.msra.mxu0 0.0
    %4586 = vmatprep.subr.mxu0 0.0
    %4587 = vmatpush1.msra.mxu0 0.0
    %4588 = vmatprep.subr.mxu0 0.0
    %4589 = vmatpush1.msra.mxu0 0.0
    %4590 = vmatprep.subr.mxu0 0.0
    %4591 = vmatpush1.msra.mxu0 0.0
    %4592 = vmatprep.subr.mxu0 0.0
    %4593 = vmatpush1.msra.mxu0 0.0
    %4594 = vmatprep.subr.mxu0 0.0
    %4595 = vmatpush1.msra.mxu0 0.0
    %4596 = vmatprep.subr.mxu0 0.0
    %4597 = vmatpush1.msra.mxu0 0.0
    %4598 = vmatprep.subr.mxu0 0.0
    %4599 = vmatpush1.msra.mxu0 0.0
    %4600 = vmatprep.subr.mxu0 0.0
    %4601 = vmatpush1.msra.mxu0 0.0
    %4602 = vmatprep.subr.mxu0 0.0
    %4603 = vmatpush1.msra.mxu0 0.0
    %4604 = vmatprep.subr.mxu0 0.0
    %4605 = vmatpush1.msra.mxu0 0.0
    %4606 = vmatprep.subr.mxu0 0.0
    %4607 = vmatpush1.msra.mxu0 0.0
    %4608 = vmatprep.subr.mxu0 0.0
    %4609 = vmatpush1.msra.mxu0 0.0
    %4610 = vmatprep.subr.mxu0 0.0
    %4611 = vmatpush1.msra.mxu0 0.0
    %4612 = vmatprep.subr.mxu0 0.0
    %4613 = vmatpush1.msra.mxu0 0.0
    %4614 = vmatprep.subr.mxu0 0.0
    %4615 = vmatpush1.msra.mxu0 0.0
    %4616 = vmatprep.subr.mxu0 0.0
    %4617 = vmatpush1.msra.mxu0 0.0
    %4618 = vmatprep.subr.mxu0 0.0
    %4619 = vmatpush1.msra.mxu0 0.0
    %4620 = vmatprep.subr.mxu0 0.0
    %4621 = vmatpush1.msra.mxu0 0.0
    %4622 = vmatprep.subr.mxu0 0.0
    %4623 = vmatpush1.msra.mxu0 0.0
    %4624 = vmatprep.subr.mxu0 0.0
    %4625 = vmatpush1.msra.mxu0 0.0
    %4626 = vmatprep.subr.mxu0 0.0
    %4627 = vmatpush1.msra.mxu0 0.0
    %4628 = vmatprep.subr.mxu0 0.0
    %4629 = vmatpush1.msra.mxu0 0.0
    %4630 = vmatprep.subr.mxu0 0.0
    %4631 = vmatpush1.msra.mxu0 0.0
    %4632 = vmatprep.subr.mxu0 0.0
    %4633 = vmatpush1.msra.mxu0 0.0
    %4634 = vmatprep.subr.mxu0 0.0
    %4635 = vmatpush1.msra.mxu0 0.0
    %4636 = vmatprep.subr.mxu0 0.0
    %4637 = vmatpush1.msra.mxu0 0.0
    %4638 = vmatprep.subr.mxu0 0.0
    %4639 = vmatpush1.msra.mxu0 0.0
    %4640 = vmatprep.mubr.f32.mxu0 0.0
    %4641 = vmatmul.mubr.f32.gmra.mrb[0].mxu0 %v4566
    %v4642 = vpop.f32.mrb[0].mxu0
    %v4643 = vadd.f32 0.0, %v4642
    %v4644 = vpop.f32.mrb[0].mxu0
    %4645 = vmatprep.mubr.f32.mxu0 0.0
    %4646 = vmatmul.mubr.f32.gmra.mrb[0].mxu0 %v4569
    %v4647 = vpop.f32.mrb[0].mxu0
    %v4648 = vadd.f32 0.0, %v4647
    %v4649 = vpop.f32.mrb[0].mxu0
    %4650 = vmatprep.mubr.f32.mxu0 0.0
    %4651 = vmatmul.mubr.f32.gmra.mrb[0].mxu0 %v4572
    %v4652 = vpop.f32.mrb[0].mxu0
    %v4653 = vadd.f32 0.0, %v4652
    %v4654 = vpop.f32.mrb[0].mxu0
    %4655 = vdwg.mxu0
    %4659 = vrot.lane.b32.xlu0 %v4643, 8
    %v4660 = vpop.permute.xlu0 %4659
    %4661 = vrot.lane.b32.xlu0 %v4648, 8
    %v4662 = vpop.permute.xlu0 %4661
    %4663 = vrot.lane.b32.xlu0 %v4653, 8
    %v4664 = vpop.permute.xlu0 %4663
    %4668 = vst.msk [vmem:[#allocation3 + $0x11] sm:$0xff] %vm897, %v4660
    %4669 = vst.msk [vmem:[#allocation3 + $0x19] sm:$0xff] %vm897, %v4662
    %4670 = vst.msk [vmem:[#allocation3 + $0x21] sm:$0x1] %vm900, %v4664
    %4671 = vrot.lane.b32.xlu0 %v4184, 112
    %v4672 = vpop.permute.xlu0 %4671
    %4673 = vrot.lane.b32.xlu0 %v4186, 112
    %v4674 = vpop.permute.xlu0 %4673
    %4675 = vrot.lane.b32.xlu0 %v4185, 112
    %v4676 = vpop.permute.xlu0 %4675
    %4677 = vrot.lane.b32.xlu0 %v4184, 80
    %v4678 = vpop.permute.xlu0 %4677
    %4679 = vrot.lane.b32.xlu0 %v4186, 80
    %v4680 = vpop.permute.xlu0 %4679
    %4681 = vrot.lane.b32.xlu0 %v4185, 80
    %v4682 = vpop.permute.xlu0 %4681
    %v4683 = vsel %vm417, %v4672, 0
    %v4685 = vsel %vm417, %v4674, 0
    %v4687 = vsel %vm417, %v4676, 0
    %v4689 = vsel %vm417, %v4678, 0
    %v4691 = vsel %vm417, %v4680, 0
    %v4693 = vsel %vm417, %v4682, 0
    %4695 = vmatprep.subr.mxu0 0.0
    %4696 = vmatpush1.xpose.msra.mxu0 %v4689
    %4697 = vmatprep.subr.mxu0 0.0
    %4698 = vmatpush1.xpose.msra.mxu0 %v4691
    %4699 = vmatprep.subr.mxu0 0.0
    %4700 = vmatpush1.xpose.msra.mxu0 %v4693
    %4701 = vmatprep.subr.mxu0 0.0
    %4702 = vmatpush1.xpose.msra.mxu0 0.0
    %4703 = vmatprep.subr.mxu0 0.0
    %4704 = vmatpush1.xpose.msra.mxu0 0.0
    %4705 = vmatprep.subr.mxu0 0.0
    %4706 = vmatpush1.xpose.msra.mxu0 0.0
    %4707 = vmatprep.subr.mxu0 0.0
    %4708 = vmatpush1.xpose.msra.mxu0 0.0
    %4709 = vmatprep.subr.mxu0 0.0
    %4710 = vmatpush1.xpose.msra.mxu0 0.0
    %4711 = vmatprep.subr.mxu0 0.0
    %4712 = vmatpush1.xpose.msra.mxu0 0.0
    %4713 = vmatprep.subr.mxu0 0.0
    %4714 = vmatpush1.xpose.msra.mxu0 0.0
    %4715 = vmatprep.subr.mxu0 0.0
    %4716 = vmatpush1.xpose.msra.mxu0 0.0
    %4717 = vmatprep.subr.mxu0 0.0
    %4718 = vmatpush1.xpose.msra.mxu0 0.0
    %4719 = vmatprep.subr.mxu0 0.0
    %4720 = vmatpush1.xpose.msra.mxu0 0.0
    %4721 = vmatprep.subr.mxu0 0.0
    %4722 = vmatpush1.xpose.msra.mxu0 0.0
    %4723 = vmatprep.subr.mxu0 0.0
    %4724 = vmatpush1.xpose.msra.mxu0 0.0
    %4725 = vmatprep.subr.mxu0 0.0
    %4726 = vmatpush1.xpose.msra.mxu0 0.0
    %4727 = vmatprep.subr.mxu0 0.0
    %4728 = vmatpush1.xpose.msra.mxu0 0.0
    %4729 = vmatprep.subr.mxu0 0.0
    %4730 = vmatpush1.xpose.msra.mxu0 0.0
    %4731 = vmatprep.subr.mxu0 0.0
    %4732 = vmatpush1.xpose.msra.mxu0 0.0
    %4733 = vmatprep.subr.mxu0 0.0
    %4734 = vmatpush1.xpose.msra.mxu0 0.0
    %4735 = vmatprep.subr.mxu0 0.0
    %4736 = vmatpush1.xpose.msra.mxu0 0.0
    %4737 = vmatprep.subr.mxu0 0.0
    %4738 = vmatpush1.xpose.msra.mxu0 0.0
    %4739 = vmatprep.subr.mxu0 0.0
    %4740 = vmatpush1.xpose.msra.mxu0 0.0
    %4741 = vmatprep.subr.mxu0 0.0
    %4742 = vmatpush1.xpose.msra.mxu0 0.0
    %4743 = vmatprep.subr.mxu0 0.0
    %4744 = vmatpush1.xpose.msra.mxu0 0.0
    %4745 = vmatprep.subr.mxu0 0.0
    %4746 = vmatpush1.xpose.msra.mxu0 0.0
    %4747 = vmatprep.subr.mxu0 0.0
    %4748 = vmatpush1.xpose.msra.mxu0 0.0
    %4749 = vmatprep.subr.mxu0 0.0
    %4750 = vmatpush1.xpose.msra.mxu0 0.0
    %4751 = vmatprep.subr.mxu0 0.0
    %4752 = vmatpush1.xpose.msra.mxu0 0.0
    %4753 = vmatprep.subr.mxu0 0.0
    %4754 = vmatpush1.xpose.msra.mxu0 0.0
    %4755 = vmatprep.subr.mxu0 0.0
    %4756 = vmatpush1.xpose.msra.mxu0 0.0
    %4757 = vmatprep.subr.mxu0 0.0
    %4758 = vmatpush1.xpose.msra.mxu0 0.0
    %4759 = vmatprep.mubr.f32.mxu0 0.0
    %4760 = vmatmul.mubr.f32.gmra.mrb[0].mxu0 %v4683
    %v4761 = vpop.f32.mrb[0].mxu0
    %v4762 = vadd.f32 0.0, %v4761
    %v4763 = vpop.f32.mrb[0].mxu0
    %4764 = vmatprep.mubr.f32.mxu0 0.0
    %4765 = vmatmul.mubr.f32.gmra.mrb[0].mxu0 %v4685
    %v4766 = vpop.f32.mrb[0].mxu0
    %v4767 = vadd.f32 0.0, %v4766
    %v4768 = vpop.f32.mrb[0].mxu0
    %4769 = vmatprep.mubr.f32.mxu0 0.0
    %4770 = vmatmul.mubr.f32.gmra.mrb[0].mxu0 %v4687
    %v4771 = vpop.f32.mrb[0].mxu0
    %v4772 = vadd.f32 0.0, %v4771
    %v4773 = vpop.f32.mrb[0].mxu0
    %4774 = vdwg.mxu0
    %v4775 = vsel %vm510, %v4762, -inf
    %4776 = vmax.xlane.f32.xlu0 %v4775
    %v4777 = vpop.xlane.xlu0 %4776
    %v4778 = vsel %vm510, %v4767, -inf
    %4779 = vmax.xlane.f32.xlu0 %v4778
    %v4780 = vpop.xlane.xlu0 %4779
    %v4781 = vsel %vm517, %v4772, -inf
    %4782 = vmax.xlane.f32.xlu0 %v4781
    %v4783 = vpop.xlane.xlu0 %4782
    %v4784 = vsub.f32 %v4762, %v4777
    %v4785 = vsub.f32 %v4767, %v4780
    %v4786 = vsub.f32 %v4772, %v4783
    %v4787 = vmul.f32 %v4784, 1.442695
    %v4788 = vpow.pop %v4787
    %v4789 = vmul.f32 %v4785, 1.442695
    %v4790 = vpow.pop %v4789
    %v4791 = vmul.f32 %v4786, 1.442695
    %v4792 = vpow.pop %v4791
    %v4793 = vsel %vm510, %v4788, 0.0
    %4794 = vadd.xlane.f32.xlu0 %v4793
    %v4795 = vpop.xlane.xlu0 %4794
    %v4796 = vsel %vm510, %v4790, 0.0
    %4797 = vadd.xlane.f32.xlu0 %v4796
    %v4798 = vpop.xlane.xlu0 %4797
    %v4799 = vsel %vm517, %v4792, 0.0
    %4800 = vadd.xlane.f32.xlu0 %v4799
    %v4801 = vpop.xlane.xlu0 %4800
    %v4802 = vrcp.pop %v4795
    %v4803 = vrcp.pop %v4798
    %v4804 = vrcp.pop %v4801
    %v4805 = vmul.f32 %v4788, %v4802
    %v4806 = vmul.f32 %v4790, %v4803
    %v4807 = vmul.f32 %v4792, %v4804
    %4808 = vrot.lane.b32.xlu0 %v4184, 48
    %v4809 = vpop.permute.xlu0 %4808
    %4810 = vrot.lane.b32.xlu0 %v4186, 48
    %v4811 = vpop.permute.xlu0 %4810
    %4812 = vrot.lane.b32.xlu0 %v4185, 48
    %v4813 = vpop.permute.xlu0 %4812
    %v4817 = vsel %vm510, %v4805, 0
    %v4820 = vsel %vm510, %v4806, 0
    %v4823 = vsel %vm510, %v4807, 0
    %v4825 = vsel %vm562, %v4813, 0
    %4827 = vmatprep.subr.mxu0 0.0
    %4828 = vmatpush1.msra.mxu0 %v4809
    %4829 = vmatprep.subr.mxu0 0.0
    %4830 = vmatpush1.msra.mxu0 %v4811
    %4831 = vmatprep.subr.mxu0 0.0
    %4832 = vmatpush1.msra.mxu0 %v4825
    %4833 = vmatprep.subr.mxu0 0.0
    %4834 = vmatpush1.msra.mxu0 0.0
    %4835 = vmatprep.subr.mxu0 0.0
    %4836 = vmatpush1.msra.mxu0 0.0
    %4837 = vmatprep.subr.mxu0 0.0
    %4838 = vmatpush1.msra.mxu0 0.0
    %4839 = vmatprep.subr.mxu0 0.0
    %4840 = vmatpush1.msra.mxu0 0.0
    %4841 = vmatprep.subr.mxu0 0.0
    %4842 = vmatpush1.msra.mxu0 0.0
    %4843 = vmatprep.subr.mxu0 0.0
    %4844 = vmatpush1.msra.mxu0 0.0
    %4845 = vmatprep.subr.mxu0 0.0
    %4846 = vmatpush1.msra.mxu0 0.0
    %4847 = vmatprep.subr.mxu0 0.0
    %4848 = vmatpush1.msra.mxu0 0.0
    %4849 = vmatprep.subr.mxu0 0.0
    %4850 = vmatpush1.msra.mxu0 0.0
    %4851 = vmatprep.subr.mxu0 0.0
    %4852 = vmatpush1.msra.mxu0 0.0
    %4853 = vmatprep.subr.mxu0 0.0
    %4854 = vmatpush1.msra.mxu0 0.0
    %4855 = vmatprep.subr.mxu0 0.0
    %4856 = vmatpush1.msra.mxu0 0.0
    %4857 = vmatprep.subr.mxu0 0.0
    %4858 = vmatpush1.msra.mxu0 0.0
    %4859 = vmatprep.subr.mxu0 0.0
    %4860 = vmatpush1.msra.mxu0 0.0
    %4861 = vmatprep.subr.mxu0 0.0
    %4862 = vmatpush1.msra.mxu0 0.0
    %4863 = vmatprep.subr.mxu0 0.0
    %4864 = vmatpush1.msra.mxu0 0.0
    %4865 = vmatprep.subr.mxu0 0.0
    %4866 = vmatpush1.msra.mxu0 0.0
    %4867 = vmatprep.subr.mxu0 0.0
    %4868 = vmatpush1.msra.mxu0 0.0
    %4869 = vmatprep.subr.mxu0 0.0
    %4870 = vmatpush1.msra.mxu0 0.0
    %4871 = vmatprep.subr.mxu0 0.0
    %4872 = vmatpush1.msra.mxu0 0.0
    %4873 = vmatprep.subr.mxu0 0.0
    %4874 = vmatpush1.msra.mxu0 0.0
    %4875 = vmatprep.subr.mxu0 0.0
    %4876 = vmatpush1.msra.mxu0 0.0
    %4877 = vmatprep.subr.mxu0 0.0
    %4878 = vmatpush1.msra.mxu0 0.0
    %4879 = vmatprep.subr.mxu0 0.0
    %4880 = vmatpush1.msra.mxu0 0.0
    %4881 = vmatprep.subr.mxu0 0.0
    %4882 = vmatpush1.msra.mxu0 0.0
    %4883 = vmatprep.subr.mxu0 0.0
    %4884 = vmatpush1.msra.mxu0 0.0
    %4885 = vmatprep.subr.mxu0 0.0
    %4886 = vmatpush1.msra.mxu0 0.0
    %4887 = vmatprep.subr.mxu0 0.0
    %4888 = vmatpush1.msra.mxu0 0.0
    %4889 = vmatprep.subr.mxu0 0.0
    %4890 = vmatpush1.msra.mxu0 0.0
    %4891 = vmatprep.mubr.f32.mxu0 0.0
    %4892 = vmatmul.mubr.f32.gmra.mrb[0].mxu0 %v4817
    %v4893 = vpop.f32.mrb[0].mxu0
    %v4894 = vadd.f32 0.0, %v4893
    %v4895 = vpop.f32.mrb[0].mxu0
    %4896 = vmatprep.mubr.f32.mxu0 0.0
    %4897 = vmatmul.mubr.f32.gmra.mrb[0].mxu0 %v4820
    %v4898 = vpop.f32.mrb[0].mxu0
    %v4899 = vadd.f32 0.0, %v4898
    %v4900 = vpop.f32.mrb[0].mxu0
    %4901 = vmatprep.mubr.f32.mxu0 0.0
    %4902 = vmatmul.mubr.f32.gmra.mrb[0].mxu0 %v4823
    %v4903 = vpop.f32.mrb[0].mxu0
    %v4904 = vadd.f32 0.0, %v4903
    %v4905 = vpop.f32.mrb[0].mxu0
    %4906 = vdwg.mxu0
    %4910 = vrot.lane.b32.xlu0 %v4894, 16
    %v4911 = vpop.permute.xlu0 %4910
    %4912 = vrot.lane.b32.xlu0 %v4899, 16
    %v4913 = vpop.permute.xlu0 %4912
    %4914 = vrot.lane.b32.xlu0 %v4904, 16
    %v4915 = vpop.permute.xlu0 %4914
    %4919 = vst.msk [vmem:[#allocation3 + $0x11] sm:$0xff] %vm1150, %v4911
    %4920 = vst.msk [vmem:[#allocation3 + $0x19] sm:$0xff] %vm1150, %v4913
    %4921 = vst.msk [vmem:[#allocation3 + $0x21] sm:$0x1] %vm1153, %v4915
    %4922 = vrot.lane.b32.xlu0 %v4184, 104
    %v4923 = vpop.permute.xlu0 %4922
    %4924 = vrot.lane.b32.xlu0 %v4186, 104
    %v4925 = vpop.permute.xlu0 %4924
    %4926 = vrot.lane.b32.xlu0 %v4185, 104
    %v4927 = vpop.permute.xlu0 %4926
    %4928 = vrot.lane.b32.xlu0 %v4184, 72
    %v4929 = vpop.permute.xlu0 %4928
    %4930 = vrot.lane.b32.xlu0 %v4186, 72
    %v4931 = vpop.permute.xlu0 %4930
    %4932 = vrot.lane.b32.xlu0 %v4185, 72
    %v4933 = vpop.permute.xlu0 %4932
    %v4934 = vsel %vm417, %v4923, 0
    %v4936 = vsel %vm417, %v4925, 0
    %v4938 = vsel %vm417, %v4927, 0
    %v4940 = vsel %vm417, %v4929, 0
    %v4942 = vsel %vm417, %v4931, 0
    %v4944 = vsel %vm417, %v4933, 0
    %4946 = vmatprep.subr.mxu0 0.0
    %4947 = vmatpush1.xpose.msra.mxu0 %v4940
    %4948 = vmatprep.subr.mxu0 0.0
    %4949 = vmatpush1.xpose.msra.mxu0 %v4942
    %4950 = vmatprep.subr.mxu0 0.0
    %4951 = vmatpush1.xpose.msra.mxu0 %v4944
    %4952 = vmatprep.subr.mxu0 0.0
    %4953 = vmatpush1.xpose.msra.mxu0 0.0
    %4954 = vmatprep.subr.mxu0 0.0
    %4955 = vmatpush1.xpose.msra.mxu0 0.0
    %4956 = vmatprep.subr.mxu0 0.0
    %4957 = vmatpush1.xpose.msra.mxu0 0.0
    %4958 = vmatprep.subr.mxu0 0.0
    %4959 = vmatpush1.xpose.msra.mxu0 0.0
    %4960 = vmatprep.subr.mxu0 0.0
    %4961 = vmatpush1.xpose.msra.mxu0 0.0
    %4962 = vmatprep.subr.mxu0 0.0
    %4963 = vmatpush1.xpose.msra.mxu0 0.0
    %4964 = vmatprep.subr.mxu0 0.0
    %4965 = vmatpush1.xpose.msra.mxu0 0.0
    %4966 = vmatprep.subr.mxu0 0.0
    %4967 = vmatpush1.xpose.msra.mxu0 0.0
    %4968 = vmatprep.subr.mxu0 0.0
    %4969 = vmatpush1.xpose.msra.mxu0 0.0
    %4970 = vmatprep.subr.mxu0 0.0
    %4971 = vmatpush1.xpose.msra.mxu0 0.0
    %4972 = vmatprep.subr.mxu0 0.0
    %4973 = vmatpush1.xpose.msra.mxu0 0.0
    %4974 = vmatprep.subr.mxu0 0.0
    %4975 = vmatpush1.xpose.msra.mxu0 0.0
    %4976 = vmatprep.subr.mxu0 0.0
    %4977 = vmatpush1.xpose.msra.mxu0 0.0
    %4978 = vmatprep.subr.mxu0 0.0
    %4979 = vmatpush1.xpose.msra.mxu0 0.0
    %4980 = vmatprep.subr.mxu0 0.0
    %4981 = vmatpush1.xpose.msra.mxu0 0.0
    %4982 = vmatprep.subr.mxu0 0.0
    %4983 = vmatpush1.xpose.msra.mxu0 0.0
    %4984 = vmatprep.subr.mxu0 0.0
    %4985 = vmatpush1.xpose.msra.mxu0 0.0
    %4986 = vmatprep.subr.mxu0 0.0
    %4987 = vmatpush1.xpose.msra.mxu0 0.0
    %4988 = vmatprep.subr.mxu0 0.0
    %4989 = vmatpush1.xpose.msra.mxu0 0.0
    %4990 = vmatprep.subr.mxu0 0.0
    %4991 = vmatpush1.xpose.msra.mxu0 0.0
    %4992 = vmatprep.subr.mxu0 0.0
    %4993 = vmatpush1.xpose.msra.mxu0 0.0
    %4994 = vmatprep.subr.mxu0 0.0
    %4995 = vmatpush1.xpose.msra.mxu0 0.0
    %4996 = vmatprep.subr.mxu0 0.0
    %4997 = vmatpush1.xpose.msra.mxu0 0.0
    %4998 = vmatprep.subr.mxu0 0.0
    %4999 = vmatpush1.xpose.msra.mxu0 0.0
    %5000 = vmatprep.subr.mxu0 0.0
    %5001 = vmatpush1.xpose.msra.mxu0 0.0
    %5002 = vmatprep.subr.mxu0 0.0
    %5003 = vmatpush1.xpose.msra.mxu0 0.0
    %5004 = vmatprep.subr.mxu0 0.0
    %5005 = vmatpush1.xpose.msra.mxu0 0.0
    %5006 = vmatprep.subr.mxu0 0.0
    %5007 = vmatpush1.xpose.msra.mxu0 0.0
    %5008 = vmatprep.subr.mxu0 0.0
    %5009 = vmatpush1.xpose.msra.mxu0 0.0
    %5010 = vmatprep.mubr.f32.mxu0 0.0
    %5011 = vmatmul.mubr.f32.gmra.mrb[0].mxu0 %v4934
    %v5012 = vpop.f32.mrb[0].mxu0
    %v5013 = vadd.f32 0.0, %v5012
    %v5014 = vpop.f32.mrb[0].mxu0
    %5015 = vmatprep.mubr.f32.mxu0 0.0
    %5016 = vmatmul.mubr.f32.gmra.mrb[0].mxu0 %v4936
    %v5017 = vpop.f32.mrb[0].mxu0
    %v5018 = vadd.f32 0.0, %v5017
    %v5019 = vpop.f32.mrb[0].mxu0
    %5020 = vmatprep.mubr.f32.mxu0 0.0
    %5021 = vmatmul.mubr.f32.gmra.mrb[0].mxu0 %v4938
    %v5022 = vpop.f32.mrb[0].mxu0
    %v5023 = vadd.f32 0.0, %v5022
    %v5024 = vpop.f32.mrb[0].mxu0
    %5025 = vdwg.mxu0
    %v5026 = vsel %vm510, %v5013, -inf
    %5027 = vmax.xlane.f32.xlu0 %v5026
    %v5028 = vpop.xlane.xlu0 %5027
    %v5029 = vsel %vm510, %v5018, -inf
    %5030 = vmax.xlane.f32.xlu0 %v5029
    %v5031 = vpop.xlane.xlu0 %5030
    %v5032 = vsel %vm517, %v5023, -inf
    %5033 = vmax.xlane.f32.xlu0 %v5032
    %v5034 = vpop.xlane.xlu0 %5033
    %v5035 = vsub.f32 %v5013, %v5028
    %v5036 = vsub.f32 %v5018, %v5031
    %v5037 = vsub.f32 %v5023, %v5034
    %v5038 = vmul.f32 %v5035, 1.442695
    %v5039 = vpow.pop %v5038
    %v5040 = vmul.f32 %v5036, 1.442695
    %v5041 = vpow.pop %v5040
    %v5042 = vmul.f32 %v5037, 1.442695
    %v5043 = vpow.pop %v5042
    %v5044 = vsel %vm510, %v5039, 0.0
    %5045 = vadd.xlane.f32.xlu0 %v5044
    %v5046 = vpop.xlane.xlu0 %5045
    %v5047 = vsel %vm510, %v5041, 0.0
    %5048 = vadd.xlane.f32.xlu0 %v5047
    %v5049 = vpop.xlane.xlu0 %5048
    %v5050 = vsel %vm517, %v5043, 0.0
    %5051 = vadd.xlane.f32.xlu0 %v5050
    %v5052 = vpop.xlane.xlu0 %5051
    %v5053 = vrcp.pop %v5046
    %v5054 = vrcp.pop %v5049
    %v5055 = vrcp.pop %v5052
    %v5056 = vmul.f32 %v5039, %v5053
    %v5057 = vmul.f32 %v5041, %v5054
    %v5058 = vmul.f32 %v5043, %v5055
    %5059 = vrot.lane.b32.xlu0 %v4184, 40
    %v5060 = vpop.permute.xlu0 %5059
    %5061 = vrot.lane.b32.xlu0 %v4186, 40
    %v5062 = vpop.permute.xlu0 %5061
    %5063 = vrot.lane.b32.xlu0 %v4185, 40
    %v5064 = vpop.permute.xlu0 %5063
    %v5068 = vsel %vm510, %v5056, 0
    %v5071 = vsel %vm510, %v5057, 0
    %v5074 = vsel %vm510, %v5058, 0
    %v5076 = vsel %vm562, %v5064, 0
    %5078 = vmatprep.subr.mxu0 0.0
    %5079 = vmatpush1.msra.mxu0 %v5060
    %5080 = vmatprep.subr.mxu0 0.0
    %5081 = vmatpush1.msra.mxu0 %v5062
    %5082 = vmatprep.subr.mxu0 0.0
    %5083 = vmatpush1.msra.mxu0 %v5076
    %5084 = vmatprep.subr.mxu0 0.0
    %5085 = vmatpush1.msra.mxu0 0.0
    %5086 = vmatprep.subr.mxu0 0.0
    %5087 = vmatpush1.msra.mxu0 0.0
    %5088 = vmatprep.subr.mxu0 0.0
    %5089 = vmatpush1.msra.mxu0 0.0
    %5090 = vmatprep.subr.mxu0 0.0
    %5091 = vmatpush1.msra.mxu0 0.0
    %5092 = vmatprep.subr.mxu0 0.0
    %5093 = vmatpush1.msra.mxu0 0.0
    %5094 = vmatprep.subr.mxu0 0.0
    %5095 = vmatpush1.msra.mxu0 0.0
    %5096 = vmatprep.subr.mxu0 0.0
    %5097 = vmatpush1.msra.mxu0 0.0
    %5098 = vmatprep.subr.mxu0 0.0
    %5099 = vmatpush1.msra.mxu0 0.0
    %5100 = vmatprep.subr.mxu0 0.0
    %5101 = vmatpush1.msra.mxu0 0.0
    %5102 = vmatprep.subr.mxu0 0.0
    %5103 = vmatpush1.msra.mxu0 0.0
    %5104 = vmatprep.subr.mxu0 0.0
    %5105 = vmatpush1.msra.mxu0 0.0
    %5106 = vmatprep.subr.mxu0 0.0
    %5107 = vmatpush1.msra.mxu0 0.0
    %5108 = vmatprep.subr.mxu0 0.0
    %5109 = vmatpush1.msra.mxu0 0.0
    %5110 = vmatprep.subr.mxu0 0.0
    %5111 = vmatpush1.msra.mxu0 0.0
    %5112 = vmatprep.subr.mxu0 0.0
    %5113 = vmatpush1.msra.mxu0 0.0
    %5114 = vmatprep.subr.mxu0 0.0
    %5115 = vmatpush1.msra.mxu0 0.0
    %5116 = vmatprep.subr.mxu0 0.0
    %5117 = vmatpush1.msra.mxu0 0.0
    %5118 = vmatprep.subr.mxu0 0.0
    %5119 = vmatpush1.msra.mxu0 0.0
    %5120 = vmatprep.subr.mxu0 0.0
    %5121 = vmatpush1.msra.mxu0 0.0
    %5122 = vmatprep.subr.mxu0 0.0
    %5123 = vmatpush1.msra.mxu0 0.0
    %5124 = vmatprep.subr.mxu0 0.0
    %5125 = vmatpush1.msra.mxu0 0.0
    %5126 = vmatprep.subr.mxu0 0.0
    %5127 = vmatpush1.msra.mxu0 0.0
    %5128 = vmatprep.subr.mxu0 0.0
    %5129 = vmatpush1.msra.mxu0 0.0
    %5130 = vmatprep.subr.mxu0 0.0
    %5131 = vmatpush1.msra.mxu0 0.0
    %5132 = vmatprep.subr.mxu0 0.0
    %5133 = vmatpush1.msra.mxu0 0.0
    %5134 = vmatprep.subr.mxu0 0.0
    %5135 = vmatpush1.msra.mxu0 0.0
    %5136 = vmatprep.subr.mxu0 0.0
    %5137 = vmatpush1.msra.mxu0 0.0
    %5138 = vmatprep.subr.mxu0 0.0
    %5139 = vmatpush1.msra.mxu0 0.0
    %5140 = vmatprep.subr.mxu0 0.0
    %5141 = vmatpush1.msra.mxu0 0.0
    %5142 = vmatprep.mubr.f32.mxu0 0.0
    %5143 = vmatmul.mubr.f32.gmra.mrb[0].mxu0 %v5068
    %v5144 = vpop.f32.mrb[0].mxu0
    %v5145 = vadd.f32 0.0, %v5144
    %v5146 = vpop.f32.mrb[0].mxu0
    %5147 = vmatprep.mubr.f32.mxu0 0.0
    %5148 = vmatmul.mubr.f32.gmra.mrb[0].mxu0 %v5071
    %v5149 = vpop.f32.mrb[0].mxu0
    %v5150 = vadd.f32 0.0, %v5149
    %v5151 = vpop.f32.mrb[0].mxu0
    %5152 = vmatprep.mubr.f32.mxu0 0.0
    %5153 = vmatmul.mubr.f32.gmra.mrb[0].mxu0 %v5074
    %v5154 = vpop.f32.mrb[0].mxu0
    %v5155 = vadd.f32 0.0, %v5154
    %v5156 = vpop.f32.mrb[0].mxu0
    %5157 = vdwg.mxu0
    %5161 = vrot.lane.b32.xlu0 %v5145, 24
    %v5162 = vpop.permute.xlu0 %5161
    %5163 = vrot.lane.b32.xlu0 %v5150, 24
    %v5164 = vpop.permute.xlu0 %5163
    %5165 = vrot.lane.b32.xlu0 %v5155, 24
    %v5166 = vpop.permute.xlu0 %5165
    %5170 = vst.msk [vmem:[#allocation3 + $0x11] sm:$0xff] %vm1403, %v5162
    %5171 = vst.msk [vmem:[#allocation3 + $0x19] sm:$0xff] %vm1403, %v5164
    %5172 = vst.msk [vmem:[#allocation3 + $0x21] sm:$0x1] %vm1406, %v5166
    %v5173 = vld [vmem:[#allocation3] sm:$0xff]
    %v5174 = vld [vmem:[#allocation3 + $0x8] sm:$0xff]
    %v5175 = vld [vmem:[#allocation3 + $0x10] sm:$0xff]
    %v5176 = vld [vmem:[#allocation3 + $0x18] sm:$0xff]
    %v5177 = vld [vmem:[#allocation3 + $0x20] sm:$0x3]
    %s5178 = scalar_lea.vmem %s8, 32
    %v5179 = vld [vmem:[%s5178] sm:$0xff]
    %v5180 = vld [vmem:[%s5178 + $0x8] sm:$0xff]
    %v5181 = vld [vmem:[%s5178 + $0x10] sm:$0xff]
    %v5182 = vld [vmem:[%s5178 + $0x18] sm:$0xff]
    %s5183 = scalar_lea.vmem %s9, 1
    %v5184 = vld [vmem:[%s5183] sm:$0x1]
    %v5186 = vlaneseq
    %v5187 = vshrl.u32 %v5186, 7
    %v5188 = vsub.s32 0, %v5187
    %v5189 = vrot.slane %v5184, %v5188
    %v5192 = vsel %vm195, %v5173, 0
    %v5195 = vsel %vm195, %v5174, 0
    %v5198 = vsel %vm195, %v5175, 0
    %v5201 = vsel %vm195, %v5176, 0
    %v5204 = vsel %vm195, %v5177, 0
    %5206 = vmatprep.subr.mxu0 0.0
    %5207 = vmatpush1.msra.mxu0 %v5179
    %5208 = vmatprep.subr.mxu0 0.0
    %5209 = vmatpush1.msra.mxu0 %v5180
    %5210 = vmatprep.subr.mxu0 0.0
    %5211 = vmatpush1.msra.mxu0 %v5181
    %5212 = vmatprep.subr.mxu0 0.0
    %5213 = vmatpush1.msra.mxu0 %v5182
    %5214 = vmatprep.subr.mxu0 0.0
    %5215 = vmatpush1.msra.mxu0 0.0
    %5216 = vmatprep.subr.mxu0 0.0
    %5217 = vmatpush1.msra.mxu0 0.0
    %5218 = vmatprep.subr.mxu0 0.0
    %5219 = vmatpush1.msra.mxu0 0.0
    %5220 = vmatprep.subr.mxu0 0.0
    %5221 = vmatpush1.msra.mxu0 0.0
    %5222 = vmatprep.subr.mxu0 0.0
    %5223 = vmatpush1.msra.mxu0 0.0
    %5224 = vmatprep.subr.mxu0 0.0
    %5225 = vmatpush1.msra.mxu0 0.0
    %5226 = vmatprep.subr.mxu0 0.0
    %5227 = vmatpush1.msra.mxu0 0.0
    %5228 = vmatprep.subr.mxu0 0.0
    %5229 = vmatpush1.msra.mxu0 0.0
    %5230 = vmatprep.subr.mxu0 0.0
    %5231 = vmatpush1.msra.mxu0 0.0
    %5232 = vmatprep.subr.mxu0 0.0
    %5233 = vmatpush1.msra.mxu0 0.0
    %5234 = vmatprep.subr.mxu0 0.0
    %5235 = vmatpush1.msra.mxu0 0.0
    %5236 = vmatprep.subr.mxu0 0.0
    %5237 = vmatpush1.msra.mxu0 0.0
    %5238 = vmatprep.subr.mxu0 0.0
    %5239 = vmatpush1.msra.mxu0 0.0
    %5240 = vmatprep.subr.mxu0 0.0
    %5241 = vmatpush1.msra.mxu0 0.0
    %5242 = vmatprep.subr.mxu0 0.0
    %5243 = vmatpush1.msra.mxu0 0.0
    %5244 = vmatprep.subr.mxu0 0.0
    %5245 = vmatpush1.msra.mxu0 0.0
    %5246 = vmatprep.subr.mxu0 0.0
    %5247 = vmatpush1.msra.mxu0 0.0
    %5248 = vmatprep.subr.mxu0 0.0
    %5249 = vmatpush1.msra.mxu0 0.0
    %5250 = vmatprep.subr.mxu0 0.0
    %5251 = vmatpush1.msra.mxu0 0.0
    %5252 = vmatprep.subr.mxu0 0.0
    %5253 = vmatpush1.msra.mxu0 0.0
    %5254 = vmatprep.subr.mxu0 0.0
    %5255 = vmatpush1.msra.mxu0 0.0
    %5256 = vmatprep.subr.mxu0 0.0
    %5257 = vmatpush1.msra.mxu0 0.0
    %5258 = vmatprep.subr.mxu0 0.0
    %5259 = vmatpush1.msra.mxu0 0.0
    %5260 = vmatprep.subr.mxu0 0.0
    %5261 = vmatpush1.msra.mxu0 0.0
    %5262 = vmatprep.subr.mxu0 0.0
    %5263 = vmatpush1.msra.mxu0 0.0
    %5264 = vmatprep.subr.mxu0 0.0
    %5265 = vmatpush1.msra.mxu0 0.0
    %5266 = vmatprep.subr.mxu0 0.0
    %5267 = vmatpush1.msra.mxu0 0.0
    %5268 = vmatprep.subr.mxu0 0.0
    %5269 = vmatpush1.msra.mxu0 0.0
    %5270 = vmatprep.mubr.f32.mxu0 0.0
    %5271 = vmatmul.mubr.f32.gmra.mrb[0].mxu0 %v5192
    %v5272 = vpop.f32.mrb[0].mxu0
    %v5273 = vadd.f32 %v5189, %v5272
    %v5274 = vpop.f32.mrb[0].mxu0
    %5275 = vmatprep.mubr.f32.mxu0 0.0
    %5276 = vmatmul.mubr.f32.gmra.mrb[0].mxu0 %v5195
    %v5277 = vpop.f32.mrb[0].mxu0
    %v5278 = vadd.f32 %v5189, %v5277
    %v5279 = vpop.f32.mrb[0].mxu0
    %5280 = vmatprep.mubr.f32.mxu0 0.0
    %5281 = vmatmul.mubr.f32.gmra.mrb[0].mxu0 %v5198
    %v5282 = vpop.f32.mrb[0].mxu0
    %v5283 = vadd.f32 %v5189, %v5282
    %v5284 = vpop.f32.mrb[0].mxu0
    %5285 = vmatprep.mubr.f32.mxu0 0.0
    %5286 = vmatmul.mubr.f32.gmra.mrb[0].mxu0 %v5201
    %v5287 = vpop.f32.mrb[0].mxu0
    %v5288 = vadd.f32 %v5189, %v5287
    %v5289 = vpop.f32.mrb[0].mxu0
    %5290 = vmatprep.mubr.f32.mxu0 0.0
    %5291 = vmatmul.mubr.f32.gmra.mrb[0].mxu0 %v5204
    %v5292 = vpop.f32.mrb[0].mxu0
    %v5293 = vadd.f32 %v5189, %v5292
    %v5294 = vpop.f32.mrb[0].mxu0
    %5295 = vdwg.mxu0
    %v5296 = vadd.f32 %v2985, %v5273
    %v5297 = vadd.f32 %v2986, %v5278
    %v5298 = vadd.f32 %v2987, %v5283
    %v5299 = vadd.f32 %v2988, %v5288
    %v5300 = vadd.f32 %v2989, %v5293
    %s5301 = scalar_lea.vmem %s10, 1
    %v5302 = vld [vmem:[%s5301] sm:$0x1]
    %s5303 = scalar_lea.vmem %s11, 1
    %v5304 = vld [vmem:[%s5303] sm:$0x1]
    %v5305 = vsel %vm195, %v5296, 0.0
    %5306 = vadd.xlane.f32.xlu0 %v5305
    %v5307 = vpop.xlane.xlu0 %5306
    %v5308 = vsel %vm195, %v5297, 0.0
    %5309 = vadd.xlane.f32.xlu0 %v5308
    %v5310 = vpop.xlane.xlu0 %5309
    %v5311 = vsel %vm195, %v5298, 0.0
    %5312 = vadd.xlane.f32.xlu0 %v5311
    %v5313 = vpop.xlane.xlu0 %5312
    %v5314 = vsel %vm195, %v5299, 0.0
    %5315 = vadd.xlane.f32.xlu0 %v5314
    %v5316 = vpop.xlane.xlu0 %5315
    %v5317 = vsel %vm222, %v5300, 0.0
    %5318 = vadd.xlane.f32.xlu0 %v5317
    %v5319 = vpop.xlane.xlu0 %5318
    %v5320 = vmul.f32 %v5307, %v226
    %v5321 = vmul.f32 %v5310, %v226
    %v5322 = vmul.f32 %v5313, %v226
    %v5323 = vmul.f32 %v5316, %v226
    %v5324 = vmul.f32 %v5319, %v226
    %v5325 = vsub.f32 %v5296, %v5320
    %v5326 = vsub.f32 %v5297, %v5321
    %v5327 = vsub.f32 %v5298, %v5322
    %v5328 = vsub.f32 %v5299, %v5323
    %v5329 = vsub.f32 %v5300, %v5324
    %v5330 = vmul.f32 %v5325, %v5325
    %v5331 = vmul.f32 %v5326, %v5326
    %v5332 = vmul.f32 %v5327, %v5327
    %v5333 = vmul.f32 %v5328, %v5328
    %v5334 = vmul.f32 %v5329, %v5329
    %v5335 = vsel %vm195, %v5330, 0.0
    %5336 = vadd.xlane.f32.xlu0 %v5335
    %v5337 = vpop.xlane.xlu0 %5336
    %v5338 = vsel %vm195, %v5331, 0.0
    %5339 = vadd.xlane.f32.xlu0 %v5338
    %v5340 = vpop.xlane.xlu0 %5339
    %v5341 = vsel %vm195, %v5332, 0.0
    %5342 = vadd.xlane.f32.xlu0 %v5341
    %v5343 = vpop.xlane.xlu0 %5342
    %v5344 = vsel %vm195, %v5333, 0.0
    %5345 = vadd.xlane.f32.xlu0 %v5344
    %v5346 = vpop.xlane.xlu0 %5345
    %v5347 = vsel %vm222, %v5334, 0.0
    %5348 = vadd.xlane.f32.xlu0 %v5347
    %v5349 = vpop.xlane.xlu0 %5348
    %v5350 = vmul.f32 %v5337, %v226
    %v5351 = vmul.f32 %v5340, %v226
    %v5352 = vmul.f32 %v5343, %v226
    %v5353 = vmul.f32 %v5346, %v226
    %v5354 = vmul.f32 %v5349, %v226
    %v5355 = vadd.f32 %v5350, 1e-05
    %v5356 = vadd.f32 %v5351, 1e-05
    %v5357 = vadd.f32 %v5352, 1e-05
    %v5358 = vadd.f32 %v5353, 1e-05
    %v5359 = vadd.f32 %v5354, 1e-05
    %v5360 = vrsqrt.pop %v5355
    %v5361 = vrsqrt.pop %v5356
    %v5362 = vrsqrt.pop %v5357
    %v5363 = vrsqrt.pop %v5358
    %v5364 = vrsqrt.pop %v5359
    %v5365 = vmul.f32 %v5325, %v5360
    %v5366 = vmul.f32 %v5326, %v5361
    %v5367 = vmul.f32 %v5327, %v5362
    %v5368 = vmul.f32 %v5328, %v5363
    %v5369 = vmul.f32 %v5329, %v5364
    %v5371 = vlaneseq
    %v5372 = vshrl.u32 %v5371, 7
    %v5373 = vsub.s32 0, %v5372
    %v5374 = vrot.slane %v5302, %v5373
    %v5376 = vmul.f32 %v5365, %v5374
    %v5377 = vmul.f32 %v5366, %v5374
    %v5378 = vmul.f32 %v5367, %v5374
    %v5379 = vmul.f32 %v5368, %v5374
    %v5380 = vmul.f32 %v5369, %v5374
    %v5382 = vlaneseq
    %v5383 = vshrl.u32 %v5382, 7
    %v5384 = vsub.s32 0, %v5383
    %v5385 = vrot.slane %v5304, %v5384
    %v5387 = vadd.f32 %v5376, %v5385
    %v5388 = vadd.f32 %v5377, %v5385
    %v5389 = vadd.f32 %v5378, %v5385
    %v5390 = vadd.f32 %v5379, %v5385
    %v5391 = vadd.f32 %v5380, %v5385
    %s5392 = scalar_lea.vmem %s12, 32
    %v5393 = vld [vmem:[%s5392] sm:$0xff]
    %v5394 = vld [vmem:[%s5392 + $0x8] sm:$0xff]
    %v5395 = vld [vmem:[%s5392 + $0x10] sm:$0xff]
    %v5396 = vld [vmem:[%s5392 + $0x18] sm:$0xff]
    %s5397 = scalar_lea.vmem %s13, 1
    %v5398 = vld [vmem:[%s5397] sm:$0x1]
    %v5400 = vlaneseq
    %v5401 = vshrl.u32 %v5400, 7
    %v5402 = vsub.s32 0, %v5401
    %v5403 = vrot.slane %v5398, %v5402
    %v5406 = vsel %vm195, %v5387, 0
    %v5409 = vsel %vm195, %v5388, 0
    %v5412 = vsel %vm195, %v5389, 0
    %v5415 = vsel %vm195, %v5390, 0
    %v5418 = vsel %vm195, %v5391, 0
    %5420 = vmatprep.subr.mxu0 0.0
    %5421 = vmatpush1.msra.mxu0 %v5393
    %5422 = vmatprep.subr.mxu0 0.0
    %5423 = vmatpush1.msra.mxu0 %v5394
    %5424 = vmatprep.subr.mxu0 0.0
    %5425 = vmatpush1.msra.mxu0 %v5395
    %5426 = vmatprep.subr.mxu0 0.0
    %5427 = vmatpush1.msra.mxu0 %v5396
    %5428 = vmatprep.subr.mxu0 0.0
    %5429 = vmatpush1.msra.mxu0 0.0
    %5430 = vmatprep.subr.mxu0 0.0
    %5431 = vmatpush1.msra.mxu0 0.0
    %5432 = vmatprep.subr.mxu0 0.0
    %5433 = vmatpush1.msra.mxu0 0.0
    %5434 = vmatprep.subr.mxu0 0.0
    %5435 = vmatpush1.msra.mxu0 0.0
    %5436 = vmatprep.subr.mxu0 0.0
    %5437 = vmatpush1.msra.mxu0 0.0
    %5438 = vmatprep.subr.mxu0 0.0
    %5439 = vmatpush1.msra.mxu0 0.0
    %5440 = vmatprep.subr.mxu0 0.0
    %5441 = vmatpush1.msra.mxu0 0.0
    %5442 = vmatprep.subr.mxu0 0.0
    %5443 = vmatpush1.msra.mxu0 0.0
    %5444 = vmatprep.subr.mxu0 0.0
    %5445 = vmatpush1.msra.mxu0 0.0
    %5446 = vmatprep.subr.mxu0 0.0
    %5447 = vmatpush1.msra.mxu0 0.0
    %5448 = vmatprep.subr.mxu0 0.0
    %5449 = vmatpush1.msra.mxu0 0.0
    %5450 = vmatprep.subr.mxu0 0.0
    %5451 = vmatpush1.msra.mxu0 0.0
    %5452 = vmatprep.subr.mxu0 0.0
    %5453 = vmatpush1.msra.mxu0 0.0
    %5454 = vmatprep.subr.mxu0 0.0
    %5455 = vmatpush1.msra.mxu0 0.0
    %5456 = vmatprep.subr.mxu0 0.0
    %5457 = vmatpush1.msra.mxu0 0.0
    %5458 = vmatprep.subr.mxu0 0.0
    %5459 = vmatpush1.msra.mxu0 0.0
    %5460 = vmatprep.subr.mxu0 0.0
    %5461 = vmatpush1.msra.mxu0 0.0
    %5462 = vmatprep.subr.mxu0 0.0
    %5463 = vmatpush1.msra.mxu0 0.0
    %5464 = vmatprep.subr.mxu0 0.0
    %5465 = vmatpush1.msra.mxu0 0.0
    %5466 = vmatprep.subr.mxu0 0.0
    %5467 = vmatpush1.msra.mxu0 0.0
    %5468 = vmatprep.subr.mxu0 0.0
    %5469 = vmatpush1.msra.mxu0 0.0
    %5470 = vmatprep.subr.mxu0 0.0
    %5471 = vmatpush1.msra.mxu0 0.0
    %5472 = vmatprep.subr.mxu0 0.0
    %5473 = vmatpush1.msra.mxu0 0.0
    %5474 = vmatprep.subr.mxu0 0.0
    %5475 = vmatpush1.msra.mxu0 0.0
    %5476 = vmatprep.subr.mxu0 0.0
    %5477 = vmatpush1.msra.mxu0 0.0
    %5478 = vmatprep.subr.mxu0 0.0
    %5479 = vmatpush1.msra.mxu0 0.0
    %5480 = vmatprep.subr.mxu0 0.0
    %5481 = vmatpush1.msra.mxu0 0.0
    %5482 = vmatprep.subr.mxu0 0.0
    %5483 = vmatpush1.msra.mxu0 0.0
    %5484 = vmatprep.mubr.f32.mxu0 0.0
    %5485 = vmatmul.mubr.f32.gmra.mrb[0].mxu0 %v5406
    %v5486 = vpop.f32.mrb[0].mxu0
    %v5487 = vadd.f32 %v5403, %v5486
    %v5488 = vpop.f32.mrb[0].mxu0
    %5489 = vmatprep.mubr.f32.mxu0 0.0
    %5490 = vmatmul.mubr.f32.gmra.mrb[0].mxu0 %v5409
    %v5491 = vpop.f32.mrb[0].mxu0
    %v5492 = vadd.f32 %v5403, %v5491
    %v5493 = vpop.f32.mrb[0].mxu0
    %5494 = vmatprep.mubr.f32.mxu0 0.0
    %5495 = vmatmul.mubr.f32.gmra.mrb[0].mxu0 %v5412
    %v5496 = vpop.f32.mrb[0].mxu0
    %v5497 = vadd.f32 %v5403, %v5496
    %v5498 = vpop.f32.mrb[0].mxu0
    %5499 = vmatprep.mubr.f32.mxu0 0.0
    %5500 = vmatmul.mubr.f32.gmra.mrb[0].mxu0 %v5415
    %v5501 = vpop.f32.mrb[0].mxu0
    %v5502 = vadd.f32 %v5403, %v5501
    %v5503 = vpop.f32.mrb[0].mxu0
    %5504 = vmatprep.mubr.f32.mxu0 0.0
    %5505 = vmatmul.mubr.f32.gmra.mrb[0].mxu0 %v5418
    %v5506 = vpop.f32.mrb[0].mxu0
    %v5507 = vadd.f32 %v5403, %v5506
    %v5508 = vpop.f32.mrb[0].mxu0
    %5509 = vdwg.mxu0
    %v5510 = vmul.f32 %v5487, 0.5
    %v5511 = vmul.f32 %v5492, 0.5
    %v5512 = vmul.f32 %v5497, 0.5
    %v5513 = vmul.f32 %v5502, 0.5
    %v5514 = vmul.f32 %v5507, 0.5
    %v5515 = vmul.f32 %v5487, 0.70710677
    %v5516 = vmul.f32 %v5492, 0.70710677
    %v5517 = vmul.f32 %v5497, 0.70710677
    %v5518 = vmul.f32 %v5502, 0.70710677
    %v5519 = vmul.f32 %v5507, 0.70710677
    %v5520 = vand.u32 2147483647, %v5515
    %v5521 = vand.u32 2147483647, %v5516
    %v5522 = vand.u32 2147483647, %v5517
    %v5523 = vand.u32 2147483647, %v5518
    %v5524 = vand.u32 2147483647, %v5519
    %v5525 = vmul.f32 %v5520, 0.3275911
    %v5526 = vmul.f32 %v5521, 0.3275911
    %v5527 = vmul.f32 %v5522, 0.3275911
    %v5528 = vmul.f32 %v5523, 0.3275911
    %v5529 = vmul.f32 %v5524, 0.3275911
    %v5530 = vadd.f32 %v5525, 1.0
    %v5531 = vadd.f32 %v5526, 1.0
    %v5532 = vadd.f32 %v5527, 1.0
    %v5533 = vadd.f32 %v5528, 1.0
    %v5534 = vadd.f32 %v5529, 1.0
    %v5535 = vrcp.pop %v5530
    %v5536 = vmul.f32 1.0, %v5535
    %v5537 = vrcp.pop %v5531
    %v5538 = vmul.f32 1.0, %v5537
    %v5539 = vrcp.pop %v5532
    %v5540 = vmul.f32 1.0, %v5539
    %v5541 = vrcp.pop %v5533
    %v5542 = vmul.f32 1.0, %v5541
    %v5543 = vrcp.pop %v5534
    %v5544 = vmul.f32 1.0, %v5543
    %v5545 = vmul.f32 %v5536, 1.0614054
    %v5546 = vmul.f32 %v5538, 1.0614054
    %v5547 = vmul.f32 %v5540, 1.0614054
    %v5548 = vmul.f32 %v5542, 1.0614054
    %v5549 = vmul.f32 %v5544, 1.0614054
    %v5550 = vadd.f32 %v5545, -1.4531521
    %v5551 = vadd.f32 %v5546, -1.4531521
    %v5552 = vadd.f32 %v5547, -1.4531521
    %v5553 = vadd.f32 %v5548, -1.4531521
    %v5554 = vadd.f32 %v5549, -1.4531521
    %v5555 = vmul.f32 %v5550, %v5536
    %v5556 = vmul.f32 %v5551, %v5538
    %v5557 = vmul.f32 %v5552, %v5540
    %v5558 = vmul.f32 %v5553, %v5542
    %v5559 = vmul.f32 %v5554, %v5544
    %v5560 = vadd.f32 %v5555, 1.4214138
    %v5561 = vadd.f32 %v5556, 1.4214138
    %v5562 = vadd.f32 %v5557, 1.4214138
    %v5563 = vadd.f32 %v5558, 1.4214138
    %v5564 = vadd.f32 %v5559, 1.4214138
    %v5565 = vmul.f32 %v5560, %v5536
    %v5566 = vmul.f32 %v5561, %v5538
    %v5567 = vmul.f32 %v5562, %v5540
    %v5568 = vmul.f32 %v5563, %v5542
    %v5569 = vmul.f32 %v5564, %v5544
    %v5570 = vadd.f32 %v5565, -0.28449672
    %v5571 = vadd.f32 %v5566, -0.28449672
    %v5572 = vadd.f32 %v5567, -0.28449672
    %v5573 = vadd.f32 %v5568, -0.28449672
    %v5574 = vadd.f32 %v5569, -0.28449672
    %v5575 = vmul.f32 %v5570, %v5536
    %v5576 = vmul.f32 %v5571, %v5538
    %v5577 = vmul.f32 %v5572, %v5540
    %v5578 = vmul.f32 %v5573, %v5542
    %v5579 = vmul.f32 %v5574, %v5544
    %v5580 = vadd.f32 %v5575, 0.2548296
    %v5581 = vadd.f32 %v5576, 0.2548296
    %v5582 = vadd.f32 %v5577, 0.2548296
    %v5583 = vadd.f32 %v5578, 0.2548296
    %v5584 = vadd.f32 %v5579, 0.2548296
    %v5585 = vmul.f32 %v5580, %v5536
    %v5586 = vmul.f32 %v5581, %v5538
    %v5587 = vmul.f32 %v5582, %v5540
    %v5588 = vmul.f32 %v5583, %v5542
    %v5589 = vmul.f32 %v5584, %v5544
    %v5590 = vsub.f32 0.0, %v5520
    %v5591 = vsub.f32 0.0, %v5521
    %v5592 = vsub.f32 0.0, %v5522
    %v5593 = vsub.f32 0.0, %v5523
    %v5594 = vsub.f32 0.0, %v5524
    %v5595 = vmul.f32 %v5590, %v5520
    %v5596 = vmul.f32 %v5591, %v5521
    %v5597 = vmul.f32 %v5592, %v5522
    %v5598 = vmul.f32 %v5593, %v5523
    %v5599 = vmul.f32 %v5594, %v5524
    %v5600 = vmul.f32 %v5595, 1.442695
    %v5601 = vpow.pop %v5600
    %v5602 = vmul.f32 %v5596, 1.442695
    %v5603 = vpow.pop %v5602
    %v5604 = vmul.f32 %v5597, 1.442695
    %v5605 = vpow.pop %v5604
    %v5606 = vmul.f32 %v5598, 1.442695
    %v5607 = vpow.pop %v5606
    %v5608 = vmul.f32 %v5599, 1.442695
    %v5609 = vpow.pop %v5608
    %v5610 = vmul.f32 %v5585, %v5601
    %v5611 = vmul.f32 %v5586, %v5603
    %v5612 = vmul.f32 %v5587, %v5605
    %v5613 = vmul.f32 %v5588, %v5607
    %v5614 = vmul.f32 %v5589, %v5609
    %v5615 = vsub.f32 1.0, %v5610
    %v5616 = vsub.f32 1.0, %v5611
    %v5617 = vsub.f32 1.0, %v5612
    %v5618 = vsub.f32 1.0, %v5613
    %v5619 = vsub.f32 1.0, %v5614
    %vm5620 = vcmp.ge.f32.partialorder %v5515, 0.0
    %vm5621 = vcmp.ge.f32.partialorder %v5516, 0.0
    %vm5622 = vcmp.ge.f32.partialorder %v5517, 0.0
    %vm5623 = vcmp.ge.f32.partialorder %v5518, 0.0
    %vm5624 = vcmp.ge.f32.partialorder %v5519, 0.0
    %v5625 = vsub.f32 0.0, %v5615
    %v5626 = vsub.f32 0.0, %v5616
    %v5627 = vsub.f32 0.0, %v5617
    %v5628 = vsub.f32 0.0, %v5618
    %v5629 = vsub.f32 0.0, %v5619
    %v5630 = vsel %vm5620, %v5615, %v5625
    %v5631 = vsel %vm5621, %v5616, %v5626
    %v5632 = vsel %vm5622, %v5617, %v5627
    %v5633 = vsel %vm5623, %v5618, %v5628
    %v5634 = vsel %vm5624, %v5619, %v5629
    %v5635 = vadd.f32 %v5630, 1.0
    %v5636 = vadd.f32 %v5631, 1.0
    %v5637 = vadd.f32 %v5632, 1.0
    %v5638 = vadd.f32 %v5633, 1.0
    %v5639 = vadd.f32 %v5634, 1.0
    %v5640 = vmul.f32 %v5510, %v5635
    %v5641 = vmul.f32 %v5511, %v5636
    %v5642 = vmul.f32 %v5512, %v5637
    %v5643 = vmul.f32 %v5513, %v5638
    %v5644 = vmul.f32 %v5514, %v5639
    %s5645 = scalar_lea.vmem %s14, 128
    %v5646 = vld [vmem:[%s5645] sm:$0xff]
    %v5647 = vld [vmem:[%s5645 + $0x8] sm:$0xff]
    %v5648 = vld [vmem:[%s5645 + $0x10] sm:$0xff]
    %v5649 = vld [vmem:[%s5645 + $0x18] sm:$0xff]
    %v5650 = vld [vmem:[%s5645 + $0x20] sm:$0xff]
    %v5651 = vld [vmem:[%s5645 + $0x28] sm:$0xff]
    %v5652 = vld [vmem:[%s5645 + $0x30] sm:$0xff]
    %v5653 = vld [vmem:[%s5645 + $0x38] sm:$0xff]
    %v5654 = vld [vmem:[%s5645 + $0x40] sm:$0xff]
    %v5655 = vld [vmem:[%s5645 + $0x48] sm:$0xff]
    %v5656 = vld [vmem:[%s5645 + $0x50] sm:$0xff]
    %v5657 = vld [vmem:[%s5645 + $0x58] sm:$0xff]
    %v5658 = vld [vmem:[%s5645 + $0x60] sm:$0xff]
    %v5659 = vld [vmem:[%s5645 + $0x68] sm:$0xff]
    %v5660 = vld [vmem:[%s5645 + $0x70] sm:$0xff]
    %v5661 = vld [vmem:[%s5645 + $0x78] sm:$0xff]
    %5662 = vmatprep.subr.mxu0 0.0
    %5663 = vmatpush1.msra.mxu0 %v5646
    %5664 = vmatprep.subr.mxu0 0.0
    %5665 = vmatpush1.msra.mxu0 %v5647
    %5666 = vmatprep.subr.mxu0 0.0
    %5667 = vmatpush1.msra.mxu0 %v5648
    %5668 = vmatprep.subr.mxu0 0.0
    %5669 = vmatpush1.msra.mxu0 %v5649
    %5670 = vmatprep.subr.mxu0 0.0
    %5671 = vmatpush1.msra.mxu0 %v5650
    %5672 = vmatprep.subr.mxu0 0.0
    %5673 = vmatpush1.msra.mxu0 %v5651
    %5674 = vmatprep.subr.mxu0 0.0
    %5675 = vmatpush1.msra.mxu0 %v5652
    %5676 = vmatprep.subr.mxu0 0.0
    %5677 = vmatpush1.msra.mxu0 %v5653
    %5678 = vmatprep.subr.mxu0 0.0
    %5679 = vmatpush1.msra.mxu0 %v5654
    %5680 = vmatprep.subr.mxu0 0.0
    %5681 = vmatpush1.msra.mxu0 %v5655
    %5682 = vmatprep.subr.mxu0 0.0
    %5683 = vmatpush1.msra.mxu0 %v5656
    %5684 = vmatprep.subr.mxu0 0.0
    %5685 = vmatpush1.msra.mxu0 %v5657
    %5686 = vmatprep.subr.mxu0 0.0
    %5687 = vmatpush1.msra.mxu0 %v5658
    %5688 = vmatprep.subr.mxu0 0.0
    %5689 = vmatpush1.msra.mxu0 %v5659
    %5690 = vmatprep.subr.mxu0 0.0
    %5691 = vmatpush1.msra.mxu0 %v5660
    %5692 = vmatprep.subr.mxu0 0.0
    %5693 = vmatpush1.msra.mxu0 %v5661
    %5694 = vmatprep.subr.mxu0 0.0
    %5695 = vmatpush1.msra.mxu0 0.0
    %5696 = vmatprep.subr.mxu0 0.0
    %5697 = vmatpush1.msra.mxu0 0.0
    %5698 = vmatprep.subr.mxu0 0.0
    %5699 = vmatpush1.msra.mxu0 0.0
    %5700 = vmatprep.subr.mxu0 0.0
    %5701 = vmatpush1.msra.mxu0 0.0
    %5702 = vmatprep.subr.mxu0 0.0
    %5703 = vmatpush1.msra.mxu0 0.0
    %5704 = vmatprep.subr.mxu0 0.0
    %5705 = vmatpush1.msra.mxu0 0.0
    %5706 = vmatprep.subr.mxu0 0.0
    %5707 = vmatpush1.msra.mxu0 0.0
    %5708 = vmatprep.subr.mxu0 0.0
    %5709 = vmatpush1.msra.mxu0 0.0
    %5710 = vmatprep.subr.mxu0 0.0
    %5711 = vmatpush1.msra.mxu0 0.0
    %5712 = vmatprep.subr.mxu0 0.0
    %5713 = vmatpush1.msra.mxu0 0.0
    %5714 = vmatprep.subr.mxu0 0.0
    %5715 = vmatpush1.msra.mxu0 0.0
    %5716 = vmatprep.subr.mxu0 0.0
    %5717 = vmatpush1.msra.mxu0 0.0
    %5718 = vmatprep.subr.mxu0 0.0
    %5719 = vmatpush1.msra.mxu0 0.0
    %5720 = vmatprep.subr.mxu0 0.0
    %5721 = vmatpush1.msra.mxu0 0.0
    %5722 = vmatprep.subr.mxu0 0.0
    %5723 = vmatpush1.msra.mxu0 0.0
    %5724 = vmatprep.subr.mxu0 0.0
    %5725 = vmatpush1.msra.mxu0 0.0
    %5726 = vmatprep.mubr.f32.mxu0 0.0
    %5727 = vmatmul.mubr.f32.gmra.mrb[0].mxu0 %v5640
    %v5728 = vpop.f32.mrb[0].mxu0
    %v5729 = vadd.f32 0.0, %v5728
    %v5730 = vpop.f32.mrb[0].mxu0
    %5731 = vmatprep.mubr.f32.mxu0 0.0
    %5732 = vmatmul.mubr.f32.gmra.mrb[0].mxu0 %v5641
    %v5733 = vpop.f32.mrb[0].mxu0
    %v5734 = vpop.f32.mrb[0].mxu0
    %5735 = vmatprep.mubr.f32.mxu0 0.0
    %5736 = vmatmul.mubr.f32.gmra.mrb[0].mxu0 %v5642
    %v5737 = vpop.f32.mrb[0].mxu0
    %v5738 = vadd.f32 0.0, %v5737
    %v5739 = vpop.f32.mrb[0].mxu0
    %5740 = vmatprep.mubr.f32.mxu0 0.0
    %5741 = vmatmul.mubr.f32.gmra.mrb[0].mxu0 %v5643
    %v5742 = vpop.f32.mrb[0].mxu0
    %v5743 = vpop.f32.mrb[0].mxu0
    %5744 = vmatprep.mubr.f32.mxu0 0.0
    %5745 = vmatmul.mubr.f32.gmra.mrb[0].mxu0 %v5644
    %v5746 = vpop.f32.mrb[0].mxu0
    %v5747 = vpop.f32.mrb[0].mxu0
    %5748 = vdwg.mxu0
    %v5749 = vadd.f32 %v5296, %v5729
    %v5750 = vadd.f32 %v5298, %v5738
    %s5751 = scalar_lea.vmem %s15, 1
    %v5752 = vld [vmem:[%s5751] sm:$0x1]
    %v5754 = vlaneseq
    %v5755 = vshrl.u32 %v5754, 7
    %v5756 = vsub.s32 0, %v5755
    %v5757 = vrot.slane %v5752, %v5756
    %v5759 = vadd.f32 %v5749, %v5757
    %v5760 = vadd.f32 %v5750, %v5757
    %v5761 = vld [vmem:[%s16] sm:$0x1]
    %v5762 = vld [vmem:[%s17] sm:$0x1]
    %v5763 = vsel %vm180, %v5759, 0.0
    %5764 = vadd.xlane.f32.xlu0 %v5763
    %v5765 = vpop.xlane.xlu0 %5764
    %v5766 = vmul.f32 %v5765, %v226
    %v5767 = vsub.f32 %v5759, %v5766
    %v5768 = vmul.f32 %v5767, %v5767
    %v5769 = vsel %vm180, %v5768, 0.0
    %5770 = vadd.xlane.f32.xlu0 %v5769
    %v5771 = vpop.xlane.xlu0 %5770
    %v5772 = vmul.f32 %v5771, %v226
    %v5773 = vadd.f32 %v5772, 1e-05
    %v5774 = vrsqrt.pop %v5773
    %v5775 = vmul.f32 %v5767, %v5774
    %v5776 = vmul.f32 %v5775, %v5761
    %v5777 = vadd.f32 %v5776, %v5762
    %5778 = vst.msk [vmem:[#allocation4] sm:$0x1] %vm180, %v5777
    %vm5779 = vcmask 254977
    %v5780 = vsel %vm5779, %v5760, 0.0
    %5781 = vadd.xlane.f32.xlu0 %v5780
    %v5782 = vpop.xlane.xlu0 %5781
    %v5783 = vmul.f32 %v5782, %v226
    %v5784 = vsub.f32 %v5760, %v5783
    %v5785 = vmul.f32 %v5784, %v5784
    %v5786 = vsel %vm5779, %v5785, 0.0
    %5787 = vadd.xlane.f32.xlu0 %v5786
    %v5788 = vpop.xlane.xlu0 %5787
    %v5789 = vmul.f32 %v5788, %v226
    %v5790 = vadd.f32 %v5789, 1e-05
    %v5791 = vrsqrt.pop %v5790
    %v5792 = vmul.f32 %v5784, %v5791
    %v5794 = vlaneseq
    %v5795 = vshrl.u32 %v5794, 7
    %v5796 = vsub.s32 0, %v5795
    %v5797 = vrot.slane %v5761, %v5796
    %v5799 = vmul.f32 %v5792, %v5797
    %v5801 = vlaneseq
    %v5802 = vshrl.u32 %v5801, 7
    %v5803 = vsub.s32 0, %v5802
    %v5804 = vrot.slane %v5762, %v5803
    %v5806 = vadd.f32 %v5799, %v5804
    %5807 = vst.msk [vmem:[#allocation4] sm:$0x2] %vm5779, %v5806
    // Predicated region
    $region74: #{vit_forward.1} parent=1 // pred_check
      _
    $region75: #{vit_forward.1} parent=1 // pred_check_branch
      %5809 = sbr.rel (0) target = $region77
    $region76: #{vit_forward.1} parent=1 // pred_region
      %s5811 = ssub.s32 32, 32
      %5812 = vsyncadd [#allocation5], %s5811
      %s5814 = sshll.u32 [#allocation4], 4
      %s5815 = int_to_ptr.vmem [resolvable:$true] %s5814
      %5817 = dma.vmem_to_hbm [thread:$0]  %s5815, 32, %s18, [#allocation5]
    $region77: #{vit_forward.1} parent=1 // pred_fallthru
      _
    // Predicated region
    $region78: #{vit_forward.1} parent=1 // pred_check
      _
    $region79: #{vit_forward.1} parent=1 // pred_check_branch
      %5819 = sbr.rel (0) target = $region81
    $region80: #{vit_forward.1} parent=1 // pred_region
      %5820 = dma.done [#allocation5], 32
    $region81: #{vit_forward.1} parent=1 // pred_fallthru
      _
    %5821 = vsyncpa [#allocation5], 1

</llo_original>
